<compile_context>
chip_gen: v6e
topology: v6e:2x2x1
jax: 0.10.0
libtpu: 0.0.40
codegen_flags: <defaults>
</compile_context>

<pallas_src>
import jax
import jax.numpy as jnp
from jax.experimental import pallas as pl
from jax.experimental.pallas import tpu as pltpu


def _sp_gat_kernel(ef_ref, lane_ref, mask_ref, xw1_ref, zsrc_ref, zdst_ref,
                   tew_ref, lam_ref, shw_ref, shb_ref,
                   watte_ref, va_ref,
                   w1e_ref, b1_ref, w2_ref, b2_ref, w3_ref, b3_ref,
                   out_ref):
    ef3d = ef_ref[...]                                # (TD, N, 3) = [distance, delta_t, period]
    td, n, _ = ef3d.shape
    e = td * n
    nl, th = tew_ref.shape
    nhid = zsrc_ref.shape[1]
    bf = jnp.bfloat16

    # flat per-edge rows (row index = d * N + s) — leading-dim collapse, layout-free
    ef = ef3d.reshape(e, 3)
    dt = ef[:, 1:2]                                   # (E, 1) delta_t
    lane = lane_ref[...].reshape(e, 1)                # (E, 1) int32 dst_lane

    # ---- EDGE_TE lane-table gather: NL-way compare/select chain on the VPU (no one-hot) ----
    tew = jnp.zeros((e, th), jnp.float32)
    lam = jnp.zeros((e, 1), jnp.float32)
    for l in range(nl):                               # nl is small & static -> unrolled
        sel = (lane == l).astype(jnp.float32)         # (E, 1)
        tew = tew + sel * tew_ref[l:l + 1, :]         # (E, TH)
        lam = lam + sel * lam_ref[l:l + 1, :]         # (E, 1)  (already exp(-TE_lam^2))

    arg_i = dt * tew                                  # per-lane individual frequencies
    arg_s = dt * shw_ref[...] + shb_ref[...]          # shared Linear(1, TH)
    # TODO(synk): on v6e/v7x these sin/cos/tanh could run in bf16 for 2x EUP rate; kept f32
    #             because v5e has no bf16 EUP/VPU path.
    et_sin = (1.0 - lam) * jnp.sin(arg_i) + lam * jnp.sin(arg_s)   # (E, TH)
    et_cos = (1.0 - lam) * jnp.cos(arg_i) + lam * jnp.cos(arg_s)   # (E, TH)

    # ---- attention logits: row-split edge projection (no lane concat), bf16 MXU operands ----
    z_e = jnp.dot(ef.astype(bf), watte_ref[0:3, :], preferred_element_type=jnp.float32)
    z_e = z_e + jnp.dot(et_sin.astype(bf), watte_ref[3:3 + th, :],
                        preferred_element_type=jnp.float32)
    z_e = z_e + jnp.dot(et_cos.astype(bf), watte_ref[3 + th:, :],
                        preferred_element_type=jnp.float32)        # (E, NHID), f32 accum
    z = z_e.reshape(td, n, nhid)
    z = z + zsrc_ref[...][None, :, :] + zdst_ref[...][:, None, :]  # hoisted node terms (+bias)
    z = jnp.tanh(z)
    att = jnp.sum(va_ref[...][None, :, :] * z, axis=-1)            # (TD, N)

    # ---- masked softmax over incoming edges (source axis on lanes) ----
    att = jnp.where(mask_ref[...] > 0.5, att, -1e9)
    att = att - jnp.max(att, axis=-1, keepdims=True)
    p = jnp.exp(att)
    alpha = p * pl.reciprocal(jnp.sum(p, axis=-1, keepdims=True), approx=True)   # (TD, N)

    # ---- aggregation: x-part on the MXU against hoisted x@w1[:F]; edge part aggregate-then-project ----
    term_x = jnp.dot(alpha.astype(bf), xw1_ref[...],
                     preferred_element_type=jnp.float32)            # (TD, NHID)

    alpha3 = alpha[:, :, None]                                      # (TD, N, 1)
    agg_ef = jnp.sum(alpha3 * ef3d, axis=1)                         # (TD, 3)
    agg_sin = jnp.sum(alpha3 * et_sin.reshape(td, n, th), axis=1)   # (TD, TH)
    agg_cos = jnp.sum(alpha3 * et_cos.reshape(td, n, th), axis=1)   # (TD, TH)
    term_e = jnp.dot(agg_ef, w1e_ref[0:3, :], preferred_element_type=jnp.float32)
    term_e = term_e + jnp.dot(agg_sin, w1e_ref[3:3 + th, :], preferred_element_type=jnp.float32)
    term_e = term_e + jnp.dot(agg_cos, w1e_ref[3 + th:, :], preferred_element_type=jnp.float32)

    # ---- mlp_out: Linear -> ReLU -> Linear -> ReLU -> Linear -> ReLU (tiny; f32) ----
    h = jnp.maximum(term_x + term_e + b1_ref[...], 0.0)
    h = jnp.maximum(jnp.dot(h, w2_ref[...], preferred_element_type=jnp.float32) + b2_ref[...], 0.0)
    h = jnp.maximum(jnp.dot(h, w3_ref[...], preferred_element_type=jnp.float32) + b3_ref[...], 0.0)

    out_ref[...] = h                                                # (TD, NHID)


def sp_graph_attention_layer(x, edge_feat, mask, params, tile_d=128):
    """Forward pass of SpGraphAttentionLayer (is_pred=False) on a dense masked graph."""
    (TE_w, TE_lam, shw, shb, watt, batt, va, w1, b1, w2, b2, w3, b3) = params
    N, F = x.shape
    NL, TH = TE_w.shape
    NHID = watt.shape[1]
    DE = 3 + 2 * TH

    # Tile of destination nodes per grid step.  Larger tiles amortize per-step overhead and
    # fill MXU rows; v7x (64 MiB VMEM) wants roughly half the tile of v5e/v6e (128 MiB).
    tile_d = min(tile_d, N)
    assert N % tile_d == 0, (N, tile_d)

    # --- hoisted loop-invariant precompute (tiny; done once, outside the grid) ---
    z_src = x @ watt[0:F]                               # (N, NHID) source-node attention term
    z_dst = x @ watt[F:2 * F] + batt                    # (N, NHID) dst-node term, bias folded in
    watt_e = watt[2 * F:].astype(jnp.bfloat16)          # (DE, NHID) edge rows of w_att (MXU bf16)
    xw1 = (x @ w1[0:F]).astype(jnp.bfloat16)            # (N, NHID)  hoisted x @ w1[:F]
    w1_e = w1[F:]                                       # (DE, NHID) edge rows of mlp L1
    lam_tab = jnp.exp(-jnp.square(TE_lam))              # (NL, 1)    exp(-TE_lam^2) per lane

    ef3 = edge_feat[..., 0:3]                           # (N, N, 3)  [distance, delta_t, period]
    lane_i = edge_feat[..., 3:4].astype(jnp.int32)      # (N, N, 1)  dst_lane as int32
    mask_f = mask.astype(jnp.float32)
    # TODO(synk): lane-dense (C, N, N) edge-feature planes (review item) were not adopted: the
    #             in-kernel lane->sublane relayout they require offsets the DMA win at these sizes.

    full = lambda shape: pl.BlockSpec(shape, lambda t, _s=shape: (0,) * len(_s))

    out = pl.pallas_call(
        _sp_gat_kernel,
        out_shape=jax.ShapeDtypeStruct((N, NHID), jnp.float32),
        grid=(N // tile_d,),
        in_specs=[
            pl.BlockSpec((tile_d, N, 3), lambda t: (t, 0, 0)),     # edge scalar features tile
            pl.BlockSpec((tile_d, N, 1), lambda t: (t, 0, 0)),     # dst_lane tile (int32)
            pl.BlockSpec((tile_d, N), lambda t: (t, 0)),           # mask tile
            full((N, NHID)),                                       # xw1 = x @ w1[:F] (resident)
            full((N, NHID)),                                       # z_src (resident)
            pl.BlockSpec((tile_d, NHID), lambda t: (t, 0)),        # z_dst tile
            full((NL, TH)),                                        # TE_w table
            full((NL, 1)),                                         # exp(-TE_lam^2) table
            full((1, TH)),                                         # sharedTE_w weight
            full((1, TH)),                                         # sharedTE_w bias
            full((DE, NHID)),                                      # w_att edge rows (bf16)
            full((1, NHID)),                                       # va
            full((DE, NHID)),                                      # w1 edge rows
            full((1, NHID)),                                       # b1
            full((NHID, NHID)), full((1, NHID)),                   # mlp L2
            full((NHID, NHID)), full((1, NHID)),                   # mlp L3
        ],
        out_specs=pl.BlockSpec((tile_d, NHID), lambda t: (t, 0)),
        compiler_params=pltpu.CompilerParams(
            dimension_semantics=("parallel",),
            vmem_limit_bytes=48 * 1024 * 1024,                     # allow large tile_d (safe < v7x 64 MiB)
        ),
    )(ef3, lane_i, mask_f, xw1, z_src, z_dst, TE_w, lam_tab, shw, shb,
      watt_e, va, w1_e, b1, w2, b2, w3, b3)

    return out


def ref_forward(x, edge_feat, mask, params):
    """Pure-JAX reference mirroring the PyTorch/DGL forward on the dense masked graph."""
    (TE_w, TE_lam, shw, shb, watt, batt, va, w1, b1, w2, b2, w3, b3) = params
    N, F = x.shape
    dt = edge_feat[..., 1:2]
    lane = edge_feat[..., 3].astype(jnp.int32)
    ret_w = TE_w[lane]
    ret_lam = TE_lam[lane]
    te_ind = jnp.concatenate([jnp.sin(dt * ret_w), jnp.cos(dt * ret_w)], axis=-1)
    sh = dt * shw + shb
    te_shared = jnp.concatenate([jnp.sin(sh), jnp.cos(sh)], axis=-1)
    lam = jnp.exp(-jnp.square(ret_lam))
    e_te = (1.0 - lam) * te_ind + lam * te_shared
    h_edge = jnp.concatenate([edge_feat[..., :3], e_te], axis=-1)
    x_src = jnp.broadcast_to(x[None, :, :], (N, N, F))   # [dst, src, F]
    x_dst = jnp.broadcast_to(x[:, None, :], (N, N, F))
    xa = jnp.concatenate([x_src, x_dst, h_edge], axis=-1)
    z = jnp.tanh(xa @ watt + batt[0])
    att = jnp.sum(va[0] * z, axis=-1)
    att = jnp.where(mask > 0.5, att, -1e9)
    att = att - att.max(axis=1, keepdims=True)
    p = jnp.exp(att)
    alpha = p / p.sum(axis=1, keepdims=True)
    msgs = jnp.concatenate([x_src, h_edge], axis=-1)
    h_att = jnp.sum(alpha[..., None] * msgs, axis=1)
    h = jax.nn.relu(h_att @ w1 + b1[0])
    h = jax.nn.relu(h @ w2 + b2[0])
    h = jax.nn.relu(h @ w3 + b3[0])
    return h


if __name__ == "__main__":
    # small shapes implied by the module: in_feat=2 per node, te_dim even, nhid hidden size
    N, IN_FEAT, NHID, TE_DIM, NUM_LANES = 16, 2, 32, 8, 4
    TE_HALF = TE_DIM // 2
    DIN_ATT = 2 * IN_FEAT + 3 + TE_DIM          # 4 + 3 + te_dim  (is_pred=False)
    DMSG = IN_FEAT + 3 + TE_DIM                 # 2 + 3 + te_dim

    key = jax.random.PRNGKey(0)
    ks = jax.random.split(key, 24)

    # --- inputs ---
    x = jax.random.normal(ks[0], (N, IN_FEAT), jnp.float32)
    dist = jax.random.uniform(ks[1], (N, N, 1), jnp.float32)
    dtv = jax.random.uniform(ks[2], (N, N, 1), jnp.float32, minval=0.1, maxval=2.0)
    period = jax.random.uniform(ks[3], (N, N, 1), jnp.float32)
    lane = jax.random.randint(ks[4], (N, N, 1), 0, NUM_LANES).astype(jnp.float32)
    edge_feat = jnp.concatenate([dist, dtv, period, lane], axis=-1)      # (N, N, 4)
    mask = (jax.random.uniform(ks[5], (N, N)) < 0.5).astype(jnp.float32)
    mask = jnp.maximum(mask, jnp.eye(N, dtype=jnp.float32))              # ensure >=1 in-edge/node

    # --- deterministic parameters (shapes from __init__) ---
    TE_w = 0.5 * jax.random.normal(ks[6], (NUM_LANES, TE_HALF), jnp.float32)
    TE_lam = 0.5 * jax.random.normal(ks[7], (NUM_LANES, 1), jnp.float32)
    shw = 0.5 * jax.random.normal(ks[8], (1, TE_HALF), jnp.float32)      # Linear(1, TE_HALF) weight
    shb = 0.1 * jax.random.normal(ks[9], (1, TE_HALF), jnp.float32)
    watt = jax.random.normal(ks[10], (DIN_ATT, NHID), jnp.float32) / jnp.sqrt(DIN_ATT)
    batt = 0.1 * jax.random.normal(ks[11], (1, NHID), jnp.float32)
    va = jax.random.normal(ks[12], (1, NHID), jnp.float32)
    w1 = jax.random.normal(ks[13], (DMSG, NHID), jnp.float32) / jnp.sqrt(DMSG)
    b1 = 0.1 * jax.random.normal(ks[14], (1, NHID), jnp.float32)
    w2 = jax.random.normal(ks[15], (NHID, NHID), jnp.float32) / jnp.sqrt(NHID)
    b2 = 0.1 * jax.random.normal(ks[16], (1, NHID), jnp.float32)
    w3 = jax.random.normal(ks[17], (NHID, NHID), jnp.float32) / jnp.sqrt(NHID)
    b3 = 0.1 * jax.random.normal(ks[18], (1, NHID), jnp.float32)
    params = (TE_w, TE_lam, shw, shb, watt, batt, va, w1, b1, w2, b2, w3, b3)

    # TODO(synk): dropout arg of the module is unused in its forward; nothing to port.

    # tile_d=8 keeps the grid at 2 steps for N=16 (both v7x cores busy); use 64-256 at real N.
    out = sp_graph_attention_layer(x, edge_feat, mask, params, tile_d=8)
    out = jax.block_until_ready(out)

    ref = jax.block_until_ready(ref_forward(x, edge_feat, mask, params))
    assert out.shape == (N, NHID), out.shape
    assert jnp.all(jnp.isfinite(out))
    assert jnp.allclose(out, ref, rtol=5e-2, atol=5e-2), float(jnp.max(jnp.abs(out - ref)))

    print("KERNEL_OK")
</pallas_src>

<mosaic_0001>
module attributes {stable_mosaic.version = 11 : i64} {
  func.func @_sp_gat_kernel(%arg0: i32, %arg1: memref<8x16x3xf32, #tpu.memory_space<vmem>>, %arg2: memref<8x16x1xi32, #tpu.memory_space<vmem>>, %arg3: memref<8x16xf32, #tpu.memory_space<vmem>>, %arg4: memref<16x32xbf16, #tpu.memory_space<vmem>>, %arg5: memref<16x32xf32, #tpu.memory_space<vmem>>, %arg6: memref<8x32xf32, #tpu.memory_space<vmem>>, %arg7: memref<4x4xf32, #tpu.memory_space<vmem>>, %arg8: memref<4x1xf32, #tpu.memory_space<vmem>>, %arg9: memref<1x4xf32, #tpu.memory_space<vmem>>, %arg10: memref<1x4xf32, #tpu.memory_space<vmem>>, %arg11: memref<11x32xbf16, #tpu.memory_space<vmem>>, %arg12: memref<1x32xf32, #tpu.memory_space<vmem>>, %arg13: memref<11x32xf32, #tpu.memory_space<vmem>>, %arg14: memref<1x32xf32, #tpu.memory_space<vmem>>, %arg15: memref<32x32xf32, #tpu.memory_space<vmem>>, %arg16: memref<1x32xf32, #tpu.memory_space<vmem>>, %arg17: memref<32x32xf32, #tpu.memory_space<vmem>>, %arg18: memref<1x32xf32, #tpu.memory_space<vmem>>, %arg19: memref<8x32xf32, #tpu.memory_space<vmem>>) attributes {dimension_semantics = [#tpu.dimension_semantics<parallel>], iteration_bounds = array<i64: 2>, scalar_prefetch = 0 : i64, scratch_operands = 0 : i64, tpu.core_type = #tpu.core_type<tc>, window_params = [{transform_indices = @transform_0, window_bounds = array<i64: 8, 16, 3>}, {transform_indices = @transform_1, window_bounds = array<i64: 8, 16, 1>}, {transform_indices = @transform_2, window_bounds = array<i64: 8, 16>}, {pipeline_mode = #tpu.pipeline_mode<synchronous>, transform_indices = @transform_3, window_bounds = array<i64: 16, 32>}, {pipeline_mode = #tpu.pipeline_mode<synchronous>, transform_indices = @transform_4, window_bounds = array<i64: 16, 32>}, {transform_indices = @transform_5, window_bounds = array<i64: 8, 32>}, {pipeline_mode = #tpu.pipeline_mode<synchronous>, transform_indices = @transform_6, window_bounds = array<i64: 4, 4>}, {pipeline_mode = #tpu.pipeline_mode<synchronous>, transform_indices = @transform_7, window_bounds = array<i64: 4, 1>}, {pipeline_mode = #tpu.pipeline_mode<synchronous>, transform_indices = @transform_8, window_bounds = array<i64: 1, 4>}, {pipeline_mode = #tpu.pipeline_mode<synchronous>, transform_indices = @transform_9, window_bounds = array<i64: 1, 4>}, {pipeline_mode = #tpu.pipeline_mode<synchronous>, transform_indices = @transform_10, window_bounds = array<i64: 11, 32>}, {pipeline_mode = #tpu.pipeline_mode<synchronous>, transform_indices = @transform_11, window_bounds = array<i64: 1, 32>}, {pipeline_mode = #tpu.pipeline_mode<synchronous>, transform_indices = @transform_12, window_bounds = array<i64: 11, 32>}, {pipeline_mode = #tpu.pipeline_mode<synchronous>, transform_indices = @transform_13, window_bounds = array<i64: 1, 32>}, {pipeline_mode = #tpu.pipeline_mode<synchronous>, transform_indices = @transform_14, window_bounds = array<i64: 32, 32>}, {pipeline_mode = #tpu.pipeline_mode<synchronous>, transform_indices = @transform_15, window_bounds = array<i64: 1, 32>}, {pipeline_mode = #tpu.pipeline_mode<synchronous>, transform_indices = @transform_16, window_bounds = array<i64: 32, 32>}, {pipeline_mode = #tpu.pipeline_mode<synchronous>, transform_indices = @transform_17, window_bounds = array<i64: 1, 32>}, {transform_indices = @transform_18, window_bounds = array<i64: 8, 32>}]} {
    %c0 = arith.constant 0 : index
    %c0_0 = arith.constant 0 : index
    %c0_1 = arith.constant 0 : index
    %0 = vector.load %arg1[%c0, %c0_0, %c0_1] : memref<8x16x3xf32, #tpu.memory_space<vmem>>, vector<8x16x3xf32>
    %1 = vector.shape_cast %0 : vector<8x16x3xf32> to vector<128x3xf32>
    %2 = vector.extract_strided_slice %1 {offsets = [0, 1], sizes = [128, 1], strides = [1, 1]} : vector<128x3xf32> to vector<128x1xf32>
    %c0_2 = arith.constant 0 : index
    %c0_3 = arith.constant 0 : index
    %c0_4 = arith.constant 0 : index
    %3 = vector.load %arg2[%c0_2, %c0_3, %c0_4] : memref<8x16x1xi32, #tpu.memory_space<vmem>>, vector<8x16x1xi32>
    %4 = vector.shape_cast %3 : vector<8x16x1xi32> to vector<128x1xi32>
    %cst = arith.constant 0.000000e+00 : f32
    %5 = vector.broadcast %cst : f32 to vector<128x4xf32>
    %cst_5 = arith.constant 0.000000e+00 : f32
    %6 = vector.broadcast %cst_5 : f32 to vector<128x1xf32>
    %c0_i32 = arith.constant 0 : i32
    %7 = vector.broadcast %c0_i32 : i32 to vector<128x1xi32>
    %8 = arith.cmpi eq, %4, %7 : vector<128x1xi32>
    %9 = arith.extui %8 : vector<128x1xi1> to vector<128x1xi32>
    %10 = arith.sitofp %9 : vector<128x1xi32> to vector<128x1xf32>
    %c0_6 = arith.constant 0 : index
    %c0_7 = arith.constant 0 : index
    %11 = vector.load %arg7[%c0_6, %c0_7] : memref<4x4xf32, #tpu.memory_space<vmem>>, vector<1x4xf32>
    %12 = vector.broadcast %10 : vector<128x1xf32> to vector<128x4xf32>
    %13 = vector.broadcast %11 : vector<1x4xf32> to vector<128x4xf32>
    %14 = arith.mulf %12, %13 : vector<128x4xf32>
    %15 = arith.addf %5, %14 : vector<128x4xf32>
    %c0_8 = arith.constant 0 : index
    %c0_9 = arith.constant 0 : index
    %16 = vector.load %arg8[%c0_8, %c0_9] : memref<4x1xf32, #tpu.memory_space<vmem>>, vector<1x1xf32>
    %17 = vector.broadcast %16 : vector<1x1xf32> to vector<128x1xf32>
    %18 = arith.mulf %10, %17 : vector<128x1xf32>
    %19 = arith.addf %6, %18 : vector<128x1xf32>
    %c1_i32 = arith.constant 1 : i32
    %20 = vector.broadcast %c1_i32 : i32 to vector<128x1xi32>
    %21 = arith.cmpi eq, %4, %20 : vector<128x1xi32>
    %22 = arith.extui %21 : vector<128x1xi1> to vector<128x1xi32>
    %23 = arith.sitofp %22 : vector<128x1xi32> to vector<128x1xf32>
    %c1 = arith.constant 1 : index
    %c0_10 = arith.constant 0 : index
    %24 = vector.load %arg7[%c1, %c0_10] : memref<4x4xf32, #tpu.memory_space<vmem>>, vector<1x4xf32>
    %25 = vector.broadcast %23 : vector<128x1xf32> to vector<128x4xf32>
    %26 = vector.broadcast %24 : vector<1x4xf32> to vector<128x4xf32>
    %27 = arith.mulf %25, %26 : vector<128x4xf32>
    %28 = arith.addf %15, %27 : vector<128x4xf32>
    %c1_11 = arith.constant 1 : index
    %c0_12 = arith.constant 0 : index
    %29 = vector.load %arg8[%c1_11, %c0_12] : memref<4x1xf32, #tpu.memory_space<vmem>>, vector<1x1xf32>
    %30 = vector.broadcast %29 : vector<1x1xf32> to vector<128x1xf32>
    %31 = arith.mulf %23, %30 : vector<128x1xf32>
    %32 = arith.addf %19, %31 : vector<128x1xf32>
    %c2_i32 = arith.constant 2 : i32
    %33 = vector.broadcast %c2_i32 : i32 to vector<128x1xi32>
    %34 = arith.cmpi eq, %4, %33 : vector<128x1xi32>
    %35 = arith.extui %34 : vector<128x1xi1> to vector<128x1xi32>
    %36 = arith.sitofp %35 : vector<128x1xi32> to vector<128x1xf32>
    %c2 = arith.constant 2 : index
    %c0_13 = arith.constant 0 : index
    %37 = vector.load %arg7[%c2, %c0_13] : memref<4x4xf32, #tpu.memory_space<vmem>>, vector<1x4xf32>
    %38 = vector.broadcast %36 : vector<128x1xf32> to vector<128x4xf32>
    %39 = vector.broadcast %37 : vector<1x4xf32> to vector<128x4xf32>
    %40 = arith.mulf %38, %39 : vector<128x4xf32>
    %41 = arith.addf %28, %40 : vector<128x4xf32>
    %c2_14 = arith.constant 2 : index
    %c0_15 = arith.constant 0 : index
    %42 = vector.load %arg8[%c2_14, %c0_15] : memref<4x1xf32, #tpu.memory_space<vmem>>, vector<1x1xf32>
    %43 = vector.broadcast %42 : vector<1x1xf32> to vector<128x1xf32>
    %44 = arith.mulf %36, %43 : vector<128x1xf32>
    %45 = arith.addf %32, %44 : vector<128x1xf32>
    %c3_i32 = arith.constant 3 : i32
    %46 = vector.broadcast %c3_i32 : i32 to vector<128x1xi32>
    %47 = arith.cmpi eq, %4, %46 : vector<128x1xi32>
    %48 = arith.extui %47 : vector<128x1xi1> to vector<128x1xi32>
    %49 = arith.sitofp %48 : vector<128x1xi32> to vector<128x1xf32>
    %c3 = arith.constant 3 : index
    %c0_16 = arith.constant 0 : index
    %50 = vector.load %arg7[%c3, %c0_16] : memref<4x4xf32, #tpu.memory_space<vmem>>, vector<1x4xf32>
    %51 = vector.broadcast %49 : vector<128x1xf32> to vector<128x4xf32>
    %52 = vector.broadcast %50 : vector<1x4xf32> to vector<128x4xf32>
    %53 = arith.mulf %51, %52 : vector<128x4xf32>
    %54 = arith.addf %41, %53 : vector<128x4xf32>
    %c3_17 = arith.constant 3 : index
    %c0_18 = arith.constant 0 : index
    %55 = vector.load %arg8[%c3_17, %c0_18] : memref<4x1xf32, #tpu.memory_space<vmem>>, vector<1x1xf32>
    %56 = vector.broadcast %55 : vector<1x1xf32> to vector<128x1xf32>
    %57 = arith.mulf %49, %56 : vector<128x1xf32>
    %58 = arith.addf %45, %57 : vector<128x1xf32>
    %59 = vector.broadcast %2 : vector<128x1xf32> to vector<128x4xf32>
    %60 = arith.mulf %59, %54 : vector<128x4xf32>
    %c0_19 = arith.constant 0 : index
    %c0_20 = arith.constant 0 : index
    %61 = vector.load %arg9[%c0_19, %c0_20] : memref<1x4xf32, #tpu.memory_space<vmem>>, vector<1x4xf32>
    %62 = vector.broadcast %2 : vector<128x1xf32> to vector<128x4xf32>
    %63 = vector.broadcast %61 : vector<1x4xf32> to vector<128x4xf32>
    %64 = arith.mulf %62, %63 : vector<128x4xf32>
    %c0_21 = arith.constant 0 : index
    %c0_22 = arith.constant 0 : index
    %65 = vector.load %arg10[%c0_21, %c0_22] : memref<1x4xf32, #tpu.memory_space<vmem>>, vector<1x4xf32>
    %66 = vector.broadcast %65 : vector<1x4xf32> to vector<128x4xf32>
    %67 = arith.addf %64, %66 : vector<128x4xf32>
    %cst_23 = arith.constant 1.000000e+00 : f32
    %68 = vector.broadcast %cst_23 : f32 to vector<128x1xf32>
    %69 = arith.subf %68, %58 : vector<128x1xf32>
    %70 = math.sin %60 : vector<128x4xf32>
    %71 = vector.broadcast %69 : vector<128x1xf32> to vector<128x4xf32>
    %72 = arith.mulf %71, %70 : vector<128x4xf32>
    %73 = math.sin %67 : vector<128x4xf32>
    %74 = vector.broadcast %58 : vector<128x1xf32> to vector<128x4xf32>
    %75 = arith.mulf %74, %73 : vector<128x4xf32>
    %76 = arith.addf %72, %75 : vector<128x4xf32>
    %cst_24 = arith.constant 1.000000e+00 : f32
    %77 = vector.broadcast %cst_24 : f32 to vector<128x1xf32>
    %78 = arith.subf %77, %58 : vector<128x1xf32>
    %79 = math.cos %60 : vector<128x4xf32>
    %80 = vector.broadcast %78 : vector<128x1xf32> to vector<128x4xf32>
    %81 = arith.mulf %80, %79 : vector<128x4xf32>
    %82 = math.cos %67 : vector<128x4xf32>
    %83 = vector.broadcast %58 : vector<128x1xf32> to vector<128x4xf32>
    %84 = arith.mulf %83, %82 : vector<128x4xf32>
    %85 = arith.addf %81, %84 : vector<128x4xf32>
    %86 = arith.truncf %1 : vector<128x3xf32> to vector<128x3xbf16>
    %c0_25 = arith.constant 0 : index
    %c0_26 = arith.constant 0 : index
    %87 = vector.load %arg11[%c0_25, %c0_26] : memref<11x32xbf16, #tpu.memory_space<vmem>>, vector<3x32xbf16>
    %cst_27 = arith.constant dense<0.000000e+00> : vector<128x32xf32>
    %88 = tpu.matmul %86, %87, %cst_27 {dimension_numbers = #tpu.dot_dimension_numbers<[1], [0], [0], [1], [0, 0, 1, 1], [], []>} : vector<128x3xbf16>, vector<3x32xbf16>, vector<128x32xf32> -> vector<128x32xf32>
    %89 = arith.truncf %76 : vector<128x4xf32> to vector<128x4xbf16>
    %c3_28 = arith.constant 3 : index
    %c0_29 = arith.constant 0 : index
    %90 = vector.load %arg11[%c3_28, %c0_29] : memref<11x32xbf16, #tpu.memory_space<vmem>>, vector<4x32xbf16>
    %cst_30 = arith.constant dense<0.000000e+00> : vector<128x32xf32>
    %91 = tpu.matmul %89, %90, %cst_30 {dimension_numbers = #tpu.dot_dimension_numbers<[1], [0], [0], [1], [0, 0, 1, 1], [], []>} : vector<128x4xbf16>, vector<4x32xbf16>, vector<128x32xf32> -> vector<128x32xf32>
    %92 = arith.addf %88, %91 : vector<128x32xf32>
    %93 = arith.truncf %85 : vector<128x4xf32> to vector<128x4xbf16>
    %c7 = arith.constant 7 : index
    %c0_31 = arith.constant 0 : index
    %94 = vector.load %arg11[%c7, %c0_31] : memref<11x32xbf16, #tpu.memory_space<vmem>>, vector<4x32xbf16>
    %cst_32 = arith.constant dense<0.000000e+00> : vector<128x32xf32>
    %95 = tpu.matmul %93, %94, %cst_32 {dimension_numbers = #tpu.dot_dimension_numbers<[1], [0], [0], [1], [0, 0, 1, 1], [], []>} : vector<128x4xbf16>, vector<4x32xbf16>, vector<128x32xf32> -> vector<128x32xf32>
    %96 = arith.addf %92, %95 : vector<128x32xf32>
    %97 = vector.shape_cast %96 : vector<128x32xf32> to vector<8x16x32xf32>
    %c0_33 = arith.constant 0 : index
    %c0_34 = arith.constant 0 : index
    %98 = vector.load %arg5[%c0_33, %c0_34] : memref<16x32xf32, #tpu.memory_space<vmem>>, vector<16x32xf32>
    %99 = vector.shape_cast %98 : vector<16x32xf32> to vector<1x16x32xf32>
    %100 = vector.broadcast %99 : vector<1x16x32xf32> to vector<8x16x32xf32>
    %101 = arith.addf %97, %100 : vector<8x16x32xf32>
    %c0_35 = arith.constant 0 : index
    %c0_36 = arith.constant 0 : index
    %102 = vector.load %arg6[%c0_35, %c0_36] : memref<8x32xf32, #tpu.memory_space<vmem>>, vector<8x32xf32>
    %103 = vector.shape_cast %102 : vector<8x32xf32> to vector<8x1x32xf32>
    %104 = vector.broadcast %103 : vector<8x1x32xf32> to vector<8x16x32xf32>
    %105 = arith.addf %101, %104 : vector<8x16x32xf32>
    %106 = math.tanh %105 : vector<8x16x32xf32>
    %c0_37 = arith.constant 0 : index
    %c0_38 = arith.constant 0 : index
    %107 = vector.load %arg12[%c0_37, %c0_38] : memref<1x32xf32, #tpu.memory_space<vmem>>, vector<1x32xf32>
    %108 = vector.shape_cast %107 : vector<1x32xf32> to vector<1x1x32xf32>
    %109 = vector.broadcast %108 : vector<1x1x32xf32> to vector<8x16x32xf32>
    %110 = arith.mulf %109, %106 : vector<8x16x32xf32>
    %cst_39 = arith.constant dense<0.000000e+00> : vector<8x16xf32>
    %111 = vector.multi_reduction <add>, %110, %cst_39 [2] : vector<8x16x32xf32> to vector<8x16xf32>
    %c0_40 = arith.constant 0 : index
    %c0_41 = arith.constant 0 : index
    %112 = vector.load %arg3[%c0_40, %c0_41] : memref<8x16xf32, #tpu.memory_space<vmem>>, vector<8x16xf32>
    %cst_42 = arith.constant 5.000000e-01 : f32
    %113 = vector.broadcast %cst_42 : f32 to vector<8x16xf32>
    %114 = arith.cmpf ogt, %112, %113 : vector<8x16xf32>
    %cst_43 = arith.constant -1.000000e+09 : f32
    %115 = vector.broadcast %cst_43 : f32 to vector<8x16xf32>
    %116 = arith.select %114, %111, %115 : vector<8x16xi1>, vector<8x16xf32>
    %cst_44 = arith.constant dense<0xFF800000> : vector<8xf32>
    %117 = vector.multi_reduction <maximumf>, %116, %cst_44 [1] : vector<8x16xf32> to vector<8xf32>
    %118 = vector.shape_cast %117 : vector<8xf32> to vector<8x1xf32>
    %119 = vector.broadcast %118 : vector<8x1xf32> to vector<8x16xf32>
    %120 = arith.subf %116, %119 : vector<8x16xf32>
    %121 = math.exp %120 : vector<8x16xf32>
    %cst_45 = arith.constant dense<0.000000e+00> : vector<8xf32>
    %122 = vector.multi_reduction <add>, %121, %cst_45 [1] : vector<8x16xf32> to vector<8xf32>
    %123 = vector.shape_cast %122 : vector<8xf32> to vector<8x1xf32>
    %124 = tpu.reciprocal %123 {approx = true} : vector<8x1xf32> -> vector<8x1xf32>
    %125 = vector.broadcast %124 : vector<8x1xf32> to vector<8x16xf32>
    %126 = arith.mulf %121, %125 : vector<8x16xf32>
    %127 = arith.truncf %126 : vector<8x16xf32> to vector<8x16xbf16>
    %c0_46 = arith.constant 0 : index
    %c0_47 = arith.constant 0 : index
    %128 = vector.load %arg4[%c0_46, %c0_47] : memref<16x32xbf16, #tpu.memory_space<vmem>>, vector<16x32xbf16>
    %cst_48 = arith.constant dense<0.000000e+00> : vector<8x32xf32>
    %129 = tpu.matmul %127, %128, %cst_48 {dimension_numbers = #tpu.dot_dimension_numbers<[1], [0], [0], [1], [0, 0, 1, 1], [], []>} : vector<8x16xbf16>, vector<16x32xbf16>, vector<8x32xf32> -> vector<8x32xf32>
    %130 = vector.shape_cast %126 : vector<8x16xf32> to vector<8x16x1xf32>
    %131 = vector.broadcast %130 : vector<8x16x1xf32> to vector<8x16x3xf32>
    %132 = arith.mulf %131, %0 : vector<8x16x3xf32>
    %cst_49 = arith.constant dense<0.000000e+00> : vector<8x3xf32>
    %133 = vector.multi_reduction <add>, %132, %cst_49 [1] : vector<8x16x3xf32> to vector<8x3xf32>
    %134 = vector.shape_cast %76 : vector<128x4xf32> to vector<8x16x4xf32>
    %135 = vector.broadcast %130 : vector<8x16x1xf32> to vector<8x16x4xf32>
    %136 = arith.mulf %135, %134 : vector<8x16x4xf32>
    %cst_50 = arith.constant dense<0.000000e+00> : vector<8x4xf32>
    %137 = vector.multi_reduction <add>, %136, %cst_50 [1] : vector<8x16x4xf32> to vector<8x4xf32>
    %138 = vector.shape_cast %85 : vector<128x4xf32> to vector<8x16x4xf32>
    %139 = vector.broadcast %130 : vector<8x16x1xf32> to vector<8x16x4xf32>
    %140 = arith.mulf %139, %138 : vector<8x16x4xf32>
    %cst_51 = arith.constant dense<0.000000e+00> : vector<8x4xf32>
    %141 = vector.multi_reduction <add>, %140, %cst_51 [1] : vector<8x16x4xf32> to vector<8x4xf32>
    %c0_52 = arith.constant 0 : index
    %c0_53 = arith.constant 0 : index
    %142 = vector.load %arg13[%c0_52, %c0_53] : memref<11x32xf32, #tpu.memory_space<vmem>>, vector<3x32xf32>
    %cst_54 = arith.constant dense<0.000000e+00> : vector<8x32xf32>
    %143 = tpu.matmul %133, %142, %cst_54 {dimension_numbers = #tpu.dot_dimension_numbers<[1], [0], [0], [1], [0, 0, 1, 1], [], []>} : vector<8x3xf32>, vector<3x32xf32>, vector<8x32xf32> -> vector<8x32xf32>
    %c3_55 = arith.constant 3 : index
    %c0_56 = arith.constant 0 : index
    %144 = vector.load %arg13[%c3_55, %c0_56] : memref<11x32xf32, #tpu.memory_space<vmem>>, vector<4x32xf32>
    %cst_57 = arith.constant dense<0.000000e+00> : vector<8x32xf32>
    %145 = tpu.matmul %137, %144, %cst_57 {dimension_numbers = #tpu.dot_dimension_numbers<[1], [0], [0], [1], [0, 0, 1, 1], [], []>} : vector<8x4xf32>, vector<4x32xf32>, vector<8x32xf32> -> vector<8x32xf32>
    %146 = arith.addf %143, %145 : vector<8x32xf32>
    %c7_58 = arith.constant 7 : index
    %c0_59 = arith.constant 0 : index
    %147 = vector.load %arg13[%c7_58, %c0_59] : memref<11x32xf32, #tpu.memory_space<vmem>>, vector<4x32xf32>
    %cst_60 = arith.constant dense<0.000000e+00> : vector<8x32xf32>
    %148 = tpu.matmul %141, %147, %cst_60 {dimension_numbers = #tpu.dot_dimension_numbers<[1], [0], [0], [1], [0, 0, 1, 1], [], []>} : vector<8x4xf32>, vector<4x32xf32>, vector<8x32xf32> -> vector<8x32xf32>
    %149 = arith.addf %146, %148 : vector<8x32xf32>
    %150 = arith.addf %129, %149 : vector<8x32xf32>
    %c0_61 = arith.constant 0 : index
    %c0_62 = arith.constant 0 : index
    %151 = vector.load %arg14[%c0_61, %c0_62] : memref<1x32xf32, #tpu.memory_space<vmem>>, vector<1x32xf32>
    %152 = vector.broadcast %151 : vector<1x32xf32> to vector<8x32xf32>
    %153 = arith.addf %150, %152 : vector<8x32xf32>
    %cst_63 = arith.constant 0.000000e+00 : f32
    %154 = vector.broadcast %cst_63 : f32 to vector<8x32xf32>
    %155 = arith.maximumf %153, %154 : vector<8x32xf32>
    %c0_64 = arith.constant 0 : index
    %c0_65 = arith.constant 0 : index
    %156 = vector.load %arg15[%c0_64, %c0_65] : memref<32x32xf32, #tpu.memory_space<vmem>>, vector<32x32xf32>
    %cst_66 = arith.constant dense<0.000000e+00> : vector<8x32xf32>
    %157 = tpu.matmul %155, %156, %cst_66 {dimension_numbers = #tpu.dot_dimension_numbers<[1], [0], [0], [1], [0, 0, 1, 1], [], []>} : vector<8x32xf32>, vector<32x32xf32>, vector<8x32xf32> -> vector<8x32xf32>
    %c0_67 = arith.constant 0 : index
    %c0_68 = arith.constant 0 : index
    %158 = vector.load %arg16[%c0_67, %c0_68] : memref<1x32xf32, #tpu.memory_space<vmem>>, vector<1x32xf32>
    %159 = vector.broadcast %158 : vector<1x32xf32> to vector<8x32xf32>
    %160 = arith.addf %157, %159 : vector<8x32xf32>
    %cst_69 = arith.constant 0.000000e+00 : f32
    %161 = vector.broadcast %cst_69 : f32 to vector<8x32xf32>
    %162 = arith.maximumf %160, %161 : vector<8x32xf32>
    %c0_70 = arith.constant 0 : index
    %c0_71 = arith.constant 0 : index
    %163 = vector.load %arg17[%c0_70, %c0_71] : memref<32x32xf32, #tpu.memory_space<vmem>>, vector<32x32xf32>
    %cst_72 = arith.constant dense<0.000000e+00> : vector<8x32xf32>
    %164 = tpu.matmul %162, %163, %cst_72 {dimension_numbers = #tpu.dot_dimension_numbers<[1], [0], [0], [1], [0, 0, 1, 1], [], []>} : vector<8x32xf32>, vector<32x32xf32>, vector<8x32xf32> -> vector<8x32xf32>
    %c0_73 = arith.constant 0 : index
    %c0_74 = arith.constant 0 : index
    %165 = vector.load %arg18[%c0_73, %c0_74] : memref<1x32xf32, #tpu.memory_space<vmem>>, vector<1x32xf32>
    %166 = vector.broadcast %165 : vector<1x32xf32> to vector<8x32xf32>
    %167 = arith.addf %164, %166 : vector<8x32xf32>
    %cst_75 = arith.constant 0.000000e+00 : f32
    %168 = vector.broadcast %cst_75 : f32 to vector<8x32xf32>
    %169 = arith.maximumf %167, %168 : vector<8x32xf32>
    %c0_76 = arith.constant 0 : index
    %c0_77 = arith.constant 0 : index
    %170 = vector.load %arg19[%c0_76, %c0_77] : memref<8x32xf32, #tpu.memory_space<vmem>>, vector<8x32xf32>
    tpu.vector_store %arg19[%c0_76, %c0_77], %169 {strides = array<i32>} : memref<8x32xf32, #tpu.memory_space<vmem>>, vector<8x32xf32>,
    return
  }
  func.func @transform_0(%arg0: i32) -> (i32, i32, i32) {
    %c0_i32 = arith.constant 0 : i32
    %c0_i32_0 = arith.constant 0 : i32
    %c0_i32_1 = arith.constant 0 : i32
    return %arg0, %c0_i32, %c0_i32_0 : i32, i32, i32
  }
  func.func @transform_1(%arg0: i32) -> (i32, i32, i32) {
    %c0_i32 = arith.constant 0 : i32
    %c0_i32_0 = arith.constant 0 : i32
    %c0_i32_1 = arith.constant 0 : i32
    return %arg0, %c0_i32, %c0_i32_0 : i32, i32, i32
  }
  func.func @transform_2(%arg0: i32) -> (i32, i32) {
    %c0_i32 = arith.constant 0 : i32
    %c0_i32_0 = arith.constant 0 : i32
    return %arg0, %c0_i32 : i32, i32
  }
  func.func @transform_3(%arg0: i32) -> (i32, i32) {
    %c0_i32 = arith.constant 0 : i32
    %c0_i32_0 = arith.constant 0 : i32
    %c0_i32_1 = arith.constant 0 : i32
    return %c0_i32, %c0_i32_0 : i32, i32
  }
  func.func @transform_4(%arg0: i32) -> (i32, i32) {
    %c0_i32 = arith.constant 0 : i32
    %c0_i32_0 = arith.constant 0 : i32
    %c0_i32_1 = arith.constant 0 : i32
    return %c0_i32, %c0_i32_0 : i32, i32
  }
  func.func @transform_5(%arg0: i32) -> (i32, i32) {
    %c0_i32 = arith.constant 0 : i32
    %c0_i32_0 = arith.constant 0 : i32
    return %arg0, %c0_i32 : i32, i32
  }
  func.func @transform_6(%arg0: i32) -> (i32, i32) {
    %c0_i32 = arith.constant 0 : i32
    %c0_i32_0 = arith.constant 0 : i32
    %c0_i32_1 = arith.constant 0 : i32
    return %c0_i32, %c0_i32_0 : i32, i32
  }
  func.func @transform_7(%arg0: i32) -> (i32, i32) {
    %c0_i32 = arith.constant 0 : i32
    %c0_i32_0 = arith.constant 0 : i32
    %c0_i32_1 = arith.constant 0 : i32
    return %c0_i32, %c0_i32_0 : i32, i32
  }
  func.func @transform_8(%arg0: i32) -> (i32, i32) {
    %c0_i32 = arith.constant 0 : i32
    %c0_i32_0 = arith.constant 0 : i32
    %c0_i32_1 = arith.constant 0 : i32
    return %c0_i32, %c0_i32_0 : i32, i32
  }
  func.func @transform_9(%arg0: i32) -> (i32, i32) {
    %c0_i32 = arith.constant 0 : i32
    %c0_i32_0 = arith.constant 0 : i32
    %c0_i32_1 = arith.constant 0 : i32
    return %c0_i32, %c0_i32_0 : i32, i32
  }
  func.func @transform_10(%arg0: i32) -> (i32, i32) {
    %c0_i32 = arith.constant 0 : i32
    %c0_i32_0 = arith.constant 0 : i32
    %c0_i32_1 = arith.constant 0 : i32
    return %c0_i32, %c0_i32_0 : i32, i32
  }
  func.func @transform_11(%arg0: i32) -> (i32, i32) {
    %c0_i32 = arith.constant 0 : i32
    %c0_i32_0 = arith.constant 0 : i32
    %c0_i32_1 = arith.constant 0 : i32
    return %c0_i32, %c0_i32_0 : i32, i32
  }
  func.func @transform_12(%arg0: i32) -> (i32, i32) {
    %c0_i32 = arith.constant 0 : i32
    %c0_i32_0 = arith.constant 0 : i32
    %c0_i32_1 = arith.constant 0 : i32
    return %c0_i32, %c0_i32_0 : i32, i32
  }
  func.func @transform_13(%arg0: i32) -> (i32, i32) {
    %c0_i32 = arith.constant 0 : i32
    %c0_i32_0 = arith.constant 0 : i32
    %c0_i32_1 = arith.constant 0 : i32
    return %c0_i32, %c0_i32_0 : i32, i32
  }
  func.func @transform_14(%arg0: i32) -> (i32, i32) {
    %c0_i32 = arith.constant 0 : i32
    %c0_i32_0 = arith.constant 0 : i32
    %c0_i32_1 = arith.constant 0 : i32
    return %c0_i32, %c0_i32_0 : i32, i32
  }
  func.func @transform_15(%arg0: i32) -> (i32, i32) {
    %c0_i32 = arith.constant 0 : i32
    %c0_i32_0 = arith.constant 0 : i32
    %c0_i32_1 = arith.constant 0 : i32
    return %c0_i32, %c0_i32_0 : i32, i32
  }
  func.func @transform_16(%arg0: i32) -> (i32, i32) {
    %c0_i32 = arith.constant 0 : i32
    %c0_i32_0 = arith.constant 0 : i32
    %c0_i32_1 = arith.constant 0 : i32
    return %c0_i32, %c0_i32_0 : i32, i32
  }
  func.func @transform_17(%arg0: i32) -> (i32, i32) {
    %c0_i32 = arith.constant 0 : i32
    %c0_i32_0 = arith.constant 0 : i32
    %c0_i32_1 = arith.constant 0 : i32
    return %c0_i32, %c0_i32_0 : i32, i32
  }
  func.func @transform_18(%arg0: i32) -> (i32, i32) {
    %c0_i32 = arith.constant 0 : i32
    %c0_i32_0 = arith.constant 0 : i32
    return %arg0, %c0_i32 : i32, i32
  }
}

</mosaic_0001>

<llo_original>
// kernel: tpu_custom_call.1
$region0: #{tpu_custom_call.1}
  #allocation0 [shape = 'u32[]', space=smem, size = 0x4, offset = 0x4, fixed_abs, tag = 'smem constant byte address 0x4 - core index']
  #allocation1 [shape = 'u32[144,128]{1,0:T(1,128)}', space=vmem, size = 0x12000, scoped, tag = 'internal scratch']
  %s0 = inlined_call_operand.vmem [shape: f32[16,16,3], index: 0, kind: input, shape index: {}]
  %s1 = inlined_call_operand.vmem [shape: s32[16,16,1], index: 1, kind: input, shape index: {}]
  %s2 = inlined_call_operand.vmem [shape: f32[16,16], index: 2, kind: input, shape index: {}]
  %s3 = inlined_call_operand.vmem [shape: bf16[16,32], index: 3, kind: input, shape index: {}]
  %s4 = inlined_call_operand.vmem [shape: f32[16,32], index: 4, kind: input, shape index: {}]
  %s5 = inlined_call_operand.vmem [shape: f32[16,32], index: 5, kind: input, shape index: {}]
  %s6 = inlined_call_operand.vmem [shape: f32[4,4], index: 6, kind: input, shape index: {}]
  %s7 = inlined_call_operand.vmem [shape: f32[4,1], index: 7, kind: input, shape index: {}]
  %s8 = inlined_call_operand.vmem [shape: f32[1,4], index: 8, kind: input, shape index: {}]
  %s9 = inlined_call_operand.vmem [shape: f32[1,4], index: 9, kind: input, shape index: {}]
  %s10 = inlined_call_operand.vmem [shape: bf16[11,32], index: 10, kind: input, shape index: {}]
  %s11 = inlined_call_operand.vmem [shape: f32[1,32], index: 11, kind: input, shape index: {}]
  %s12 = inlined_call_operand.vmem [shape: f32[11,32], index: 12, kind: input, shape index: {}]
  %s13 = inlined_call_operand.vmem [shape: f32[1,32], index: 13, kind: input, shape index: {}]
  %s14 = inlined_call_operand.vmem [shape: f32[32,32], index: 14, kind: input, shape index: {}]
  %s15 = inlined_call_operand.vmem [shape: f32[1,32], index: 15, kind: input, shape index: {}]
  %s16 = inlined_call_operand.vmem [shape: f32[32,32], index: 16, kind: input, shape index: {}]
  %s17 = inlined_call_operand.vmem [shape: f32[1,32], index: 17, kind: input, shape index: {}]
  %s18 = inlined_call_operand.hbm [shape: f32[16,32], index: 18, kind: output, shape index: {}]
  %s19 = sld [smem:[#allocation0]]
  $region105: #{tpu_custom_call.1} parent=0
    _
  %s21 = ssub.s32 1, %s19
  %s22 = scalar_select 0, %s21, %s19
  $region1: #{tpu_custom_call.1} parent=0
    #allocation2 [shape = 'u8[8192]{0}', space=vmem, size = 0x2000, scoped, tag = 'output window, operand 0']
    #allocation3 [shape = 's32[2]{0}', space=sflag, size = 0x8, scoped, tag = 'scoped memory for tpu_custom_call.1']
    %23 = vsyncpa [#allocation3], 0
    %s24 = scalar_lea.sflag [#allocation3], 1
    %25 = vsyncpa %s24, 0
    loop: start=0, step=1, limit=4
    $region2: #{tpu_custom_call.1} parent=1 // loop_pre_header
      _
    $region3: #{tpu_custom_call.1} parent=1 // loop_header
      %s27 = sphi 0, %s31
      %p28 = scmp.ge.s32.totalorder %s27, 4
      %s37 = sphi 0, %s39
      %s40 = sphi 0, %s37
      %s41 = sphi 0, %s40
      %s57 = sphi 0, %s41
      %s63 = sphi 0, %s65
      %s66 = sphi 0, %s63
      %s67 = sphi 0, %s66
      %s83 = sphi 0, %s67
      %s89 = sphi 0, %s91
      %s92 = sphi 0, %s89
      %s93 = sphi 0, %s92
      %s109 = sphi 0, %s93
      %s113 = sphi 0, %s113
      %s115 = sphi 0, %s113
      %s116 = sphi 0, %s115
      %s130 = sphi 0, %s116
      %s134 = sphi 0, %s134
      %s136 = sphi 0, %s134
      %s137 = sphi 0, %s136
      %s151 = sphi 0, %s137
      %s157 = sphi 0, %s159
      %s160 = sphi 0, %s157
      %s161 = sphi 0, %s160
      %s177 = sphi 0, %s161
      %s181 = sphi 0, %s181
      %s183 = sphi 0, %s181
      %s184 = sphi 0, %s183
      %s198 = sphi 0, %s184
      %s202 = sphi 0, %s202
      %s204 = sphi 0, %s202
      %s205 = sphi 0, %s204
      %s219 = sphi 0, %s205
      %s223 = sphi 0, %s223
      %s225 = sphi 0, %s223
      %s226 = sphi 0, %s225
      %s240 = sphi 0, %s226
      %s244 = sphi 0, %s244
      %s246 = sphi 0, %s244
      %s247 = sphi 0, %s246
      %s261 = sphi 0, %s247
      %s265 = sphi 0, %s265
      %s267 = sphi 0, %s265
      %s268 = sphi 0, %s267
      %s282 = sphi 0, %s268
      %s286 = sphi 0, %s286
      %s288 = sphi 0, %s286
      %s289 = sphi 0, %s288
      %s303 = sphi 0, %s289
      %s307 = sphi 0, %s307
      %s309 = sphi 0, %s307
      %s310 = sphi 0, %s309
      %s324 = sphi 0, %s310
      %s328 = sphi 0, %s328
      %s330 = sphi 0, %s328
      %s331 = sphi 0, %s330
      %s345 = sphi 0, %s331
      %s349 = sphi 0, %s349
      %s351 = sphi 0, %s349
      %s352 = sphi 0, %s351
      %s366 = sphi 0, %s352
      %s370 = sphi 0, %s370
      %s372 = sphi 0, %s370
      %s373 = sphi 0, %s372
      %s387 = sphi 0, %s373
      %s391 = sphi 0, %s391
      %s393 = sphi 0, %s391
      %s394 = sphi 0, %s393
      %s408 = sphi 0, %s394
      %s412 = sphi 0, %s412
      %s414 = sphi 0, %s412
      %s415 = sphi 0, %s414
      %s429 = sphi 0, %s415
      %s435 = sphi 0, %s437
      %s438 = sphi 0, %s435
      %s439 = sphi 0, %s438
      %s455 = sphi 0, %s439
    $region4: #{tpu_custom_call.1} parent=1 // loop_header_branch
      %30 = sbr.rel (%p28) target = $region8
    $region5: #{tpu_custom_call.1} parent=1 // loop_body
      %s32 = ssub.s32 %s27, 1
      %s33 = ssub.s32 %s27, 2
      %s34 = sadd.s32 %s27, 1
      %s35 = ssub.s32 %s27, %s34
      %p36 = scmp.eq.s32.totalorder %s35, 0
      %s38 = sadd.s32 %s37, 1
      %s39 = scalar_select %p36, %s37, %s38
      %p42 = pneg %p36
      %p43 = scmp.eq.s32.totalorder %s27, 1
      %p44 = por %p42, %p43
      %p45 = scmp.ne.s32.totalorder %s37, %s40
      %p46 = scmp.eq.s32.totalorder %s27, 0
      %p47 = por %p45, %p46
      %p48 = scmp.ne.s32.totalorder %s37, %s40
      %p49 = scmp.eq.s32.totalorder %s32, 1
      %p50 = por %p48, %p49
      %p51 = scmp.ne.s32.totalorder %s40, %s41
      %p52 = scmp.eq.s32.totalorder %s32, 0
      %p53 = por %p51, %p52
      %p54 = scmp.ne.s32.totalorder %s40, %s41
      %p55 = scmp.eq.s32.totalorder %s33, 1
      %p56 = por %p54, %p55
      %p58 = scmp.ne.s32.totalorder %s41, %s57
      %p59 = scmp.eq.s32.totalorder %s33, 0
      %p60 = por %p58, %p59
      %s61 = ssub.s32 %s27, %s34
      %p62 = scmp.eq.s32.totalorder %s61, 0
      %s64 = sadd.s32 %s63, 1
      %s65 = scalar_select %p62, %s63, %s64
      %p68 = pneg %p62
      %p69 = scmp.eq.s32.totalorder %s27, 1
      %p70 = por %p68, %p69
      %p71 = scmp.ne.s32.totalorder %s63, %s66
      %p72 = scmp.eq.s32.totalorder %s27, 0
      %p73 = por %p71, %p72
      %p74 = scmp.ne.s32.totalorder %s63, %s66
      %p75 = scmp.eq.s32.totalorder %s32, 1
      %p76 = por %p74, %p75
      %p77 = scmp.ne.s32.totalorder %s66, %s67
      %p78 = scmp.eq.s32.totalorder %s32, 0
      %p79 = por %p77, %p78
      %p80 = scmp.ne.s32.totalorder %s66, %s67
      %p81 = scmp.eq.s32.totalorder %s33, 1
      %p82 = por %p80, %p81
      %p84 = scmp.ne.s32.totalorder %s67, %s83
      %p85 = scmp.eq.s32.totalorder %s33, 0
      %p86 = por %p84, %p85
      %s87 = ssub.s32 %s27, %s34
      %p88 = scmp.eq.s32.totalorder %s87, 0
      %s90 = sadd.s32 %s89, 1
      %s91 = scalar_select %p88, %s89, %s90
      %p94 = pneg %p88
      %p95 = scmp.eq.s32.totalorder %s27, 1
      %p96 = por %p94, %p95
      %p97 = scmp.ne.s32.totalorder %s89, %s92
      %p98 = scmp.eq.s32.totalorder %s27, 0
      %p99 = por %p97, %p98
      %p100 = scmp.ne.s32.totalorder %s89, %s92
      %p101 = scmp.eq.s32.totalorder %s32, 1
      %p102 = por %p100, %p101
      %p103 = scmp.ne.s32.totalorder %s92, %s93
      %p104 = scmp.eq.s32.totalorder %s32, 0
      %p105 = por %p103, %p104
      %p106 = scmp.ne.s32.totalorder %s92, %s93
      %p107 = scmp.eq.s32.totalorder %s33, 1
      %p108 = por %p106, %p107
      %p110 = scmp.ne.s32.totalorder %s93, %s109
      %p111 = scmp.eq.s32.totalorder %s33, 0
      %p112 = por %p110, %p111
      %s114 = sadd.s32 %s113, 1
      %p117 = scmp.eq.s32.totalorder %s27, 1
      %p118 = scmp.ne.s32.totalorder %s113, %s115
      %p119 = scmp.eq.s32.totalorder %s27, 0
      %p120 = por %p118, %p119
      %p121 = scmp.ne.s32.totalorder %s113, %s115
      %p122 = scmp.eq.s32.totalorder %s32, 1
      %p123 = por %p121, %p122
      %p124 = scmp.ne.s32.totalorder %s115, %s116
      %p125 = scmp.eq.s32.totalorder %s32, 0
      %p126 = por %p124, %p125
      %p127 = scmp.ne.s32.totalorder %s115, %s116
      %p128 = scmp.eq.s32.totalorder %s33, 1
      %p129 = por %p127, %p128
      %p131 = scmp.ne.s32.totalorder %s116, %s130
      %p132 = scmp.eq.s32.totalorder %s33, 0
      %p133 = por %p131, %p132
      %s135 = sadd.s32 %s134, 1
      %p138 = scmp.eq.s32.totalorder %s27, 1
      %p139 = scmp.ne.s32.totalorder %s134, %s136
      %p140 = scmp.eq.s32.totalorder %s27, 0
      %p141 = por %p139, %p140
      %p142 = scmp.ne.s32.totalorder %s134, %s136
      %p143 = scmp.eq.s32.totalorder %s32, 1
      %p144 = por %p142, %p143
      %p145 = scmp.ne.s32.totalorder %s136, %s137
      %p146 = scmp.eq.s32.totalorder %s32, 0
      %p147 = por %p145, %p146
      %p148 = scmp.ne.s32.totalorder %s136, %s137
      %p149 = scmp.eq.s32.totalorder %s33, 1
      %p150 = por %p148, %p149
      %p152 = scmp.ne.s32.totalorder %s137, %s151
      %p153 = scmp.eq.s32.totalorder %s33, 0
      %p154 = por %p152, %p153
      %s155 = ssub.s32 %s27, %s34
      %p156 = scmp.eq.s32.totalorder %s155, 0
      %s158 = sadd.s32 %s157, 1
      %s159 = scalar_select %p156, %s157, %s158
      %p162 = pneg %p156
      %p163 = scmp.eq.s32.totalorder %s27, 1
      %p164 = por %p162, %p163
      %p165 = scmp.ne.s32.totalorder %s157, %s160
      %p166 = scmp.eq.s32.totalorder %s27, 0
      %p167 = por %p165, %p166
      %p168 = scmp.ne.s32.totalorder %s157, %s160
      %p169 = scmp.eq.s32.totalorder %s32, 1
      %p170 = por %p168, %p169
      %p171 = scmp.ne.s32.totalorder %s160, %s161
      %p172 = scmp.eq.s32.totalorder %s32, 0
      %p173 = por %p171, %p172
      %p174 = scmp.ne.s32.totalorder %s160, %s161
      %p175 = scmp.eq.s32.totalorder %s33, 1
      %p176 = por %p174, %p175
      %p178 = scmp.ne.s32.totalorder %s161, %s177
      %p179 = scmp.eq.s32.totalorder %s33, 0
      %p180 = por %p178, %p179
      %s182 = sadd.s32 %s181, 1
      %p185 = scmp.eq.s32.totalorder %s27, 1
      %p186 = scmp.ne.s32.totalorder %s181, %s183
      %p187 = scmp.eq.s32.totalorder %s27, 0
      %p188 = por %p186, %p187
      %p189 = scmp.ne.s32.totalorder %s181, %s183
      %p190 = scmp.eq.s32.totalorder %s32, 1
      %p191 = por %p189, %p190
      %p192 = scmp.ne.s32.totalorder %s183, %s184
      %p193 = scmp.eq.s32.totalorder %s32, 0
      %p194 = por %p192, %p193
      %p195 = scmp.ne.s32.totalorder %s183, %s184
      %p196 = scmp.eq.s32.totalorder %s33, 1
      %p197 = por %p195, %p196
      %p199 = scmp.ne.s32.totalorder %s184, %s198
      %p200 = scmp.eq.s32.totalorder %s33, 0
      %p201 = por %p199, %p200
      %s203 = sadd.s32 %s202, 1
      %p206 = scmp.eq.s32.totalorder %s27, 1
      %p207 = scmp.ne.s32.totalorder %s202, %s204
      %p208 = scmp.eq.s32.totalorder %s27, 0
      %p209 = por %p207, %p208
      %p210 = scmp.ne.s32.totalorder %s202, %s204
      %p211 = scmp.eq.s32.totalorder %s32, 1
      %p212 = por %p210, %p211
      %p213 = scmp.ne.s32.totalorder %s204, %s205
      %p214 = scmp.eq.s32.totalorder %s32, 0
      %p215 = por %p213, %p214
      %p216 = scmp.ne.s32.totalorder %s204, %s205
      %p217 = scmp.eq.s32.totalorder %s33, 1
      %p218 = por %p216, %p217
      %p220 = scmp.ne.s32.totalorder %s205, %s219
      %p221 = scmp.eq.s32.totalorder %s33, 0
      %p222 = por %p220, %p221
      %s224 = sadd.s32 %s223, 1
      %p227 = scmp.eq.s32.totalorder %s27, 1
      %p228 = scmp.ne.s32.totalorder %s223, %s225
      %p229 = scmp.eq.s32.totalorder %s27, 0
      %p230 = por %p228, %p229
      %p231 = scmp.ne.s32.totalorder %s223, %s225
      %p232 = scmp.eq.s32.totalorder %s32, 1
      %p233 = por %p231, %p232
      %p234 = scmp.ne.s32.totalorder %s225, %s226
      %p235 = scmp.eq.s32.totalorder %s32, 0
      %p236 = por %p234, %p235
      %p237 = scmp.ne.s32.totalorder %s225, %s226
      %p238 = scmp.eq.s32.totalorder %s33, 1
      %p239 = por %p237, %p238
      %p241 = scmp.ne.s32.totalorder %s226, %s240
      %p242 = scmp.eq.s32.totalorder %s33, 0
      %p243 = por %p241, %p242
      %s245 = sadd.s32 %s244, 1
      %p248 = scmp.eq.s32.totalorder %s27, 1
      %p249 = scmp.ne.s32.totalorder %s244, %s246
      %p250 = scmp.eq.s32.totalorder %s27, 0
      %p251 = por %p249, %p250
      %p252 = scmp.ne.s32.totalorder %s244, %s246
      %p253 = scmp.eq.s32.totalorder %s32, 1
      %p254 = por %p252, %p253
      %p255 = scmp.ne.s32.totalorder %s246, %s247
      %p256 = scmp.eq.s32.totalorder %s32, 0
      %p257 = por %p255, %p256
      %p258 = scmp.ne.s32.totalorder %s246, %s247
      %p259 = scmp.eq.s32.totalorder %s33, 1
      %p260 = por %p258, %p259
      %p262 = scmp.ne.s32.totalorder %s247, %s261
      %p263 = scmp.eq.s32.totalorder %s33, 0
      %p264 = por %p262, %p263
      %s266 = sadd.s32 %s265, 1
      %p269 = scmp.eq.s32.totalorder %s27, 1
      %p270 = scmp.ne.s32.totalorder %s265, %s267
      %p271 = scmp.eq.s32.totalorder %s27, 0
      %p272 = por %p270, %p271
      %p273 = scmp.ne.s32.totalorder %s265, %s267
      %p274 = scmp.eq.s32.totalorder %s32, 1
      %p275 = por %p273, %p274
      %p276 = scmp.ne.s32.totalorder %s267, %s268
      %p277 = scmp.eq.s32.totalorder %s32, 0
      %p278 = por %p276, %p277
      %p279 = scmp.ne.s32.totalorder %s267, %s268
      %p280 = scmp.eq.s32.totalorder %s33, 1
      %p281 = por %p279, %p280
      %p283 = scmp.ne.s32.totalorder %s268, %s282
      %p284 = scmp.eq.s32.totalorder %s33, 0
      %p285 = por %p283, %p284
      %s287 = sadd.s32 %s286, 1
      %p290 = scmp.eq.s32.totalorder %s27, 1
      %p291 = scmp.ne.s32.totalorder %s286, %s288
      %p292 = scmp.eq.s32.totalorder %s27, 0
      %p293 = por %p291, %p292
      %p294 = scmp.ne.s32.totalorder %s286, %s288
      %p295 = scmp.eq.s32.totalorder %s32, 1
      %p296 = por %p294, %p295
      %p297 = scmp.ne.s32.totalorder %s288, %s289
      %p298 = scmp.eq.s32.totalorder %s32, 0
      %p299 = por %p297, %p298
      %p300 = scmp.ne.s32.totalorder %s288, %s289
      %p301 = scmp.eq.s32.totalorder %s33, 1
      %p302 = por %p300, %p301
      %p304 = scmp.ne.s32.totalorder %s289, %s303
      %p305 = scmp.eq.s32.totalorder %s33, 0
      %p306 = por %p304, %p305
      %s308 = sadd.s32 %s307, 1
      %p311 = scmp.eq.s32.totalorder %s27, 1
      %p312 = scmp.ne.s32.totalorder %s307, %s309
      %p313 = scmp.eq.s32.totalorder %s27, 0
      %p314 = por %p312, %p313
      %p315 = scmp.ne.s32.totalorder %s307, %s309
      %p316 = scmp.eq.s32.totalorder %s32, 1
      %p317 = por %p315, %p316
      %p318 = scmp.ne.s32.totalorder %s309, %s310
      %p319 = scmp.eq.s32.totalorder %s32, 0
      %p320 = por %p318, %p319
      %p321 = scmp.ne.s32.totalorder %s309, %s310
      %p322 = scmp.eq.s32.totalorder %s33, 1
      %p323 = por %p321, %p322
      %p325 = scmp.ne.s32.totalorder %s310, %s324
      %p326 = scmp.eq.s32.totalorder %s33, 0
      %p327 = por %p325, %p326
      %s329 = sadd.s32 %s328, 1
      %p332 = scmp.eq.s32.totalorder %s27, 1
      %p333 = scmp.ne.s32.totalorder %s328, %s330
      %p334 = scmp.eq.s32.totalorder %s27, 0
      %p335 = por %p333, %p334
      %p336 = scmp.ne.s32.totalorder %s328, %s330
      %p337 = scmp.eq.s32.totalorder %s32, 1
      %p338 = por %p336, %p337
      %p339 = scmp.ne.s32.totalorder %s330, %s331
      %p340 = scmp.eq.s32.totalorder %s32, 0
      %p341 = por %p339, %p340
      %p342 = scmp.ne.s32.totalorder %s330, %s331
      %p343 = scmp.eq.s32.totalorder %s33, 1
      %p344 = por %p342, %p343
      %p346 = scmp.ne.s32.totalorder %s331, %s345
      %p347 = scmp.eq.s32.totalorder %s33, 0
      %p348 = por %p346, %p347
      %s350 = sadd.s32 %s349, 1
      %p353 = scmp.eq.s32.totalorder %s27, 1
      %p354 = scmp.ne.s32.totalorder %s349, %s351
      %p355 = scmp.eq.s32.totalorder %s27, 0
      %p356 = por %p354, %p355
      %p357 = scmp.ne.s32.totalorder %s349, %s351
      %p358 = scmp.eq.s32.totalorder %s32, 1
      %p359 = por %p357, %p358
      %p360 = scmp.ne.s32.totalorder %s351, %s352
      %p361 = scmp.eq.s32.totalorder %s32, 0
      %p362 = por %p360, %p361
      %p363 = scmp.ne.s32.totalorder %s351, %s352
      %p364 = scmp.eq.s32.totalorder %s33, 1
      %p365 = por %p363, %p364
      %p367 = scmp.ne.s32.totalorder %s352, %s366
      %p368 = scmp.eq.s32.totalorder %s33, 0
      %p369 = por %p367, %p368
      %s371 = sadd.s32 %s370, 1
      %p374 = scmp.eq.s32.totalorder %s27, 1
      %p375 = scmp.ne.s32.totalorder %s370, %s372
      %p376 = scmp.eq.s32.totalorder %s27, 0
      %p377 = por %p375, %p376
      %p378 = scmp.ne.s32.totalorder %s370, %s372
      %p379 = scmp.eq.s32.totalorder %s32, 1
      %p380 = por %p378, %p379
      %p381 = scmp.ne.s32.totalorder %s372, %s373
      %p382 = scmp.eq.s32.totalorder %s32, 0
      %p383 = por %p381, %p382
      %p384 = scmp.ne.s32.totalorder %s372, %s373
      %p385 = scmp.eq.s32.totalorder %s33, 1
      %p386 = por %p384, %p385
      %p388 = scmp.ne.s32.totalorder %s373, %s387
      %p389 = scmp.eq.s32.totalorder %s33, 0
      %p390 = por %p388, %p389
      %s392 = sadd.s32 %s391, 1
      %p395 = scmp.eq.s32.totalorder %s27, 1
      %p396 = scmp.ne.s32.totalorder %s391, %s393
      %p397 = scmp.eq.s32.totalorder %s27, 0
      %p398 = por %p396, %p397
      %p399 = scmp.ne.s32.totalorder %s391, %s393
      %p400 = scmp.eq.s32.totalorder %s32, 1
      %p401 = por %p399, %p400
      %p402 = scmp.ne.s32.totalorder %s393, %s394
      %p403 = scmp.eq.s32.totalorder %s32, 0
      %p404 = por %p402, %p403
      %p405 = scmp.ne.s32.totalorder %s393, %s394
      %p406 = scmp.eq.s32.totalorder %s33, 1
      %p407 = por %p405, %p406
      %p409 = scmp.ne.s32.totalorder %s394, %s408
      %p410 = scmp.eq.s32.totalorder %s33, 0
      %p411 = por %p409, %p410
      %s413 = sadd.s32 %s412, 1
      %p416 = scmp.eq.s32.totalorder %s27, 1
      %p417 = scmp.ne.s32.totalorder %s412, %s414
      %p418 = scmp.eq.s32.totalorder %s27, 0
      %p419 = por %p417, %p418
      %p420 = scmp.ne.s32.totalorder %s412, %s414
      %p421 = scmp.eq.s32.totalorder %s32, 1
      %p422 = por %p420, %p421
      %p423 = scmp.ne.s32.totalorder %s414, %s415
      %p424 = scmp.eq.s32.totalorder %s32, 0
      %p425 = por %p423, %p424
      %p426 = scmp.ne.s32.totalorder %s414, %s415
      %p427 = scmp.eq.s32.totalorder %s33, 1
      %p428 = por %p426, %p427
      %p430 = scmp.ne.s32.totalorder %s415, %s429
      %p431 = scmp.eq.s32.totalorder %s33, 0
      %p432 = por %p430, %p431
      %s433 = ssub.s32 %s27, %s34
      %p434 = scmp.eq.s32.totalorder %s433, 0
      %s436 = sadd.s32 %s435, 1
      %s437 = scalar_select %p434, %s435, %s436
      %p440 = pneg %p434
      %p441 = scmp.eq.s32.totalorder %s27, 1
      %p442 = por %p440, %p441
      %p443 = scmp.ne.s32.totalorder %s435, %s438
      %p444 = scmp.eq.s32.totalorder %s27, 0
      %p445 = por %p443, %p444
      %p446 = scmp.ne.s32.totalorder %s435, %s438
      %p447 = scmp.eq.s32.totalorder %s32, 1
      %p448 = por %p446, %p447
      %p449 = scmp.ne.s32.totalorder %s438, %s439
      %p450 = scmp.eq.s32.totalorder %s32, 0
      %p451 = por %p449, %p450
      %p452 = scmp.ne.s32.totalorder %s438, %s439
      %p453 = scmp.eq.s32.totalorder %s33, 1
      %p454 = por %p452, %p453
      %p456 = scmp.ne.s32.totalorder %s439, %s455
      %p457 = scmp.eq.s32.totalorder %s33, 0
      %p458 = por %p456, %p457
      %p459 = scmp.le.s32.totalorder 1, %s27
      %p460 = scmp.lt.s32.totalorder %s27, 3
      %p461 = pnand %p459, %p460
      %p462 = pneg %p461
      // Predicated region
      $region9: #{tpu_custom_call.1} parent=5 // pred_check
        _
      $region10: #{tpu_custom_call.1} parent=5 // pred_check_branch
        %464 = sbr.rel (%p461) target = $region12
      $region11: #{tpu_custom_call.1} parent=5 // pred_region
        %s465 = ssub.s32 %s27, 1
        // Predicated region
        $region13: #{tpu_custom_call.1} parent=11 // pred_check
          %p466 = pneg %p126
        $region14: #{tpu_custom_call.1} parent=11 // pred_check_branch
          %468 = sbr.rel (%p466) target = $region16
        $region15: #{tpu_custom_call.1} parent=11 // pred_region
          _
        $region16: #{tpu_custom_call.1} parent=11 // pred_fallthru
          _
        // Predicated region
        $region17: #{tpu_custom_call.1} parent=11 // pred_check
          %p469 = pneg %p147
        $region18: #{tpu_custom_call.1} parent=11 // pred_check_branch
          %471 = sbr.rel (%p469) target = $region20
        $region19: #{tpu_custom_call.1} parent=11 // pred_region
          _
        $region20: #{tpu_custom_call.1} parent=11 // pred_fallthru
          _
        // Predicated region
        $region21: #{tpu_custom_call.1} parent=11 // pred_check
          %p472 = pneg %p194
        $region22: #{tpu_custom_call.1} parent=11 // pred_check_branch
          %474 = sbr.rel (%p472) target = $region24
        $region23: #{tpu_custom_call.1} parent=11 // pred_region
          _
        $region24: #{tpu_custom_call.1} parent=11 // pred_fallthru
          _
        // Predicated region
        $region25: #{tpu_custom_call.1} parent=11 // pred_check
          %p475 = pneg %p215
        $region26: #{tpu_custom_call.1} parent=11 // pred_check_branch
          %477 = sbr.rel (%p475) target = $region28
        $region27: #{tpu_custom_call.1} parent=11 // pred_region
          _
        $region28: #{tpu_custom_call.1} parent=11 // pred_fallthru
          _
        // Predicated region
        $region29: #{tpu_custom_call.1} parent=11 // pred_check
          %p478 = pneg %p236
        $region30: #{tpu_custom_call.1} parent=11 // pred_check_branch
          %480 = sbr.rel (%p478) target = $region32
        $region31: #{tpu_custom_call.1} parent=11 // pred_region
          _
        $region32: #{tpu_custom_call.1} parent=11 // pred_fallthru
          _
        // Predicated region
        $region33: #{tpu_custom_call.1} parent=11 // pred_check
          %p481 = pneg %p257
        $region34: #{tpu_custom_call.1} parent=11 // pred_check_branch
          %483 = sbr.rel (%p481) target = $region36
        $region35: #{tpu_custom_call.1} parent=11 // pred_region
          _
        $region36: #{tpu_custom_call.1} parent=11 // pred_fallthru
          _
        // Predicated region
        $region37: #{tpu_custom_call.1} parent=11 // pred_check
          %p484 = pneg %p278
        $region38: #{tpu_custom_call.1} parent=11 // pred_check_branch
          %486 = sbr.rel (%p484) target = $region40
        $region39: #{tpu_custom_call.1} parent=11 // pred_region
          _
        $region40: #{tpu_custom_call.1} parent=11 // pred_fallthru
          _
        // Predicated region
        $region41: #{tpu_custom_call.1} parent=11 // pred_check
          %p487 = pneg %p299
        $region42: #{tpu_custom_call.1} parent=11 // pred_check_branch
          %489 = sbr.rel (%p487) target = $region44
        $region43: #{tpu_custom_call.1} parent=11 // pred_region
          _
        $region44: #{tpu_custom_call.1} parent=11 // pred_fallthru
          _
        // Predicated region
        $region45: #{tpu_custom_call.1} parent=11 // pred_check
          %p490 = pneg %p320
        $region46: #{tpu_custom_call.1} parent=11 // pred_check_branch
          %492 = sbr.rel (%p490) target = $region48
        $region47: #{tpu_custom_call.1} parent=11 // pred_region
          _
        $region48: #{tpu_custom_call.1} parent=11 // pred_fallthru
          _
        // Predicated region
        $region49: #{tpu_custom_call.1} parent=11 // pred_check
          %p493 = pneg %p341
        $region50: #{tpu_custom_call.1} parent=11 // pred_check_branch
          %495 = sbr.rel (%p493) target = $region52
        $region51: #{tpu_custom_call.1} parent=11 // pred_region
          _
        $region52: #{tpu_custom_call.1} parent=11 // pred_fallthru
          _
        // Predicated region
        $region53: #{tpu_custom_call.1} parent=11 // pred_check
          %p496 = pneg %p362
        $region54: #{tpu_custom_call.1} parent=11 // pred_check_branch
          %498 = sbr.rel (%p496) target = $region56
        $region55: #{tpu_custom_call.1} parent=11 // pred_region
          _
        $region56: #{tpu_custom_call.1} parent=11 // pred_fallthru
          _
        // Predicated region
        $region57: #{tpu_custom_call.1} parent=11 // pred_check
          %p499 = pneg %p383
        $region58: #{tpu_custom_call.1} parent=11 // pred_check_branch
          %501 = sbr.rel (%p499) target = $region60
        $region59: #{tpu_custom_call.1} parent=11 // pred_region
          _
        $region60: #{tpu_custom_call.1} parent=11 // pred_fallthru
          _
        // Predicated region
        $region61: #{tpu_custom_call.1} parent=11 // pred_check
          %p502 = pneg %p404
        $region62: #{tpu_custom_call.1} parent=11 // pred_check_branch
          %504 = sbr.rel (%p502) target = $region64
        $region63: #{tpu_custom_call.1} parent=11 // pred_region
          _
        $region64: #{tpu_custom_call.1} parent=11 // pred_fallthru
          _
        // Predicated region
        $region65: #{tpu_custom_call.1} parent=11 // pred_check
          %p505 = pneg %p425
        $region66: #{tpu_custom_call.1} parent=11 // pred_check_branch
          %507 = sbr.rel (%p505) target = $region68
        $region67: #{tpu_custom_call.1} parent=11 // pred_region
          _
        $region68: #{tpu_custom_call.1} parent=11 // pred_fallthru
          _
      $region12: #{tpu_custom_call.1} parent=5 // pred_fallthru
        _
      %p508 = scmp.lt.s32.totalorder %s27, 2
      // Predicated region
      $region69: #{tpu_custom_call.1} parent=5 // pred_check
        %p509 = pneg %p508
      $region70: #{tpu_custom_call.1} parent=5 // pred_check_branch
        %511 = sbr.rel (%p509) target = $region72
      $region71: #{tpu_custom_call.1} parent=5 // pred_region
        // Predicated region
        $region73: #{tpu_custom_call.1} parent=71 // pred_check
          %p512 = pneg %p47
        $region74: #{tpu_custom_call.1} parent=71 // pred_check_branch
          %514 = sbr.rel (%p512) target = $region76
        $region75: #{tpu_custom_call.1} parent=71 // pred_region
          %s515 = smul.u32 8, %s27
          %p516 = scmp.lt.s32.totalorder %s515, 15
          %s517 = scalar_select %p516, %s515, 15
          %s518 = smul.addr %s517, 2
          %s519 = smul.addr %s518, 8
          %s520 = scalar_lea.vmem %s0, %s519
          %s521 = smul.u32 8, %s27
        $region76: #{tpu_custom_call.1} parent=71 // pred_fallthru
          _
        // Predicated region
        $region77: #{tpu_custom_call.1} parent=71 // pred_check
          %p522 = pneg %p73
        $region78: #{tpu_custom_call.1} parent=71 // pred_check_branch
          %524 = sbr.rel (%p522) target = $region80
        $region79: #{tpu_custom_call.1} parent=71 // pred_region
          %s525 = smul.u32 8, %s27
          %p526 = scmp.lt.s32.totalorder %s525, 15
          %s527 = scalar_select %p526, %s525, 15
          %s528 = smul.addr %s527, 2
          %s529 = smul.addr %s528, 8
          %s530 = scalar_lea.vmem %s1, %s529
          %s531 = smul.u32 8, %s27
        $region80: #{tpu_custom_call.1} parent=71 // pred_fallthru
          _
        // Predicated region
        $region81: #{tpu_custom_call.1} parent=71 // pred_check
          %p532 = pneg %p99
        $region82: #{tpu_custom_call.1} parent=71 // pred_check_branch
          %534 = sbr.rel (%p532) target = $region84
        $region83: #{tpu_custom_call.1} parent=71 // pred_region
          %p535 = scmp.lt.s32.totalorder %s27, 1
          %s536 = scalar_select %p535, %s27, 1
          %s537 = smul.addr %s536, 8
          %s538 = scalar_lea.vmem %s2, %s537
        $region84: #{tpu_custom_call.1} parent=71 // pred_fallthru
          _
        // Predicated region
        $region85: #{tpu_custom_call.1} parent=71 // pred_check
          %p539 = pneg %p167
        $region86: #{tpu_custom_call.1} parent=71 // pred_check_branch
          %541 = sbr.rel (%p539) target = $region88
        $region87: #{tpu_custom_call.1} parent=71 // pred_region
          %p542 = scmp.lt.s32.totalorder %s27, 1
          %s543 = scalar_select %p542, %s27, 1
          %s544 = smul.addr %s543, 8
          %s545 = scalar_lea.vmem %s5, %s544
        $region88: #{tpu_custom_call.1} parent=71 // pred_fallthru
          _
      $region72: #{tpu_custom_call.1} parent=5 // pred_fallthru
        _
      %p546 = scmp.le.s32.totalorder 1, %s27
      %p547 = scmp.lt.s32.totalorder %s27, 3
      %p548 = pnand %p546, %p547
      %p549 = pneg %p548
      // Predicated region
      $region89: #{tpu_custom_call.1} parent=5 // pred_check
        _
      $region90: #{tpu_custom_call.1} parent=5 // pred_check_branch
        %551 = sbr.rel (%p548) target = $region92
      $region91: #{tpu_custom_call.1} parent=5 // pred_region
        %s552 = ssub.s32 %s27, 1
        %s553 = smul.u32 8, %s32
        %p554 = scmp.lt.s32.totalorder %s553, 15
        %s555 = scalar_select %p554, %s553, 15
        %s556 = smul.addr %s555, 2
        %s557 = smul.addr %s556, 8
        %s558 = scalar_lea.vmem %s0, %s557
        %p559 = pneg %p53
        %p560 = pneg %p50
        %s561 = smul.u32 8, %s32
        %p562 = scmp.lt.s32.totalorder %s561, 15
        %s563 = scalar_select %p562, %s561, 15
        %s564 = smul.addr %s563, 2
        %s565 = smul.addr %s564, 8
        %s566 = scalar_lea.vmem %s1, %s565
        %p567 = pneg %p79
        %p568 = pneg %p76
        %p569 = scmp.lt.s32.totalorder %s32, 1
        %s570 = scalar_select %p569, %s32, 1
        %s571 = smul.addr %s570, 8
        %s572 = scalar_lea.vmem %s2, %s571
        %p573 = pneg %p105
        %p574 = pneg %p102
        %p575 = pneg %p126
        %p576 = pneg %p123
        %p577 = pneg %p147
        %p578 = pneg %p144
        %p579 = scmp.lt.s32.totalorder %s32, 1
        %s580 = scalar_select %p579, %s32, 1
        %s581 = smul.addr %s580, 8
        %s582 = scalar_lea.vmem %s5, %s581
        %p583 = pneg %p173
        %p584 = pneg %p170
        %p585 = pneg %p194
        %p586 = pneg %p191
        %p587 = pneg %p215
        %p588 = pneg %p212
        %p589 = pneg %p236
        %p590 = pneg %p233
        %p591 = pneg %p257
        %p592 = pneg %p254
        %p593 = pneg %p278
        %p594 = pneg %p275
        %p595 = pneg %p299
        %p596 = pneg %p296
        %p597 = pneg %p320
        %p598 = pneg %p317
        %p599 = pneg %p341
        %p600 = pneg %p338
        %p601 = pneg %p362
        %p602 = pneg %p359
        %p603 = pneg %p383
        %p604 = pneg %p380
        %p605 = pneg %p404
        %p606 = pneg %p401
        %p607 = pneg %p425
        %p608 = pneg %p422
        %p609 = pneg %p451
        %p610 = pneg %p448
        %s611 = sand.u32 %s438, 1
        %s612 = scalar_lea.sflag [#allocation3], %s611
        %s613 = sand.u32 %s438, 1
        %s614 = smul.addr %s613, 8
        %s615 = scalar_lea.vmem [#allocation2], %s614
        %s616 = smul.u32 8, %s32
        %p617 = scmp.lt.s32.totalorder %s616, 15
        %s618 = scalar_select %p617, %s616, 15
        %s619 = smul.addr %s618, 2
        %s620 = smul.addr %s619, 8
        %s621 = scalar_lea.vmem %s0, %s620
        %s622 = smul.u32 8, %s32
        %s623 = smul.u32 8, %s32
        %p624 = scmp.lt.s32.totalorder %s623, 15
        %s625 = scalar_select %p624, %s623, 15
        %s626 = smul.addr %s625, 2
        %s627 = smul.addr %s626, 8
        %s628 = scalar_lea.vmem %s1, %s627
        %s629 = smul.u32 8, %s32
        %p630 = scmp.lt.s32.totalorder %s32, 1
        %s631 = scalar_select %p630, %s32, 1
        %s632 = smul.addr %s631, 8
        %s633 = scalar_lea.vmem %s2, %s632
        %p634 = scmp.lt.s32.totalorder %s32, 1
        %s635 = scalar_select %p634, %s32, 1
        %s636 = smul.addr %s635, 8
        %s637 = scalar_lea.vmem %s5, %s636
        %v639 = vld [vmem:[%s621] sm:$0xff]
        %v640 = vld [vmem:[%s621 + $0x8] sm:$0xff]
        %v641 = vld [vmem:[%s621 + $0x10] sm:$0xff]
        %v642 = vld [vmem:[%s621 + $0x18] sm:$0xff]
        %v643 = vld [vmem:[%s621 + $0x20] sm:$0xff]
        %v644 = vld [vmem:[%s621 + $0x28] sm:$0xff]
        %v645 = vld [vmem:[%s621 + $0x30] sm:$0xff]
        %v646 = vld [vmem:[%s621 + $0x38] sm:$0xff]
        %v647 = vld [vmem:[%s621 + $0x40] sm:$0xff]
        %v648 = vld [vmem:[%s621 + $0x48] sm:$0xff]
        %v649 = vld [vmem:[%s621 + $0x50] sm:$0xff]
        %v650 = vld [vmem:[%s621 + $0x58] sm:$0xff]
        %v651 = vld [vmem:[%s621 + $0x60] sm:$0xff]
        %v652 = vld [vmem:[%s621 + $0x68] sm:$0xff]
        %v653 = vld [vmem:[%s621 + $0x70] sm:$0xff]
        %v654 = vld [vmem:[%s621 + $0x78] sm:$0xff]
        %v655 = vld [vmem:[%s628] sm:$0xff]
        %v656 = vld [vmem:[%s628 + $0x8] sm:$0xff]
        %v657 = vld [vmem:[%s628 + $0x10] sm:$0xff]
        %v658 = vld [vmem:[%s628 + $0x18] sm:$0xff]
        %v659 = vld [vmem:[%s628 + $0x20] sm:$0xff]
        %v660 = vld [vmem:[%s628 + $0x28] sm:$0xff]
        %v661 = vld [vmem:[%s628 + $0x30] sm:$0xff]
        %v662 = vld [vmem:[%s628 + $0x38] sm:$0xff]
        %v663 = vld [vmem:[%s628 + $0x40] sm:$0xff]
        %v664 = vld [vmem:[%s628 + $0x48] sm:$0xff]
        %v665 = vld [vmem:[%s628 + $0x50] sm:$0xff]
        %v666 = vld [vmem:[%s628 + $0x58] sm:$0xff]
        %v667 = vld [vmem:[%s628 + $0x60] sm:$0xff]
        %v668 = vld [vmem:[%s628 + $0x68] sm:$0xff]
        %v669 = vld [vmem:[%s628 + $0x70] sm:$0xff]
        %v670 = vld [vmem:[%s628 + $0x78] sm:$0xff]
        %vm671 = vcmp.eq.s32.totalorder %v655, 0
        %vm672 = vcmp.eq.s32.totalorder %v656, 0
        %vm673 = vcmp.eq.s32.totalorder %v657, 0
        %vm674 = vcmp.eq.s32.totalorder %v658, 0
        %vm675 = vcmp.eq.s32.totalorder %v659, 0
        %vm676 = vcmp.eq.s32.totalorder %v660, 0
        %vm677 = vcmp.eq.s32.totalorder %v661, 0
        %vm678 = vcmp.eq.s32.totalorder %v662, 0
        %vm679 = vcmp.eq.s32.totalorder %v663, 0
        %vm680 = vcmp.eq.s32.totalorder %v664, 0
        %vm681 = vcmp.eq.s32.totalorder %v665, 0
        %vm682 = vcmp.eq.s32.totalorder %v666, 0
        %vm683 = vcmp.eq.s32.totalorder %v667, 0
        %vm684 = vcmp.eq.s32.totalorder %v668, 0
        %vm685 = vcmp.eq.s32.totalorder %v669, 0
        %vm686 = vcmp.eq.s32.totalorder %v670, 0
        %v687 = vsel %vm671, 1, 0
        %v688 = vsel %vm672, 1, 0
        %v689 = vsel %vm673, 1, 0
        %v690 = vsel %vm674, 1, 0
        %v691 = vsel %vm675, 1, 0
        %v692 = vsel %vm676, 1, 0
        %v693 = vsel %vm677, 1, 0
        %v694 = vsel %vm678, 1, 0
        %v695 = vsel %vm679, 1, 0
        %v696 = vsel %vm680, 1, 0
        %v697 = vsel %vm681, 1, 0
        %v698 = vsel %vm682, 1, 0
        %v699 = vsel %vm683, 1, 0
        %v700 = vsel %vm684, 1, 0
        %v701 = vsel %vm685, 1, 0
        %v702 = vsel %vm686, 1, 0
        %v703 = vcvt.s32.f32 %v687
        %v704 = vcvt.s32.f32 %v688
        %v705 = vcvt.s32.f32 %v689
        %v706 = vcvt.s32.f32 %v690
        %v707 = vcvt.s32.f32 %v691
        %v708 = vcvt.s32.f32 %v692
        %v709 = vcvt.s32.f32 %v693
        %v710 = vcvt.s32.f32 %v694
        %v711 = vcvt.s32.f32 %v695
        %v712 = vcvt.s32.f32 %v696
        %v713 = vcvt.s32.f32 %v697
        %v714 = vcvt.s32.f32 %v698
        %v715 = vcvt.s32.f32 %v699
        %v716 = vcvt.s32.f32 %v700
        %v717 = vcvt.s32.f32 %v701
        %v718 = vcvt.s32.f32 %v702
        %v719 = vld [vmem:[%s6] sm:$0x1]
        %721 = vset.pattern.permute.xlu0 0
        %722 = vperm.xlu0 %721, %v703
        %v723 = vpop.permute.xlu0 %722
        %726 = vset.pattern.permute.xlu0 0
        %727 = vperm.xlu0 %726, %v704
        %v728 = vpop.permute.xlu0 %727
        %731 = vset.pattern.permute.xlu0 0
        %732 = vperm.xlu0 %731, %v705
        %v733 = vpop.permute.xlu0 %732
        %736 = vset.pattern.permute.xlu0 0
        %737 = vperm.xlu0 %736, %v706
        %v738 = vpop.permute.xlu0 %737
        %741 = vset.pattern.permute.xlu0 0
        %742 = vperm.xlu0 %741, %v707
        %v743 = vpop.permute.xlu0 %742
        %746 = vset.pattern.permute.xlu0 0
        %747 = vperm.xlu0 %746, %v708
        %v748 = vpop.permute.xlu0 %747
        %751 = vset.pattern.permute.xlu0 0
        %752 = vperm.xlu0 %751, %v709
        %v753 = vpop.permute.xlu0 %752
        %756 = vset.pattern.permute.xlu0 0
        %757 = vperm.xlu0 %756, %v710
        %v758 = vpop.permute.xlu0 %757
        %761 = vset.pattern.permute.xlu0 0
        %762 = vperm.xlu0 %761, %v711
        %v763 = vpop.permute.xlu0 %762
        %766 = vset.pattern.permute.xlu0 0
        %767 = vperm.xlu0 %766, %v712
        %v768 = vpop.permute.xlu0 %767
        %771 = vset.pattern.permute.xlu0 0
        %772 = vperm.xlu0 %771, %v713
        %v773 = vpop.permute.xlu0 %772
        %776 = vset.pattern.permute.xlu0 0
        %777 = vperm.xlu0 %776, %v714
        %v778 = vpop.permute.xlu0 %777
        %781 = vset.pattern.permute.xlu0 0
        %782 = vperm.xlu0 %781, %v715
        %v783 = vpop.permute.xlu0 %782
        %786 = vset.pattern.permute.xlu0 0
        %787 = vperm.xlu0 %786, %v716
        %v788 = vpop.permute.xlu0 %787
        %791 = vset.pattern.permute.xlu0 0
        %792 = vperm.xlu0 %791, %v717
        %v793 = vpop.permute.xlu0 %792
        %796 = vset.pattern.permute.xlu0 0
        %797 = vperm.xlu0 %796, %v718
        %v798 = vpop.permute.xlu0 %797
        %v800 = vlaneseq
        %v801 = vshrl.u32 %v800, 7
        %v802 = vsub.s32 0, %v801
        %v803 = vrot.slane %v719, %v802
        %v804 = vmul.f32 %v723, %v803
        %v805 = vmul.f32 %v728, %v803
        %v806 = vmul.f32 %v733, %v803
        %v807 = vmul.f32 %v738, %v803
        %v808 = vmul.f32 %v743, %v803
        %v809 = vmul.f32 %v748, %v803
        %v810 = vmul.f32 %v753, %v803
        %v811 = vmul.f32 %v758, %v803
        %v812 = vmul.f32 %v763, %v803
        %v813 = vmul.f32 %v768, %v803
        %v814 = vmul.f32 %v773, %v803
        %v815 = vmul.f32 %v778, %v803
        %v816 = vmul.f32 %v783, %v803
        %v817 = vmul.f32 %v788, %v803
        %v818 = vmul.f32 %v793, %v803
        %v819 = vmul.f32 %v798, %v803
        %v820 = vadd.f32 %v804, 0.0
        %v821 = vadd.f32 %v805, 0.0
        %v822 = vadd.f32 %v806, 0.0
        %v823 = vadd.f32 %v807, 0.0
        %v824 = vadd.f32 %v808, 0.0
        %v825 = vadd.f32 %v809, 0.0
        %v826 = vadd.f32 %v810, 0.0
        %v827 = vadd.f32 %v811, 0.0
        %v828 = vadd.f32 %v812, 0.0
        %v829 = vadd.f32 %v813, 0.0
        %v830 = vadd.f32 %v814, 0.0
        %v831 = vadd.f32 %v815, 0.0
        %v832 = vadd.f32 %v816, 0.0
        %v833 = vadd.f32 %v817, 0.0
        %v834 = vadd.f32 %v818, 0.0
        %v835 = vadd.f32 %v819, 0.0
        %v836 = vld [vmem:[%s7] sm:$0x1]
        %v837 = vlaneseq
        %v838 = vshrl.u32 %v837, 7
        %v839 = vsub.s32 0, %v838
        %v840 = vrot.slane %v836, %v839
        %v841 = vmul.f32 %v703, %v840
        %v842 = vmul.f32 %v704, %v840
        %v843 = vmul.f32 %v705, %v840
        %v844 = vmul.f32 %v706, %v840
        %v845 = vmul.f32 %v707, %v840
        %v846 = vmul.f32 %v708, %v840
        %v847 = vmul.f32 %v709, %v840
        %v848 = vmul.f32 %v710, %v840
        %v849 = vmul.f32 %v711, %v840
        %v850 = vmul.f32 %v712, %v840
        %v851 = vmul.f32 %v713, %v840
        %v852 = vmul.f32 %v714, %v840
        %v853 = vmul.f32 %v715, %v840
        %v854 = vmul.f32 %v716, %v840
        %v855 = vmul.f32 %v717, %v840
        %v856 = vmul.f32 %v718, %v840
        %v857 = vadd.f32 %v841, 0.0
        %v858 = vadd.f32 %v842, 0.0
        %v859 = vadd.f32 %v843, 0.0
        %v860 = vadd.f32 %v844, 0.0
        %v861 = vadd.f32 %v845, 0.0
        %v862 = vadd.f32 %v846, 0.0
        %v863 = vadd.f32 %v847, 0.0
        %v864 = vadd.f32 %v848, 0.0
        %v865 = vadd.f32 %v849, 0.0
        %v866 = vadd.f32 %v850, 0.0
        %v867 = vadd.f32 %v851, 0.0
        %v868 = vadd.f32 %v852, 0.0
        %v869 = vadd.f32 %v853, 0.0
        %v870 = vadd.f32 %v854, 0.0
        %v871 = vadd.f32 %v855, 0.0
        %v872 = vadd.f32 %v856, 0.0
        %vm873 = vcmp.eq.s32.totalorder %v655, 1
        %vm874 = vcmp.eq.s32.totalorder %v656, 1
        %vm875 = vcmp.eq.s32.totalorder %v657, 1
        %vm876 = vcmp.eq.s32.totalorder %v658, 1
        %vm877 = vcmp.eq.s32.totalorder %v659, 1
        %vm878 = vcmp.eq.s32.totalorder %v660, 1
        %vm879 = vcmp.eq.s32.totalorder %v661, 1
        %vm880 = vcmp.eq.s32.totalorder %v662, 1
        %vm881 = vcmp.eq.s32.totalorder %v663, 1
        %vm882 = vcmp.eq.s32.totalorder %v664, 1
        %vm883 = vcmp.eq.s32.totalorder %v665, 1
        %vm884 = vcmp.eq.s32.totalorder %v666, 1
        %vm885 = vcmp.eq.s32.totalorder %v667, 1
        %vm886 = vcmp.eq.s32.totalorder %v668, 1
        %vm887 = vcmp.eq.s32.totalorder %v669, 1
        %vm888 = vcmp.eq.s32.totalorder %v670, 1
        %v889 = vsel %vm873, 1, 0
        %v890 = vsel %vm874, 1, 0
        %v891 = vsel %vm875, 1, 0
        %v892 = vsel %vm876, 1, 0
        %v893 = vsel %vm877, 1, 0
        %v894 = vsel %vm878, 1, 0
        %v895 = vsel %vm879, 1, 0
        %v896 = vsel %vm880, 1, 0
        %v897 = vsel %vm881, 1, 0
        %v898 = vsel %vm882, 1, 0
        %v899 = vsel %vm883, 1, 0
        %v900 = vsel %vm884, 1, 0
        %v901 = vsel %vm885, 1, 0
        %v902 = vsel %vm886, 1, 0
        %v903 = vsel %vm887, 1, 0
        %v904 = vsel %vm888, 1, 0
        %v905 = vcvt.s32.f32 %v889
        %v906 = vcvt.s32.f32 %v890
        %v907 = vcvt.s32.f32 %v891
        %v908 = vcvt.s32.f32 %v892
        %v909 = vcvt.s32.f32 %v893
        %v910 = vcvt.s32.f32 %v894
        %v911 = vcvt.s32.f32 %v895
        %v912 = vcvt.s32.f32 %v896
        %v913 = vcvt.s32.f32 %v897
        %v914 = vcvt.s32.f32 %v898
        %v915 = vcvt.s32.f32 %v899
        %v916 = vcvt.s32.f32 %v900
        %v917 = vcvt.s32.f32 %v901
        %v918 = vcvt.s32.f32 %v902
        %v919 = vcvt.s32.f32 %v903
        %v920 = vcvt.s32.f32 %v904
        %v921 = vld [vmem:[%s6 + $0x1] sm:$0x1]
        %923 = vset.pattern.permute.xlu0 0
        %924 = vperm.xlu0 %923, %v905
        %v925 = vpop.permute.xlu0 %924
        %928 = vset.pattern.permute.xlu0 0
        %929 = vperm.xlu0 %928, %v906
        %v930 = vpop.permute.xlu0 %929
        %933 = vset.pattern.permute.xlu0 0
        %934 = vperm.xlu0 %933, %v907
        %v935 = vpop.permute.xlu0 %934
        %938 = vset.pattern.permute.xlu0 0
        %939 = vperm.xlu0 %938, %v908
        %v940 = vpop.permute.xlu0 %939
        %943 = vset.pattern.permute.xlu0 0
        %944 = vperm.xlu0 %943, %v909
        %v945 = vpop.permute.xlu0 %944
        %948 = vset.pattern.permute.xlu0 0
        %949 = vperm.xlu0 %948, %v910
        %v950 = vpop.permute.xlu0 %949
        %953 = vset.pattern.permute.xlu0 0
        %954 = vperm.xlu0 %953, %v911
        %v955 = vpop.permute.xlu0 %954
        %958 = vset.pattern.permute.xlu0 0
        %959 = vperm.xlu0 %958, %v912
        %v960 = vpop.permute.xlu0 %959
        %963 = vset.pattern.permute.xlu0 0
        %964 = vperm.xlu0 %963, %v913
        %v965 = vpop.permute.xlu0 %964
        %968 = vset.pattern.permute.xlu0 0
        %969 = vperm.xlu0 %968, %v914
        %v970 = vpop.permute.xlu0 %969
        %973 = vset.pattern.permute.xlu0 0
        %974 = vperm.xlu0 %973, %v915
        %v975 = vpop.permute.xlu0 %974
        %978 = vset.pattern.permute.xlu0 0
        %979 = vperm.xlu0 %978, %v916
        %v980 = vpop.permute.xlu0 %979
        %983 = vset.pattern.permute.xlu0 0
        %984 = vperm.xlu0 %983, %v917
        %v985 = vpop.permute.xlu0 %984
        %988 = vset.pattern.permute.xlu0 0
        %989 = vperm.xlu0 %988, %v918
        %v990 = vpop.permute.xlu0 %989
        %993 = vset.pattern.permute.xlu0 0
        %994 = vperm.xlu0 %993, %v919
        %v995 = vpop.permute.xlu0 %994
        %998 = vset.pattern.permute.xlu0 0
        %999 = vperm.xlu0 %998, %v920
        %v1000 = vpop.permute.xlu0 %999
        %v1002 = vlaneseq
        %v1003 = vshrl.u32 %v1002, 7
        %v1004 = vsub.s32 0, %v1003
        %v1005 = vrot.slane %v921, %v1004
        %v1006 = vmul.f32 %v925, %v1005
        %v1007 = vmul.f32 %v930, %v1005
        %v1008 = vmul.f32 %v935, %v1005
        %v1009 = vmul.f32 %v940, %v1005
        %v1010 = vmul.f32 %v945, %v1005
        %v1011 = vmul.f32 %v950, %v1005
        %v1012 = vmul.f32 %v955, %v1005
        %v1013 = vmul.f32 %v960, %v1005
        %v1014 = vmul.f32 %v965, %v1005
        %v1015 = vmul.f32 %v970, %v1005
        %v1016 = vmul.f32 %v975, %v1005
        %v1017 = vmul.f32 %v980, %v1005
        %v1018 = vmul.f32 %v985, %v1005
        %v1019 = vmul.f32 %v990, %v1005
        %v1020 = vmul.f32 %v995, %v1005
        %v1021 = vmul.f32 %v1000, %v1005
        %v1022 = vadd.f32 %v820, %v1006
        %v1023 = vadd.f32 %v821, %v1007
        %v1024 = vadd.f32 %v822, %v1008
        %v1025 = vadd.f32 %v823, %v1009
        %v1026 = vadd.f32 %v824, %v1010
        %v1027 = vadd.f32 %v825, %v1011
        %v1028 = vadd.f32 %v826, %v1012
        %v1029 = vadd.f32 %v827, %v1013
        %v1030 = vadd.f32 %v828, %v1014
        %v1031 = vadd.f32 %v829, %v1015
        %v1032 = vadd.f32 %v830, %v1016
        %v1033 = vadd.f32 %v831, %v1017
        %v1034 = vadd.f32 %v832, %v1018
        %v1035 = vadd.f32 %v833, %v1019
        %v1036 = vadd.f32 %v834, %v1020
        %v1037 = vadd.f32 %v835, %v1021
        %v1038 = vld [vmem:[%s7 + $0x1] sm:$0x1]
        %v1039 = vlaneseq
        %v1040 = vshrl.u32 %v1039, 7
        %v1041 = vsub.s32 0, %v1040
        %v1042 = vrot.slane %v1038, %v1041
        %v1043 = vmul.f32 %v905, %v1042
        %v1044 = vmul.f32 %v906, %v1042
        %v1045 = vmul.f32 %v907, %v1042
        %v1046 = vmul.f32 %v908, %v1042
        %v1047 = vmul.f32 %v909, %v1042
        %v1048 = vmul.f32 %v910, %v1042
        %v1049 = vmul.f32 %v911, %v1042
        %v1050 = vmul.f32 %v912, %v1042
        %v1051 = vmul.f32 %v913, %v1042
        %v1052 = vmul.f32 %v914, %v1042
        %v1053 = vmul.f32 %v915, %v1042
        %v1054 = vmul.f32 %v916, %v1042
        %v1055 = vmul.f32 %v917, %v1042
        %v1056 = vmul.f32 %v918, %v1042
        %v1057 = vmul.f32 %v919, %v1042
        %v1058 = vmul.f32 %v920, %v1042
        %v1059 = vadd.f32 %v857, %v1043
        %v1060 = vadd.f32 %v858, %v1044
        %v1061 = vadd.f32 %v859, %v1045
        %v1062 = vadd.f32 %v860, %v1046
        %v1063 = vadd.f32 %v861, %v1047
        %v1064 = vadd.f32 %v862, %v1048
        %v1065 = vadd.f32 %v863, %v1049
        %v1066 = vadd.f32 %v864, %v1050
        %v1067 = vadd.f32 %v865, %v1051
        %v1068 = vadd.f32 %v866, %v1052
        %v1069 = vadd.f32 %v867, %v1053
        %v1070 = vadd.f32 %v868, %v1054
        %v1071 = vadd.f32 %v869, %v1055
        %v1072 = vadd.f32 %v870, %v1056
        %v1073 = vadd.f32 %v871, %v1057
        %v1074 = vadd.f32 %v872, %v1058
        %vm1075 = vcmp.eq.s32.totalorder %v655, 2
        %vm1076 = vcmp.eq.s32.totalorder %v656, 2
        %vm1077 = vcmp.eq.s32.totalorder %v657, 2
        %vm1078 = vcmp.eq.s32.totalorder %v658, 2
        %vm1079 = vcmp.eq.s32.totalorder %v659, 2
        %vm1080 = vcmp.eq.s32.totalorder %v660, 2
        %vm1081 = vcmp.eq.s32.totalorder %v661, 2
        %vm1082 = vcmp.eq.s32.totalorder %v662, 2
        %vm1083 = vcmp.eq.s32.totalorder %v663, 2
        %vm1084 = vcmp.eq.s32.totalorder %v664, 2
        %vm1085 = vcmp.eq.s32.totalorder %v665, 2
        %vm1086 = vcmp.eq.s32.totalorder %v666, 2
        %vm1087 = vcmp.eq.s32.totalorder %v667, 2
        %vm1088 = vcmp.eq.s32.totalorder %v668, 2
        %vm1089 = vcmp.eq.s32.totalorder %v669, 2
        %vm1090 = vcmp.eq.s32.totalorder %v670, 2
        %v1091 = vsel %vm1075, 1, 0
        %v1092 = vsel %vm1076, 1, 0
        %v1093 = vsel %vm1077, 1, 0
        %v1094 = vsel %vm1078, 1, 0
        %v1095 = vsel %vm1079, 1, 0
        %v1096 = vsel %vm1080, 1, 0
        %v1097 = vsel %vm1081, 1, 0
        %v1098 = vsel %vm1082, 1, 0
        %v1099 = vsel %vm1083, 1, 0
        %v1100 = vsel %vm1084, 1, 0
        %v1101 = vsel %vm1085, 1, 0
        %v1102 = vsel %vm1086, 1, 0
        %v1103 = vsel %vm1087, 1, 0
        %v1104 = vsel %vm1088, 1, 0
        %v1105 = vsel %vm1089, 1, 0
        %v1106 = vsel %vm1090, 1, 0
        %v1107 = vcvt.s32.f32 %v1091
        %v1108 = vcvt.s32.f32 %v1092
        %v1109 = vcvt.s32.f32 %v1093
        %v1110 = vcvt.s32.f32 %v1094
        %v1111 = vcvt.s32.f32 %v1095
        %v1112 = vcvt.s32.f32 %v1096
        %v1113 = vcvt.s32.f32 %v1097
        %v1114 = vcvt.s32.f32 %v1098
        %v1115 = vcvt.s32.f32 %v1099
        %v1116 = vcvt.s32.f32 %v1100
        %v1117 = vcvt.s32.f32 %v1101
        %v1118 = vcvt.s32.f32 %v1102
        %v1119 = vcvt.s32.f32 %v1103
        %v1120 = vcvt.s32.f32 %v1104
        %v1121 = vcvt.s32.f32 %v1105
        %v1122 = vcvt.s32.f32 %v1106
        %v1123 = vld [vmem:[%s6 + $0x2] sm:$0x1]
        %1125 = vset.pattern.permute.xlu0 0
        %1126 = vperm.xlu0 %1125, %v1107
        %v1127 = vpop.permute.xlu0 %1126
        %1130 = vset.pattern.permute.xlu0 0
        %1131 = vperm.xlu0 %1130, %v1108
        %v1132 = vpop.permute.xlu0 %1131
        %1135 = vset.pattern.permute.xlu0 0
        %1136 = vperm.xlu0 %1135, %v1109
        %v1137 = vpop.permute.xlu0 %1136
        %1140 = vset.pattern.permute.xlu0 0
        %1141 = vperm.xlu0 %1140, %v1110
        %v1142 = vpop.permute.xlu0 %1141
        %1145 = vset.pattern.permute.xlu0 0
        %1146 = vperm.xlu0 %1145, %v1111
        %v1147 = vpop.permute.xlu0 %1146
        %1150 = vset.pattern.permute.xlu0 0
        %1151 = vperm.xlu0 %1150, %v1112
        %v1152 = vpop.permute.xlu0 %1151
        %1155 = vset.pattern.permute.xlu0 0
        %1156 = vperm.xlu0 %1155, %v1113
        %v1157 = vpop.permute.xlu0 %1156
        %1160 = vset.pattern.permute.xlu0 0
        %1161 = vperm.xlu0 %1160, %v1114
        %v1162 = vpop.permute.xlu0 %1161
        %1165 = vset.pattern.permute.xlu0 0
        %1166 = vperm.xlu0 %1165, %v1115
        %v1167 = vpop.permute.xlu0 %1166
        %1170 = vset.pattern.permute.xlu0 0
        %1171 = vperm.xlu0 %1170, %v1116
        %v1172 = vpop.permute.xlu0 %1171
        %1175 = vset.pattern.permute.xlu0 0
        %1176 = vperm.xlu0 %1175, %v1117
        %v1177 = vpop.permute.xlu0 %1176
        %1180 = vset.pattern.permute.xlu0 0
        %1181 = vperm.xlu0 %1180, %v1118
        %v1182 = vpop.permute.xlu0 %1181
        %1185 = vset.pattern.permute.xlu0 0
        %1186 = vperm.xlu0 %1185, %v1119
        %v1187 = vpop.permute.xlu0 %1186
        %1190 = vset.pattern.permute.xlu0 0
        %1191 = vperm.xlu0 %1190, %v1120
        %v1192 = vpop.permute.xlu0 %1191
        %1195 = vset.pattern.permute.xlu0 0
        %1196 = vperm.xlu0 %1195, %v1121
        %v1197 = vpop.permute.xlu0 %1196
        %1200 = vset.pattern.permute.xlu0 0
        %1201 = vperm.xlu0 %1200, %v1122
        %v1202 = vpop.permute.xlu0 %1201
        %v1204 = vlaneseq
        %v1205 = vshrl.u32 %v1204, 7
        %v1206 = vsub.s32 0, %v1205
        %v1207 = vrot.slane %v1123, %v1206
        %v1208 = vmul.f32 %v1127, %v1207
        %v1209 = vmul.f32 %v1132, %v1207
        %v1210 = vmul.f32 %v1137, %v1207
        %v1211 = vmul.f32 %v1142, %v1207
        %v1212 = vmul.f32 %v1147, %v1207
        %v1213 = vmul.f32 %v1152, %v1207
        %v1214 = vmul.f32 %v1157, %v1207
        %v1215 = vmul.f32 %v1162, %v1207
        %v1216 = vmul.f32 %v1167, %v1207
        %v1217 = vmul.f32 %v1172, %v1207
        %v1218 = vmul.f32 %v1177, %v1207
        %v1219 = vmul.f32 %v1182, %v1207
        %v1220 = vmul.f32 %v1187, %v1207
        %v1221 = vmul.f32 %v1192, %v1207
        %v1222 = vmul.f32 %v1197, %v1207
        %v1223 = vmul.f32 %v1202, %v1207
        %v1224 = vadd.f32 %v1022, %v1208
        %v1225 = vadd.f32 %v1023, %v1209
        %v1226 = vadd.f32 %v1024, %v1210
        %v1227 = vadd.f32 %v1025, %v1211
        %v1228 = vadd.f32 %v1026, %v1212
        %v1229 = vadd.f32 %v1027, %v1213
        %v1230 = vadd.f32 %v1028, %v1214
        %v1231 = vadd.f32 %v1029, %v1215
        %v1232 = vadd.f32 %v1030, %v1216
        %v1233 = vadd.f32 %v1031, %v1217
        %v1234 = vadd.f32 %v1032, %v1218
        %v1235 = vadd.f32 %v1033, %v1219
        %v1236 = vadd.f32 %v1034, %v1220
        %v1237 = vadd.f32 %v1035, %v1221
        %v1238 = vadd.f32 %v1036, %v1222
        %v1239 = vadd.f32 %v1037, %v1223
        %v1240 = vld [vmem:[%s7 + $0x2] sm:$0x1]
        %v1241 = vlaneseq
        %v1242 = vshrl.u32 %v1241, 7
        %v1243 = vsub.s32 0, %v1242
        %v1244 = vrot.slane %v1240, %v1243
        %v1245 = vmul.f32 %v1107, %v1244
        %v1246 = vmul.f32 %v1108, %v1244
        %v1247 = vmul.f32 %v1109, %v1244
        %v1248 = vmul.f32 %v1110, %v1244
        %v1249 = vmul.f32 %v1111, %v1244
        %v1250 = vmul.f32 %v1112, %v1244
        %v1251 = vmul.f32 %v1113, %v1244
        %v1252 = vmul.f32 %v1114, %v1244
        %v1253 = vmul.f32 %v1115, %v1244
        %v1254 = vmul.f32 %v1116, %v1244
        %v1255 = vmul.f32 %v1117, %v1244
        %v1256 = vmul.f32 %v1118, %v1244
        %v1257 = vmul.f32 %v1119, %v1244
        %v1258 = vmul.f32 %v1120, %v1244
        %v1259 = vmul.f32 %v1121, %v1244
        %v1260 = vmul.f32 %v1122, %v1244
        %v1261 = vadd.f32 %v1059, %v1245
        %v1262 = vadd.f32 %v1060, %v1246
        %v1263 = vadd.f32 %v1061, %v1247
        %v1264 = vadd.f32 %v1062, %v1248
        %v1265 = vadd.f32 %v1063, %v1249
        %v1266 = vadd.f32 %v1064, %v1250
        %v1267 = vadd.f32 %v1065, %v1251
        %v1268 = vadd.f32 %v1066, %v1252
        %v1269 = vadd.f32 %v1067, %v1253
        %v1270 = vadd.f32 %v1068, %v1254
        %v1271 = vadd.f32 %v1069, %v1255
        %v1272 = vadd.f32 %v1070, %v1256
        %v1273 = vadd.f32 %v1071, %v1257
        %v1274 = vadd.f32 %v1072, %v1258
        %v1275 = vadd.f32 %v1073, %v1259
        %v1276 = vadd.f32 %v1074, %v1260
        %vm1277 = vcmp.eq.s32.totalorder %v655, 3
        %vm1278 = vcmp.eq.s32.totalorder %v656, 3
        %vm1279 = vcmp.eq.s32.totalorder %v657, 3
        %vm1280 = vcmp.eq.s32.totalorder %v658, 3
        %vm1281 = vcmp.eq.s32.totalorder %v659, 3
        %vm1282 = vcmp.eq.s32.totalorder %v660, 3
        %vm1283 = vcmp.eq.s32.totalorder %v661, 3
        %vm1284 = vcmp.eq.s32.totalorder %v662, 3
        %vm1285 = vcmp.eq.s32.totalorder %v663, 3
        %vm1286 = vcmp.eq.s32.totalorder %v664, 3
        %vm1287 = vcmp.eq.s32.totalorder %v665, 3
        %vm1288 = vcmp.eq.s32.totalorder %v666, 3
        %vm1289 = vcmp.eq.s32.totalorder %v667, 3
        %vm1290 = vcmp.eq.s32.totalorder %v668, 3
        %vm1291 = vcmp.eq.s32.totalorder %v669, 3
        %vm1292 = vcmp.eq.s32.totalorder %v670, 3
        %v1293 = vsel %vm1277, 1, 0
        %v1294 = vsel %vm1278, 1, 0
        %v1295 = vsel %vm1279, 1, 0
        %v1296 = vsel %vm1280, 1, 0
        %v1297 = vsel %vm1281, 1, 0
        %v1298 = vsel %vm1282, 1, 0
        %v1299 = vsel %vm1283, 1, 0
        %v1300 = vsel %vm1284, 1, 0
        %v1301 = vsel %vm1285, 1, 0
        %v1302 = vsel %vm1286, 1, 0
        %v1303 = vsel %vm1287, 1, 0
        %v1304 = vsel %vm1288, 1, 0
        %v1305 = vsel %vm1289, 1, 0
        %v1306 = vsel %vm1290, 1, 0
        %v1307 = vsel %vm1291, 1, 0
        %v1308 = vsel %vm1292, 1, 0
        %v1309 = vcvt.s32.f32 %v1293
        %v1310 = vcvt.s32.f32 %v1294
        %v1311 = vcvt.s32.f32 %v1295
        %v1312 = vcvt.s32.f32 %v1296
        %v1313 = vcvt.s32.f32 %v1297
        %v1314 = vcvt.s32.f32 %v1298
        %v1315 = vcvt.s32.f32 %v1299
        %v1316 = vcvt.s32.f32 %v1300
        %v1317 = vcvt.s32.f32 %v1301
        %v1318 = vcvt.s32.f32 %v1302
        %v1319 = vcvt.s32.f32 %v1303
        %v1320 = vcvt.s32.f32 %v1304
        %v1321 = vcvt.s32.f32 %v1305
        %v1322 = vcvt.s32.f32 %v1306
        %v1323 = vcvt.s32.f32 %v1307
        %v1324 = vcvt.s32.f32 %v1308
        %v1325 = vld [vmem:[%s6 + $0x3] sm:$0x1]
        %1327 = vset.pattern.permute.xlu0 0
        %1328 = vperm.xlu0 %1327, %v1309
        %v1329 = vpop.permute.xlu0 %1328
        %1332 = vset.pattern.permute.xlu0 0
        %1333 = vperm.xlu0 %1332, %v1310
        %v1334 = vpop.permute.xlu0 %1333
        %1337 = vset.pattern.permute.xlu0 0
        %1338 = vperm.xlu0 %1337, %v1311
        %v1339 = vpop.permute.xlu0 %1338
        %1342 = vset.pattern.permute.xlu0 0
        %1343 = vperm.xlu0 %1342, %v1312
        %v1344 = vpop.permute.xlu0 %1343
        %1347 = vset.pattern.permute.xlu0 0
        %1348 = vperm.xlu0 %1347, %v1313
        %v1349 = vpop.permute.xlu0 %1348
        %1352 = vset.pattern.permute.xlu0 0
        %1353 = vperm.xlu0 %1352, %v1314
        %v1354 = vpop.permute.xlu0 %1353
        %1357 = vset.pattern.permute.xlu0 0
        %1358 = vperm.xlu0 %1357, %v1315
        %v1359 = vpop.permute.xlu0 %1358
        %1362 = vset.pattern.permute.xlu0 0
        %1363 = vperm.xlu0 %1362, %v1316
        %v1364 = vpop.permute.xlu0 %1363
        %1367 = vset.pattern.permute.xlu0 0
        %1368 = vperm.xlu0 %1367, %v1317
        %v1369 = vpop.permute.xlu0 %1368
        %1372 = vset.pattern.permute.xlu0 0
        %1373 = vperm.xlu0 %1372, %v1318
        %v1374 = vpop.permute.xlu0 %1373
        %1377 = vset.pattern.permute.xlu0 0
        %1378 = vperm.xlu0 %1377, %v1319
        %v1379 = vpop.permute.xlu0 %1378
        %1382 = vset.pattern.permute.xlu0 0
        %1383 = vperm.xlu0 %1382, %v1320
        %v1384 = vpop.permute.xlu0 %1383
        %1387 = vset.pattern.permute.xlu0 0
        %1388 = vperm.xlu0 %1387, %v1321
        %v1389 = vpop.permute.xlu0 %1388
        %1392 = vset.pattern.permute.xlu0 0
        %1393 = vperm.xlu0 %1392, %v1322
        %v1394 = vpop.permute.xlu0 %1393
        %1397 = vset.pattern.permute.xlu0 0
        %1398 = vperm.xlu0 %1397, %v1323
        %v1399 = vpop.permute.xlu0 %1398
        %1402 = vset.pattern.permute.xlu0 0
        %1403 = vperm.xlu0 %1402, %v1324
        %v1404 = vpop.permute.xlu0 %1403
        %v1406 = vlaneseq
        %v1407 = vshrl.u32 %v1406, 7
        %v1408 = vsub.s32 0, %v1407
        %v1409 = vrot.slane %v1325, %v1408
        %v1410 = vmul.f32 %v1329, %v1409
        %v1411 = vmul.f32 %v1334, %v1409
        %v1412 = vmul.f32 %v1339, %v1409
        %v1413 = vmul.f32 %v1344, %v1409
        %v1414 = vmul.f32 %v1349, %v1409
        %v1415 = vmul.f32 %v1354, %v1409
        %v1416 = vmul.f32 %v1359, %v1409
        %v1417 = vmul.f32 %v1364, %v1409
        %v1418 = vmul.f32 %v1369, %v1409
        %v1419 = vmul.f32 %v1374, %v1409
        %v1420 = vmul.f32 %v1379, %v1409
        %v1421 = vmul.f32 %v1384, %v1409
        %v1422 = vmul.f32 %v1389, %v1409
        %v1423 = vmul.f32 %v1394, %v1409
        %v1424 = vmul.f32 %v1399, %v1409
        %v1425 = vmul.f32 %v1404, %v1409
        %v1426 = vadd.f32 %v1224, %v1410
        %v1427 = vadd.f32 %v1225, %v1411
        %v1428 = vadd.f32 %v1226, %v1412
        %v1429 = vadd.f32 %v1227, %v1413
        %v1430 = vadd.f32 %v1228, %v1414
        %v1431 = vadd.f32 %v1229, %v1415
        %v1432 = vadd.f32 %v1230, %v1416
        %v1433 = vadd.f32 %v1231, %v1417
        %v1434 = vadd.f32 %v1232, %v1418
        %v1435 = vadd.f32 %v1233, %v1419
        %v1436 = vadd.f32 %v1234, %v1420
        %v1437 = vadd.f32 %v1235, %v1421
        %v1438 = vadd.f32 %v1236, %v1422
        %v1439 = vadd.f32 %v1237, %v1423
        %v1440 = vadd.f32 %v1238, %v1424
        %v1441 = vadd.f32 %v1239, %v1425
        %v1442 = vld [vmem:[%s7 + $0x3] sm:$0x1]
        %v1443 = vlaneseq
        %v1444 = vshrl.u32 %v1443, 7
        %v1445 = vsub.s32 0, %v1444
        %v1446 = vrot.slane %v1442, %v1445
        %v1447 = vmul.f32 %v1309, %v1446
        %v1448 = vmul.f32 %v1310, %v1446
        %v1449 = vmul.f32 %v1311, %v1446
        %v1450 = vmul.f32 %v1312, %v1446
        %v1451 = vmul.f32 %v1313, %v1446
        %v1452 = vmul.f32 %v1314, %v1446
        %v1453 = vmul.f32 %v1315, %v1446
        %v1454 = vmul.f32 %v1316, %v1446
        %v1455 = vmul.f32 %v1317, %v1446
        %v1456 = vmul.f32 %v1318, %v1446
        %v1457 = vmul.f32 %v1319, %v1446
        %v1458 = vmul.f32 %v1320, %v1446
        %v1459 = vmul.f32 %v1321, %v1446
        %v1460 = vmul.f32 %v1322, %v1446
        %v1461 = vmul.f32 %v1323, %v1446
        %v1462 = vmul.f32 %v1324, %v1446
        %v1463 = vadd.f32 %v1261, %v1447
        %v1464 = vadd.f32 %v1262, %v1448
        %v1465 = vadd.f32 %v1263, %v1449
        %v1466 = vadd.f32 %v1264, %v1450
        %v1467 = vadd.f32 %v1265, %v1451
        %v1468 = vadd.f32 %v1266, %v1452
        %v1469 = vadd.f32 %v1267, %v1453
        %v1470 = vadd.f32 %v1268, %v1454
        %v1471 = vadd.f32 %v1269, %v1455
        %v1472 = vadd.f32 %v1270, %v1456
        %v1473 = vadd.f32 %v1271, %v1457
        %v1474 = vadd.f32 %v1272, %v1458
        %v1475 = vadd.f32 %v1273, %v1459
        %v1476 = vadd.f32 %v1274, %v1460
        %v1477 = vadd.f32 %v1275, %v1461
        %v1478 = vadd.f32 %v1276, %v1462
        %1480 = vset.pattern.permute.xlu0 1
        %1481 = vperm.xlu0 %1480, %v639
        %v1482 = vpop.permute.xlu0 %1481
        %1485 = vset.pattern.permute.xlu0 1
        %1486 = vperm.xlu0 %1485, %v640
        %v1487 = vpop.permute.xlu0 %1486
        %1490 = vset.pattern.permute.xlu0 1
        %1491 = vperm.xlu0 %1490, %v641
        %v1492 = vpop.permute.xlu0 %1491
        %1495 = vset.pattern.permute.xlu0 1
        %1496 = vperm.xlu0 %1495, %v642
        %v1497 = vpop.permute.xlu0 %1496
        %1500 = vset.pattern.permute.xlu0 1
        %1501 = vperm.xlu0 %1500, %v643
        %v1502 = vpop.permute.xlu0 %1501
        %1505 = vset.pattern.permute.xlu0 1
        %1506 = vperm.xlu0 %1505, %v644
        %v1507 = vpop.permute.xlu0 %1506
        %1510 = vset.pattern.permute.xlu0 1
        %1511 = vperm.xlu0 %1510, %v645
        %v1512 = vpop.permute.xlu0 %1511
        %1515 = vset.pattern.permute.xlu0 1
        %1516 = vperm.xlu0 %1515, %v646
        %v1517 = vpop.permute.xlu0 %1516
        %1520 = vset.pattern.permute.xlu0 1
        %1521 = vperm.xlu0 %1520, %v647
        %v1522 = vpop.permute.xlu0 %1521
        %1525 = vset.pattern.permute.xlu0 1
        %1526 = vperm.xlu0 %1525, %v648
        %v1527 = vpop.permute.xlu0 %1526
        %1530 = vset.pattern.permute.xlu0 1
        %1531 = vperm.xlu0 %1530, %v649
        %v1532 = vpop.permute.xlu0 %1531
        %1535 = vset.pattern.permute.xlu0 1
        %1536 = vperm.xlu0 %1535, %v650
        %v1537 = vpop.permute.xlu0 %1536
        %1540 = vset.pattern.permute.xlu0 1
        %1541 = vperm.xlu0 %1540, %v651
        %v1542 = vpop.permute.xlu0 %1541
        %1545 = vset.pattern.permute.xlu0 1
        %1546 = vperm.xlu0 %1545, %v652
        %v1547 = vpop.permute.xlu0 %1546
        %1550 = vset.pattern.permute.xlu0 1
        %1551 = vperm.xlu0 %1550, %v653
        %v1552 = vpop.permute.xlu0 %1551
        %1555 = vset.pattern.permute.xlu0 1
        %1556 = vperm.xlu0 %1555, %v654
        %v1557 = vpop.permute.xlu0 %1556
        %v1559 = vmul.f32 %v1482, %v1426
        %v1560 = vmul.f32 %v1487, %v1427
        %v1561 = vmul.f32 %v1492, %v1428
        %v1562 = vmul.f32 %v1497, %v1429
        %v1563 = vmul.f32 %v1502, %v1430
        %v1564 = vmul.f32 %v1507, %v1431
        %v1565 = vmul.f32 %v1512, %v1432
        %v1566 = vmul.f32 %v1517, %v1433
        %v1567 = vmul.f32 %v1522, %v1434
        %v1568 = vmul.f32 %v1527, %v1435
        %v1569 = vmul.f32 %v1532, %v1436
        %v1570 = vmul.f32 %v1537, %v1437
        %v1571 = vmul.f32 %v1542, %v1438
        %v1572 = vmul.f32 %v1547, %v1439
        %v1573 = vmul.f32 %v1552, %v1440
        %v1574 = vmul.f32 %v1557, %v1441
        %v1575 = vld [vmem:[%s8] sm:$0x1]
        %v1577 = vlaneseq
        %v1578 = vshrl.u32 %v1577, 7
        %v1579 = vsub.s32 0, %v1578
        %v1580 = vrot.slane %v1575, %v1579
        %v1582 = vmul.f32 %v1482, %v1580
        %v1583 = vmul.f32 %v1487, %v1580
        %v1584 = vmul.f32 %v1492, %v1580
        %v1585 = vmul.f32 %v1497, %v1580
        %v1586 = vmul.f32 %v1502, %v1580
        %v1587 = vmul.f32 %v1507, %v1580
        %v1588 = vmul.f32 %v1512, %v1580
        %v1589 = vmul.f32 %v1517, %v1580
        %v1590 = vmul.f32 %v1522, %v1580
        %v1591 = vmul.f32 %v1527, %v1580
        %v1592 = vmul.f32 %v1532, %v1580
        %v1593 = vmul.f32 %v1537, %v1580
        %v1594 = vmul.f32 %v1542, %v1580
        %v1595 = vmul.f32 %v1547, %v1580
        %v1596 = vmul.f32 %v1552, %v1580
        %v1597 = vmul.f32 %v1557, %v1580
        %v1598 = vld [vmem:[%s9] sm:$0x1]
        %v1600 = vlaneseq
        %v1601 = vshrl.u32 %v1600, 7
        %v1602 = vsub.s32 0, %v1601
        %v1603 = vrot.slane %v1598, %v1602
        %v1605 = vadd.f32 %v1582, %v1603
        %v1606 = vadd.f32 %v1583, %v1603
        %v1607 = vadd.f32 %v1584, %v1603
        %v1608 = vadd.f32 %v1585, %v1603
        %v1609 = vadd.f32 %v1586, %v1603
        %v1610 = vadd.f32 %v1587, %v1603
        %v1611 = vadd.f32 %v1588, %v1603
        %v1612 = vadd.f32 %v1589, %v1603
        %v1613 = vadd.f32 %v1590, %v1603
        %v1614 = vadd.f32 %v1591, %v1603
        %v1615 = vadd.f32 %v1592, %v1603
        %v1616 = vadd.f32 %v1593, %v1603
        %v1617 = vadd.f32 %v1594, %v1603
        %v1618 = vadd.f32 %v1595, %v1603
        %v1619 = vadd.f32 %v1596, %v1603
        %v1620 = vadd.f32 %v1597, %v1603
        %v1621 = vsub.f32 1.0, %v1463
        %v1622 = vsub.f32 1.0, %v1464
        %v1623 = vsub.f32 1.0, %v1465
        %v1624 = vsub.f32 1.0, %v1466
        %v1625 = vsub.f32 1.0, %v1467
        %v1626 = vsub.f32 1.0, %v1468
        %v1627 = vsub.f32 1.0, %v1469
        %v1628 = vsub.f32 1.0, %v1470
        %v1629 = vsub.f32 1.0, %v1471
        %v1630 = vsub.f32 1.0, %v1472
        %v1631 = vsub.f32 1.0, %v1473
        %v1632 = vsub.f32 1.0, %v1474
        %v1633 = vsub.f32 1.0, %v1475
        %v1634 = vsub.f32 1.0, %v1476
        %v1635 = vsub.f32 1.0, %v1477
        %v1636 = vsub.f32 1.0, %v1478
        %v1637 = vand.u32 2147483647, %v1559
        %vm1638 = vcmp.le.f32.partialorder %v1637, 0.7853982
        %vm1639 = vcmp.lt.s32.totalorder %v1559, 0
        %v1640 = vand.u32 %v1559, 2139095040
        %v1641 = vshrl.u32 %v1640, 23
        %v1642 = vsub.s32 %v1641, 127
        %v1643 = vand.u32 2147483647, %v1559
        %v1644 = vand.u32 %v1643, 8388607
        %v1645 = vor.u32 %v1644, 8388608
        %v1646 = vsub.s32 0, %v1645
        %v1647 = vadd.s32 %v1642, 1
        %vm1648 = vcmp.gt.s32.totalorder %v1647, 0
        %v1649 = vsel %vm1648, %v1647, 0
        %v1650 = vshrl.u32 %v1649, 5
        %v1651 = vand.u32 %v1649, 31
        %v1652 = vsub.s32 32, %v1651
        %v1653 = vshrl.u32 683565275, %v1652
        %v1654 = vshll.u32 683565275, %v1651
        %v1655 = vshrl.u32 2475754826, %v1652
        %v1656 = vor.u32 %v1654, %v1655
        %v1657 = vshll.u32 2475754826, %v1651
        %v1658 = vshrl.u32 2131351028, %v1652
        %v1659 = vor.u32 %v1657, %v1658
        %v1660 = vshll.u32 2131351028, %v1651
        %v1661 = vshrl.u32 2102212464, %v1652
        %v1662 = vor.u32 %v1660, %v1661
        %v1663 = vshll.u32 2102212464, %v1651
        %v1664 = vshrl.u32 920167782, %v1652
        %v1665 = vor.u32 %v1663, %v1664
        %v1666 = vshll.u32 920167782, %v1651
        %v1667 = vshrl.u32 1326507024, %v1652
        %v1668 = vor.u32 %v1666, %v1667
        %vm1669 = vcmp.lt.s32.totalorder %v1650, 1
        %vm1670 = vcmp.lt.s32.totalorder %v1650, 2
        %vm1671 = vcmp.lt.s32.totalorder %v1650, 3
        %vm1672 = vcmp.lt.s32.totalorder %v1650, 4
        %v1673 = vsel %vm1669, %v1653, %v1656
        %v1674 = vsel %vm1672, %v1662, 2102212464
        %v1675 = vsel %vm1671, %v1659, %v1674
        %v1676 = vsel %vm1670, %v1673, %v1675
        %v1677 = vsel %vm1669, %v1656, %v1659
        %v1678 = vsel %vm1672, %v1665, 920167782
        %v1679 = vsel %vm1671, %v1662, %v1678
        %v1680 = vsel %vm1670, %v1677, %v1679
        %v1681 = vsel %vm1669, %v1659, %v1662
        %v1682 = vsel %vm1672, %v1668, 1326507024
        %v1683 = vsel %vm1671, %v1665, %v1682
        %v1684 = vsel %vm1670, %v1681, %v1683
        %v1685 = vshll.u32 %v1645, 8
        %v1686 = vmul.u32.u64.compose %v1685, %v1684
        %v1687 = vextract.low.u32 %v1686
        %v1688 = vextract.high.u32 %v1686
        %v1689 = vmul.u32.u64.compose %v1685, %v1680
        %v1690 = vextract.low.u32 %v1689
        %v1691 = vextract.high.u32 %v1689
        %v1692 = vmul.u32 %v1685, %v1676
        %v1693 = vadd.s32 %v1688, %v1690
        %vm1694 = vc.u32 %v1688, %v1690
        %v1695 = vadd.s32 %v1691, 1
        %v1696 = vsel %vm1694, %v1695, %v1691
        %v1697 = vadd.s32 %v1692, %v1696
        %v1698 = vadd.s32 %v1697, 536870912
        %v1699 = vshrl.u32 %v1698, 30
        %v1700 = vshll.u32 %v1699, 30
        %v1701 = vsub.s32 %v1697, %v1700
        %vm1702 = vcmp.lt.s32.totalorder %v1701, 0
        %v1703 = vsub.s32 0, %v1701
        %v1704 = vsel %vm1702, %v1703, %v1701
        %v1705 = vclz %v1704
        %v1706 = vsub.s32 %v1705, 2
        %vm1707 = vcmp.gt.s32.totalorder 0, %v1706
        %v1708 = vsel %vm1707, 0, %v1706
        %v1709 = vsub.s32 32, %v1708
        %v1710 = vshll.u32 %v1701, %v1708
        %v1711 = vshrl.u32 %v1693, %v1709
        %v1712 = vor.u32 %v1710, %v1711
        %v1713 = vsub.s32 4294967266, %v1708
        %v1714 = vadd.s32 %v1713, 127
        %v1715 = vshll.u32 %v1714, 23
        %v1716 = vor.u32 4788187, %v1715
        %v1717 = vand.u32 2147483647, %v1716
        %v1719 = vcvt.s32.f32 %v1712
        %v1720 = vmul.f32 %v1719, %v1717
        %v1721 = vxor.u32 %v1720, 2147483648
        %v1722 = vsel %vm1639, %v1721, %v1720
        %v1723 = vsub.s32 4, %v1699
        %v1724 = vsel %vm1639, %v1723, %v1699
        %v1725 = vsel %vm1638, %v1559, %v1722
        %v1726 = vsel %vm1638, 0, %v1724
        %v1727 = vcosq.f32.pop %v1725
        %v1728 = vsinq.f32.pop %v1725
        %vm1729 = vweird.f32 %v1559
        %v1730 = vadd.s32 %v1726, 3
        %v1731 = vand.u32 %v1730, 3
        %vm1732 = vcmp.lt.s32.totalorder %v1731, 2
        %vm1733 = vcmp.eq.s32.totalorder %v1731, 0
        %v1734 = vxor.u32 %v1728, 2147483648
        %v1735 = vsel %vm1733, %v1727, %v1734
        %vm1736 = vcmp.eq.s32.totalorder %v1731, 2
        %v1737 = vxor.u32 %v1727, 2147483648
        %v1738 = vsel %vm1736, %v1737, %v1728
        %v1739 = vsel %vm1732, %v1735, %v1738
        %v1740 = vsel %vm1729, nan, %v1739
        %v1741 = vand.u32 2147483647, %v1560
        %vm1742 = vcmp.le.f32.partialorder %v1741, 0.7853982
        %vm1743 = vcmp.lt.s32.totalorder %v1560, 0
        %v1744 = vand.u32 %v1560, 2139095040
        %v1745 = vshrl.u32 %v1744, 23
        %v1746 = vsub.s32 %v1745, 127
        %v1747 = vand.u32 2147483647, %v1560
        %v1748 = vand.u32 %v1747, 8388607
        %v1749 = vor.u32 %v1748, 8388608
        %v1750 = vsub.s32 0, %v1749
        %v1751 = vadd.s32 %v1746, 1
        %vm1752 = vcmp.gt.s32.totalorder %v1751, 0
        %v1753 = vsel %vm1752, %v1751, 0
        %v1754 = vshrl.u32 %v1753, 5
        %v1755 = vand.u32 %v1753, 31
        %v1756 = vsub.s32 32, %v1755
        %v1757 = vshrl.u32 683565275, %v1756
        %v1758 = vshll.u32 683565275, %v1755
        %v1759 = vshrl.u32 2475754826, %v1756
        %v1760 = vor.u32 %v1758, %v1759
        %v1761 = vshll.u32 2475754826, %v1755
        %v1762 = vshrl.u32 2131351028, %v1756
        %v1763 = vor.u32 %v1761, %v1762
        %v1764 = vshll.u32 2131351028, %v1755
        %v1765 = vshrl.u32 2102212464, %v1756
        %v1766 = vor.u32 %v1764, %v1765
        %v1767 = vshll.u32 2102212464, %v1755
        %v1768 = vshrl.u32 920167782, %v1756
        %v1769 = vor.u32 %v1767, %v1768
        %v1770 = vshll.u32 920167782, %v1755
        %v1771 = vshrl.u32 1326507024, %v1756
        %v1772 = vor.u32 %v1770, %v1771
        %vm1773 = vcmp.lt.s32.totalorder %v1754, 1
        %vm1774 = vcmp.lt.s32.totalorder %v1754, 2
        %vm1775 = vcmp.lt.s32.totalorder %v1754, 3
        %vm1776 = vcmp.lt.s32.totalorder %v1754, 4
        %v1777 = vsel %vm1773, %v1757, %v1760
        %v1778 = vsel %vm1776, %v1766, 2102212464
        %v1779 = vsel %vm1775, %v1763, %v1778
        %v1780 = vsel %vm1774, %v1777, %v1779
        %v1781 = vsel %vm1773, %v1760, %v1763
        %v1782 = vsel %vm1776, %v1769, 920167782
        %v1783 = vsel %vm1775, %v1766, %v1782
        %v1784 = vsel %vm1774, %v1781, %v1783
        %v1785 = vsel %vm1773, %v1763, %v1766
        %v1786 = vsel %vm1776, %v1772, 1326507024
        %v1787 = vsel %vm1775, %v1769, %v1786
        %v1788 = vsel %vm1774, %v1785, %v1787
        %v1789 = vshll.u32 %v1749, 8
        %v1790 = vmul.u32.u64.compose %v1789, %v1788
        %v1791 = vextract.low.u32 %v1790
        %v1792 = vextract.high.u32 %v1790
        %v1793 = vmul.u32.u64.compose %v1789, %v1784
        %v1794 = vextract.low.u32 %v1793
        %v1795 = vextract.high.u32 %v1793
        %v1796 = vmul.u32 %v1789, %v1780
        %v1797 = vadd.s32 %v1792, %v1794
        %vm1798 = vc.u32 %v1792, %v1794
        %v1799 = vadd.s32 %v1795, 1
        %v1800 = vsel %vm1798, %v1799, %v1795
        %v1801 = vadd.s32 %v1796, %v1800
        %v1802 = vadd.s32 %v1801, 536870912
        %v1803 = vshrl.u32 %v1802, 30
        %v1804 = vshll.u32 %v1803, 30
        %v1805 = vsub.s32 %v1801, %v1804
        %vm1806 = vcmp.lt.s32.totalorder %v1805, 0
        %v1807 = vsub.s32 0, %v1805
        %v1808 = vsel %vm1806, %v1807, %v1805
        %v1809 = vclz %v1808
        %v1810 = vsub.s32 %v1809, 2
        %vm1811 = vcmp.gt.s32.totalorder 0, %v1810
        %v1812 = vsel %vm1811, 0, %v1810
        %v1813 = vsub.s32 32, %v1812
        %v1814 = vshll.u32 %v1805, %v1812
        %v1815 = vshrl.u32 %v1797, %v1813
        %v1816 = vor.u32 %v1814, %v1815
        %v1817 = vsub.s32 4294967266, %v1812
        %v1818 = vadd.s32 %v1817, 127
        %v1819 = vshll.u32 %v1818, 23
        %v1820 = vor.u32 4788187, %v1819
        %v1821 = vand.u32 2147483647, %v1820
        %v1823 = vcvt.s32.f32 %v1816
        %v1824 = vmul.f32 %v1823, %v1821
        %v1825 = vxor.u32 %v1824, 2147483648
        %v1826 = vsel %vm1743, %v1825, %v1824
        %v1827 = vsub.s32 4, %v1803
        %v1828 = vsel %vm1743, %v1827, %v1803
        %v1829 = vsel %vm1742, %v1560, %v1826
        %v1830 = vsel %vm1742, 0, %v1828
        %v1831 = vcosq.f32.pop %v1829
        %v1832 = vsinq.f32.pop %v1829
        %vm1833 = vweird.f32 %v1560
        %v1834 = vadd.s32 %v1830, 3
        %v1835 = vand.u32 %v1834, 3
        %vm1836 = vcmp.lt.s32.totalorder %v1835, 2
        %vm1837 = vcmp.eq.s32.totalorder %v1835, 0
        %v1838 = vxor.u32 %v1832, 2147483648
        %v1839 = vsel %vm1837, %v1831, %v1838
        %vm1840 = vcmp.eq.s32.totalorder %v1835, 2
        %v1841 = vxor.u32 %v1831, 2147483648
        %v1842 = vsel %vm1840, %v1841, %v1832
        %v1843 = vsel %vm1836, %v1839, %v1842
        %v1844 = vsel %vm1833, nan, %v1843
        %v1845 = vand.u32 2147483647, %v1561
        %vm1846 = vcmp.le.f32.partialorder %v1845, 0.7853982
        %vm1847 = vcmp.lt.s32.totalorder %v1561, 0
        %v1848 = vand.u32 %v1561, 2139095040
        %v1849 = vshrl.u32 %v1848, 23
        %v1850 = vsub.s32 %v1849, 127
        %v1851 = vand.u32 2147483647, %v1561
        %v1852 = vand.u32 %v1851, 8388607
        %v1853 = vor.u32 %v1852, 8388608
        %v1854 = vsub.s32 0, %v1853
        %v1855 = vadd.s32 %v1850, 1
        %vm1856 = vcmp.gt.s32.totalorder %v1855, 0
        %v1857 = vsel %vm1856, %v1855, 0
        %v1858 = vshrl.u32 %v1857, 5
        %v1859 = vand.u32 %v1857, 31
        %v1860 = vsub.s32 32, %v1859
        %v1861 = vshrl.u32 683565275, %v1860
        %v1862 = vshll.u32 683565275, %v1859
        %v1863 = vshrl.u32 2475754826, %v1860
        %v1864 = vor.u32 %v1862, %v1863
        %v1865 = vshll.u32 2475754826, %v1859
        %v1866 = vshrl.u32 2131351028, %v1860
        %v1867 = vor.u32 %v1865, %v1866
        %v1868 = vshll.u32 2131351028, %v1859
        %v1869 = vshrl.u32 2102212464, %v1860
        %v1870 = vor.u32 %v1868, %v1869
        %v1871 = vshll.u32 2102212464, %v1859
        %v1872 = vshrl.u32 920167782, %v1860
        %v1873 = vor.u32 %v1871, %v1872
        %v1874 = vshll.u32 920167782, %v1859
        %v1875 = vshrl.u32 1326507024, %v1860
        %v1876 = vor.u32 %v1874, %v1875
        %vm1877 = vcmp.lt.s32.totalorder %v1858, 1
        %vm1878 = vcmp.lt.s32.totalorder %v1858, 2
        %vm1879 = vcmp.lt.s32.totalorder %v1858, 3
        %vm1880 = vcmp.lt.s32.totalorder %v1858, 4
        %v1881 = vsel %vm1877, %v1861, %v1864
        %v1882 = vsel %vm1880, %v1870, 2102212464
        %v1883 = vsel %vm1879, %v1867, %v1882
        %v1884 = vsel %vm1878, %v1881, %v1883
        %v1885 = vsel %vm1877, %v1864, %v1867
        %v1886 = vsel %vm1880, %v1873, 920167782
        %v1887 = vsel %vm1879, %v1870, %v1886
        %v1888 = vsel %vm1878, %v1885, %v1887
        %v1889 = vsel %vm1877, %v1867, %v1870
        %v1890 = vsel %vm1880, %v1876, 1326507024
        %v1891 = vsel %vm1879, %v1873, %v1890
        %v1892 = vsel %vm1878, %v1889, %v1891
        %v1893 = vshll.u32 %v1853, 8
        %v1894 = vmul.u32.u64.compose %v1893, %v1892
        %v1895 = vextract.low.u32 %v1894
        %v1896 = vextract.high.u32 %v1894
        %v1897 = vmul.u32.u64.compose %v1893, %v1888
        %v1898 = vextract.low.u32 %v1897
        %v1899 = vextract.high.u32 %v1897
        %v1900 = vmul.u32 %v1893, %v1884
        %v1901 = vadd.s32 %v1896, %v1898
        %vm1902 = vc.u32 %v1896, %v1898
        %v1903 = vadd.s32 %v1899, 1
        %v1904 = vsel %vm1902, %v1903, %v1899
        %v1905 = vadd.s32 %v1900, %v1904
        %v1906 = vadd.s32 %v1905, 536870912
        %v1907 = vshrl.u32 %v1906, 30
        %v1908 = vshll.u32 %v1907, 30
        %v1909 = vsub.s32 %v1905, %v1908
        %vm1910 = vcmp.lt.s32.totalorder %v1909, 0
        %v1911 = vsub.s32 0, %v1909
        %v1912 = vsel %vm1910, %v1911, %v1909
        %v1913 = vclz %v1912
        %v1914 = vsub.s32 %v1913, 2
        %vm1915 = vcmp.gt.s32.totalorder 0, %v1914
        %v1916 = vsel %vm1915, 0, %v1914
        %v1917 = vsub.s32 32, %v1916
        %v1918 = vshll.u32 %v1909, %v1916
        %v1919 = vshrl.u32 %v1901, %v1917
        %v1920 = vor.u32 %v1918, %v1919
        %v1921 = vsub.s32 4294967266, %v1916
        %v1922 = vadd.s32 %v1921, 127
        %v1923 = vshll.u32 %v1922, 23
        %v1924 = vor.u32 4788187, %v1923
        %v1925 = vand.u32 2147483647, %v1924
        %v1927 = vcvt.s32.f32 %v1920
        %v1928 = vmul.f32 %v1927, %v1925
        %v1929 = vxor.u32 %v1928, 2147483648
        %v1930 = vsel %vm1847, %v1929, %v1928
        %v1931 = vsub.s32 4, %v1907
        %v1932 = vsel %vm1847, %v1931, %v1907
        %v1933 = vsel %vm1846, %v1561, %v1930
        %v1934 = vsel %vm1846, 0, %v1932
        %v1935 = vcosq.f32.pop %v1933
        %v1936 = vsinq.f32.pop %v1933
        %vm1937 = vweird.f32 %v1561
        %v1938 = vadd.s32 %v1934, 3
        %v1939 = vand.u32 %v1938, 3
        %vm1940 = vcmp.lt.s32.totalorder %v1939, 2
        %vm1941 = vcmp.eq.s32.totalorder %v1939, 0
        %v1942 = vxor.u32 %v1936, 2147483648
        %v1943 = vsel %vm1941, %v1935, %v1942
        %vm1944 = vcmp.eq.s32.totalorder %v1939, 2
        %v1945 = vxor.u32 %v1935, 2147483648
        %v1946 = vsel %vm1944, %v1945, %v1936
        %v1947 = vsel %vm1940, %v1943, %v1946
        %v1948 = vsel %vm1937, nan, %v1947
        %v1949 = vand.u32 2147483647, %v1562
        %vm1950 = vcmp.le.f32.partialorder %v1949, 0.7853982
        %vm1951 = vcmp.lt.s32.totalorder %v1562, 0
        %v1952 = vand.u32 %v1562, 2139095040
        %v1953 = vshrl.u32 %v1952, 23
        %v1954 = vsub.s32 %v1953, 127
        %v1955 = vand.u32 2147483647, %v1562
        %v1956 = vand.u32 %v1955, 8388607
        %v1957 = vor.u32 %v1956, 8388608
        %v1958 = vsub.s32 0, %v1957
        %v1959 = vadd.s32 %v1954, 1
        %vm1960 = vcmp.gt.s32.totalorder %v1959, 0
        %v1961 = vsel %vm1960, %v1959, 0
        %v1962 = vshrl.u32 %v1961, 5
        %v1963 = vand.u32 %v1961, 31
        %v1964 = vsub.s32 32, %v1963
        %v1965 = vshrl.u32 683565275, %v1964
        %v1966 = vshll.u32 683565275, %v1963
        %v1967 = vshrl.u32 2475754826, %v1964
        %v1968 = vor.u32 %v1966, %v1967
        %v1969 = vshll.u32 2475754826, %v1963
        %v1970 = vshrl.u32 2131351028, %v1964
        %v1971 = vor.u32 %v1969, %v1970
        %v1972 = vshll.u32 2131351028, %v1963
        %v1973 = vshrl.u32 2102212464, %v1964
        %v1974 = vor.u32 %v1972, %v1973
        %v1975 = vshll.u32 2102212464, %v1963
        %v1976 = vshrl.u32 920167782, %v1964
        %v1977 = vor.u32 %v1975, %v1976
        %v1978 = vshll.u32 920167782, %v1963
        %v1979 = vshrl.u32 1326507024, %v1964
        %v1980 = vor.u32 %v1978, %v1979
        %vm1981 = vcmp.lt.s32.totalorder %v1962, 1
        %vm1982 = vcmp.lt.s32.totalorder %v1962, 2
        %vm1983 = vcmp.lt.s32.totalorder %v1962, 3
        %vm1984 = vcmp.lt.s32.totalorder %v1962, 4
        %v1985 = vsel %vm1981, %v1965, %v1968
        %v1986 = vsel %vm1984, %v1974, 2102212464
        %v1987 = vsel %vm1983, %v1971, %v1986
        %v1988 = vsel %vm1982, %v1985, %v1987
        %v1989 = vsel %vm1981, %v1968, %v1971
        %v1990 = vsel %vm1984, %v1977, 920167782
        %v1991 = vsel %vm1983, %v1974, %v1990
        %v1992 = vsel %vm1982, %v1989, %v1991
        %v1993 = vsel %vm1981, %v1971, %v1974
        %v1994 = vsel %vm1984, %v1980, 1326507024
        %v1995 = vsel %vm1983, %v1977, %v1994
        %v1996 = vsel %vm1982, %v1993, %v1995
        %v1997 = vshll.u32 %v1957, 8
        %v1998 = vmul.u32.u64.compose %v1997, %v1996
        %v1999 = vextract.low.u32 %v1998
        %v2000 = vextract.high.u32 %v1998
        %v2001 = vmul.u32.u64.compose %v1997, %v1992
        %v2002 = vextract.low.u32 %v2001
        %v2003 = vextract.high.u32 %v2001
        %v2004 = vmul.u32 %v1997, %v1988
        %v2005 = vadd.s32 %v2000, %v2002
        %vm2006 = vc.u32 %v2000, %v2002
        %v2007 = vadd.s32 %v2003, 1
        %v2008 = vsel %vm2006, %v2007, %v2003
        %v2009 = vadd.s32 %v2004, %v2008
        %v2010 = vadd.s32 %v2009, 536870912
        %v2011 = vshrl.u32 %v2010, 30
        %v2012 = vshll.u32 %v2011, 30
        %v2013 = vsub.s32 %v2009, %v2012
        %vm2014 = vcmp.lt.s32.totalorder %v2013, 0
        %v2015 = vsub.s32 0, %v2013
        %v2016 = vsel %vm2014, %v2015, %v2013
        %v2017 = vclz %v2016
        %v2018 = vsub.s32 %v2017, 2
        %vm2019 = vcmp.gt.s32.totalorder 0, %v2018
        %v2020 = vsel %vm2019, 0, %v2018
        %v2021 = vsub.s32 32, %v2020
        %v2022 = vshll.u32 %v2013, %v2020
        %v2023 = vshrl.u32 %v2005, %v2021
        %v2024 = vor.u32 %v2022, %v2023
        %v2025 = vsub.s32 4294967266, %v2020
        %v2026 = vadd.s32 %v2025, 127
        %v2027 = vshll.u32 %v2026, 23
        %v2028 = vor.u32 4788187, %v2027
        %v2029 = vand.u32 2147483647, %v2028
        %v2031 = vcvt.s32.f32 %v2024
        %v2032 = vmul.f32 %v2031, %v2029
        %v2033 = vxor.u32 %v2032, 2147483648
        %v2034 = vsel %vm1951, %v2033, %v2032
        %v2035 = vsub.s32 4, %v2011
        %v2036 = vsel %vm1951, %v2035, %v2011
        %v2037 = vsel %vm1950, %v1562, %v2034
        %v2038 = vsel %vm1950, 0, %v2036
        %v2039 = vcosq.f32.pop %v2037
        %v2040 = vsinq.f32.pop %v2037
        %vm2041 = vweird.f32 %v1562
        %v2042 = vadd.s32 %v2038, 3
        %v2043 = vand.u32 %v2042, 3
        %vm2044 = vcmp.lt.s32.totalorder %v2043, 2
        %vm2045 = vcmp.eq.s32.totalorder %v2043, 0
        %v2046 = vxor.u32 %v2040, 2147483648
        %v2047 = vsel %vm2045, %v2039, %v2046
        %vm2048 = vcmp.eq.s32.totalorder %v2043, 2
        %v2049 = vxor.u32 %v2039, 2147483648
        %v2050 = vsel %vm2048, %v2049, %v2040
        %v2051 = vsel %vm2044, %v2047, %v2050
        %v2052 = vsel %vm2041, nan, %v2051
        %v2053 = vand.u32 2147483647, %v1563
        %vm2054 = vcmp.le.f32.partialorder %v2053, 0.7853982
        %vm2055 = vcmp.lt.s32.totalorder %v1563, 0
        %v2056 = vand.u32 %v1563, 2139095040
        %v2057 = vshrl.u32 %v2056, 23
        %v2058 = vsub.s32 %v2057, 127
        %v2059 = vand.u32 2147483647, %v1563
        %v2060 = vand.u32 %v2059, 8388607
        %v2061 = vor.u32 %v2060, 8388608
        %v2062 = vsub.s32 0, %v2061
        %v2063 = vadd.s32 %v2058, 1
        %vm2064 = vcmp.gt.s32.totalorder %v2063, 0
        %v2065 = vsel %vm2064, %v2063, 0
        %v2066 = vshrl.u32 %v2065, 5
        %v2067 = vand.u32 %v2065, 31
        %v2068 = vsub.s32 32, %v2067
        %v2069 = vshrl.u32 683565275, %v2068
        %v2070 = vshll.u32 683565275, %v2067
        %v2071 = vshrl.u32 2475754826, %v2068
        %v2072 = vor.u32 %v2070, %v2071
        %v2073 = vshll.u32 2475754826, %v2067
        %v2074 = vshrl.u32 2131351028, %v2068
        %v2075 = vor.u32 %v2073, %v2074
        %v2076 = vshll.u32 2131351028, %v2067
        %v2077 = vshrl.u32 2102212464, %v2068
        %v2078 = vor.u32 %v2076, %v2077
        %v2079 = vshll.u32 2102212464, %v2067
        %v2080 = vshrl.u32 920167782, %v2068
        %v2081 = vor.u32 %v2079, %v2080
        %v2082 = vshll.u32 920167782, %v2067
        %v2083 = vshrl.u32 1326507024, %v2068
        %v2084 = vor.u32 %v2082, %v2083
        %vm2085 = vcmp.lt.s32.totalorder %v2066, 1
        %vm2086 = vcmp.lt.s32.totalorder %v2066, 2
        %vm2087 = vcmp.lt.s32.totalorder %v2066, 3
        %vm2088 = vcmp.lt.s32.totalorder %v2066, 4
        %v2089 = vsel %vm2085, %v2069, %v2072
        %v2090 = vsel %vm2088, %v2078, 2102212464
        %v2091 = vsel %vm2087, %v2075, %v2090
        %v2092 = vsel %vm2086, %v2089, %v2091
        %v2093 = vsel %vm2085, %v2072, %v2075
        %v2094 = vsel %vm2088, %v2081, 920167782
        %v2095 = vsel %vm2087, %v2078, %v2094
        %v2096 = vsel %vm2086, %v2093, %v2095
        %v2097 = vsel %vm2085, %v2075, %v2078
        %v2098 = vsel %vm2088, %v2084, 1326507024
        %v2099 = vsel %vm2087, %v2081, %v2098
        %v2100 = vsel %vm2086, %v2097, %v2099
        %v2101 = vshll.u32 %v2061, 8
        %v2102 = vmul.u32.u64.compose %v2101, %v2100
        %v2103 = vextract.low.u32 %v2102
        %v2104 = vextract.high.u32 %v2102
        %v2105 = vmul.u32.u64.compose %v2101, %v2096
        %v2106 = vextract.low.u32 %v2105
        %v2107 = vextract.high.u32 %v2105
        %v2108 = vmul.u32 %v2101, %v2092
        %v2109 = vadd.s32 %v2104, %v2106
        %vm2110 = vc.u32 %v2104, %v2106
        %v2111 = vadd.s32 %v2107, 1
        %v2112 = vsel %vm2110, %v2111, %v2107
        %v2113 = vadd.s32 %v2108, %v2112
        %v2114 = vadd.s32 %v2113, 536870912
        %v2115 = vshrl.u32 %v2114, 30
        %v2116 = vshll.u32 %v2115, 30
        %v2117 = vsub.s32 %v2113, %v2116
        %vm2118 = vcmp.lt.s32.totalorder %v2117, 0
        %v2119 = vsub.s32 0, %v2117
        %v2120 = vsel %vm2118, %v2119, %v2117
        %v2121 = vclz %v2120
        %v2122 = vsub.s32 %v2121, 2
        %vm2123 = vcmp.gt.s32.totalorder 0, %v2122
        %v2124 = vsel %vm2123, 0, %v2122
        %v2125 = vsub.s32 32, %v2124
        %v2126 = vshll.u32 %v2117, %v2124
        %v2127 = vshrl.u32 %v2109, %v2125
        %v2128 = vor.u32 %v2126, %v2127
        %v2129 = vsub.s32 4294967266, %v2124
        %v2130 = vadd.s32 %v2129, 127
        %v2131 = vshll.u32 %v2130, 23
        %v2132 = vor.u32 4788187, %v2131
        %v2133 = vand.u32 2147483647, %v2132
        %v2135 = vcvt.s32.f32 %v2128
        %v2136 = vmul.f32 %v2135, %v2133
        %v2137 = vxor.u32 %v2136, 2147483648
        %v2138 = vsel %vm2055, %v2137, %v2136
        %v2139 = vsub.s32 4, %v2115
        %v2140 = vsel %vm2055, %v2139, %v2115
        %v2141 = vsel %vm2054, %v1563, %v2138
        %v2142 = vsel %vm2054, 0, %v2140
        %v2143 = vcosq.f32.pop %v2141
        %v2144 = vsinq.f32.pop %v2141
        %vm2145 = vweird.f32 %v1563
        %v2146 = vadd.s32 %v2142, 3
        %v2147 = vand.u32 %v2146, 3
        %vm2148 = vcmp.lt.s32.totalorder %v2147, 2
        %vm2149 = vcmp.eq.s32.totalorder %v2147, 0
        %v2150 = vxor.u32 %v2144, 2147483648
        %v2151 = vsel %vm2149, %v2143, %v2150
        %vm2152 = vcmp.eq.s32.totalorder %v2147, 2
        %v2153 = vxor.u32 %v2143, 2147483648
        %v2154 = vsel %vm2152, %v2153, %v2144
        %v2155 = vsel %vm2148, %v2151, %v2154
        %v2156 = vsel %vm2145, nan, %v2155
        %v2157 = vand.u32 2147483647, %v1564
        %vm2158 = vcmp.le.f32.partialorder %v2157, 0.7853982
        %vm2159 = vcmp.lt.s32.totalorder %v1564, 0
        %v2160 = vand.u32 %v1564, 2139095040
        %v2161 = vshrl.u32 %v2160, 23
        %v2162 = vsub.s32 %v2161, 127
        %v2163 = vand.u32 2147483647, %v1564
        %v2164 = vand.u32 %v2163, 8388607
        %v2165 = vor.u32 %v2164, 8388608
        %v2166 = vsub.s32 0, %v2165
        %v2167 = vadd.s32 %v2162, 1
        %vm2168 = vcmp.gt.s32.totalorder %v2167, 0
        %v2169 = vsel %vm2168, %v2167, 0
        %v2170 = vshrl.u32 %v2169, 5
        %v2171 = vand.u32 %v2169, 31
        %v2172 = vsub.s32 32, %v2171
        %v2173 = vshrl.u32 683565275, %v2172
        %v2174 = vshll.u32 683565275, %v2171
        %v2175 = vshrl.u32 2475754826, %v2172
        %v2176 = vor.u32 %v2174, %v2175
        %v2177 = vshll.u32 2475754826, %v2171
        %v2178 = vshrl.u32 2131351028, %v2172
        %v2179 = vor.u32 %v2177, %v2178
        %v2180 = vshll.u32 2131351028, %v2171
        %v2181 = vshrl.u32 2102212464, %v2172
        %v2182 = vor.u32 %v2180, %v2181
        %v2183 = vshll.u32 2102212464, %v2171
        %v2184 = vshrl.u32 920167782, %v2172
        %v2185 = vor.u32 %v2183, %v2184
        %v2186 = vshll.u32 920167782, %v2171
        %v2187 = vshrl.u32 1326507024, %v2172
        %v2188 = vor.u32 %v2186, %v2187
        %vm2189 = vcmp.lt.s32.totalorder %v2170, 1
        %vm2190 = vcmp.lt.s32.totalorder %v2170, 2
        %vm2191 = vcmp.lt.s32.totalorder %v2170, 3
        %vm2192 = vcmp.lt.s32.totalorder %v2170, 4
        %v2193 = vsel %vm2189, %v2173, %v2176
        %v2194 = vsel %vm2192, %v2182, 2102212464
        %v2195 = vsel %vm2191, %v2179, %v2194
        %v2196 = vsel %vm2190, %v2193, %v2195
        %v2197 = vsel %vm2189, %v2176, %v2179
        %v2198 = vsel %vm2192, %v2185, 920167782
        %v2199 = vsel %vm2191, %v2182, %v2198
        %v2200 = vsel %vm2190, %v2197, %v2199
        %v2201 = vsel %vm2189, %v2179, %v2182
        %v2202 = vsel %vm2192, %v2188, 1326507024
        %v2203 = vsel %vm2191, %v2185, %v2202
        %v2204 = vsel %vm2190, %v2201, %v2203
        %v2205 = vshll.u32 %v2165, 8
        %v2206 = vmul.u32.u64.compose %v2205, %v2204
        %v2207 = vextract.low.u32 %v2206
        %v2208 = vextract.high.u32 %v2206
        %v2209 = vmul.u32.u64.compose %v2205, %v2200
        %v2210 = vextract.low.u32 %v2209
        %v2211 = vextract.high.u32 %v2209
        %v2212 = vmul.u32 %v2205, %v2196
        %v2213 = vadd.s32 %v2208, %v2210
        %vm2214 = vc.u32 %v2208, %v2210
        %v2215 = vadd.s32 %v2211, 1
        %v2216 = vsel %vm2214, %v2215, %v2211
        %v2217 = vadd.s32 %v2212, %v2216
        %v2218 = vadd.s32 %v2217, 536870912
        %v2219 = vshrl.u32 %v2218, 30
        %v2220 = vshll.u32 %v2219, 30
        %v2221 = vsub.s32 %v2217, %v2220
        %vm2222 = vcmp.lt.s32.totalorder %v2221, 0
        %v2223 = vsub.s32 0, %v2221
        %v2224 = vsel %vm2222, %v2223, %v2221
        %v2225 = vclz %v2224
        %v2226 = vsub.s32 %v2225, 2
        %vm2227 = vcmp.gt.s32.totalorder 0, %v2226
        %v2228 = vsel %vm2227, 0, %v2226
        %v2229 = vsub.s32 32, %v2228
        %v2230 = vshll.u32 %v2221, %v2228
        %v2231 = vshrl.u32 %v2213, %v2229
        %v2232 = vor.u32 %v2230, %v2231
        %v2233 = vsub.s32 4294967266, %v2228
        %v2234 = vadd.s32 %v2233, 127
        %v2235 = vshll.u32 %v2234, 23
        %v2236 = vor.u32 4788187, %v2235
        %v2237 = vand.u32 2147483647, %v2236
        %v2239 = vcvt.s32.f32 %v2232
        %v2240 = vmul.f32 %v2239, %v2237
        %v2241 = vxor.u32 %v2240, 2147483648
        %v2242 = vsel %vm2159, %v2241, %v2240
        %v2243 = vsub.s32 4, %v2219
        %v2244 = vsel %vm2159, %v2243, %v2219
        %v2245 = vsel %vm2158, %v1564, %v2242
        %v2246 = vsel %vm2158, 0, %v2244
        %v2247 = vcosq.f32.pop %v2245
        %v2248 = vsinq.f32.pop %v2245
        %vm2249 = vweird.f32 %v1564
        %v2250 = vadd.s32 %v2246, 3
        %v2251 = vand.u32 %v2250, 3
        %vm2252 = vcmp.lt.s32.totalorder %v2251, 2
        %vm2253 = vcmp.eq.s32.totalorder %v2251, 0
        %v2254 = vxor.u32 %v2248, 2147483648
        %v2255 = vsel %vm2253, %v2247, %v2254
        %vm2256 = vcmp.eq.s32.totalorder %v2251, 2
        %v2257 = vxor.u32 %v2247, 2147483648
        %v2258 = vsel %vm2256, %v2257, %v2248
        %v2259 = vsel %vm2252, %v2255, %v2258
        %v2260 = vsel %vm2249, nan, %v2259
        %v2261 = vand.u32 2147483647, %v1565
        %vm2262 = vcmp.le.f32.partialorder %v2261, 0.7853982
        %vm2263 = vcmp.lt.s32.totalorder %v1565, 0
        %v2264 = vand.u32 %v1565, 2139095040
        %v2265 = vshrl.u32 %v2264, 23
        %v2266 = vsub.s32 %v2265, 127
        %v2267 = vand.u32 2147483647, %v1565
        %v2268 = vand.u32 %v2267, 8388607
        %v2269 = vor.u32 %v2268, 8388608
        %v2270 = vsub.s32 0, %v2269
        %v2271 = vadd.s32 %v2266, 1
        %vm2272 = vcmp.gt.s32.totalorder %v2271, 0
        %v2273 = vsel %vm2272, %v2271, 0
        %v2274 = vshrl.u32 %v2273, 5
        %v2275 = vand.u32 %v2273, 31
        %v2276 = vsub.s32 32, %v2275
        %v2277 = vshrl.u32 683565275, %v2276
        %v2278 = vshll.u32 683565275, %v2275
        %v2279 = vshrl.u32 2475754826, %v2276
        %v2280 = vor.u32 %v2278, %v2279
        %v2281 = vshll.u32 2475754826, %v2275
        %v2282 = vshrl.u32 2131351028, %v2276
        %v2283 = vor.u32 %v2281, %v2282
        %v2284 = vshll.u32 2131351028, %v2275
        %v2285 = vshrl.u32 2102212464, %v2276
        %v2286 = vor.u32 %v2284, %v2285
        %v2287 = vshll.u32 2102212464, %v2275
        %v2288 = vshrl.u32 920167782, %v2276
        %v2289 = vor.u32 %v2287, %v2288
        %v2290 = vshll.u32 920167782, %v2275
        %v2291 = vshrl.u32 1326507024, %v2276
        %v2292 = vor.u32 %v2290, %v2291
        %vm2293 = vcmp.lt.s32.totalorder %v2274, 1
        %vm2294 = vcmp.lt.s32.totalorder %v2274, 2
        %vm2295 = vcmp.lt.s32.totalorder %v2274, 3
        %vm2296 = vcmp.lt.s32.totalorder %v2274, 4
        %v2297 = vsel %vm2293, %v2277, %v2280
        %v2298 = vsel %vm2296, %v2286, 2102212464
        %v2299 = vsel %vm2295, %v2283, %v2298
        %v2300 = vsel %vm2294, %v2297, %v2299
        %v2301 = vsel %vm2293, %v2280, %v2283
        %v2302 = vsel %vm2296, %v2289, 920167782
        %v2303 = vsel %vm2295, %v2286, %v2302
        %v2304 = vsel %vm2294, %v2301, %v2303
        %v2305 = vsel %vm2293, %v2283, %v2286
        %v2306 = vsel %vm2296, %v2292, 1326507024
        %v2307 = vsel %vm2295, %v2289, %v2306
        %v2308 = vsel %vm2294, %v2305, %v2307
        %v2309 = vshll.u32 %v2269, 8
        %v2310 = vmul.u32.u64.compose %v2309, %v2308
        %v2311 = vextract.low.u32 %v2310
        %v2312 = vextract.high.u32 %v2310
        %v2313 = vmul.u32.u64.compose %v2309, %v2304
        %v2314 = vextract.low.u32 %v2313
        %v2315 = vextract.high.u32 %v2313
        %v2316 = vmul.u32 %v2309, %v2300
        %v2317 = vadd.s32 %v2312, %v2314
        %vm2318 = vc.u32 %v2312, %v2314
        %v2319 = vadd.s32 %v2315, 1
        %v2320 = vsel %vm2318, %v2319, %v2315
        %v2321 = vadd.s32 %v2316, %v2320
        %v2322 = vadd.s32 %v2321, 536870912
        %v2323 = vshrl.u32 %v2322, 30
        %v2324 = vshll.u32 %v2323, 30
        %v2325 = vsub.s32 %v2321, %v2324
        %vm2326 = vcmp.lt.s32.totalorder %v2325, 0
        %v2327 = vsub.s32 0, %v2325
        %v2328 = vsel %vm2326, %v2327, %v2325
        %v2329 = vclz %v2328
        %v2330 = vsub.s32 %v2329, 2
        %vm2331 = vcmp.gt.s32.totalorder 0, %v2330
        %v2332 = vsel %vm2331, 0, %v2330
        %v2333 = vsub.s32 32, %v2332
        %v2334 = vshll.u32 %v2325, %v2332
        %v2335 = vshrl.u32 %v2317, %v2333
        %v2336 = vor.u32 %v2334, %v2335
        %v2337 = vsub.s32 4294967266, %v2332
        %v2338 = vadd.s32 %v2337, 127
        %v2339 = vshll.u32 %v2338, 23
        %v2340 = vor.u32 4788187, %v2339
        %v2341 = vand.u32 2147483647, %v2340
        %v2343 = vcvt.s32.f32 %v2336
        %v2344 = vmul.f32 %v2343, %v2341
        %v2345 = vxor.u32 %v2344, 2147483648
        %v2346 = vsel %vm2263, %v2345, %v2344
        %v2347 = vsub.s32 4, %v2323
        %v2348 = vsel %vm2263, %v2347, %v2323
        %v2349 = vsel %vm2262, %v1565, %v2346
        %v2350 = vsel %vm2262, 0, %v2348
        %v2351 = vcosq.f32.pop %v2349
        %v2352 = vsinq.f32.pop %v2349
        %vm2353 = vweird.f32 %v1565
        %v2354 = vadd.s32 %v2350, 3
        %v2355 = vand.u32 %v2354, 3
        %vm2356 = vcmp.lt.s32.totalorder %v2355, 2
        %vm2357 = vcmp.eq.s32.totalorder %v2355, 0
        %v2358 = vxor.u32 %v2352, 2147483648
        %v2359 = vsel %vm2357, %v2351, %v2358
        %vm2360 = vcmp.eq.s32.totalorder %v2355, 2
        %v2361 = vxor.u32 %v2351, 2147483648
        %v2362 = vsel %vm2360, %v2361, %v2352
        %v2363 = vsel %vm2356, %v2359, %v2362
        %v2364 = vsel %vm2353, nan, %v2363
        %v2365 = vand.u32 2147483647, %v1566
        %vm2366 = vcmp.le.f32.partialorder %v2365, 0.7853982
        %vm2367 = vcmp.lt.s32.totalorder %v1566, 0
        %v2368 = vand.u32 %v1566, 2139095040
        %v2369 = vshrl.u32 %v2368, 23
        %v2370 = vsub.s32 %v2369, 127
        %v2371 = vand.u32 2147483647, %v1566
        %v2372 = vand.u32 %v2371, 8388607
        %v2373 = vor.u32 %v2372, 8388608
        %v2374 = vsub.s32 0, %v2373
        %v2375 = vadd.s32 %v2370, 1
        %vm2376 = vcmp.gt.s32.totalorder %v2375, 0
        %v2377 = vsel %vm2376, %v2375, 0
        %v2378 = vshrl.u32 %v2377, 5
        %v2379 = vand.u32 %v2377, 31
        %v2380 = vsub.s32 32, %v2379
        %v2381 = vshrl.u32 683565275, %v2380
        %v2382 = vshll.u32 683565275, %v2379
        %v2383 = vshrl.u32 2475754826, %v2380
        %v2384 = vor.u32 %v2382, %v2383
        %v2385 = vshll.u32 2475754826, %v2379
        %v2386 = vshrl.u32 2131351028, %v2380
        %v2387 = vor.u32 %v2385, %v2386
        %v2388 = vshll.u32 2131351028, %v2379
        %v2389 = vshrl.u32 2102212464, %v2380
        %v2390 = vor.u32 %v2388, %v2389
        %v2391 = vshll.u32 2102212464, %v2379
        %v2392 = vshrl.u32 920167782, %v2380
        %v2393 = vor.u32 %v2391, %v2392
        %v2394 = vshll.u32 920167782, %v2379
        %v2395 = vshrl.u32 1326507024, %v2380
        %v2396 = vor.u32 %v2394, %v2395
        %vm2397 = vcmp.lt.s32.totalorder %v2378, 1
        %vm2398 = vcmp.lt.s32.totalorder %v2378, 2
        %vm2399 = vcmp.lt.s32.totalorder %v2378, 3
        %vm2400 = vcmp.lt.s32.totalorder %v2378, 4
        %v2401 = vsel %vm2397, %v2381, %v2384
        %v2402 = vsel %vm2400, %v2390, 2102212464
        %v2403 = vsel %vm2399, %v2387, %v2402
        %v2404 = vsel %vm2398, %v2401, %v2403
        %v2405 = vsel %vm2397, %v2384, %v2387
        %v2406 = vsel %vm2400, %v2393, 920167782
        %v2407 = vsel %vm2399, %v2390, %v2406
        %v2408 = vsel %vm2398, %v2405, %v2407
        %v2409 = vsel %vm2397, %v2387, %v2390
        %v2410 = vsel %vm2400, %v2396, 1326507024
        %v2411 = vsel %vm2399, %v2393, %v2410
        %v2412 = vsel %vm2398, %v2409, %v2411
        %v2413 = vshll.u32 %v2373, 8
        %v2414 = vmul.u32.u64.compose %v2413, %v2412
        %v2415 = vextract.low.u32 %v2414
        %v2416 = vextract.high.u32 %v2414
        %v2417 = vmul.u32.u64.compose %v2413, %v2408
        %v2418 = vextract.low.u32 %v2417
        %v2419 = vextract.high.u32 %v2417
        %v2420 = vmul.u32 %v2413, %v2404
        %v2421 = vadd.s32 %v2416, %v2418
        %vm2422 = vc.u32 %v2416, %v2418
        %v2423 = vadd.s32 %v2419, 1
        %v2424 = vsel %vm2422, %v2423, %v2419
        %v2425 = vadd.s32 %v2420, %v2424
        %v2426 = vadd.s32 %v2425, 536870912
        %v2427 = vshrl.u32 %v2426, 30
        %v2428 = vshll.u32 %v2427, 30
        %v2429 = vsub.s32 %v2425, %v2428
        %vm2430 = vcmp.lt.s32.totalorder %v2429, 0
        %v2431 = vsub.s32 0, %v2429
        %v2432 = vsel %vm2430, %v2431, %v2429
        %v2433 = vclz %v2432
        %v2434 = vsub.s32 %v2433, 2
        %vm2435 = vcmp.gt.s32.totalorder 0, %v2434
        %v2436 = vsel %vm2435, 0, %v2434
        %v2437 = vsub.s32 32, %v2436
        %v2438 = vshll.u32 %v2429, %v2436
        %v2439 = vshrl.u32 %v2421, %v2437
        %v2440 = vor.u32 %v2438, %v2439
        %v2441 = vsub.s32 4294967266, %v2436
        %v2442 = vadd.s32 %v2441, 127
        %v2443 = vshll.u32 %v2442, 23
        %v2444 = vor.u32 4788187, %v2443
        %v2445 = vand.u32 2147483647, %v2444
        %v2447 = vcvt.s32.f32 %v2440
        %v2448 = vmul.f32 %v2447, %v2445
        %v2449 = vxor.u32 %v2448, 2147483648
        %v2450 = vsel %vm2367, %v2449, %v2448
        %v2451 = vsub.s32 4, %v2427
        %v2452 = vsel %vm2367, %v2451, %v2427
        %v2453 = vsel %vm2366, %v1566, %v2450
        %v2454 = vsel %vm2366, 0, %v2452
        %v2455 = vcosq.f32.pop %v2453
        %v2456 = vsinq.f32.pop %v2453
        %vm2457 = vweird.f32 %v1566
        %v2458 = vadd.s32 %v2454, 3
        %v2459 = vand.u32 %v2458, 3
        %vm2460 = vcmp.lt.s32.totalorder %v2459, 2
        %vm2461 = vcmp.eq.s32.totalorder %v2459, 0
        %v2462 = vxor.u32 %v2456, 2147483648
        %v2463 = vsel %vm2461, %v2455, %v2462
        %vm2464 = vcmp.eq.s32.totalorder %v2459, 2
        %v2465 = vxor.u32 %v2455, 2147483648
        %v2466 = vsel %vm2464, %v2465, %v2456
        %v2467 = vsel %vm2460, %v2463, %v2466
        %v2468 = vsel %vm2457, nan, %v2467
        %v2469 = vand.u32 2147483647, %v1567
        %vm2470 = vcmp.le.f32.partialorder %v2469, 0.7853982
        %vm2471 = vcmp.lt.s32.totalorder %v1567, 0
        %v2472 = vand.u32 %v1567, 2139095040
        %v2473 = vshrl.u32 %v2472, 23
        %v2474 = vsub.s32 %v2473, 127
        %v2475 = vand.u32 2147483647, %v1567
        %v2476 = vand.u32 %v2475, 8388607
        %v2477 = vor.u32 %v2476, 8388608
        %v2478 = vsub.s32 0, %v2477
        %v2479 = vadd.s32 %v2474, 1
        %vm2480 = vcmp.gt.s32.totalorder %v2479, 0
        %v2481 = vsel %vm2480, %v2479, 0
        %v2482 = vshrl.u32 %v2481, 5
        %v2483 = vand.u32 %v2481, 31
        %v2484 = vsub.s32 32, %v2483
        %v2485 = vshrl.u32 683565275, %v2484
        %v2486 = vshll.u32 683565275, %v2483
        %v2487 = vshrl.u32 2475754826, %v2484
        %v2488 = vor.u32 %v2486, %v2487
        %v2489 = vshll.u32 2475754826, %v2483
        %v2490 = vshrl.u32 2131351028, %v2484
        %v2491 = vor.u32 %v2489, %v2490
        %v2492 = vshll.u32 2131351028, %v2483
        %v2493 = vshrl.u32 2102212464, %v2484
        %v2494 = vor.u32 %v2492, %v2493
        %v2495 = vshll.u32 2102212464, %v2483
        %v2496 = vshrl.u32 920167782, %v2484
        %v2497 = vor.u32 %v2495, %v2496
        %v2498 = vshll.u32 920167782, %v2483
        %v2499 = vshrl.u32 1326507024, %v2484
        %v2500 = vor.u32 %v2498, %v2499
        %vm2501 = vcmp.lt.s32.totalorder %v2482, 1
        %vm2502 = vcmp.lt.s32.totalorder %v2482, 2
        %vm2503 = vcmp.lt.s32.totalorder %v2482, 3
        %vm2504 = vcmp.lt.s32.totalorder %v2482, 4
        %v2505 = vsel %vm2501, %v2485, %v2488
        %v2506 = vsel %vm2504, %v2494, 2102212464
        %v2507 = vsel %vm2503, %v2491, %v2506
        %v2508 = vsel %vm2502, %v2505, %v2507
        %v2509 = vsel %vm2501, %v2488, %v2491
        %v2510 = vsel %vm2504, %v2497, 920167782
        %v2511 = vsel %vm2503, %v2494, %v2510
        %v2512 = vsel %vm2502, %v2509, %v2511
        %v2513 = vsel %vm2501, %v2491, %v2494
        %v2514 = vsel %vm2504, %v2500, 1326507024
        %v2515 = vsel %vm2503, %v2497, %v2514
        %v2516 = vsel %vm2502, %v2513, %v2515
        %v2517 = vshll.u32 %v2477, 8
        %v2518 = vmul.u32.u64.compose %v2517, %v2516
        %v2519 = vextract.low.u32 %v2518
        %v2520 = vextract.high.u32 %v2518
        %v2521 = vmul.u32.u64.compose %v2517, %v2512
        %v2522 = vextract.low.u32 %v2521
        %v2523 = vextract.high.u32 %v2521
        %v2524 = vmul.u32 %v2517, %v2508
        %v2525 = vadd.s32 %v2520, %v2522
        %vm2526 = vc.u32 %v2520, %v2522
        %v2527 = vadd.s32 %v2523, 1
        %v2528 = vsel %vm2526, %v2527, %v2523
        %v2529 = vadd.s32 %v2524, %v2528
        %v2530 = vadd.s32 %v2529, 536870912
        %v2531 = vshrl.u32 %v2530, 30
        %v2532 = vshll.u32 %v2531, 30
        %v2533 = vsub.s32 %v2529, %v2532
        %vm2534 = vcmp.lt.s32.totalorder %v2533, 0
        %v2535 = vsub.s32 0, %v2533
        %v2536 = vsel %vm2534, %v2535, %v2533
        %v2537 = vclz %v2536
        %v2538 = vsub.s32 %v2537, 2
        %vm2539 = vcmp.gt.s32.totalorder 0, %v2538
        %v2540 = vsel %vm2539, 0, %v2538
        %v2541 = vsub.s32 32, %v2540
        %v2542 = vshll.u32 %v2533, %v2540
        %v2543 = vshrl.u32 %v2525, %v2541
        %v2544 = vor.u32 %v2542, %v2543
        %v2545 = vsub.s32 4294967266, %v2540
        %v2546 = vadd.s32 %v2545, 127
        %v2547 = vshll.u32 %v2546, 23
        %v2548 = vor.u32 4788187, %v2547
        %v2549 = vand.u32 2147483647, %v2548
        %v2551 = vcvt.s32.f32 %v2544
        %v2552 = vmul.f32 %v2551, %v2549
        %v2553 = vxor.u32 %v2552, 2147483648
        %v2554 = vsel %vm2471, %v2553, %v2552
        %v2555 = vsub.s32 4, %v2531
        %v2556 = vsel %vm2471, %v2555, %v2531
        %v2557 = vsel %vm2470, %v1567, %v2554
        %v2558 = vsel %vm2470, 0, %v2556
        %v2559 = vcosq.f32.pop %v2557
        %v2560 = vsinq.f32.pop %v2557
        %vm2561 = vweird.f32 %v1567
        %v2562 = vadd.s32 %v2558, 3
        %v2563 = vand.u32 %v2562, 3
        %vm2564 = vcmp.lt.s32.totalorder %v2563, 2
        %vm2565 = vcmp.eq.s32.totalorder %v2563, 0
        %v2566 = vxor.u32 %v2560, 2147483648
        %v2567 = vsel %vm2565, %v2559, %v2566
        %vm2568 = vcmp.eq.s32.totalorder %v2563, 2
        %v2569 = vxor.u32 %v2559, 2147483648
        %v2570 = vsel %vm2568, %v2569, %v2560
        %v2571 = vsel %vm2564, %v2567, %v2570
        %v2572 = vsel %vm2561, nan, %v2571
        %v2573 = vand.u32 2147483647, %v1568
        %vm2574 = vcmp.le.f32.partialorder %v2573, 0.7853982
        %vm2575 = vcmp.lt.s32.totalorder %v1568, 0
        %v2576 = vand.u32 %v1568, 2139095040
        %v2577 = vshrl.u32 %v2576, 23
        %v2578 = vsub.s32 %v2577, 127
        %v2579 = vand.u32 2147483647, %v1568
        %v2580 = vand.u32 %v2579, 8388607
        %v2581 = vor.u32 %v2580, 8388608
        %v2582 = vsub.s32 0, %v2581
        %v2583 = vadd.s32 %v2578, 1
        %vm2584 = vcmp.gt.s32.totalorder %v2583, 0
        %v2585 = vsel %vm2584, %v2583, 0
        %v2586 = vshrl.u32 %v2585, 5
        %v2587 = vand.u32 %v2585, 31
        %v2588 = vsub.s32 32, %v2587
        %v2589 = vshrl.u32 683565275, %v2588
        %v2590 = vshll.u32 683565275, %v2587
        %v2591 = vshrl.u32 2475754826, %v2588
        %v2592 = vor.u32 %v2590, %v2591
        %v2593 = vshll.u32 2475754826, %v2587
        %v2594 = vshrl.u32 2131351028, %v2588
        %v2595 = vor.u32 %v2593, %v2594
        %v2596 = vshll.u32 2131351028, %v2587
        %v2597 = vshrl.u32 2102212464, %v2588
        %v2598 = vor.u32 %v2596, %v2597
        %v2599 = vshll.u32 2102212464, %v2587
        %v2600 = vshrl.u32 920167782, %v2588
        %v2601 = vor.u32 %v2599, %v2600
        %v2602 = vshll.u32 920167782, %v2587
        %v2603 = vshrl.u32 1326507024, %v2588
        %v2604 = vor.u32 %v2602, %v2603
        %vm2605 = vcmp.lt.s32.totalorder %v2586, 1
        %vm2606 = vcmp.lt.s32.totalorder %v2586, 2
        %vm2607 = vcmp.lt.s32.totalorder %v2586, 3
        %vm2608 = vcmp.lt.s32.totalorder %v2586, 4
        %v2609 = vsel %vm2605, %v2589, %v2592
        %v2610 = vsel %vm2608, %v2598, 2102212464
        %v2611 = vsel %vm2607, %v2595, %v2610
        %v2612 = vsel %vm2606, %v2609, %v2611
        %v2613 = vsel %vm2605, %v2592, %v2595
        %v2614 = vsel %vm2608, %v2601, 920167782
        %v2615 = vsel %vm2607, %v2598, %v2614
        %v2616 = vsel %vm2606, %v2613, %v2615
        %v2617 = vsel %vm2605, %v2595, %v2598
        %v2618 = vsel %vm2608, %v2604, 1326507024
        %v2619 = vsel %vm2607, %v2601, %v2618
        %v2620 = vsel %vm2606, %v2617, %v2619
        %v2621 = vshll.u32 %v2581, 8
        %v2622 = vmul.u32.u64.compose %v2621, %v2620
        %v2623 = vextract.low.u32 %v2622
        %v2624 = vextract.high.u32 %v2622
        %v2625 = vmul.u32.u64.compose %v2621, %v2616
        %v2626 = vextract.low.u32 %v2625
        %v2627 = vextract.high.u32 %v2625
        %v2628 = vmul.u32 %v2621, %v2612
        %v2629 = vadd.s32 %v2624, %v2626
        %vm2630 = vc.u32 %v2624, %v2626
        %v2631 = vadd.s32 %v2627, 1
        %v2632 = vsel %vm2630, %v2631, %v2627
        %v2633 = vadd.s32 %v2628, %v2632
        %v2634 = vadd.s32 %v2633, 536870912
        %v2635 = vshrl.u32 %v2634, 30
        %v2636 = vshll.u32 %v2635, 30
        %v2637 = vsub.s32 %v2633, %v2636
        %vm2638 = vcmp.lt.s32.totalorder %v2637, 0
        %v2639 = vsub.s32 0, %v2637
        %v2640 = vsel %vm2638, %v2639, %v2637
        %v2641 = vclz %v2640
        %v2642 = vsub.s32 %v2641, 2
        %vm2643 = vcmp.gt.s32.totalorder 0, %v2642
        %v2644 = vsel %vm2643, 0, %v2642
        %v2645 = vsub.s32 32, %v2644
        %v2646 = vshll.u32 %v2637, %v2644
        %v2647 = vshrl.u32 %v2629, %v2645
        %v2648 = vor.u32 %v2646, %v2647
        %v2649 = vsub.s32 4294967266, %v2644
        %v2650 = vadd.s32 %v2649, 127
        %v2651 = vshll.u32 %v2650, 23
        %v2652 = vor.u32 4788187, %v2651
        %v2653 = vand.u32 2147483647, %v2652
        %v2655 = vcvt.s32.f32 %v2648
        %v2656 = vmul.f32 %v2655, %v2653
        %v2657 = vxor.u32 %v2656, 2147483648
        %v2658 = vsel %vm2575, %v2657, %v2656
        %v2659 = vsub.s32 4, %v2635
        %v2660 = vsel %vm2575, %v2659, %v2635
        %v2661 = vsel %vm2574, %v1568, %v2658
        %v2662 = vsel %vm2574, 0, %v2660
        %v2663 = vcosq.f32.pop %v2661
        %v2664 = vsinq.f32.pop %v2661
        %vm2665 = vweird.f32 %v1568
        %v2666 = vadd.s32 %v2662, 3
        %v2667 = vand.u32 %v2666, 3
        %vm2668 = vcmp.lt.s32.totalorder %v2667, 2
        %vm2669 = vcmp.eq.s32.totalorder %v2667, 0
        %v2670 = vxor.u32 %v2664, 2147483648
        %v2671 = vsel %vm2669, %v2663, %v2670
        %vm2672 = vcmp.eq.s32.totalorder %v2667, 2
        %v2673 = vxor.u32 %v2663, 2147483648
        %v2674 = vsel %vm2672, %v2673, %v2664
        %v2675 = vsel %vm2668, %v2671, %v2674
        %v2676 = vsel %vm2665, nan, %v2675
        %v2677 = vand.u32 2147483647, %v1569
        %vm2678 = vcmp.le.f32.partialorder %v2677, 0.7853982
        %vm2679 = vcmp.lt.s32.totalorder %v1569, 0
        %v2680 = vand.u32 %v1569, 2139095040
        %v2681 = vshrl.u32 %v2680, 23
        %v2682 = vsub.s32 %v2681, 127
        %v2683 = vand.u32 2147483647, %v1569
        %v2684 = vand.u32 %v2683, 8388607
        %v2685 = vor.u32 %v2684, 8388608
        %v2686 = vsub.s32 0, %v2685
        %v2687 = vadd.s32 %v2682, 1
        %vm2688 = vcmp.gt.s32.totalorder %v2687, 0
        %v2689 = vsel %vm2688, %v2687, 0
        %v2690 = vshrl.u32 %v2689, 5
        %v2691 = vand.u32 %v2689, 31
        %v2692 = vsub.s32 32, %v2691
        %v2693 = vshrl.u32 683565275, %v2692
        %v2694 = vshll.u32 683565275, %v2691
        %v2695 = vshrl.u32 2475754826, %v2692
        %v2696 = vor.u32 %v2694, %v2695
        %v2697 = vshll.u32 2475754826, %v2691
        %v2698 = vshrl.u32 2131351028, %v2692
        %v2699 = vor.u32 %v2697, %v2698
        %v2700 = vshll.u32 2131351028, %v2691
        %v2701 = vshrl.u32 2102212464, %v2692
        %v2702 = vor.u32 %v2700, %v2701
        %v2703 = vshll.u32 2102212464, %v2691
        %v2704 = vshrl.u32 920167782, %v2692
        %v2705 = vor.u32 %v2703, %v2704
        %v2706 = vshll.u32 920167782, %v2691
        %v2707 = vshrl.u32 1326507024, %v2692
        %v2708 = vor.u32 %v2706, %v2707
        %vm2709 = vcmp.lt.s32.totalorder %v2690, 1
        %vm2710 = vcmp.lt.s32.totalorder %v2690, 2
        %vm2711 = vcmp.lt.s32.totalorder %v2690, 3
        %vm2712 = vcmp.lt.s32.totalorder %v2690, 4
        %v2713 = vsel %vm2709, %v2693, %v2696
        %v2714 = vsel %vm2712, %v2702, 2102212464
        %v2715 = vsel %vm2711, %v2699, %v2714
        %v2716 = vsel %vm2710, %v2713, %v2715
        %v2717 = vsel %vm2709, %v2696, %v2699
        %v2718 = vsel %vm2712, %v2705, 920167782
        %v2719 = vsel %vm2711, %v2702, %v2718
        %v2720 = vsel %vm2710, %v2717, %v2719
        %v2721 = vsel %vm2709, %v2699, %v2702
        %v2722 = vsel %vm2712, %v2708, 1326507024
        %v2723 = vsel %vm2711, %v2705, %v2722
        %v2724 = vsel %vm2710, %v2721, %v2723
        %v2725 = vshll.u32 %v2685, 8
        %v2726 = vmul.u32.u64.compose %v2725, %v2724
        %v2727 = vextract.low.u32 %v2726
        %v2728 = vextract.high.u32 %v2726
        %v2729 = vmul.u32.u64.compose %v2725, %v2720
        %v2730 = vextract.low.u32 %v2729
        %v2731 = vextract.high.u32 %v2729
        %v2732 = vmul.u32 %v2725, %v2716
        %v2733 = vadd.s32 %v2728, %v2730
        %vm2734 = vc.u32 %v2728, %v2730
        %v2735 = vadd.s32 %v2731, 1
        %v2736 = vsel %vm2734, %v2735, %v2731
        %v2737 = vadd.s32 %v2732, %v2736
        %v2738 = vadd.s32 %v2737, 536870912
        %v2739 = vshrl.u32 %v2738, 30
        %v2740 = vshll.u32 %v2739, 30
        %v2741 = vsub.s32 %v2737, %v2740
        %vm2742 = vcmp.lt.s32.totalorder %v2741, 0
        %v2743 = vsub.s32 0, %v2741
        %v2744 = vsel %vm2742, %v2743, %v2741
        %v2745 = vclz %v2744
        %v2746 = vsub.s32 %v2745, 2
        %vm2747 = vcmp.gt.s32.totalorder 0, %v2746
        %v2748 = vsel %vm2747, 0, %v2746
        %v2749 = vsub.s32 32, %v2748
        %v2750 = vshll.u32 %v2741, %v2748
        %v2751 = vshrl.u32 %v2733, %v2749
        %v2752 = vor.u32 %v2750, %v2751
        %v2753 = vsub.s32 4294967266, %v2748
        %v2754 = vadd.s32 %v2753, 127
        %v2755 = vshll.u32 %v2754, 23
        %v2756 = vor.u32 4788187, %v2755
        %v2757 = vand.u32 2147483647, %v2756
        %v2759 = vcvt.s32.f32 %v2752
        %v2760 = vmul.f32 %v2759, %v2757
        %v2761 = vxor.u32 %v2760, 2147483648
        %v2762 = vsel %vm2679, %v2761, %v2760
        %v2763 = vsub.s32 4, %v2739
        %v2764 = vsel %vm2679, %v2763, %v2739
        %v2765 = vsel %vm2678, %v1569, %v2762
        %v2766 = vsel %vm2678, 0, %v2764
        %v2767 = vcosq.f32.pop %v2765
        %v2768 = vsinq.f32.pop %v2765
        %vm2769 = vweird.f32 %v1569
        %v2770 = vadd.s32 %v2766, 3
        %v2771 = vand.u32 %v2770, 3
        %vm2772 = vcmp.lt.s32.totalorder %v2771, 2
        %vm2773 = vcmp.eq.s32.totalorder %v2771, 0
        %v2774 = vxor.u32 %v2768, 2147483648
        %v2775 = vsel %vm2773, %v2767, %v2774
        %vm2776 = vcmp.eq.s32.totalorder %v2771, 2
        %v2777 = vxor.u32 %v2767, 2147483648
        %v2778 = vsel %vm2776, %v2777, %v2768
        %v2779 = vsel %vm2772, %v2775, %v2778
        %v2780 = vsel %vm2769, nan, %v2779
        %v2781 = vand.u32 2147483647, %v1570
        %vm2782 = vcmp.le.f32.partialorder %v2781, 0.7853982
        %vm2783 = vcmp.lt.s32.totalorder %v1570, 0
        %v2784 = vand.u32 %v1570, 2139095040
        %v2785 = vshrl.u32 %v2784, 23
        %v2786 = vsub.s32 %v2785, 127
        %v2787 = vand.u32 2147483647, %v1570
        %v2788 = vand.u32 %v2787, 8388607
        %v2789 = vor.u32 %v2788, 8388608
        %v2790 = vsub.s32 0, %v2789
        %v2791 = vadd.s32 %v2786, 1
        %vm2792 = vcmp.gt.s32.totalorder %v2791, 0
        %v2793 = vsel %vm2792, %v2791, 0
        %v2794 = vshrl.u32 %v2793, 5
        %v2795 = vand.u32 %v2793, 31
        %v2796 = vsub.s32 32, %v2795
        %v2797 = vshrl.u32 683565275, %v2796
        %v2798 = vshll.u32 683565275, %v2795
        %v2799 = vshrl.u32 2475754826, %v2796
        %v2800 = vor.u32 %v2798, %v2799
        %v2801 = vshll.u32 2475754826, %v2795
        %v2802 = vshrl.u32 2131351028, %v2796
        %v2803 = vor.u32 %v2801, %v2802
        %v2804 = vshll.u32 2131351028, %v2795
        %v2805 = vshrl.u32 2102212464, %v2796
        %v2806 = vor.u32 %v2804, %v2805
        %v2807 = vshll.u32 2102212464, %v2795
        %v2808 = vshrl.u32 920167782, %v2796
        %v2809 = vor.u32 %v2807, %v2808
        %v2810 = vshll.u32 920167782, %v2795
        %v2811 = vshrl.u32 1326507024, %v2796
        %v2812 = vor.u32 %v2810, %v2811
        %vm2813 = vcmp.lt.s32.totalorder %v2794, 1
        %vm2814 = vcmp.lt.s32.totalorder %v2794, 2
        %vm2815 = vcmp.lt.s32.totalorder %v2794, 3
        %vm2816 = vcmp.lt.s32.totalorder %v2794, 4
        %v2817 = vsel %vm2813, %v2797, %v2800
        %v2818 = vsel %vm2816, %v2806, 2102212464
        %v2819 = vsel %vm2815, %v2803, %v2818
        %v2820 = vsel %vm2814, %v2817, %v2819
        %v2821 = vsel %vm2813, %v2800, %v2803
        %v2822 = vsel %vm2816, %v2809, 920167782
        %v2823 = vsel %vm2815, %v2806, %v2822
        %v2824 = vsel %vm2814, %v2821, %v2823
        %v2825 = vsel %vm2813, %v2803, %v2806
        %v2826 = vsel %vm2816, %v2812, 1326507024
        %v2827 = vsel %vm2815, %v2809, %v2826
        %v2828 = vsel %vm2814, %v2825, %v2827
        %v2829 = vshll.u32 %v2789, 8
        %v2830 = vmul.u32.u64.compose %v2829, %v2828
        %v2831 = vextract.low.u32 %v2830
        %v2832 = vextract.high.u32 %v2830
        %v2833 = vmul.u32.u64.compose %v2829, %v2824
        %v2834 = vextract.low.u32 %v2833
        %v2835 = vextract.high.u32 %v2833
        %v2836 = vmul.u32 %v2829, %v2820
        %v2837 = vadd.s32 %v2832, %v2834
        %vm2838 = vc.u32 %v2832, %v2834
        %v2839 = vadd.s32 %v2835, 1
        %v2840 = vsel %vm2838, %v2839, %v2835
        %v2841 = vadd.s32 %v2836, %v2840
        %v2842 = vadd.s32 %v2841, 536870912
        %v2843 = vshrl.u32 %v2842, 30
        %v2844 = vshll.u32 %v2843, 30
        %v2845 = vsub.s32 %v2841, %v2844
        %vm2846 = vcmp.lt.s32.totalorder %v2845, 0
        %v2847 = vsub.s32 0, %v2845
        %v2848 = vsel %vm2846, %v2847, %v2845
        %v2849 = vclz %v2848
        %v2850 = vsub.s32 %v2849, 2
        %vm2851 = vcmp.gt.s32.totalorder 0, %v2850
        %v2852 = vsel %vm2851, 0, %v2850
        %v2853 = vsub.s32 32, %v2852
        %v2854 = vshll.u32 %v2845, %v2852
        %v2855 = vshrl.u32 %v2837, %v2853
        %v2856 = vor.u32 %v2854, %v2855
        %v2857 = vsub.s32 4294967266, %v2852
        %v2858 = vadd.s32 %v2857, 127
        %v2859 = vshll.u32 %v2858, 23
        %v2860 = vor.u32 4788187, %v2859
        %v2861 = vand.u32 2147483647, %v2860
        %v2863 = vcvt.s32.f32 %v2856
        %v2864 = vmul.f32 %v2863, %v2861
        %v2865 = vxor.u32 %v2864, 2147483648
        %v2866 = vsel %vm2783, %v2865, %v2864
        %v2867 = vsub.s32 4, %v2843
        %v2868 = vsel %vm2783, %v2867, %v2843
        %v2869 = vsel %vm2782, %v1570, %v2866
        %v2870 = vsel %vm2782, 0, %v2868
        %v2871 = vcosq.f32.pop %v2869
        %v2872 = vsinq.f32.pop %v2869
        %vm2873 = vweird.f32 %v1570
        %v2874 = vadd.s32 %v2870, 3
        %v2875 = vand.u32 %v2874, 3
        %vm2876 = vcmp.lt.s32.totalorder %v2875, 2
        %vm2877 = vcmp.eq.s32.totalorder %v2875, 0
        %v2878 = vxor.u32 %v2872, 2147483648
        %v2879 = vsel %vm2877, %v2871, %v2878
        %vm2880 = vcmp.eq.s32.totalorder %v2875, 2
        %v2881 = vxor.u32 %v2871, 2147483648
        %v2882 = vsel %vm2880, %v2881, %v2872
        %v2883 = vsel %vm2876, %v2879, %v2882
        %v2884 = vsel %vm2873, nan, %v2883
        %v2885 = vand.u32 2147483647, %v1571
        %vm2886 = vcmp.le.f32.partialorder %v2885, 0.7853982
        %vm2887 = vcmp.lt.s32.totalorder %v1571, 0
        %v2888 = vand.u32 %v1571, 2139095040
        %v2889 = vshrl.u32 %v2888, 23
        %v2890 = vsub.s32 %v2889, 127
        %v2891 = vand.u32 2147483647, %v1571
        %v2892 = vand.u32 %v2891, 8388607
        %v2893 = vor.u32 %v2892, 8388608
        %v2894 = vsub.s32 0, %v2893
        %v2895 = vadd.s32 %v2890, 1
        %vm2896 = vcmp.gt.s32.totalorder %v2895, 0
        %v2897 = vsel %vm2896, %v2895, 0
        %v2898 = vshrl.u32 %v2897, 5
        %v2899 = vand.u32 %v2897, 31
        %v2900 = vsub.s32 32, %v2899
        %v2901 = vshrl.u32 683565275, %v2900
        %v2902 = vshll.u32 683565275, %v2899
        %v2903 = vshrl.u32 2475754826, %v2900
        %v2904 = vor.u32 %v2902, %v2903
        %v2905 = vshll.u32 2475754826, %v2899
        %v2906 = vshrl.u32 2131351028, %v2900
        %v2907 = vor.u32 %v2905, %v2906
        %v2908 = vshll.u32 2131351028, %v2899
        %v2909 = vshrl.u32 2102212464, %v2900
        %v2910 = vor.u32 %v2908, %v2909
        %v2911 = vshll.u32 2102212464, %v2899
        %v2912 = vshrl.u32 920167782, %v2900
        %v2913 = vor.u32 %v2911, %v2912
        %v2914 = vshll.u32 920167782, %v2899
        %v2915 = vshrl.u32 1326507024, %v2900
        %v2916 = vor.u32 %v2914, %v2915
        %vm2917 = vcmp.lt.s32.totalorder %v2898, 1
        %vm2918 = vcmp.lt.s32.totalorder %v2898, 2
        %vm2919 = vcmp.lt.s32.totalorder %v2898, 3
        %vm2920 = vcmp.lt.s32.totalorder %v2898, 4
        %v2921 = vsel %vm2917, %v2901, %v2904
        %v2922 = vsel %vm2920, %v2910, 2102212464
        %v2923 = vsel %vm2919, %v2907, %v2922
        %v2924 = vsel %vm2918, %v2921, %v2923
        %v2925 = vsel %vm2917, %v2904, %v2907
        %v2926 = vsel %vm2920, %v2913, 920167782
        %v2927 = vsel %vm2919, %v2910, %v2926
        %v2928 = vsel %vm2918, %v2925, %v2927
        %v2929 = vsel %vm2917, %v2907, %v2910
        %v2930 = vsel %vm2920, %v2916, 1326507024
        %v2931 = vsel %vm2919, %v2913, %v2930
        %v2932 = vsel %vm2918, %v2929, %v2931
        %v2933 = vshll.u32 %v2893, 8
        %v2934 = vmul.u32.u64.compose %v2933, %v2932
        %v2935 = vextract.low.u32 %v2934
        %v2936 = vextract.high.u32 %v2934
        %v2937 = vmul.u32.u64.compose %v2933, %v2928
        %v2938 = vextract.low.u32 %v2937
        %v2939 = vextract.high.u32 %v2937
        %v2940 = vmul.u32 %v2933, %v2924
        %v2941 = vadd.s32 %v2936, %v2938
        %vm2942 = vc.u32 %v2936, %v2938
        %v2943 = vadd.s32 %v2939, 1
        %v2944 = vsel %vm2942, %v2943, %v2939
        %v2945 = vadd.s32 %v2940, %v2944
        %v2946 = vadd.s32 %v2945, 536870912
        %v2947 = vshrl.u32 %v2946, 30
        %v2948 = vshll.u32 %v2947, 30
        %v2949 = vsub.s32 %v2945, %v2948
        %vm2950 = vcmp.lt.s32.totalorder %v2949, 0
        %v2951 = vsub.s32 0, %v2949
        %v2952 = vsel %vm2950, %v2951, %v2949
        %v2953 = vclz %v2952
        %v2954 = vsub.s32 %v2953, 2
        %vm2955 = vcmp.gt.s32.totalorder 0, %v2954
        %v2956 = vsel %vm2955, 0, %v2954
        %v2957 = vsub.s32 32, %v2956
        %v2958 = vshll.u32 %v2949, %v2956
        %v2959 = vshrl.u32 %v2941, %v2957
        %v2960 = vor.u32 %v2958, %v2959
        %v2961 = vsub.s32 4294967266, %v2956
        %v2962 = vadd.s32 %v2961, 127
        %v2963 = vshll.u32 %v2962, 23
        %v2964 = vor.u32 4788187, %v2963
        %v2965 = vand.u32 2147483647, %v2964
        %v2967 = vcvt.s32.f32 %v2960
        %v2968 = vmul.f32 %v2967, %v2965
        %v2969 = vxor.u32 %v2968, 2147483648
        %v2970 = vsel %vm2887, %v2969, %v2968
        %v2971 = vsub.s32 4, %v2947
        %v2972 = vsel %vm2887, %v2971, %v2947
        %v2973 = vsel %vm2886, %v1571, %v2970
        %v2974 = vsel %vm2886, 0, %v2972
        %v2975 = vcosq.f32.pop %v2973
        %v2976 = vsinq.f32.pop %v2973
        %vm2977 = vweird.f32 %v1571
        %v2978 = vadd.s32 %v2974, 3
        %v2979 = vand.u32 %v2978, 3
        %vm2980 = vcmp.lt.s32.totalorder %v2979, 2
        %vm2981 = vcmp.eq.s32.totalorder %v2979, 0
        %v2982 = vxor.u32 %v2976, 2147483648
        %v2983 = vsel %vm2981, %v2975, %v2982
        %vm2984 = vcmp.eq.s32.totalorder %v2979, 2
        %v2985 = vxor.u32 %v2975, 2147483648
        %v2986 = vsel %vm2984, %v2985, %v2976
        %v2987 = vsel %vm2980, %v2983, %v2986
        %v2988 = vsel %vm2977, nan, %v2987
        %v2989 = vand.u32 2147483647, %v1572
        %vm2990 = vcmp.le.f32.partialorder %v2989, 0.7853982
        %vm2991 = vcmp.lt.s32.totalorder %v1572, 0
        %v2992 = vand.u32 %v1572, 2139095040
        %v2993 = vshrl.u32 %v2992, 23
        %v2994 = vsub.s32 %v2993, 127
        %v2995 = vand.u32 2147483647, %v1572
        %v2996 = vand.u32 %v2995, 8388607
        %v2997 = vor.u32 %v2996, 8388608
        %v2998 = vsub.s32 0, %v2997
        %v2999 = vadd.s32 %v2994, 1
        %vm3000 = vcmp.gt.s32.totalorder %v2999, 0
        %v3001 = vsel %vm3000, %v2999, 0
        %v3002 = vshrl.u32 %v3001, 5
        %v3003 = vand.u32 %v3001, 31
        %v3004 = vsub.s32 32, %v3003
        %v3005 = vshrl.u32 683565275, %v3004
        %v3006 = vshll.u32 683565275, %v3003
        %v3007 = vshrl.u32 2475754826, %v3004
        %v3008 = vor.u32 %v3006, %v3007
        %v3009 = vshll.u32 2475754826, %v3003
        %v3010 = vshrl.u32 2131351028, %v3004
        %v3011 = vor.u32 %v3009, %v3010
        %v3012 = vshll.u32 2131351028, %v3003
        %v3013 = vshrl.u32 2102212464, %v3004
        %v3014 = vor.u32 %v3012, %v3013
        %v3015 = vshll.u32 2102212464, %v3003
        %v3016 = vshrl.u32 920167782, %v3004
        %v3017 = vor.u32 %v3015, %v3016
        %v3018 = vshll.u32 920167782, %v3003
        %v3019 = vshrl.u32 1326507024, %v3004
        %v3020 = vor.u32 %v3018, %v3019
        %vm3021 = vcmp.lt.s32.totalorder %v3002, 1
        %vm3022 = vcmp.lt.s32.totalorder %v3002, 2
        %vm3023 = vcmp.lt.s32.totalorder %v3002, 3
        %vm3024 = vcmp.lt.s32.totalorder %v3002, 4
        %v3025 = vsel %vm3021, %v3005, %v3008
        %v3026 = vsel %vm3024, %v3014, 2102212464
        %v3027 = vsel %vm3023, %v3011, %v3026
        %v3028 = vsel %vm3022, %v3025, %v3027
        %v3029 = vsel %vm3021, %v3008, %v3011
        %v3030 = vsel %vm3024, %v3017, 920167782
        %v3031 = vsel %vm3023, %v3014, %v3030
        %v3032 = vsel %vm3022, %v3029, %v3031
        %v3033 = vsel %vm3021, %v3011, %v3014
        %v3034 = vsel %vm3024, %v3020, 1326507024
        %v3035 = vsel %vm3023, %v3017, %v3034
        %v3036 = vsel %vm3022, %v3033, %v3035
        %v3037 = vshll.u32 %v2997, 8
        %v3038 = vmul.u32.u64.compose %v3037, %v3036
        %v3039 = vextract.low.u32 %v3038
        %v3040 = vextract.high.u32 %v3038
        %v3041 = vmul.u32.u64.compose %v3037, %v3032
        %v3042 = vextract.low.u32 %v3041
        %v3043 = vextract.high.u32 %v3041
        %v3044 = vmul.u32 %v3037, %v3028
        %v3045 = vadd.s32 %v3040, %v3042
        %vm3046 = vc.u32 %v3040, %v3042
        %v3047 = vadd.s32 %v3043, 1
        %v3048 = vsel %vm3046, %v3047, %v3043
        %v3049 = vadd.s32 %v3044, %v3048
        %v3050 = vadd.s32 %v3049, 536870912
        %v3051 = vshrl.u32 %v3050, 30
        %v3052 = vshll.u32 %v3051, 30
        %v3053 = vsub.s32 %v3049, %v3052
        %vm3054 = vcmp.lt.s32.totalorder %v3053, 0
        %v3055 = vsub.s32 0, %v3053
        %v3056 = vsel %vm3054, %v3055, %v3053
        %v3057 = vclz %v3056
        %v3058 = vsub.s32 %v3057, 2
        %vm3059 = vcmp.gt.s32.totalorder 0, %v3058
        %v3060 = vsel %vm3059, 0, %v3058
        %v3061 = vsub.s32 32, %v3060
        %v3062 = vshll.u32 %v3053, %v3060
        %v3063 = vshrl.u32 %v3045, %v3061
        %v3064 = vor.u32 %v3062, %v3063
        %v3065 = vsub.s32 4294967266, %v3060
        %v3066 = vadd.s32 %v3065, 127
        %v3067 = vshll.u32 %v3066, 23
        %v3068 = vor.u32 4788187, %v3067
        %v3069 = vand.u32 2147483647, %v3068
        %v3071 = vcvt.s32.f32 %v3064
        %v3072 = vmul.f32 %v3071, %v3069
        %v3073 = vxor.u32 %v3072, 2147483648
        %v3074 = vsel %vm2991, %v3073, %v3072
        %v3075 = vsub.s32 4, %v3051
        %v3076 = vsel %vm2991, %v3075, %v3051
        %v3077 = vsel %vm2990, %v1572, %v3074
        %v3078 = vsel %vm2990, 0, %v3076
        %v3079 = vcosq.f32.pop %v3077
        %v3080 = vsinq.f32.pop %v3077
        %vm3081 = vweird.f32 %v1572
        %v3082 = vadd.s32 %v3078, 3
        %v3083 = vand.u32 %v3082, 3
        %vm3084 = vcmp.lt.s32.totalorder %v3083, 2
        %vm3085 = vcmp.eq.s32.totalorder %v3083, 0
        %v3086 = vxor.u32 %v3080, 2147483648
        %v3087 = vsel %vm3085, %v3079, %v3086
        %vm3088 = vcmp.eq.s32.totalorder %v3083, 2
        %v3089 = vxor.u32 %v3079, 2147483648
        %v3090 = vsel %vm3088, %v3089, %v3080
        %v3091 = vsel %vm3084, %v3087, %v3090
        %v3092 = vsel %vm3081, nan, %v3091
        %v3093 = vand.u32 2147483647, %v1573
        %vm3094 = vcmp.le.f32.partialorder %v3093, 0.7853982
        %vm3095 = vcmp.lt.s32.totalorder %v1573, 0
        %v3096 = vand.u32 %v1573, 2139095040
        %v3097 = vshrl.u32 %v3096, 23
        %v3098 = vsub.s32 %v3097, 127
        %v3099 = vand.u32 2147483647, %v1573
        %v3100 = vand.u32 %v3099, 8388607
        %v3101 = vor.u32 %v3100, 8388608
        %v3102 = vsub.s32 0, %v3101
        %v3103 = vadd.s32 %v3098, 1
        %vm3104 = vcmp.gt.s32.totalorder %v3103, 0
        %v3105 = vsel %vm3104, %v3103, 0
        %v3106 = vshrl.u32 %v3105, 5
        %v3107 = vand.u32 %v3105, 31
        %v3108 = vsub.s32 32, %v3107
        %v3109 = vshrl.u32 683565275, %v3108
        %v3110 = vshll.u32 683565275, %v3107
        %v3111 = vshrl.u32 2475754826, %v3108
        %v3112 = vor.u32 %v3110, %v3111
        %v3113 = vshll.u32 2475754826, %v3107
        %v3114 = vshrl.u32 2131351028, %v3108
        %v3115 = vor.u32 %v3113, %v3114
        %v3116 = vshll.u32 2131351028, %v3107
        %v3117 = vshrl.u32 2102212464, %v3108
        %v3118 = vor.u32 %v3116, %v3117
        %v3119 = vshll.u32 2102212464, %v3107
        %v3120 = vshrl.u32 920167782, %v3108
        %v3121 = vor.u32 %v3119, %v3120
        %v3122 = vshll.u32 920167782, %v3107
        %v3123 = vshrl.u32 1326507024, %v3108
        %v3124 = vor.u32 %v3122, %v3123
        %vm3125 = vcmp.lt.s32.totalorder %v3106, 1
        %vm3126 = vcmp.lt.s32.totalorder %v3106, 2
        %vm3127 = vcmp.lt.s32.totalorder %v3106, 3
        %vm3128 = vcmp.lt.s32.totalorder %v3106, 4
        %v3129 = vsel %vm3125, %v3109, %v3112
        %v3130 = vsel %vm3128, %v3118, 2102212464
        %v3131 = vsel %vm3127, %v3115, %v3130
        %v3132 = vsel %vm3126, %v3129, %v3131
        %v3133 = vsel %vm3125, %v3112, %v3115
        %v3134 = vsel %vm3128, %v3121, 920167782
        %v3135 = vsel %vm3127, %v3118, %v3134
        %v3136 = vsel %vm3126, %v3133, %v3135
        %v3137 = vsel %vm3125, %v3115, %v3118
        %v3138 = vsel %vm3128, %v3124, 1326507024
        %v3139 = vsel %vm3127, %v3121, %v3138
        %v3140 = vsel %vm3126, %v3137, %v3139
        %v3141 = vshll.u32 %v3101, 8
        %v3142 = vmul.u32.u64.compose %v3141, %v3140
        %v3143 = vextract.low.u32 %v3142
        %v3144 = vextract.high.u32 %v3142
        %v3145 = vmul.u32.u64.compose %v3141, %v3136
        %v3146 = vextract.low.u32 %v3145
        %v3147 = vextract.high.u32 %v3145
        %v3148 = vmul.u32 %v3141, %v3132
        %v3149 = vadd.s32 %v3144, %v3146
        %vm3150 = vc.u32 %v3144, %v3146
        %v3151 = vadd.s32 %v3147, 1
        %v3152 = vsel %vm3150, %v3151, %v3147
        %v3153 = vadd.s32 %v3148, %v3152
        %v3154 = vadd.s32 %v3153, 536870912
        %v3155 = vshrl.u32 %v3154, 30
        %v3156 = vshll.u32 %v3155, 30
        %v3157 = vsub.s32 %v3153, %v3156
        %vm3158 = vcmp.lt.s32.totalorder %v3157, 0
        %v3159 = vsub.s32 0, %v3157
        %v3160 = vsel %vm3158, %v3159, %v3157
        %v3161 = vclz %v3160
        %v3162 = vsub.s32 %v3161, 2
        %vm3163 = vcmp.gt.s32.totalorder 0, %v3162
        %v3164 = vsel %vm3163, 0, %v3162
        %v3165 = vsub.s32 32, %v3164
        %v3166 = vshll.u32 %v3157, %v3164
        %v3167 = vshrl.u32 %v3149, %v3165
        %v3168 = vor.u32 %v3166, %v3167
        %v3169 = vsub.s32 4294967266, %v3164
        %v3170 = vadd.s32 %v3169, 127
        %v3171 = vshll.u32 %v3170, 23
        %v3172 = vor.u32 4788187, %v3171
        %v3173 = vand.u32 2147483647, %v3172
        %v3175 = vcvt.s32.f32 %v3168
        %v3176 = vmul.f32 %v3175, %v3173
        %v3177 = vxor.u32 %v3176, 2147483648
        %v3178 = vsel %vm3095, %v3177, %v3176
        %v3179 = vsub.s32 4, %v3155
        %v3180 = vsel %vm3095, %v3179, %v3155
        %v3181 = vsel %vm3094, %v1573, %v3178
        %v3182 = vsel %vm3094, 0, %v3180
        %v3183 = vcosq.f32.pop %v3181
        %v3184 = vsinq.f32.pop %v3181
        %vm3185 = vweird.f32 %v1573
        %v3186 = vadd.s32 %v3182, 3
        %v3187 = vand.u32 %v3186, 3
        %vm3188 = vcmp.lt.s32.totalorder %v3187, 2
        %vm3189 = vcmp.eq.s32.totalorder %v3187, 0
        %v3190 = vxor.u32 %v3184, 2147483648
        %v3191 = vsel %vm3189, %v3183, %v3190
        %vm3192 = vcmp.eq.s32.totalorder %v3187, 2
        %v3193 = vxor.u32 %v3183, 2147483648
        %v3194 = vsel %vm3192, %v3193, %v3184
        %v3195 = vsel %vm3188, %v3191, %v3194
        %v3196 = vsel %vm3185, nan, %v3195
        %v3197 = vand.u32 2147483647, %v1574
        %vm3198 = vcmp.le.f32.partialorder %v3197, 0.7853982
        %vm3199 = vcmp.lt.s32.totalorder %v1574, 0
        %v3200 = vand.u32 %v1574, 2139095040
        %v3201 = vshrl.u32 %v3200, 23
        %v3202 = vsub.s32 %v3201, 127
        %v3203 = vand.u32 2147483647, %v1574
        %v3204 = vand.u32 %v3203, 8388607
        %v3205 = vor.u32 %v3204, 8388608
        %v3206 = vsub.s32 0, %v3205
        %v3207 = vadd.s32 %v3202, 1
        %vm3208 = vcmp.gt.s32.totalorder %v3207, 0
        %v3209 = vsel %vm3208, %v3207, 0
        %v3210 = vshrl.u32 %v3209, 5
        %v3211 = vand.u32 %v3209, 31
        %v3212 = vsub.s32 32, %v3211
        %v3213 = vshrl.u32 683565275, %v3212
        %v3214 = vshll.u32 683565275, %v3211
        %v3215 = vshrl.u32 2475754826, %v3212
        %v3216 = vor.u32 %v3214, %v3215
        %v3217 = vshll.u32 2475754826, %v3211
        %v3218 = vshrl.u32 2131351028, %v3212
        %v3219 = vor.u32 %v3217, %v3218
        %v3220 = vshll.u32 2131351028, %v3211
        %v3221 = vshrl.u32 2102212464, %v3212
        %v3222 = vor.u32 %v3220, %v3221
        %v3223 = vshll.u32 2102212464, %v3211
        %v3224 = vshrl.u32 920167782, %v3212
        %v3225 = vor.u32 %v3223, %v3224
        %v3226 = vshll.u32 920167782, %v3211
        %v3227 = vshrl.u32 1326507024, %v3212
        %v3228 = vor.u32 %v3226, %v3227
        %vm3229 = vcmp.lt.s32.totalorder %v3210, 1
        %vm3230 = vcmp.lt.s32.totalorder %v3210, 2
        %vm3231 = vcmp.lt.s32.totalorder %v3210, 3
        %vm3232 = vcmp.lt.s32.totalorder %v3210, 4
        %v3233 = vsel %vm3229, %v3213, %v3216
        %v3234 = vsel %vm3232, %v3222, 2102212464
        %v3235 = vsel %vm3231, %v3219, %v3234
        %v3236 = vsel %vm3230, %v3233, %v3235
        %v3237 = vsel %vm3229, %v3216, %v3219
        %v3238 = vsel %vm3232, %v3225, 920167782
        %v3239 = vsel %vm3231, %v3222, %v3238
        %v3240 = vsel %vm3230, %v3237, %v3239
        %v3241 = vsel %vm3229, %v3219, %v3222
        %v3242 = vsel %vm3232, %v3228, 1326507024
        %v3243 = vsel %vm3231, %v3225, %v3242
        %v3244 = vsel %vm3230, %v3241, %v3243
        %v3245 = vshll.u32 %v3205, 8
        %v3246 = vmul.u32.u64.compose %v3245, %v3244
        %v3247 = vextract.low.u32 %v3246
        %v3248 = vextract.high.u32 %v3246
        %v3249 = vmul.u32.u64.compose %v3245, %v3240
        %v3250 = vextract.low.u32 %v3249
        %v3251 = vextract.high.u32 %v3249
        %v3252 = vmul.u32 %v3245, %v3236
        %v3253 = vadd.s32 %v3248, %v3250
        %vm3254 = vc.u32 %v3248, %v3250
        %v3255 = vadd.s32 %v3251, 1
        %v3256 = vsel %vm3254, %v3255, %v3251
        %v3257 = vadd.s32 %v3252, %v3256
        %v3258 = vadd.s32 %v3257, 536870912
        %v3259 = vshrl.u32 %v3258, 30
        %v3260 = vshll.u32 %v3259, 30
        %v3261 = vsub.s32 %v3257, %v3260
        %vm3262 = vcmp.lt.s32.totalorder %v3261, 0
        %v3263 = vsub.s32 0, %v3261
        %v3264 = vsel %vm3262, %v3263, %v3261
        %v3265 = vclz %v3264
        %v3266 = vsub.s32 %v3265, 2
        %vm3267 = vcmp.gt.s32.totalorder 0, %v3266
        %v3268 = vsel %vm3267, 0, %v3266
        %v3269 = vsub.s32 32, %v3268
        %v3270 = vshll.u32 %v3261, %v3268
        %v3271 = vshrl.u32 %v3253, %v3269
        %v3272 = vor.u32 %v3270, %v3271
        %v3273 = vsub.s32 4294967266, %v3268
        %v3274 = vadd.s32 %v3273, 127
        %v3275 = vshll.u32 %v3274, 23
        %v3276 = vor.u32 4788187, %v3275
        %v3277 = vand.u32 2147483647, %v3276
        %v3279 = vcvt.s32.f32 %v3272
        %v3280 = vmul.f32 %v3279, %v3277
        %v3281 = vxor.u32 %v3280, 2147483648
        %v3282 = vsel %vm3199, %v3281, %v3280
        %v3283 = vsub.s32 4, %v3259
        %v3284 = vsel %vm3199, %v3283, %v3259
        %v3285 = vsel %vm3198, %v1574, %v3282
        %v3286 = vsel %vm3198, 0, %v3284
        %v3287 = vcosq.f32.pop %v3285
        %v3288 = vsinq.f32.pop %v3285
        %vm3289 = vweird.f32 %v1574
        %v3290 = vadd.s32 %v3286, 3
        %v3291 = vand.u32 %v3290, 3
        %vm3292 = vcmp.lt.s32.totalorder %v3291, 2
        %vm3293 = vcmp.eq.s32.totalorder %v3291, 0
        %v3294 = vxor.u32 %v3288, 2147483648
        %v3295 = vsel %vm3293, %v3287, %v3294
        %vm3296 = vcmp.eq.s32.totalorder %v3291, 2
        %v3297 = vxor.u32 %v3287, 2147483648
        %v3298 = vsel %vm3296, %v3297, %v3288
        %v3299 = vsel %vm3292, %v3295, %v3298
        %v3300 = vsel %vm3289, nan, %v3299
        %3302 = vset.pattern.permute.xlu0 0
        %3303 = vperm.xlu0 %3302, %v1621
        %v3304 = vpop.permute.xlu0 %3303
        %3307 = vset.pattern.permute.xlu0 0
        %3308 = vperm.xlu0 %3307, %v1622
        %v3309 = vpop.permute.xlu0 %3308
        %3312 = vset.pattern.permute.xlu0 0
        %3313 = vperm.xlu0 %3312, %v1623
        %v3314 = vpop.permute.xlu0 %3313
        %3317 = vset.pattern.permute.xlu0 0
        %3318 = vperm.xlu0 %3317, %v1624
        %v3319 = vpop.permute.xlu0 %3318
        %3322 = vset.pattern.permute.xlu0 0
        %3323 = vperm.xlu0 %3322, %v1625
        %v3324 = vpop.permute.xlu0 %3323
        %3327 = vset.pattern.permute.xlu0 0
        %3328 = vperm.xlu0 %3327, %v1626
        %v3329 = vpop.permute.xlu0 %3328
        %3332 = vset.pattern.permute.xlu0 0
        %3333 = vperm.xlu0 %3332, %v1627
        %v3334 = vpop.permute.xlu0 %3333
        %3337 = vset.pattern.permute.xlu0 0
        %3338 = vperm.xlu0 %3337, %v1628
        %v3339 = vpop.permute.xlu0 %3338
        %3342 = vset.pattern.permute.xlu0 0
        %3343 = vperm.xlu0 %3342, %v1629
        %v3344 = vpop.permute.xlu0 %3343
        %3347 = vset.pattern.permute.xlu0 0
        %3348 = vperm.xlu0 %3347, %v1630
        %v3349 = vpop.permute.xlu0 %3348
        %3352 = vset.pattern.permute.xlu0 0
        %3353 = vperm.xlu0 %3352, %v1631
        %v3354 = vpop.permute.xlu0 %3353
        %3357 = vset.pattern.permute.xlu0 0
        %3358 = vperm.xlu0 %3357, %v1632
        %v3359 = vpop.permute.xlu0 %3358
        %3362 = vset.pattern.permute.xlu0 0
        %3363 = vperm.xlu0 %3362, %v1633
        %v3364 = vpop.permute.xlu0 %3363
        %3367 = vset.pattern.permute.xlu0 0
        %3368 = vperm.xlu0 %3367, %v1634
        %v3369 = vpop.permute.xlu0 %3368
        %3372 = vset.pattern.permute.xlu0 0
        %3373 = vperm.xlu0 %3372, %v1635
        %v3374 = vpop.permute.xlu0 %3373
        %3377 = vset.pattern.permute.xlu0 0
        %3378 = vperm.xlu0 %3377, %v1636
        %v3379 = vpop.permute.xlu0 %3378
        %v3381 = vmul.f32 %v3304, %v1740
        %v3382 = vmul.f32 %v3309, %v1844
        %v3383 = vmul.f32 %v3314, %v1948
        %v3384 = vmul.f32 %v3319, %v2052
        %v3385 = vmul.f32 %v3324, %v2156
        %v3386 = vmul.f32 %v3329, %v2260
        %v3387 = vmul.f32 %v3334, %v2364
        %v3388 = vmul.f32 %v3339, %v2468
        %v3389 = vmul.f32 %v3344, %v2572
        %v3390 = vmul.f32 %v3349, %v2676
        %v3391 = vmul.f32 %v3354, %v2780
        %v3392 = vmul.f32 %v3359, %v2884
        %v3393 = vmul.f32 %v3364, %v2988
        %v3394 = vmul.f32 %v3369, %v3092
        %v3395 = vmul.f32 %v3374, %v3196
        %v3396 = vmul.f32 %v3379, %v3300
        %v3397 = vand.u32 2147483647, %v1605
        %vm3398 = vcmp.le.f32.partialorder %v3397, 0.7853982
        %vm3399 = vcmp.lt.s32.totalorder %v1605, 0
        %v3400 = vand.u32 %v1605, 2139095040
        %v3401 = vshrl.u32 %v3400, 23
        %v3402 = vsub.s32 %v3401, 127
        %v3403 = vand.u32 2147483647, %v1605
        %v3404 = vand.u32 %v3403, 8388607
        %v3405 = vor.u32 %v3404, 8388608
        %v3406 = vsub.s32 0, %v3405
        %v3407 = vadd.s32 %v3402, 1
        %vm3408 = vcmp.gt.s32.totalorder %v3407, 0
        %v3409 = vsel %vm3408, %v3407, 0
        %v3410 = vshrl.u32 %v3409, 5
        %v3411 = vand.u32 %v3409, 31
        %v3412 = vsub.s32 32, %v3411
        %v3413 = vshrl.u32 683565275, %v3412
        %v3414 = vshll.u32 683565275, %v3411
        %v3415 = vshrl.u32 2475754826, %v3412
        %v3416 = vor.u32 %v3414, %v3415
        %v3417 = vshll.u32 2475754826, %v3411
        %v3418 = vshrl.u32 2131351028, %v3412
        %v3419 = vor.u32 %v3417, %v3418
        %v3420 = vshll.u32 2131351028, %v3411
        %v3421 = vshrl.u32 2102212464, %v3412
        %v3422 = vor.u32 %v3420, %v3421
        %v3423 = vshll.u32 2102212464, %v3411
        %v3424 = vshrl.u32 920167782, %v3412
        %v3425 = vor.u32 %v3423, %v3424
        %v3426 = vshll.u32 920167782, %v3411
        %v3427 = vshrl.u32 1326507024, %v3412
        %v3428 = vor.u32 %v3426, %v3427
        %vm3429 = vcmp.lt.s32.totalorder %v3410, 1
        %vm3430 = vcmp.lt.s32.totalorder %v3410, 2
        %vm3431 = vcmp.lt.s32.totalorder %v3410, 3
        %vm3432 = vcmp.lt.s32.totalorder %v3410, 4
        %v3433 = vsel %vm3429, %v3413, %v3416
        %v3434 = vsel %vm3432, %v3422, 2102212464
        %v3435 = vsel %vm3431, %v3419, %v3434
        %v3436 = vsel %vm3430, %v3433, %v3435
        %v3437 = vsel %vm3429, %v3416, %v3419
        %v3438 = vsel %vm3432, %v3425, 920167782
        %v3439 = vsel %vm3431, %v3422, %v3438
        %v3440 = vsel %vm3430, %v3437, %v3439
        %v3441 = vsel %vm3429, %v3419, %v3422
        %v3442 = vsel %vm3432, %v3428, 1326507024
        %v3443 = vsel %vm3431, %v3425, %v3442
        %v3444 = vsel %vm3430, %v3441, %v3443
        %v3445 = vshll.u32 %v3405, 8
        %v3446 = vmul.u32.u64.compose %v3445, %v3444
        %v3447 = vextract.low.u32 %v3446
        %v3448 = vextract.high.u32 %v3446
        %v3449 = vmul.u32.u64.compose %v3445, %v3440
        %v3450 = vextract.low.u32 %v3449
        %v3451 = vextract.high.u32 %v3449
        %v3452 = vmul.u32 %v3445, %v3436
        %v3453 = vadd.s32 %v3448, %v3450
        %vm3454 = vc.u32 %v3448, %v3450
        %v3455 = vadd.s32 %v3451, 1
        %v3456 = vsel %vm3454, %v3455, %v3451
        %v3457 = vadd.s32 %v3452, %v3456
        %v3458 = vadd.s32 %v3457, 536870912
        %v3459 = vshrl.u32 %v3458, 30
        %v3460 = vshll.u32 %v3459, 30
        %v3461 = vsub.s32 %v3457, %v3460
        %vm3462 = vcmp.lt.s32.totalorder %v3461, 0
        %v3463 = vsub.s32 0, %v3461
        %v3464 = vsel %vm3462, %v3463, %v3461
        %v3465 = vclz %v3464
        %v3466 = vsub.s32 %v3465, 2
        %vm3467 = vcmp.gt.s32.totalorder 0, %v3466
        %v3468 = vsel %vm3467, 0, %v3466
        %v3469 = vsub.s32 32, %v3468
        %v3470 = vshll.u32 %v3461, %v3468
        %v3471 = vshrl.u32 %v3453, %v3469
        %v3472 = vor.u32 %v3470, %v3471
        %v3473 = vsub.s32 4294967266, %v3468
        %v3474 = vadd.s32 %v3473, 127
        %v3475 = vshll.u32 %v3474, 23
        %v3476 = vor.u32 4788187, %v3475
        %v3477 = vand.u32 2147483647, %v3476
        %v3479 = vcvt.s32.f32 %v3472
        %v3480 = vmul.f32 %v3479, %v3477
        %v3481 = vxor.u32 %v3480, 2147483648
        %v3482 = vsel %vm3399, %v3481, %v3480
        %v3483 = vsub.s32 4, %v3459
        %v3484 = vsel %vm3399, %v3483, %v3459
        %v3485 = vsel %vm3398, %v1605, %v3482
        %v3486 = vsel %vm3398, 0, %v3484
        %v3487 = vcosq.f32.pop %v3485
        %v3488 = vsinq.f32.pop %v3485
        %vm3489 = vweird.f32 %v1605
        %v3490 = vadd.s32 %v3486, 3
        %v3491 = vand.u32 %v3490, 3
        %vm3492 = vcmp.lt.s32.totalorder %v3491, 2
        %vm3493 = vcmp.eq.s32.totalorder %v3491, 0
        %v3494 = vxor.u32 %v3488, 2147483648
        %v3495 = vsel %vm3493, %v3487, %v3494
        %vm3496 = vcmp.eq.s32.totalorder %v3491, 2
        %v3497 = vxor.u32 %v3487, 2147483648
        %v3498 = vsel %vm3496, %v3497, %v3488
        %v3499 = vsel %vm3492, %v3495, %v3498
        %v3500 = vsel %vm3489, nan, %v3499
        %v3501 = vand.u32 2147483647, %v1606
        %vm3502 = vcmp.le.f32.partialorder %v3501, 0.7853982
        %vm3503 = vcmp.lt.s32.totalorder %v1606, 0
        %v3504 = vand.u32 %v1606, 2139095040
        %v3505 = vshrl.u32 %v3504, 23
        %v3506 = vsub.s32 %v3505, 127
        %v3507 = vand.u32 2147483647, %v1606
        %v3508 = vand.u32 %v3507, 8388607
        %v3509 = vor.u32 %v3508, 8388608
        %v3510 = vsub.s32 0, %v3509
        %v3511 = vadd.s32 %v3506, 1
        %vm3512 = vcmp.gt.s32.totalorder %v3511, 0
        %v3513 = vsel %vm3512, %v3511, 0
        %v3514 = vshrl.u32 %v3513, 5
        %v3515 = vand.u32 %v3513, 31
        %v3516 = vsub.s32 32, %v3515
        %v3517 = vshrl.u32 683565275, %v3516
        %v3518 = vshll.u32 683565275, %v3515
        %v3519 = vshrl.u32 2475754826, %v3516
        %v3520 = vor.u32 %v3518, %v3519
        %v3521 = vshll.u32 2475754826, %v3515
        %v3522 = vshrl.u32 2131351028, %v3516
        %v3523 = vor.u32 %v3521, %v3522
        %v3524 = vshll.u32 2131351028, %v3515
        %v3525 = vshrl.u32 2102212464, %v3516
        %v3526 = vor.u32 %v3524, %v3525
        %v3527 = vshll.u32 2102212464, %v3515
        %v3528 = vshrl.u32 920167782, %v3516
        %v3529 = vor.u32 %v3527, %v3528
        %v3530 = vshll.u32 920167782, %v3515
        %v3531 = vshrl.u32 1326507024, %v3516
        %v3532 = vor.u32 %v3530, %v3531
        %vm3533 = vcmp.lt.s32.totalorder %v3514, 1
        %vm3534 = vcmp.lt.s32.totalorder %v3514, 2
        %vm3535 = vcmp.lt.s32.totalorder %v3514, 3
        %vm3536 = vcmp.lt.s32.totalorder %v3514, 4
        %v3537 = vsel %vm3533, %v3517, %v3520
        %v3538 = vsel %vm3536, %v3526, 2102212464
        %v3539 = vsel %vm3535, %v3523, %v3538
        %v3540 = vsel %vm3534, %v3537, %v3539
        %v3541 = vsel %vm3533, %v3520, %v3523
        %v3542 = vsel %vm3536, %v3529, 920167782
        %v3543 = vsel %vm3535, %v3526, %v3542
        %v3544 = vsel %vm3534, %v3541, %v3543
        %v3545 = vsel %vm3533, %v3523, %v3526
        %v3546 = vsel %vm3536, %v3532, 1326507024
        %v3547 = vsel %vm3535, %v3529, %v3546
        %v3548 = vsel %vm3534, %v3545, %v3547
        %v3549 = vshll.u32 %v3509, 8
        %v3550 = vmul.u32.u64.compose %v3549, %v3548
        %v3551 = vextract.low.u32 %v3550
        %v3552 = vextract.high.u32 %v3550
        %v3553 = vmul.u32.u64.compose %v3549, %v3544
        %v3554 = vextract.low.u32 %v3553
        %v3555 = vextract.high.u32 %v3553
        %v3556 = vmul.u32 %v3549, %v3540
        %v3557 = vadd.s32 %v3552, %v3554
        %vm3558 = vc.u32 %v3552, %v3554
        %v3559 = vadd.s32 %v3555, 1
        %v3560 = vsel %vm3558, %v3559, %v3555
        %v3561 = vadd.s32 %v3556, %v3560
        %v3562 = vadd.s32 %v3561, 536870912
        %v3563 = vshrl.u32 %v3562, 30
        %v3564 = vshll.u32 %v3563, 30
        %v3565 = vsub.s32 %v3561, %v3564
        %vm3566 = vcmp.lt.s32.totalorder %v3565, 0
        %v3567 = vsub.s32 0, %v3565
        %v3568 = vsel %vm3566, %v3567, %v3565
        %v3569 = vclz %v3568
        %v3570 = vsub.s32 %v3569, 2
        %vm3571 = vcmp.gt.s32.totalorder 0, %v3570
        %v3572 = vsel %vm3571, 0, %v3570
        %v3573 = vsub.s32 32, %v3572
        %v3574 = vshll.u32 %v3565, %v3572
        %v3575 = vshrl.u32 %v3557, %v3573
        %v3576 = vor.u32 %v3574, %v3575
        %v3577 = vsub.s32 4294967266, %v3572
        %v3578 = vadd.s32 %v3577, 127
        %v3579 = vshll.u32 %v3578, 23
        %v3580 = vor.u32 4788187, %v3579
        %v3581 = vand.u32 2147483647, %v3580
        %v3583 = vcvt.s32.f32 %v3576
        %v3584 = vmul.f32 %v3583, %v3581
        %v3585 = vxor.u32 %v3584, 2147483648
        %v3586 = vsel %vm3503, %v3585, %v3584
        %v3587 = vsub.s32 4, %v3563
        %v3588 = vsel %vm3503, %v3587, %v3563
        %v3589 = vsel %vm3502, %v1606, %v3586
        %v3590 = vsel %vm3502, 0, %v3588
        %v3591 = vcosq.f32.pop %v3589
        %v3592 = vsinq.f32.pop %v3589
        %vm3593 = vweird.f32 %v1606
        %v3594 = vadd.s32 %v3590, 3
        %v3595 = vand.u32 %v3594, 3
        %vm3596 = vcmp.lt.s32.totalorder %v3595, 2
        %vm3597 = vcmp.eq.s32.totalorder %v3595, 0
        %v3598 = vxor.u32 %v3592, 2147483648
        %v3599 = vsel %vm3597, %v3591, %v3598
        %vm3600 = vcmp.eq.s32.totalorder %v3595, 2
        %v3601 = vxor.u32 %v3591, 2147483648
        %v3602 = vsel %vm3600, %v3601, %v3592
        %v3603 = vsel %vm3596, %v3599, %v3602
        %v3604 = vsel %vm3593, nan, %v3603
        %v3605 = vand.u32 2147483647, %v1607
        %vm3606 = vcmp.le.f32.partialorder %v3605, 0.7853982
        %vm3607 = vcmp.lt.s32.totalorder %v1607, 0
        %v3608 = vand.u32 %v1607, 2139095040
        %v3609 = vshrl.u32 %v3608, 23
        %v3610 = vsub.s32 %v3609, 127
        %v3611 = vand.u32 2147483647, %v1607
        %v3612 = vand.u32 %v3611, 8388607
        %v3613 = vor.u32 %v3612, 8388608
        %v3614 = vsub.s32 0, %v3613
        %v3615 = vadd.s32 %v3610, 1
        %vm3616 = vcmp.gt.s32.totalorder %v3615, 0
        %v3617 = vsel %vm3616, %v3615, 0
        %v3618 = vshrl.u32 %v3617, 5
        %v3619 = vand.u32 %v3617, 31
        %v3620 = vsub.s32 32, %v3619
        %v3621 = vshrl.u32 683565275, %v3620
        %v3622 = vshll.u32 683565275, %v3619
        %v3623 = vshrl.u32 2475754826, %v3620
        %v3624 = vor.u32 %v3622, %v3623
        %v3625 = vshll.u32 2475754826, %v3619
        %v3626 = vshrl.u32 2131351028, %v3620
        %v3627 = vor.u32 %v3625, %v3626
        %v3628 = vshll.u32 2131351028, %v3619
        %v3629 = vshrl.u32 2102212464, %v3620
        %v3630 = vor.u32 %v3628, %v3629
        %v3631 = vshll.u32 2102212464, %v3619
        %v3632 = vshrl.u32 920167782, %v3620
        %v3633 = vor.u32 %v3631, %v3632
        %v3634 = vshll.u32 920167782, %v3619
        %v3635 = vshrl.u32 1326507024, %v3620
        %v3636 = vor.u32 %v3634, %v3635
        %vm3637 = vcmp.lt.s32.totalorder %v3618, 1
        %vm3638 = vcmp.lt.s32.totalorder %v3618, 2
        %vm3639 = vcmp.lt.s32.totalorder %v3618, 3
        %vm3640 = vcmp.lt.s32.totalorder %v3618, 4
        %v3641 = vsel %vm3637, %v3621, %v3624
        %v3642 = vsel %vm3640, %v3630, 2102212464
        %v3643 = vsel %vm3639, %v3627, %v3642
        %v3644 = vsel %vm3638, %v3641, %v3643
        %v3645 = vsel %vm3637, %v3624, %v3627
        %v3646 = vsel %vm3640, %v3633, 920167782
        %v3647 = vsel %vm3639, %v3630, %v3646
        %v3648 = vsel %vm3638, %v3645, %v3647
        %v3649 = vsel %vm3637, %v3627, %v3630
        %v3650 = vsel %vm3640, %v3636, 1326507024
        %v3651 = vsel %vm3639, %v3633, %v3650
        %v3652 = vsel %vm3638, %v3649, %v3651
        %v3653 = vshll.u32 %v3613, 8
        %v3654 = vmul.u32.u64.compose %v3653, %v3652
        %v3655 = vextract.low.u32 %v3654
        %v3656 = vextract.high.u32 %v3654
        %v3657 = vmul.u32.u64.compose %v3653, %v3648
        %v3658 = vextract.low.u32 %v3657
        %v3659 = vextract.high.u32 %v3657
        %v3660 = vmul.u32 %v3653, %v3644
        %v3661 = vadd.s32 %v3656, %v3658
        %vm3662 = vc.u32 %v3656, %v3658
        %v3663 = vadd.s32 %v3659, 1
        %v3664 = vsel %vm3662, %v3663, %v3659
        %v3665 = vadd.s32 %v3660, %v3664
        %v3666 = vadd.s32 %v3665, 536870912
        %v3667 = vshrl.u32 %v3666, 30
        %v3668 = vshll.u32 %v3667, 30
        %v3669 = vsub.s32 %v3665, %v3668
        %vm3670 = vcmp.lt.s32.totalorder %v3669, 0
        %v3671 = vsub.s32 0, %v3669
        %v3672 = vsel %vm3670, %v3671, %v3669
        %v3673 = vclz %v3672
        %v3674 = vsub.s32 %v3673, 2
        %vm3675 = vcmp.gt.s32.totalorder 0, %v3674
        %v3676 = vsel %vm3675, 0, %v3674
        %v3677 = vsub.s32 32, %v3676
        %v3678 = vshll.u32 %v3669, %v3676
        %v3679 = vshrl.u32 %v3661, %v3677
        %v3680 = vor.u32 %v3678, %v3679
        %v3681 = vsub.s32 4294967266, %v3676
        %v3682 = vadd.s32 %v3681, 127
        %v3683 = vshll.u32 %v3682, 23
        %v3684 = vor.u32 4788187, %v3683
        %v3685 = vand.u32 2147483647, %v3684
        %v3687 = vcvt.s32.f32 %v3680
        %v3688 = vmul.f32 %v3687, %v3685
        %v3689 = vxor.u32 %v3688, 2147483648
        %v3690 = vsel %vm3607, %v3689, %v3688
        %v3691 = vsub.s32 4, %v3667
        %v3692 = vsel %vm3607, %v3691, %v3667
        %v3693 = vsel %vm3606, %v1607, %v3690
        %v3694 = vsel %vm3606, 0, %v3692
        %v3695 = vcosq.f32.pop %v3693
        %v3696 = vsinq.f32.pop %v3693
        %vm3697 = vweird.f32 %v1607
        %v3698 = vadd.s32 %v3694, 3
        %v3699 = vand.u32 %v3698, 3
        %vm3700 = vcmp.lt.s32.totalorder %v3699, 2
        %vm3701 = vcmp.eq.s32.totalorder %v3699, 0
        %v3702 = vxor.u32 %v3696, 2147483648
        %v3703 = vsel %vm3701, %v3695, %v3702
        %vm3704 = vcmp.eq.s32.totalorder %v3699, 2
        %v3705 = vxor.u32 %v3695, 2147483648
        %v3706 = vsel %vm3704, %v3705, %v3696
        %v3707 = vsel %vm3700, %v3703, %v3706
        %v3708 = vsel %vm3697, nan, %v3707
        %v3709 = vand.u32 2147483647, %v1608
        %vm3710 = vcmp.le.f32.partialorder %v3709, 0.7853982
        %vm3711 = vcmp.lt.s32.totalorder %v1608, 0
        %v3712 = vand.u32 %v1608, 2139095040
        %v3713 = vshrl.u32 %v3712, 23
        %v3714 = vsub.s32 %v3713, 127
        %v3715 = vand.u32 2147483647, %v1608
        %v3716 = vand.u32 %v3715, 8388607
        %v3717 = vor.u32 %v3716, 8388608
        %v3718 = vsub.s32 0, %v3717
        %v3719 = vadd.s32 %v3714, 1
        %vm3720 = vcmp.gt.s32.totalorder %v3719, 0
        %v3721 = vsel %vm3720, %v3719, 0
        %v3722 = vshrl.u32 %v3721, 5
        %v3723 = vand.u32 %v3721, 31
        %v3724 = vsub.s32 32, %v3723
        %v3725 = vshrl.u32 683565275, %v3724
        %v3726 = vshll.u32 683565275, %v3723
        %v3727 = vshrl.u32 2475754826, %v3724
        %v3728 = vor.u32 %v3726, %v3727
        %v3729 = vshll.u32 2475754826, %v3723
        %v3730 = vshrl.u32 2131351028, %v3724
        %v3731 = vor.u32 %v3729, %v3730
        %v3732 = vshll.u32 2131351028, %v3723
        %v3733 = vshrl.u32 2102212464, %v3724
        %v3734 = vor.u32 %v3732, %v3733
        %v3735 = vshll.u32 2102212464, %v3723
        %v3736 = vshrl.u32 920167782, %v3724
        %v3737 = vor.u32 %v3735, %v3736
        %v3738 = vshll.u32 920167782, %v3723
        %v3739 = vshrl.u32 1326507024, %v3724
        %v3740 = vor.u32 %v3738, %v3739
        %vm3741 = vcmp.lt.s32.totalorder %v3722, 1
        %vm3742 = vcmp.lt.s32.totalorder %v3722, 2
        %vm3743 = vcmp.lt.s32.totalorder %v3722, 3
        %vm3744 = vcmp.lt.s32.totalorder %v3722, 4
        %v3745 = vsel %vm3741, %v3725, %v3728
        %v3746 = vsel %vm3744, %v3734, 2102212464
        %v3747 = vsel %vm3743, %v3731, %v3746
        %v3748 = vsel %vm3742, %v3745, %v3747
        %v3749 = vsel %vm3741, %v3728, %v3731
        %v3750 = vsel %vm3744, %v3737, 920167782
        %v3751 = vsel %vm3743, %v3734, %v3750
        %v3752 = vsel %vm3742, %v3749, %v3751
        %v3753 = vsel %vm3741, %v3731, %v3734
        %v3754 = vsel %vm3744, %v3740, 1326507024
        %v3755 = vsel %vm3743, %v3737, %v3754
        %v3756 = vsel %vm3742, %v3753, %v3755
        %v3757 = vshll.u32 %v3717, 8
        %v3758 = vmul.u32.u64.compose %v3757, %v3756
        %v3759 = vextract.low.u32 %v3758
        %v3760 = vextract.high.u32 %v3758
        %v3761 = vmul.u32.u64.compose %v3757, %v3752
        %v3762 = vextract.low.u32 %v3761
        %v3763 = vextract.high.u32 %v3761
        %v3764 = vmul.u32 %v3757, %v3748
        %v3765 = vadd.s32 %v3760, %v3762
        %vm3766 = vc.u32 %v3760, %v3762
        %v3767 = vadd.s32 %v3763, 1
        %v3768 = vsel %vm3766, %v3767, %v3763
        %v3769 = vadd.s32 %v3764, %v3768
        %v3770 = vadd.s32 %v3769, 536870912
        %v3771 = vshrl.u32 %v3770, 30
        %v3772 = vshll.u32 %v3771, 30
        %v3773 = vsub.s32 %v3769, %v3772
        %vm3774 = vcmp.lt.s32.totalorder %v3773, 0
        %v3775 = vsub.s32 0, %v3773
        %v3776 = vsel %vm3774, %v3775, %v3773
        %v3777 = vclz %v3776
        %v3778 = vsub.s32 %v3777, 2
        %vm3779 = vcmp.gt.s32.totalorder 0, %v3778
        %v3780 = vsel %vm3779, 0, %v3778
        %v3781 = vsub.s32 32, %v3780
        %v3782 = vshll.u32 %v3773, %v3780
        %v3783 = vshrl.u32 %v3765, %v3781
        %v3784 = vor.u32 %v3782, %v3783
        %v3785 = vsub.s32 4294967266, %v3780
        %v3786 = vadd.s32 %v3785, 127
        %v3787 = vshll.u32 %v3786, 23
        %v3788 = vor.u32 4788187, %v3787
        %v3789 = vand.u32 2147483647, %v3788
        %v3791 = vcvt.s32.f32 %v3784
        %v3792 = vmul.f32 %v3791, %v3789
        %v3793 = vxor.u32 %v3792, 2147483648
        %v3794 = vsel %vm3711, %v3793, %v3792
        %v3795 = vsub.s32 4, %v3771
        %v3796 = vsel %vm3711, %v3795, %v3771
        %v3797 = vsel %vm3710, %v1608, %v3794
        %v3798 = vsel %vm3710, 0, %v3796
        %v3799 = vcosq.f32.pop %v3797
        %v3800 = vsinq.f32.pop %v3797
        %vm3801 = vweird.f32 %v1608
        %v3802 = vadd.s32 %v3798, 3
        %v3803 = vand.u32 %v3802, 3
        %vm3804 = vcmp.lt.s32.totalorder %v3803, 2
        %vm3805 = vcmp.eq.s32.totalorder %v3803, 0
        %v3806 = vxor.u32 %v3800, 2147483648
        %v3807 = vsel %vm3805, %v3799, %v3806
        %vm3808 = vcmp.eq.s32.totalorder %v3803, 2
        %v3809 = vxor.u32 %v3799, 2147483648
        %v3810 = vsel %vm3808, %v3809, %v3800
        %v3811 = vsel %vm3804, %v3807, %v3810
        %v3812 = vsel %vm3801, nan, %v3811
        %v3813 = vand.u32 2147483647, %v1609
        %vm3814 = vcmp.le.f32.partialorder %v3813, 0.7853982
        %vm3815 = vcmp.lt.s32.totalorder %v1609, 0
        %v3816 = vand.u32 %v1609, 2139095040
        %v3817 = vshrl.u32 %v3816, 23
        %v3818 = vsub.s32 %v3817, 127
        %v3819 = vand.u32 2147483647, %v1609
        %v3820 = vand.u32 %v3819, 8388607
        %v3821 = vor.u32 %v3820, 8388608
        %v3822 = vsub.s32 0, %v3821
        %v3823 = vadd.s32 %v3818, 1
        %vm3824 = vcmp.gt.s32.totalorder %v3823, 0
        %v3825 = vsel %vm3824, %v3823, 0
        %v3826 = vshrl.u32 %v3825, 5
        %v3827 = vand.u32 %v3825, 31
        %v3828 = vsub.s32 32, %v3827
        %v3829 = vshrl.u32 683565275, %v3828
        %v3830 = vshll.u32 683565275, %v3827
        %v3831 = vshrl.u32 2475754826, %v3828
        %v3832 = vor.u32 %v3830, %v3831
        %v3833 = vshll.u32 2475754826, %v3827
        %v3834 = vshrl.u32 2131351028, %v3828
        %v3835 = vor.u32 %v3833, %v3834
        %v3836 = vshll.u32 2131351028, %v3827
        %v3837 = vshrl.u32 2102212464, %v3828
        %v3838 = vor.u32 %v3836, %v3837
        %v3839 = vshll.u32 2102212464, %v3827
        %v3840 = vshrl.u32 920167782, %v3828
        %v3841 = vor.u32 %v3839, %v3840
        %v3842 = vshll.u32 920167782, %v3827
        %v3843 = vshrl.u32 1326507024, %v3828
        %v3844 = vor.u32 %v3842, %v3843
        %vm3845 = vcmp.lt.s32.totalorder %v3826, 1
        %vm3846 = vcmp.lt.s32.totalorder %v3826, 2
        %vm3847 = vcmp.lt.s32.totalorder %v3826, 3
        %vm3848 = vcmp.lt.s32.totalorder %v3826, 4
        %v3849 = vsel %vm3845, %v3829, %v3832
        %v3850 = vsel %vm3848, %v3838, 2102212464
        %v3851 = vsel %vm3847, %v3835, %v3850
        %v3852 = vsel %vm3846, %v3849, %v3851
        %v3853 = vsel %vm3845, %v3832, %v3835
        %v3854 = vsel %vm3848, %v3841, 920167782
        %v3855 = vsel %vm3847, %v3838, %v3854
        %v3856 = vsel %vm3846, %v3853, %v3855
        %v3857 = vsel %vm3845, %v3835, %v3838
        %v3858 = vsel %vm3848, %v3844, 1326507024
        %v3859 = vsel %vm3847, %v3841, %v3858
        %v3860 = vsel %vm3846, %v3857, %v3859
        %v3861 = vshll.u32 %v3821, 8
        %v3862 = vmul.u32.u64.compose %v3861, %v3860
        %v3863 = vextract.low.u32 %v3862
        %v3864 = vextract.high.u32 %v3862
        %v3865 = vmul.u32.u64.compose %v3861, %v3856
        %v3866 = vextract.low.u32 %v3865
        %v3867 = vextract.high.u32 %v3865
        %v3868 = vmul.u32 %v3861, %v3852
        %v3869 = vadd.s32 %v3864, %v3866
        %vm3870 = vc.u32 %v3864, %v3866
        %v3871 = vadd.s32 %v3867, 1
        %v3872 = vsel %vm3870, %v3871, %v3867
        %v3873 = vadd.s32 %v3868, %v3872
        %v3874 = vadd.s32 %v3873, 536870912
        %v3875 = vshrl.u32 %v3874, 30
        %v3876 = vshll.u32 %v3875, 30
        %v3877 = vsub.s32 %v3873, %v3876
        %vm3878 = vcmp.lt.s32.totalorder %v3877, 0
        %v3879 = vsub.s32 0, %v3877
        %v3880 = vsel %vm3878, %v3879, %v3877
        %v3881 = vclz %v3880
        %v3882 = vsub.s32 %v3881, 2
        %vm3883 = vcmp.gt.s32.totalorder 0, %v3882
        %v3884 = vsel %vm3883, 0, %v3882
        %v3885 = vsub.s32 32, %v3884
        %v3886 = vshll.u32 %v3877, %v3884
        %v3887 = vshrl.u32 %v3869, %v3885
        %v3888 = vor.u32 %v3886, %v3887
        %v3889 = vsub.s32 4294967266, %v3884
        %v3890 = vadd.s32 %v3889, 127
        %v3891 = vshll.u32 %v3890, 23
        %v3892 = vor.u32 4788187, %v3891
        %v3893 = vand.u32 2147483647, %v3892
        %v3895 = vcvt.s32.f32 %v3888
        %v3896 = vmul.f32 %v3895, %v3893
        %v3897 = vxor.u32 %v3896, 2147483648
        %v3898 = vsel %vm3815, %v3897, %v3896
        %v3899 = vsub.s32 4, %v3875
        %v3900 = vsel %vm3815, %v3899, %v3875
        %v3901 = vsel %vm3814, %v1609, %v3898
        %v3902 = vsel %vm3814, 0, %v3900
        %v3903 = vcosq.f32.pop %v3901
        %v3904 = vsinq.f32.pop %v3901
        %vm3905 = vweird.f32 %v1609
        %v3906 = vadd.s32 %v3902, 3
        %v3907 = vand.u32 %v3906, 3
        %vm3908 = vcmp.lt.s32.totalorder %v3907, 2
        %vm3909 = vcmp.eq.s32.totalorder %v3907, 0
        %v3910 = vxor.u32 %v3904, 2147483648
        %v3911 = vsel %vm3909, %v3903, %v3910
        %vm3912 = vcmp.eq.s32.totalorder %v3907, 2
        %v3913 = vxor.u32 %v3903, 2147483648
        %v3914 = vsel %vm3912, %v3913, %v3904
        %v3915 = vsel %vm3908, %v3911, %v3914
        %v3916 = vsel %vm3905, nan, %v3915
        %v3917 = vand.u32 2147483647, %v1610
        %vm3918 = vcmp.le.f32.partialorder %v3917, 0.7853982
        %vm3919 = vcmp.lt.s32.totalorder %v1610, 0
        %v3920 = vand.u32 %v1610, 2139095040
        %v3921 = vshrl.u32 %v3920, 23
        %v3922 = vsub.s32 %v3921, 127
        %v3923 = vand.u32 2147483647, %v1610
        %v3924 = vand.u32 %v3923, 8388607
        %v3925 = vor.u32 %v3924, 8388608
        %v3926 = vsub.s32 0, %v3925
        %v3927 = vadd.s32 %v3922, 1
        %vm3928 = vcmp.gt.s32.totalorder %v3927, 0
        %v3929 = vsel %vm3928, %v3927, 0
        %v3930 = vshrl.u32 %v3929, 5
        %v3931 = vand.u32 %v3929, 31
        %v3932 = vsub.s32 32, %v3931
        %v3933 = vshrl.u32 683565275, %v3932
        %v3934 = vshll.u32 683565275, %v3931
        %v3935 = vshrl.u32 2475754826, %v3932
        %v3936 = vor.u32 %v3934, %v3935
        %v3937 = vshll.u32 2475754826, %v3931
        %v3938 = vshrl.u32 2131351028, %v3932
        %v3939 = vor.u32 %v3937, %v3938
        %v3940 = vshll.u32 2131351028, %v3931
        %v3941 = vshrl.u32 2102212464, %v3932
        %v3942 = vor.u32 %v3940, %v3941
        %v3943 = vshll.u32 2102212464, %v3931
        %v3944 = vshrl.u32 920167782, %v3932
        %v3945 = vor.u32 %v3943, %v3944
        %v3946 = vshll.u32 920167782, %v3931
        %v3947 = vshrl.u32 1326507024, %v3932
        %v3948 = vor.u32 %v3946, %v3947
        %vm3949 = vcmp.lt.s32.totalorder %v3930, 1
        %vm3950 = vcmp.lt.s32.totalorder %v3930, 2
        %vm3951 = vcmp.lt.s32.totalorder %v3930, 3
        %vm3952 = vcmp.lt.s32.totalorder %v3930, 4
        %v3953 = vsel %vm3949, %v3933, %v3936
        %v3954 = vsel %vm3952, %v3942, 2102212464
        %v3955 = vsel %vm3951, %v3939, %v3954
        %v3956 = vsel %vm3950, %v3953, %v3955
        %v3957 = vsel %vm3949, %v3936, %v3939
        %v3958 = vsel %vm3952, %v3945, 920167782
        %v3959 = vsel %vm3951, %v3942, %v3958
        %v3960 = vsel %vm3950, %v3957, %v3959
        %v3961 = vsel %vm3949, %v3939, %v3942
        %v3962 = vsel %vm3952, %v3948, 1326507024
        %v3963 = vsel %vm3951, %v3945, %v3962
        %v3964 = vsel %vm3950, %v3961, %v3963
        %v3965 = vshll.u32 %v3925, 8
        %v3966 = vmul.u32.u64.compose %v3965, %v3964
        %v3967 = vextract.low.u32 %v3966
        %v3968 = vextract.high.u32 %v3966
        %v3969 = vmul.u32.u64.compose %v3965, %v3960
        %v3970 = vextract.low.u32 %v3969
        %v3971 = vextract.high.u32 %v3969
        %v3972 = vmul.u32 %v3965, %v3956
        %v3973 = vadd.s32 %v3968, %v3970
        %vm3974 = vc.u32 %v3968, %v3970
        %v3975 = vadd.s32 %v3971, 1
        %v3976 = vsel %vm3974, %v3975, %v3971
        %v3977 = vadd.s32 %v3972, %v3976
        %v3978 = vadd.s32 %v3977, 536870912
        %v3979 = vshrl.u32 %v3978, 30
        %v3980 = vshll.u32 %v3979, 30
        %v3981 = vsub.s32 %v3977, %v3980
        %vm3982 = vcmp.lt.s32.totalorder %v3981, 0
        %v3983 = vsub.s32 0, %v3981
        %v3984 = vsel %vm3982, %v3983, %v3981
        %v3985 = vclz %v3984
        %v3986 = vsub.s32 %v3985, 2
        %vm3987 = vcmp.gt.s32.totalorder 0, %v3986
        %v3988 = vsel %vm3987, 0, %v3986
        %v3989 = vsub.s32 32, %v3988
        %v3990 = vshll.u32 %v3981, %v3988
        %v3991 = vshrl.u32 %v3973, %v3989
        %v3992 = vor.u32 %v3990, %v3991
        %v3993 = vsub.s32 4294967266, %v3988
        %v3994 = vadd.s32 %v3993, 127
        %v3995 = vshll.u32 %v3994, 23
        %v3996 = vor.u32 4788187, %v3995
        %v3997 = vand.u32 2147483647, %v3996
        %v3999 = vcvt.s32.f32 %v3992
        %v4000 = vmul.f32 %v3999, %v3997
        %v4001 = vxor.u32 %v4000, 2147483648
        %v4002 = vsel %vm3919, %v4001, %v4000
        %v4003 = vsub.s32 4, %v3979
        %v4004 = vsel %vm3919, %v4003, %v3979
        %v4005 = vsel %vm3918, %v1610, %v4002
        %v4006 = vsel %vm3918, 0, %v4004
        %v4007 = vcosq.f32.pop %v4005
        %v4008 = vsinq.f32.pop %v4005
        %vm4009 = vweird.f32 %v1610
        %v4010 = vadd.s32 %v4006, 3
        %v4011 = vand.u32 %v4010, 3
        %vm4012 = vcmp.lt.s32.totalorder %v4011, 2
        %vm4013 = vcmp.eq.s32.totalorder %v4011, 0
        %v4014 = vxor.u32 %v4008, 2147483648
        %v4015 = vsel %vm4013, %v4007, %v4014
        %vm4016 = vcmp.eq.s32.totalorder %v4011, 2
        %v4017 = vxor.u32 %v4007, 2147483648
        %v4018 = vsel %vm4016, %v4017, %v4008
        %v4019 = vsel %vm4012, %v4015, %v4018
        %v4020 = vsel %vm4009, nan, %v4019
        %v4021 = vand.u32 2147483647, %v1611
        %vm4022 = vcmp.le.f32.partialorder %v4021, 0.7853982
        %vm4023 = vcmp.lt.s32.totalorder %v1611, 0
        %v4024 = vand.u32 %v1611, 2139095040
        %v4025 = vshrl.u32 %v4024, 23
        %v4026 = vsub.s32 %v4025, 127
        %v4027 = vand.u32 2147483647, %v1611
        %v4028 = vand.u32 %v4027, 8388607
        %v4029 = vor.u32 %v4028, 8388608
        %v4030 = vsub.s32 0, %v4029
        %v4031 = vadd.s32 %v4026, 1
        %vm4032 = vcmp.gt.s32.totalorder %v4031, 0
        %v4033 = vsel %vm4032, %v4031, 0
        %v4034 = vshrl.u32 %v4033, 5
        %v4035 = vand.u32 %v4033, 31
        %v4036 = vsub.s32 32, %v4035
        %v4037 = vshrl.u32 683565275, %v4036
        %v4038 = vshll.u32 683565275, %v4035
        %v4039 = vshrl.u32 2475754826, %v4036
        %v4040 = vor.u32 %v4038, %v4039
        %v4041 = vshll.u32 2475754826, %v4035
        %v4042 = vshrl.u32 2131351028, %v4036
        %v4043 = vor.u32 %v4041, %v4042
        %v4044 = vshll.u32 2131351028, %v4035
        %v4045 = vshrl.u32 2102212464, %v4036
        %v4046 = vor.u32 %v4044, %v4045
        %v4047 = vshll.u32 2102212464, %v4035
        %v4048 = vshrl.u32 920167782, %v4036
        %v4049 = vor.u32 %v4047, %v4048
        %v4050 = vshll.u32 920167782, %v4035
        %v4051 = vshrl.u32 1326507024, %v4036
        %v4052 = vor.u32 %v4050, %v4051
        %vm4053 = vcmp.lt.s32.totalorder %v4034, 1
        %vm4054 = vcmp.lt.s32.totalorder %v4034, 2
        %vm4055 = vcmp.lt.s32.totalorder %v4034, 3
        %vm4056 = vcmp.lt.s32.totalorder %v4034, 4
        %v4057 = vsel %vm4053, %v4037, %v4040
        %v4058 = vsel %vm4056, %v4046, 2102212464
        %v4059 = vsel %vm4055, %v4043, %v4058
        %v4060 = vsel %vm4054, %v4057, %v4059
        %v4061 = vsel %vm4053, %v4040, %v4043
        %v4062 = vsel %vm4056, %v4049, 920167782
        %v4063 = vsel %vm4055, %v4046, %v4062
        %v4064 = vsel %vm4054, %v4061, %v4063
        %v4065 = vsel %vm4053, %v4043, %v4046
        %v4066 = vsel %vm4056, %v4052, 1326507024
        %v4067 = vsel %vm4055, %v4049, %v4066
        %v4068 = vsel %vm4054, %v4065, %v4067
        %v4069 = vshll.u32 %v4029, 8
        %v4070 = vmul.u32.u64.compose %v4069, %v4068
        %v4071 = vextract.low.u32 %v4070
        %v4072 = vextract.high.u32 %v4070
        %v4073 = vmul.u32.u64.compose %v4069, %v4064
        %v4074 = vextract.low.u32 %v4073
        %v4075 = vextract.high.u32 %v4073
        %v4076 = vmul.u32 %v4069, %v4060
        %v4077 = vadd.s32 %v4072, %v4074
        %vm4078 = vc.u32 %v4072, %v4074
        %v4079 = vadd.s32 %v4075, 1
        %v4080 = vsel %vm4078, %v4079, %v4075
        %v4081 = vadd.s32 %v4076, %v4080
        %v4082 = vadd.s32 %v4081, 536870912
        %v4083 = vshrl.u32 %v4082, 30
        %v4084 = vshll.u32 %v4083, 30
        %v4085 = vsub.s32 %v4081, %v4084
        %vm4086 = vcmp.lt.s32.totalorder %v4085, 0
        %v4087 = vsub.s32 0, %v4085
        %v4088 = vsel %vm4086, %v4087, %v4085
        %v4089 = vclz %v4088
        %v4090 = vsub.s32 %v4089, 2
        %vm4091 = vcmp.gt.s32.totalorder 0, %v4090
        %v4092 = vsel %vm4091, 0, %v4090
        %v4093 = vsub.s32 32, %v4092
        %v4094 = vshll.u32 %v4085, %v4092
        %v4095 = vshrl.u32 %v4077, %v4093
        %v4096 = vor.u32 %v4094, %v4095
        %v4097 = vsub.s32 4294967266, %v4092
        %v4098 = vadd.s32 %v4097, 127
        %v4099 = vshll.u32 %v4098, 23
        %v4100 = vor.u32 4788187, %v4099
        %v4101 = vand.u32 2147483647, %v4100
        %v4103 = vcvt.s32.f32 %v4096
        %v4104 = vmul.f32 %v4103, %v4101
        %v4105 = vxor.u32 %v4104, 2147483648
        %v4106 = vsel %vm4023, %v4105, %v4104
        %v4107 = vsub.s32 4, %v4083
        %v4108 = vsel %vm4023, %v4107, %v4083
        %v4109 = vsel %vm4022, %v1611, %v4106
        %v4110 = vsel %vm4022, 0, %v4108
        %v4111 = vcosq.f32.pop %v4109
        %v4112 = vsinq.f32.pop %v4109
        %vm4113 = vweird.f32 %v1611
        %v4114 = vadd.s32 %v4110, 3
        %v4115 = vand.u32 %v4114, 3
        %vm4116 = vcmp.lt.s32.totalorder %v4115, 2
        %vm4117 = vcmp.eq.s32.totalorder %v4115, 0
        %v4118 = vxor.u32 %v4112, 2147483648
        %v4119 = vsel %vm4117, %v4111, %v4118
        %vm4120 = vcmp.eq.s32.totalorder %v4115, 2
        %v4121 = vxor.u32 %v4111, 2147483648
        %v4122 = vsel %vm4120, %v4121, %v4112
        %v4123 = vsel %vm4116, %v4119, %v4122
        %v4124 = vsel %vm4113, nan, %v4123
        %v4125 = vand.u32 2147483647, %v1612
        %vm4126 = vcmp.le.f32.partialorder %v4125, 0.7853982
        %vm4127 = vcmp.lt.s32.totalorder %v1612, 0
        %v4128 = vand.u32 %v1612, 2139095040
        %v4129 = vshrl.u32 %v4128, 23
        %v4130 = vsub.s32 %v4129, 127
        %v4131 = vand.u32 2147483647, %v1612
        %v4132 = vand.u32 %v4131, 8388607
        %v4133 = vor.u32 %v4132, 8388608
        %v4134 = vsub.s32 0, %v4133
        %v4135 = vadd.s32 %v4130, 1
        %vm4136 = vcmp.gt.s32.totalorder %v4135, 0
        %v4137 = vsel %vm4136, %v4135, 0
        %v4138 = vshrl.u32 %v4137, 5
        %v4139 = vand.u32 %v4137, 31
        %v4140 = vsub.s32 32, %v4139
        %v4141 = vshrl.u32 683565275, %v4140
        %v4142 = vshll.u32 683565275, %v4139
        %v4143 = vshrl.u32 2475754826, %v4140
        %v4144 = vor.u32 %v4142, %v4143
        %v4145 = vshll.u32 2475754826, %v4139
        %v4146 = vshrl.u32 2131351028, %v4140
        %v4147 = vor.u32 %v4145, %v4146
        %v4148 = vshll.u32 2131351028, %v4139
        %v4149 = vshrl.u32 2102212464, %v4140
        %v4150 = vor.u32 %v4148, %v4149
        %v4151 = vshll.u32 2102212464, %v4139
        %v4152 = vshrl.u32 920167782, %v4140
        %v4153 = vor.u32 %v4151, %v4152
        %v4154 = vshll.u32 920167782, %v4139
        %v4155 = vshrl.u32 1326507024, %v4140
        %v4156 = vor.u32 %v4154, %v4155
        %vm4157 = vcmp.lt.s32.totalorder %v4138, 1
        %vm4158 = vcmp.lt.s32.totalorder %v4138, 2
        %vm4159 = vcmp.lt.s32.totalorder %v4138, 3
        %vm4160 = vcmp.lt.s32.totalorder %v4138, 4
        %v4161 = vsel %vm4157, %v4141, %v4144
        %v4162 = vsel %vm4160, %v4150, 2102212464
        %v4163 = vsel %vm4159, %v4147, %v4162
        %v4164 = vsel %vm4158, %v4161, %v4163
        %v4165 = vsel %vm4157, %v4144, %v4147
        %v4166 = vsel %vm4160, %v4153, 920167782
        %v4167 = vsel %vm4159, %v4150, %v4166
        %v4168 = vsel %vm4158, %v4165, %v4167
        %v4169 = vsel %vm4157, %v4147, %v4150
        %v4170 = vsel %vm4160, %v4156, 1326507024
        %v4171 = vsel %vm4159, %v4153, %v4170
        %v4172 = vsel %vm4158, %v4169, %v4171
        %v4173 = vshll.u32 %v4133, 8
        %v4174 = vmul.u32.u64.compose %v4173, %v4172
        %v4175 = vextract.low.u32 %v4174
        %v4176 = vextract.high.u32 %v4174
        %v4177 = vmul.u32.u64.compose %v4173, %v4168
        %v4178 = vextract.low.u32 %v4177
        %v4179 = vextract.high.u32 %v4177
        %v4180 = vmul.u32 %v4173, %v4164
        %v4181 = vadd.s32 %v4176, %v4178
        %vm4182 = vc.u32 %v4176, %v4178
        %v4183 = vadd.s32 %v4179, 1
        %v4184 = vsel %vm4182, %v4183, %v4179
        %v4185 = vadd.s32 %v4180, %v4184
        %v4186 = vadd.s32 %v4185, 536870912
        %v4187 = vshrl.u32 %v4186, 30
        %v4188 = vshll.u32 %v4187, 30
        %v4189 = vsub.s32 %v4185, %v4188
        %vm4190 = vcmp.lt.s32.totalorder %v4189, 0
        %v4191 = vsub.s32 0, %v4189
        %v4192 = vsel %vm4190, %v4191, %v4189
        %v4193 = vclz %v4192
        %v4194 = vsub.s32 %v4193, 2
        %vm4195 = vcmp.gt.s32.totalorder 0, %v4194
        %v4196 = vsel %vm4195, 0, %v4194
        %v4197 = vsub.s32 32, %v4196
        %v4198 = vshll.u32 %v4189, %v4196
        %v4199 = vshrl.u32 %v4181, %v4197
        %v4200 = vor.u32 %v4198, %v4199
        %v4201 = vsub.s32 4294967266, %v4196
        %v4202 = vadd.s32 %v4201, 127
        %v4203 = vshll.u32 %v4202, 23
        %v4204 = vor.u32 4788187, %v4203
        %v4205 = vand.u32 2147483647, %v4204
        %v4207 = vcvt.s32.f32 %v4200
        %v4208 = vmul.f32 %v4207, %v4205
        %v4209 = vxor.u32 %v4208, 2147483648
        %v4210 = vsel %vm4127, %v4209, %v4208
        %v4211 = vsub.s32 4, %v4187
        %v4212 = vsel %vm4127, %v4211, %v4187
        %v4213 = vsel %vm4126, %v1612, %v4210
        %v4214 = vsel %vm4126, 0, %v4212
        %v4215 = vcosq.f32.pop %v4213
        %v4216 = vsinq.f32.pop %v4213
        %vm4217 = vweird.f32 %v1612
        %v4218 = vadd.s32 %v4214, 3
        %v4219 = vand.u32 %v4218, 3
        %vm4220 = vcmp.lt.s32.totalorder %v4219, 2
        %vm4221 = vcmp.eq.s32.totalorder %v4219, 0
        %v4222 = vxor.u32 %v4216, 2147483648
        %v4223 = vsel %vm4221, %v4215, %v4222
        %vm4224 = vcmp.eq.s32.totalorder %v4219, 2
        %v4225 = vxor.u32 %v4215, 2147483648
        %v4226 = vsel %vm4224, %v4225, %v4216
        %v4227 = vsel %vm4220, %v4223, %v4226
        %v4228 = vsel %vm4217, nan, %v4227
        %v4229 = vand.u32 2147483647, %v1613
        %vm4230 = vcmp.le.f32.partialorder %v4229, 0.7853982
        %vm4231 = vcmp.lt.s32.totalorder %v1613, 0
        %v4232 = vand.u32 %v1613, 2139095040
        %v4233 = vshrl.u32 %v4232, 23
        %v4234 = vsub.s32 %v4233, 127
        %v4235 = vand.u32 2147483647, %v1613
        %v4236 = vand.u32 %v4235, 8388607
        %v4237 = vor.u32 %v4236, 8388608
        %v4238 = vsub.s32 0, %v4237
        %v4239 = vadd.s32 %v4234, 1
        %vm4240 = vcmp.gt.s32.totalorder %v4239, 0
        %v4241 = vsel %vm4240, %v4239, 0
        %v4242 = vshrl.u32 %v4241, 5
        %v4243 = vand.u32 %v4241, 31
        %v4244 = vsub.s32 32, %v4243
        %v4245 = vshrl.u32 683565275, %v4244
        %v4246 = vshll.u32 683565275, %v4243
        %v4247 = vshrl.u32 2475754826, %v4244
        %v4248 = vor.u32 %v4246, %v4247
        %v4249 = vshll.u32 2475754826, %v4243
        %v4250 = vshrl.u32 2131351028, %v4244
        %v4251 = vor.u32 %v4249, %v4250
        %v4252 = vshll.u32 2131351028, %v4243
        %v4253 = vshrl.u32 2102212464, %v4244
        %v4254 = vor.u32 %v4252, %v4253
        %v4255 = vshll.u32 2102212464, %v4243
        %v4256 = vshrl.u32 920167782, %v4244
        %v4257 = vor.u32 %v4255, %v4256
        %v4258 = vshll.u32 920167782, %v4243
        %v4259 = vshrl.u32 1326507024, %v4244
        %v4260 = vor.u32 %v4258, %v4259
        %vm4261 = vcmp.lt.s32.totalorder %v4242, 1
        %vm4262 = vcmp.lt.s32.totalorder %v4242, 2
        %vm4263 = vcmp.lt.s32.totalorder %v4242, 3
        %vm4264 = vcmp.lt.s32.totalorder %v4242, 4
        %v4265 = vsel %vm4261, %v4245, %v4248
        %v4266 = vsel %vm4264, %v4254, 2102212464
        %v4267 = vsel %vm4263, %v4251, %v4266
        %v4268 = vsel %vm4262, %v4265, %v4267
        %v4269 = vsel %vm4261, %v4248, %v4251
        %v4270 = vsel %vm4264, %v4257, 920167782
        %v4271 = vsel %vm4263, %v4254, %v4270
        %v4272 = vsel %vm4262, %v4269, %v4271
        %v4273 = vsel %vm4261, %v4251, %v4254
        %v4274 = vsel %vm4264, %v4260, 1326507024
        %v4275 = vsel %vm4263, %v4257, %v4274
        %v4276 = vsel %vm4262, %v4273, %v4275
        %v4277 = vshll.u32 %v4237, 8
        %v4278 = vmul.u32.u64.compose %v4277, %v4276
        %v4279 = vextract.low.u32 %v4278
        %v4280 = vextract.high.u32 %v4278
        %v4281 = vmul.u32.u64.compose %v4277, %v4272
        %v4282 = vextract.low.u32 %v4281
        %v4283 = vextract.high.u32 %v4281
        %v4284 = vmul.u32 %v4277, %v4268
        %v4285 = vadd.s32 %v4280, %v4282
        %vm4286 = vc.u32 %v4280, %v4282
        %v4287 = vadd.s32 %v4283, 1
        %v4288 = vsel %vm4286, %v4287, %v4283
        %v4289 = vadd.s32 %v4284, %v4288
        %v4290 = vadd.s32 %v4289, 536870912
        %v4291 = vshrl.u32 %v4290, 30
        %v4292 = vshll.u32 %v4291, 30
        %v4293 = vsub.s32 %v4289, %v4292
        %vm4294 = vcmp.lt.s32.totalorder %v4293, 0
        %v4295 = vsub.s32 0, %v4293
        %v4296 = vsel %vm4294, %v4295, %v4293
        %v4297 = vclz %v4296
        %v4298 = vsub.s32 %v4297, 2
        %vm4299 = vcmp.gt.s32.totalorder 0, %v4298
        %v4300 = vsel %vm4299, 0, %v4298
        %v4301 = vsub.s32 32, %v4300
        %v4302 = vshll.u32 %v4293, %v4300
        %v4303 = vshrl.u32 %v4285, %v4301
        %v4304 = vor.u32 %v4302, %v4303
        %v4305 = vsub.s32 4294967266, %v4300
        %v4306 = vadd.s32 %v4305, 127
        %v4307 = vshll.u32 %v4306, 23
        %v4308 = vor.u32 4788187, %v4307
        %v4309 = vand.u32 2147483647, %v4308
        %v4311 = vcvt.s32.f32 %v4304
        %v4312 = vmul.f32 %v4311, %v4309
        %v4313 = vxor.u32 %v4312, 2147483648
        %v4314 = vsel %vm4231, %v4313, %v4312
        %v4315 = vsub.s32 4, %v4291
        %v4316 = vsel %vm4231, %v4315, %v4291
        %v4317 = vsel %vm4230, %v1613, %v4314
        %v4318 = vsel %vm4230, 0, %v4316
        %v4319 = vcosq.f32.pop %v4317
        %v4320 = vsinq.f32.pop %v4317
        %vm4321 = vweird.f32 %v1613
        %v4322 = vadd.s32 %v4318, 3
        %v4323 = vand.u32 %v4322, 3
        %vm4324 = vcmp.lt.s32.totalorder %v4323, 2
        %vm4325 = vcmp.eq.s32.totalorder %v4323, 0
        %v4326 = vxor.u32 %v4320, 2147483648
        %v4327 = vsel %vm4325, %v4319, %v4326
        %vm4328 = vcmp.eq.s32.totalorder %v4323, 2
        %v4329 = vxor.u32 %v4319, 2147483648
        %v4330 = vsel %vm4328, %v4329, %v4320
        %v4331 = vsel %vm4324, %v4327, %v4330
        %v4332 = vsel %vm4321, nan, %v4331
        %v4333 = vand.u32 2147483647, %v1614
        %vm4334 = vcmp.le.f32.partialorder %v4333, 0.7853982
        %vm4335 = vcmp.lt.s32.totalorder %v1614, 0
        %v4336 = vand.u32 %v1614, 2139095040
        %v4337 = vshrl.u32 %v4336, 23
        %v4338 = vsub.s32 %v4337, 127
        %v4339 = vand.u32 2147483647, %v1614
        %v4340 = vand.u32 %v4339, 8388607
        %v4341 = vor.u32 %v4340, 8388608
        %v4342 = vsub.s32 0, %v4341
        %v4343 = vadd.s32 %v4338, 1
        %vm4344 = vcmp.gt.s32.totalorder %v4343, 0
        %v4345 = vsel %vm4344, %v4343, 0
        %v4346 = vshrl.u32 %v4345, 5
        %v4347 = vand.u32 %v4345, 31
        %v4348 = vsub.s32 32, %v4347
        %v4349 = vshrl.u32 683565275, %v4348
        %v4350 = vshll.u32 683565275, %v4347
        %v4351 = vshrl.u32 2475754826, %v4348
        %v4352 = vor.u32 %v4350, %v4351
        %v4353 = vshll.u32 2475754826, %v4347
        %v4354 = vshrl.u32 2131351028, %v4348
        %v4355 = vor.u32 %v4353, %v4354
        %v4356 = vshll.u32 2131351028, %v4347
        %v4357 = vshrl.u32 2102212464, %v4348
        %v4358 = vor.u32 %v4356, %v4357
        %v4359 = vshll.u32 2102212464, %v4347
        %v4360 = vshrl.u32 920167782, %v4348
        %v4361 = vor.u32 %v4359, %v4360
        %v4362 = vshll.u32 920167782, %v4347
        %v4363 = vshrl.u32 1326507024, %v4348
        %v4364 = vor.u32 %v4362, %v4363
        %vm4365 = vcmp.lt.s32.totalorder %v4346, 1
        %vm4366 = vcmp.lt.s32.totalorder %v4346, 2
        %vm4367 = vcmp.lt.s32.totalorder %v4346, 3
        %vm4368 = vcmp.lt.s32.totalorder %v4346, 4
        %v4369 = vsel %vm4365, %v4349, %v4352
        %v4370 = vsel %vm4368, %v4358, 2102212464
        %v4371 = vsel %vm4367, %v4355, %v4370
        %v4372 = vsel %vm4366, %v4369, %v4371
        %v4373 = vsel %vm4365, %v4352, %v4355
        %v4374 = vsel %vm4368, %v4361, 920167782
        %v4375 = vsel %vm4367, %v4358, %v4374
        %v4376 = vsel %vm4366, %v4373, %v4375
        %v4377 = vsel %vm4365, %v4355, %v4358
        %v4378 = vsel %vm4368, %v4364, 1326507024
        %v4379 = vsel %vm4367, %v4361, %v4378
        %v4380 = vsel %vm4366, %v4377, %v4379
        %v4381 = vshll.u32 %v4341, 8
        %v4382 = vmul.u32.u64.compose %v4381, %v4380
        %v4383 = vextract.low.u32 %v4382
        %v4384 = vextract.high.u32 %v4382
        %v4385 = vmul.u32.u64.compose %v4381, %v4376
        %v4386 = vextract.low.u32 %v4385
        %v4387 = vextract.high.u32 %v4385
        %v4388 = vmul.u32 %v4381, %v4372
        %v4389 = vadd.s32 %v4384, %v4386
        %vm4390 = vc.u32 %v4384, %v4386
        %v4391 = vadd.s32 %v4387, 1
        %v4392 = vsel %vm4390, %v4391, %v4387
        %v4393 = vadd.s32 %v4388, %v4392
        %v4394 = vadd.s32 %v4393, 536870912
        %v4395 = vshrl.u32 %v4394, 30
        %v4396 = vshll.u32 %v4395, 30
        %v4397 = vsub.s32 %v4393, %v4396
        %vm4398 = vcmp.lt.s32.totalorder %v4397, 0
        %v4399 = vsub.s32 0, %v4397
        %v4400 = vsel %vm4398, %v4399, %v4397
        %v4401 = vclz %v4400
        %v4402 = vsub.s32 %v4401, 2
        %vm4403 = vcmp.gt.s32.totalorder 0, %v4402
        %v4404 = vsel %vm4403, 0, %v4402
        %v4405 = vsub.s32 32, %v4404
        %v4406 = vshll.u32 %v4397, %v4404
        %v4407 = vshrl.u32 %v4389, %v4405
        %v4408 = vor.u32 %v4406, %v4407
        %v4409 = vsub.s32 4294967266, %v4404
        %v4410 = vadd.s32 %v4409, 127
        %v4411 = vshll.u32 %v4410, 23
        %v4412 = vor.u32 4788187, %v4411
        %v4413 = vand.u32 2147483647, %v4412
        %v4415 = vcvt.s32.f32 %v4408
        %v4416 = vmul.f32 %v4415, %v4413
        %v4417 = vxor.u32 %v4416, 2147483648
        %v4418 = vsel %vm4335, %v4417, %v4416
        %v4419 = vsub.s32 4, %v4395
        %v4420 = vsel %vm4335, %v4419, %v4395
        %v4421 = vsel %vm4334, %v1614, %v4418
        %v4422 = vsel %vm4334, 0, %v4420
        %v4423 = vcosq.f32.pop %v4421
        %v4424 = vsinq.f32.pop %v4421
        %vm4425 = vweird.f32 %v1614
        %v4426 = vadd.s32 %v4422, 3
        %v4427 = vand.u32 %v4426, 3
        %vm4428 = vcmp.lt.s32.totalorder %v4427, 2
        %vm4429 = vcmp.eq.s32.totalorder %v4427, 0
        %v4430 = vxor.u32 %v4424, 2147483648
        %v4431 = vsel %vm4429, %v4423, %v4430
        %vm4432 = vcmp.eq.s32.totalorder %v4427, 2
        %v4433 = vxor.u32 %v4423, 2147483648
        %v4434 = vsel %vm4432, %v4433, %v4424
        %v4435 = vsel %vm4428, %v4431, %v4434
        %v4436 = vsel %vm4425, nan, %v4435
        %v4437 = vand.u32 2147483647, %v1615
        %vm4438 = vcmp.le.f32.partialorder %v4437, 0.7853982
        %vm4439 = vcmp.lt.s32.totalorder %v1615, 0
        %v4440 = vand.u32 %v1615, 2139095040
        %v4441 = vshrl.u32 %v4440, 23
        %v4442 = vsub.s32 %v4441, 127
        %v4443 = vand.u32 2147483647, %v1615
        %v4444 = vand.u32 %v4443, 8388607
        %v4445 = vor.u32 %v4444, 8388608
        %v4446 = vsub.s32 0, %v4445
        %v4447 = vadd.s32 %v4442, 1
        %vm4448 = vcmp.gt.s32.totalorder %v4447, 0
        %v4449 = vsel %vm4448, %v4447, 0
        %v4450 = vshrl.u32 %v4449, 5
        %v4451 = vand.u32 %v4449, 31
        %v4452 = vsub.s32 32, %v4451
        %v4453 = vshrl.u32 683565275, %v4452
        %v4454 = vshll.u32 683565275, %v4451
        %v4455 = vshrl.u32 2475754826, %v4452
        %v4456 = vor.u32 %v4454, %v4455
        %v4457 = vshll.u32 2475754826, %v4451
        %v4458 = vshrl.u32 2131351028, %v4452
        %v4459 = vor.u32 %v4457, %v4458
        %v4460 = vshll.u32 2131351028, %v4451
        %v4461 = vshrl.u32 2102212464, %v4452
        %v4462 = vor.u32 %v4460, %v4461
        %v4463 = vshll.u32 2102212464, %v4451
        %v4464 = vshrl.u32 920167782, %v4452
        %v4465 = vor.u32 %v4463, %v4464
        %v4466 = vshll.u32 920167782, %v4451
        %v4467 = vshrl.u32 1326507024, %v4452
        %v4468 = vor.u32 %v4466, %v4467
        %vm4469 = vcmp.lt.s32.totalorder %v4450, 1
        %vm4470 = vcmp.lt.s32.totalorder %v4450, 2
        %vm4471 = vcmp.lt.s32.totalorder %v4450, 3
        %vm4472 = vcmp.lt.s32.totalorder %v4450, 4
        %v4473 = vsel %vm4469, %v4453, %v4456
        %v4474 = vsel %vm4472, %v4462, 2102212464
        %v4475 = vsel %vm4471, %v4459, %v4474
        %v4476 = vsel %vm4470, %v4473, %v4475
        %v4477 = vsel %vm4469, %v4456, %v4459
        %v4478 = vsel %vm4472, %v4465, 920167782
        %v4479 = vsel %vm4471, %v4462, %v4478
        %v4480 = vsel %vm4470, %v4477, %v4479
        %v4481 = vsel %vm4469, %v4459, %v4462
        %v4482 = vsel %vm4472, %v4468, 1326507024
        %v4483 = vsel %vm4471, %v4465, %v4482
        %v4484 = vsel %vm4470, %v4481, %v4483
        %v4485 = vshll.u32 %v4445, 8
        %v4486 = vmul.u32.u64.compose %v4485, %v4484
        %v4487 = vextract.low.u32 %v4486
        %v4488 = vextract.high.u32 %v4486
        %v4489 = vmul.u32.u64.compose %v4485, %v4480
        %v4490 = vextract.low.u32 %v4489
        %v4491 = vextract.high.u32 %v4489
        %v4492 = vmul.u32 %v4485, %v4476
        %v4493 = vadd.s32 %v4488, %v4490
        %vm4494 = vc.u32 %v4488, %v4490
        %v4495 = vadd.s32 %v4491, 1
        %v4496 = vsel %vm4494, %v4495, %v4491
        %v4497 = vadd.s32 %v4492, %v4496
        %v4498 = vadd.s32 %v4497, 536870912
        %v4499 = vshrl.u32 %v4498, 30
        %v4500 = vshll.u32 %v4499, 30
        %v4501 = vsub.s32 %v4497, %v4500
        %vm4502 = vcmp.lt.s32.totalorder %v4501, 0
        %v4503 = vsub.s32 0, %v4501
        %v4504 = vsel %vm4502, %v4503, %v4501
        %v4505 = vclz %v4504
        %v4506 = vsub.s32 %v4505, 2
        %vm4507 = vcmp.gt.s32.totalorder 0, %v4506
        %v4508 = vsel %vm4507, 0, %v4506
        %v4509 = vsub.s32 32, %v4508
        %v4510 = vshll.u32 %v4501, %v4508
        %v4511 = vshrl.u32 %v4493, %v4509
        %v4512 = vor.u32 %v4510, %v4511
        %v4513 = vsub.s32 4294967266, %v4508
        %v4514 = vadd.s32 %v4513, 127
        %v4515 = vshll.u32 %v4514, 23
        %v4516 = vor.u32 4788187, %v4515
        %v4517 = vand.u32 2147483647, %v4516
        %v4519 = vcvt.s32.f32 %v4512
        %v4520 = vmul.f32 %v4519, %v4517
        %v4521 = vxor.u32 %v4520, 2147483648
        %v4522 = vsel %vm4439, %v4521, %v4520
        %v4523 = vsub.s32 4, %v4499
        %v4524 = vsel %vm4439, %v4523, %v4499
        %v4525 = vsel %vm4438, %v1615, %v4522
        %v4526 = vsel %vm4438, 0, %v4524
        %v4527 = vcosq.f32.pop %v4525
        %v4528 = vsinq.f32.pop %v4525
        %vm4529 = vweird.f32 %v1615
        %v4530 = vadd.s32 %v4526, 3
        %v4531 = vand.u32 %v4530, 3
        %vm4532 = vcmp.lt.s32.totalorder %v4531, 2
        %vm4533 = vcmp.eq.s32.totalorder %v4531, 0
        %v4534 = vxor.u32 %v4528, 2147483648
        %v4535 = vsel %vm4533, %v4527, %v4534
        %vm4536 = vcmp.eq.s32.totalorder %v4531, 2
        %v4537 = vxor.u32 %v4527, 2147483648
        %v4538 = vsel %vm4536, %v4537, %v4528
        %v4539 = vsel %vm4532, %v4535, %v4538
        %v4540 = vsel %vm4529, nan, %v4539
        %v4541 = vand.u32 2147483647, %v1616
        %vm4542 = vcmp.le.f32.partialorder %v4541, 0.7853982
        %vm4543 = vcmp.lt.s32.totalorder %v1616, 0
        %v4544 = vand.u32 %v1616, 2139095040
        %v4545 = vshrl.u32 %v4544, 23
        %v4546 = vsub.s32 %v4545, 127
        %v4547 = vand.u32 2147483647, %v1616
        %v4548 = vand.u32 %v4547, 8388607
        %v4549 = vor.u32 %v4548, 8388608
        %v4550 = vsub.s32 0, %v4549
        %v4551 = vadd.s32 %v4546, 1
        %vm4552 = vcmp.gt.s32.totalorder %v4551, 0
        %v4553 = vsel %vm4552, %v4551, 0
        %v4554 = vshrl.u32 %v4553, 5
        %v4555 = vand.u32 %v4553, 31
        %v4556 = vsub.s32 32, %v4555
        %v4557 = vshrl.u32 683565275, %v4556
        %v4558 = vshll.u32 683565275, %v4555
        %v4559 = vshrl.u32 2475754826, %v4556
        %v4560 = vor.u32 %v4558, %v4559
        %v4561 = vshll.u32 2475754826, %v4555
        %v4562 = vshrl.u32 2131351028, %v4556
        %v4563 = vor.u32 %v4561, %v4562
        %v4564 = vshll.u32 2131351028, %v4555
        %v4565 = vshrl.u32 2102212464, %v4556
        %v4566 = vor.u32 %v4564, %v4565
        %v4567 = vshll.u32 2102212464, %v4555
        %v4568 = vshrl.u32 920167782, %v4556
        %v4569 = vor.u32 %v4567, %v4568
        %v4570 = vshll.u32 920167782, %v4555
        %v4571 = vshrl.u32 1326507024, %v4556
        %v4572 = vor.u32 %v4570, %v4571
        %vm4573 = vcmp.lt.s32.totalorder %v4554, 1
        %vm4574 = vcmp.lt.s32.totalorder %v4554, 2
        %vm4575 = vcmp.lt.s32.totalorder %v4554, 3
        %vm4576 = vcmp.lt.s32.totalorder %v4554, 4
        %v4577 = vsel %vm4573, %v4557, %v4560
        %v4578 = vsel %vm4576, %v4566, 2102212464
        %v4579 = vsel %vm4575, %v4563, %v4578
        %v4580 = vsel %vm4574, %v4577, %v4579
        %v4581 = vsel %vm4573, %v4560, %v4563
        %v4582 = vsel %vm4576, %v4569, 920167782
        %v4583 = vsel %vm4575, %v4566, %v4582
        %v4584 = vsel %vm4574, %v4581, %v4583
        %v4585 = vsel %vm4573, %v4563, %v4566
        %v4586 = vsel %vm4576, %v4572, 1326507024
        %v4587 = vsel %vm4575, %v4569, %v4586
        %v4588 = vsel %vm4574, %v4585, %v4587
        %v4589 = vshll.u32 %v4549, 8
        %v4590 = vmul.u32.u64.compose %v4589, %v4588
        %v4591 = vextract.low.u32 %v4590
        %v4592 = vextract.high.u32 %v4590
        %v4593 = vmul.u32.u64.compose %v4589, %v4584
        %v4594 = vextract.low.u32 %v4593
        %v4595 = vextract.high.u32 %v4593
        %v4596 = vmul.u32 %v4589, %v4580
        %v4597 = vadd.s32 %v4592, %v4594
        %vm4598 = vc.u32 %v4592, %v4594
        %v4599 = vadd.s32 %v4595, 1
        %v4600 = vsel %vm4598, %v4599, %v4595
        %v4601 = vadd.s32 %v4596, %v4600
        %v4602 = vadd.s32 %v4601, 536870912
        %v4603 = vshrl.u32 %v4602, 30
        %v4604 = vshll.u32 %v4603, 30
        %v4605 = vsub.s32 %v4601, %v4604
        %vm4606 = vcmp.lt.s32.totalorder %v4605, 0
        %v4607 = vsub.s32 0, %v4605
        %v4608 = vsel %vm4606, %v4607, %v4605
        %v4609 = vclz %v4608
        %v4610 = vsub.s32 %v4609, 2
        %vm4611 = vcmp.gt.s32.totalorder 0, %v4610
        %v4612 = vsel %vm4611, 0, %v4610
        %v4613 = vsub.s32 32, %v4612
        %v4614 = vshll.u32 %v4605, %v4612
        %v4615 = vshrl.u32 %v4597, %v4613
        %v4616 = vor.u32 %v4614, %v4615
        %v4617 = vsub.s32 4294967266, %v4612
        %v4618 = vadd.s32 %v4617, 127
        %v4619 = vshll.u32 %v4618, 23
        %v4620 = vor.u32 4788187, %v4619
        %v4621 = vand.u32 2147483647, %v4620
        %v4623 = vcvt.s32.f32 %v4616
        %v4624 = vmul.f32 %v4623, %v4621
        %v4625 = vxor.u32 %v4624, 2147483648
        %v4626 = vsel %vm4543, %v4625, %v4624
        %v4627 = vsub.s32 4, %v4603
        %v4628 = vsel %vm4543, %v4627, %v4603
        %v4629 = vsel %vm4542, %v1616, %v4626
        %v4630 = vsel %vm4542, 0, %v4628
        %v4631 = vcosq.f32.pop %v4629
        %v4632 = vsinq.f32.pop %v4629
        %vm4633 = vweird.f32 %v1616
        %v4634 = vadd.s32 %v4630, 3
        %v4635 = vand.u32 %v4634, 3
        %vm4636 = vcmp.lt.s32.totalorder %v4635, 2
        %vm4637 = vcmp.eq.s32.totalorder %v4635, 0
        %v4638 = vxor.u32 %v4632, 2147483648
        %v4639 = vsel %vm4637, %v4631, %v4638
        %vm4640 = vcmp.eq.s32.totalorder %v4635, 2
        %v4641 = vxor.u32 %v4631, 2147483648
        %v4642 = vsel %vm4640, %v4641, %v4632
        %v4643 = vsel %vm4636, %v4639, %v4642
        %v4644 = vsel %vm4633, nan, %v4643
        %v4645 = vand.u32 2147483647, %v1617
        %vm4646 = vcmp.le.f32.partialorder %v4645, 0.7853982
        %vm4647 = vcmp.lt.s32.totalorder %v1617, 0
        %v4648 = vand.u32 %v1617, 2139095040
        %v4649 = vshrl.u32 %v4648, 23
        %v4650 = vsub.s32 %v4649, 127
        %v4651 = vand.u32 2147483647, %v1617
        %v4652 = vand.u32 %v4651, 8388607
        %v4653 = vor.u32 %v4652, 8388608
        %v4654 = vsub.s32 0, %v4653
        %v4655 = vadd.s32 %v4650, 1
        %vm4656 = vcmp.gt.s32.totalorder %v4655, 0
        %v4657 = vsel %vm4656, %v4655, 0
        %v4658 = vshrl.u32 %v4657, 5
        %v4659 = vand.u32 %v4657, 31
        %v4660 = vsub.s32 32, %v4659
        %v4661 = vshrl.u32 683565275, %v4660
        %v4662 = vshll.u32 683565275, %v4659
        %v4663 = vshrl.u32 2475754826, %v4660
        %v4664 = vor.u32 %v4662, %v4663
        %v4665 = vshll.u32 2475754826, %v4659
        %v4666 = vshrl.u32 2131351028, %v4660
        %v4667 = vor.u32 %v4665, %v4666
        %v4668 = vshll.u32 2131351028, %v4659
        %v4669 = vshrl.u32 2102212464, %v4660
        %v4670 = vor.u32 %v4668, %v4669
        %v4671 = vshll.u32 2102212464, %v4659
        %v4672 = vshrl.u32 920167782, %v4660
        %v4673 = vor.u32 %v4671, %v4672
        %v4674 = vshll.u32 920167782, %v4659
        %v4675 = vshrl.u32 1326507024, %v4660
        %v4676 = vor.u32 %v4674, %v4675
        %vm4677 = vcmp.lt.s32.totalorder %v4658, 1
        %vm4678 = vcmp.lt.s32.totalorder %v4658, 2
        %vm4679 = vcmp.lt.s32.totalorder %v4658, 3
        %vm4680 = vcmp.lt.s32.totalorder %v4658, 4
        %v4681 = vsel %vm4677, %v4661, %v4664
        %v4682 = vsel %vm4680, %v4670, 2102212464
        %v4683 = vsel %vm4679, %v4667, %v4682
        %v4684 = vsel %vm4678, %v4681, %v4683
        %v4685 = vsel %vm4677, %v4664, %v4667
        %v4686 = vsel %vm4680, %v4673, 920167782
        %v4687 = vsel %vm4679, %v4670, %v4686
        %v4688 = vsel %vm4678, %v4685, %v4687
        %v4689 = vsel %vm4677, %v4667, %v4670
        %v4690 = vsel %vm4680, %v4676, 1326507024
        %v4691 = vsel %vm4679, %v4673, %v4690
        %v4692 = vsel %vm4678, %v4689, %v4691
        %v4693 = vshll.u32 %v4653, 8
        %v4694 = vmul.u32.u64.compose %v4693, %v4692
        %v4695 = vextract.low.u32 %v4694
        %v4696 = vextract.high.u32 %v4694
        %v4697 = vmul.u32.u64.compose %v4693, %v4688
        %v4698 = vextract.low.u32 %v4697
        %v4699 = vextract.high.u32 %v4697
        %v4700 = vmul.u32 %v4693, %v4684
        %v4701 = vadd.s32 %v4696, %v4698
        %vm4702 = vc.u32 %v4696, %v4698
        %v4703 = vadd.s32 %v4699, 1
        %v4704 = vsel %vm4702, %v4703, %v4699
        %v4705 = vadd.s32 %v4700, %v4704
        %v4706 = vadd.s32 %v4705, 536870912
        %v4707 = vshrl.u32 %v4706, 30
        %v4708 = vshll.u32 %v4707, 30
        %v4709 = vsub.s32 %v4705, %v4708
        %vm4710 = vcmp.lt.s32.totalorder %v4709, 0
        %v4711 = vsub.s32 0, %v4709
        %v4712 = vsel %vm4710, %v4711, %v4709
        %v4713 = vclz %v4712
        %v4714 = vsub.s32 %v4713, 2
        %vm4715 = vcmp.gt.s32.totalorder 0, %v4714
        %v4716 = vsel %vm4715, 0, %v4714
        %v4717 = vsub.s32 32, %v4716
        %v4718 = vshll.u32 %v4709, %v4716
        %v4719 = vshrl.u32 %v4701, %v4717
        %v4720 = vor.u32 %v4718, %v4719
        %v4721 = vsub.s32 4294967266, %v4716
        %v4722 = vadd.s32 %v4721, 127
        %v4723 = vshll.u32 %v4722, 23
        %v4724 = vor.u32 4788187, %v4723
        %v4725 = vand.u32 2147483647, %v4724
        %v4727 = vcvt.s32.f32 %v4720
        %v4728 = vmul.f32 %v4727, %v4725
        %v4729 = vxor.u32 %v4728, 2147483648
        %v4730 = vsel %vm4647, %v4729, %v4728
        %v4731 = vsub.s32 4, %v4707
        %v4732 = vsel %vm4647, %v4731, %v4707
        %v4733 = vsel %vm4646, %v1617, %v4730
        %v4734 = vsel %vm4646, 0, %v4732
        %v4735 = vcosq.f32.pop %v4733
        %v4736 = vsinq.f32.pop %v4733
        %vm4737 = vweird.f32 %v1617
        %v4738 = vadd.s32 %v4734, 3
        %v4739 = vand.u32 %v4738, 3
        %vm4740 = vcmp.lt.s32.totalorder %v4739, 2
        %vm4741 = vcmp.eq.s32.totalorder %v4739, 0
        %v4742 = vxor.u32 %v4736, 2147483648
        %v4743 = vsel %vm4741, %v4735, %v4742
        %vm4744 = vcmp.eq.s32.totalorder %v4739, 2
        %v4745 = vxor.u32 %v4735, 2147483648
        %v4746 = vsel %vm4744, %v4745, %v4736
        %v4747 = vsel %vm4740, %v4743, %v4746
        %v4748 = vsel %vm4737, nan, %v4747
        %v4749 = vand.u32 2147483647, %v1618
        %vm4750 = vcmp.le.f32.partialorder %v4749, 0.7853982
        %vm4751 = vcmp.lt.s32.totalorder %v1618, 0
        %v4752 = vand.u32 %v1618, 2139095040
        %v4753 = vshrl.u32 %v4752, 23
        %v4754 = vsub.s32 %v4753, 127
        %v4755 = vand.u32 2147483647, %v1618
        %v4756 = vand.u32 %v4755, 8388607
        %v4757 = vor.u32 %v4756, 8388608
        %v4758 = vsub.s32 0, %v4757
        %v4759 = vadd.s32 %v4754, 1
        %vm4760 = vcmp.gt.s32.totalorder %v4759, 0
        %v4761 = vsel %vm4760, %v4759, 0
        %v4762 = vshrl.u32 %v4761, 5
        %v4763 = vand.u32 %v4761, 31
        %v4764 = vsub.s32 32, %v4763
        %v4765 = vshrl.u32 683565275, %v4764
        %v4766 = vshll.u32 683565275, %v4763
        %v4767 = vshrl.u32 2475754826, %v4764
        %v4768 = vor.u32 %v4766, %v4767
        %v4769 = vshll.u32 2475754826, %v4763
        %v4770 = vshrl.u32 2131351028, %v4764
        %v4771 = vor.u32 %v4769, %v4770
        %v4772 = vshll.u32 2131351028, %v4763
        %v4773 = vshrl.u32 2102212464, %v4764
        %v4774 = vor.u32 %v4772, %v4773
        %v4775 = vshll.u32 2102212464, %v4763
        %v4776 = vshrl.u32 920167782, %v4764
        %v4777 = vor.u32 %v4775, %v4776
        %v4778 = vshll.u32 920167782, %v4763
        %v4779 = vshrl.u32 1326507024, %v4764
        %v4780 = vor.u32 %v4778, %v4779
        %vm4781 = vcmp.lt.s32.totalorder %v4762, 1
        %vm4782 = vcmp.lt.s32.totalorder %v4762, 2
        %vm4783 = vcmp.lt.s32.totalorder %v4762, 3
        %vm4784 = vcmp.lt.s32.totalorder %v4762, 4
        %v4785 = vsel %vm4781, %v4765, %v4768
        %v4786 = vsel %vm4784, %v4774, 2102212464
        %v4787 = vsel %vm4783, %v4771, %v4786
        %v4788 = vsel %vm4782, %v4785, %v4787
        %v4789 = vsel %vm4781, %v4768, %v4771
        %v4790 = vsel %vm4784, %v4777, 920167782
        %v4791 = vsel %vm4783, %v4774, %v4790
        %v4792 = vsel %vm4782, %v4789, %v4791
        %v4793 = vsel %vm4781, %v4771, %v4774
        %v4794 = vsel %vm4784, %v4780, 1326507024
        %v4795 = vsel %vm4783, %v4777, %v4794
        %v4796 = vsel %vm4782, %v4793, %v4795
        %v4797 = vshll.u32 %v4757, 8
        %v4798 = vmul.u32.u64.compose %v4797, %v4796
        %v4799 = vextract.low.u32 %v4798
        %v4800 = vextract.high.u32 %v4798
        %v4801 = vmul.u32.u64.compose %v4797, %v4792
        %v4802 = vextract.low.u32 %v4801
        %v4803 = vextract.high.u32 %v4801
        %v4804 = vmul.u32 %v4797, %v4788
        %v4805 = vadd.s32 %v4800, %v4802
        %vm4806 = vc.u32 %v4800, %v4802
        %v4807 = vadd.s32 %v4803, 1
        %v4808 = vsel %vm4806, %v4807, %v4803
        %v4809 = vadd.s32 %v4804, %v4808
        %v4810 = vadd.s32 %v4809, 536870912
        %v4811 = vshrl.u32 %v4810, 30
        %v4812 = vshll.u32 %v4811, 30
        %v4813 = vsub.s32 %v4809, %v4812
        %vm4814 = vcmp.lt.s32.totalorder %v4813, 0
        %v4815 = vsub.s32 0, %v4813
        %v4816 = vsel %vm4814, %v4815, %v4813
        %v4817 = vclz %v4816
        %v4818 = vsub.s32 %v4817, 2
        %vm4819 = vcmp.gt.s32.totalorder 0, %v4818
        %v4820 = vsel %vm4819, 0, %v4818
        %v4821 = vsub.s32 32, %v4820
        %v4822 = vshll.u32 %v4813, %v4820
        %v4823 = vshrl.u32 %v4805, %v4821
        %v4824 = vor.u32 %v4822, %v4823
        %v4825 = vsub.s32 4294967266, %v4820
        %v4826 = vadd.s32 %v4825, 127
        %v4827 = vshll.u32 %v4826, 23
        %v4828 = vor.u32 4788187, %v4827
        %v4829 = vand.u32 2147483647, %v4828
        %v4831 = vcvt.s32.f32 %v4824
        %v4832 = vmul.f32 %v4831, %v4829
        %v4833 = vxor.u32 %v4832, 2147483648
        %v4834 = vsel %vm4751, %v4833, %v4832
        %v4835 = vsub.s32 4, %v4811
        %v4836 = vsel %vm4751, %v4835, %v4811
        %v4837 = vsel %vm4750, %v1618, %v4834
        %v4838 = vsel %vm4750, 0, %v4836
        %v4839 = vcosq.f32.pop %v4837
        %v4840 = vsinq.f32.pop %v4837
        %vm4841 = vweird.f32 %v1618
        %v4842 = vadd.s32 %v4838, 3
        %v4843 = vand.u32 %v4842, 3
        %vm4844 = vcmp.lt.s32.totalorder %v4843, 2
        %vm4845 = vcmp.eq.s32.totalorder %v4843, 0
        %v4846 = vxor.u32 %v4840, 2147483648
        %v4847 = vsel %vm4845, %v4839, %v4846
        %vm4848 = vcmp.eq.s32.totalorder %v4843, 2
        %v4849 = vxor.u32 %v4839, 2147483648
        %v4850 = vsel %vm4848, %v4849, %v4840
        %v4851 = vsel %vm4844, %v4847, %v4850
        %v4852 = vsel %vm4841, nan, %v4851
        %v4853 = vand.u32 2147483647, %v1619
        %vm4854 = vcmp.le.f32.partialorder %v4853, 0.7853982
        %vm4855 = vcmp.lt.s32.totalorder %v1619, 0
        %v4856 = vand.u32 %v1619, 2139095040
        %v4857 = vshrl.u32 %v4856, 23
        %v4858 = vsub.s32 %v4857, 127
        %v4859 = vand.u32 2147483647, %v1619
        %v4860 = vand.u32 %v4859, 8388607
        %v4861 = vor.u32 %v4860, 8388608
        %v4862 = vsub.s32 0, %v4861
        %v4863 = vadd.s32 %v4858, 1
        %vm4864 = vcmp.gt.s32.totalorder %v4863, 0
        %v4865 = vsel %vm4864, %v4863, 0
        %v4866 = vshrl.u32 %v4865, 5
        %v4867 = vand.u32 %v4865, 31
        %v4868 = vsub.s32 32, %v4867
        %v4869 = vshrl.u32 683565275, %v4868
        %v4870 = vshll.u32 683565275, %v4867
        %v4871 = vshrl.u32 2475754826, %v4868
        %v4872 = vor.u32 %v4870, %v4871
        %v4873 = vshll.u32 2475754826, %v4867
        %v4874 = vshrl.u32 2131351028, %v4868
        %v4875 = vor.u32 %v4873, %v4874
        %v4876 = vshll.u32 2131351028, %v4867
        %v4877 = vshrl.u32 2102212464, %v4868
        %v4878 = vor.u32 %v4876, %v4877
        %v4879 = vshll.u32 2102212464, %v4867
        %v4880 = vshrl.u32 920167782, %v4868
        %v4881 = vor.u32 %v4879, %v4880
        %v4882 = vshll.u32 920167782, %v4867
        %v4883 = vshrl.u32 1326507024, %v4868
        %v4884 = vor.u32 %v4882, %v4883
        %vm4885 = vcmp.lt.s32.totalorder %v4866, 1
        %vm4886 = vcmp.lt.s32.totalorder %v4866, 2
        %vm4887 = vcmp.lt.s32.totalorder %v4866, 3
        %vm4888 = vcmp.lt.s32.totalorder %v4866, 4
        %v4889 = vsel %vm4885, %v4869, %v4872
        %v4890 = vsel %vm4888, %v4878, 2102212464
        %v4891 = vsel %vm4887, %v4875, %v4890
        %v4892 = vsel %vm4886, %v4889, %v4891
        %v4893 = vsel %vm4885, %v4872, %v4875
        %v4894 = vsel %vm4888, %v4881, 920167782
        %v4895 = vsel %vm4887, %v4878, %v4894
        %v4896 = vsel %vm4886, %v4893, %v4895
        %v4897 = vsel %vm4885, %v4875, %v4878
        %v4898 = vsel %vm4888, %v4884, 1326507024
        %v4899 = vsel %vm4887, %v4881, %v4898
        %v4900 = vsel %vm4886, %v4897, %v4899
        %v4901 = vshll.u32 %v4861, 8
        %v4902 = vmul.u32.u64.compose %v4901, %v4900
        %v4903 = vextract.low.u32 %v4902
        %v4904 = vextract.high.u32 %v4902
        %v4905 = vmul.u32.u64.compose %v4901, %v4896
        %v4906 = vextract.low.u32 %v4905
        %v4907 = vextract.high.u32 %v4905
        %v4908 = vmul.u32 %v4901, %v4892
        %v4909 = vadd.s32 %v4904, %v4906
        %vm4910 = vc.u32 %v4904, %v4906
        %v4911 = vadd.s32 %v4907, 1
        %v4912 = vsel %vm4910, %v4911, %v4907
        %v4913 = vadd.s32 %v4908, %v4912
        %v4914 = vadd.s32 %v4913, 536870912
        %v4915 = vshrl.u32 %v4914, 30
        %v4916 = vshll.u32 %v4915, 30
        %v4917 = vsub.s32 %v4913, %v4916
        %vm4918 = vcmp.lt.s32.totalorder %v4917, 0
        %v4919 = vsub.s32 0, %v4917
        %v4920 = vsel %vm4918, %v4919, %v4917
        %v4921 = vclz %v4920
        %v4922 = vsub.s32 %v4921, 2
        %vm4923 = vcmp.gt.s32.totalorder 0, %v4922
        %v4924 = vsel %vm4923, 0, %v4922
        %v4925 = vsub.s32 32, %v4924
        %v4926 = vshll.u32 %v4917, %v4924
        %v4927 = vshrl.u32 %v4909, %v4925
        %v4928 = vor.u32 %v4926, %v4927
        %v4929 = vsub.s32 4294967266, %v4924
        %v4930 = vadd.s32 %v4929, 127
        %v4931 = vshll.u32 %v4930, 23
        %v4932 = vor.u32 4788187, %v4931
        %v4933 = vand.u32 2147483647, %v4932
        %v4935 = vcvt.s32.f32 %v4928
        %v4936 = vmul.f32 %v4935, %v4933
        %v4937 = vxor.u32 %v4936, 2147483648
        %v4938 = vsel %vm4855, %v4937, %v4936
        %v4939 = vsub.s32 4, %v4915
        %v4940 = vsel %vm4855, %v4939, %v4915
        %v4941 = vsel %vm4854, %v1619, %v4938
        %v4942 = vsel %vm4854, 0, %v4940
        %v4943 = vcosq.f32.pop %v4941
        %v4944 = vsinq.f32.pop %v4941
        %vm4945 = vweird.f32 %v1619
        %v4946 = vadd.s32 %v4942, 3
        %v4947 = vand.u32 %v4946, 3
        %vm4948 = vcmp.lt.s32.totalorder %v4947, 2
        %vm4949 = vcmp.eq.s32.totalorder %v4947, 0
        %v4950 = vxor.u32 %v4944, 2147483648
        %v4951 = vsel %vm4949, %v4943, %v4950
        %vm4952 = vcmp.eq.s32.totalorder %v4947, 2
        %v4953 = vxor.u32 %v4943, 2147483648
        %v4954 = vsel %vm4952, %v4953, %v4944
        %v4955 = vsel %vm4948, %v4951, %v4954
        %v4956 = vsel %vm4945, nan, %v4955
        %v4957 = vand.u32 2147483647, %v1620
        %vm4958 = vcmp.le.f32.partialorder %v4957, 0.7853982
        %vm4959 = vcmp.lt.s32.totalorder %v1620, 0
        %v4960 = vand.u32 %v1620, 2139095040
        %v4961 = vshrl.u32 %v4960, 23
        %v4962 = vsub.s32 %v4961, 127
        %v4963 = vand.u32 2147483647, %v1620
        %v4964 = vand.u32 %v4963, 8388607
        %v4965 = vor.u32 %v4964, 8388608
        %v4966 = vsub.s32 0, %v4965
        %v4967 = vadd.s32 %v4962, 1
        %vm4968 = vcmp.gt.s32.totalorder %v4967, 0
        %v4969 = vsel %vm4968, %v4967, 0
        %v4970 = vshrl.u32 %v4969, 5
        %v4971 = vand.u32 %v4969, 31
        %v4972 = vsub.s32 32, %v4971
        %v4973 = vshrl.u32 683565275, %v4972
        %v4974 = vshll.u32 683565275, %v4971
        %v4975 = vshrl.u32 2475754826, %v4972
        %v4976 = vor.u32 %v4974, %v4975
        %v4977 = vshll.u32 2475754826, %v4971
        %v4978 = vshrl.u32 2131351028, %v4972
        %v4979 = vor.u32 %v4977, %v4978
        %v4980 = vshll.u32 2131351028, %v4971
        %v4981 = vshrl.u32 2102212464, %v4972
        %v4982 = vor.u32 %v4980, %v4981
        %v4983 = vshll.u32 2102212464, %v4971
        %v4984 = vshrl.u32 920167782, %v4972
        %v4985 = vor.u32 %v4983, %v4984
        %v4986 = vshll.u32 920167782, %v4971
        %v4987 = vshrl.u32 1326507024, %v4972
        %v4988 = vor.u32 %v4986, %v4987
        %vm4989 = vcmp.lt.s32.totalorder %v4970, 1
        %vm4990 = vcmp.lt.s32.totalorder %v4970, 2
        %vm4991 = vcmp.lt.s32.totalorder %v4970, 3
        %vm4992 = vcmp.lt.s32.totalorder %v4970, 4
        %v4993 = vsel %vm4989, %v4973, %v4976
        %v4994 = vsel %vm4992, %v4982, 2102212464
        %v4995 = vsel %vm4991, %v4979, %v4994
        %v4996 = vsel %vm4990, %v4993, %v4995
        %v4997 = vsel %vm4989, %v4976, %v4979
        %v4998 = vsel %vm4992, %v4985, 920167782
        %v4999 = vsel %vm4991, %v4982, %v4998
        %v5000 = vsel %vm4990, %v4997, %v4999
        %v5001 = vsel %vm4989, %v4979, %v4982
        %v5002 = vsel %vm4992, %v4988, 1326507024
        %v5003 = vsel %vm4991, %v4985, %v5002
        %v5004 = vsel %vm4990, %v5001, %v5003
        %v5005 = vshll.u32 %v4965, 8
        %v5006 = vmul.u32.u64.compose %v5005, %v5004
        %v5007 = vextract.low.u32 %v5006
        %v5008 = vextract.high.u32 %v5006
        %v5009 = vmul.u32.u64.compose %v5005, %v5000
        %v5010 = vextract.low.u32 %v5009
        %v5011 = vextract.high.u32 %v5009
        %v5012 = vmul.u32 %v5005, %v4996
        %v5013 = vadd.s32 %v5008, %v5010
        %vm5014 = vc.u32 %v5008, %v5010
        %v5015 = vadd.s32 %v5011, 1
        %v5016 = vsel %vm5014, %v5015, %v5011
        %v5017 = vadd.s32 %v5012, %v5016
        %v5018 = vadd.s32 %v5017, 536870912
        %v5019 = vshrl.u32 %v5018, 30
        %v5020 = vshll.u32 %v5019, 30
        %v5021 = vsub.s32 %v5017, %v5020
        %vm5022 = vcmp.lt.s32.totalorder %v5021, 0
        %v5023 = vsub.s32 0, %v5021
        %v5024 = vsel %vm5022, %v5023, %v5021
        %v5025 = vclz %v5024
        %v5026 = vsub.s32 %v5025, 2
        %vm5027 = vcmp.gt.s32.totalorder 0, %v5026
        %v5028 = vsel %vm5027, 0, %v5026
        %v5029 = vsub.s32 32, %v5028
        %v5030 = vshll.u32 %v5021, %v5028
        %v5031 = vshrl.u32 %v5013, %v5029
        %v5032 = vor.u32 %v5030, %v5031
        %v5033 = vsub.s32 4294967266, %v5028
        %v5034 = vadd.s32 %v5033, 127
        %v5035 = vshll.u32 %v5034, 23
        %v5036 = vor.u32 4788187, %v5035
        %v5037 = vand.u32 2147483647, %v5036
        %v5039 = vcvt.s32.f32 %v5032
        %v5040 = vmul.f32 %v5039, %v5037
        %v5041 = vxor.u32 %v5040, 2147483648
        %v5042 = vsel %vm4959, %v5041, %v5040
        %v5043 = vsub.s32 4, %v5019
        %v5044 = vsel %vm4959, %v5043, %v5019
        %v5045 = vsel %vm4958, %v1620, %v5042
        %v5046 = vsel %vm4958, 0, %v5044
        %v5047 = vcosq.f32.pop %v5045
        %v5048 = vsinq.f32.pop %v5045
        %vm5049 = vweird.f32 %v1620
        %v5050 = vadd.s32 %v5046, 3
        %v5051 = vand.u32 %v5050, 3
        %vm5052 = vcmp.lt.s32.totalorder %v5051, 2
        %vm5053 = vcmp.eq.s32.totalorder %v5051, 0
        %v5054 = vxor.u32 %v5048, 2147483648
        %v5055 = vsel %vm5053, %v5047, %v5054
        %vm5056 = vcmp.eq.s32.totalorder %v5051, 2
        %v5057 = vxor.u32 %v5047, 2147483648
        %v5058 = vsel %vm5056, %v5057, %v5048
        %v5059 = vsel %vm5052, %v5055, %v5058
        %v5060 = vsel %vm5049, nan, %v5059
        %5062 = vset.pattern.permute.xlu0 0
        %5063 = vperm.xlu0 %5062, %v1463
        %v5064 = vpop.permute.xlu0 %5063
        %5067 = vset.pattern.permute.xlu0 0
        %5068 = vperm.xlu0 %5067, %v1464
        %v5069 = vpop.permute.xlu0 %5068
        %5072 = vset.pattern.permute.xlu0 0
        %5073 = vperm.xlu0 %5072, %v1465
        %v5074 = vpop.permute.xlu0 %5073
        %5077 = vset.pattern.permute.xlu0 0
        %5078 = vperm.xlu0 %5077, %v1466
        %v5079 = vpop.permute.xlu0 %5078
        %5082 = vset.pattern.permute.xlu0 0
        %5083 = vperm.xlu0 %5082, %v1467
        %v5084 = vpop.permute.xlu0 %5083
        %5087 = vset.pattern.permute.xlu0 0
        %5088 = vperm.xlu0 %5087, %v1468
        %v5089 = vpop.permute.xlu0 %5088
        %5092 = vset.pattern.permute.xlu0 0
        %5093 = vperm.xlu0 %5092, %v1469
        %v5094 = vpop.permute.xlu0 %5093
        %5097 = vset.pattern.permute.xlu0 0
        %5098 = vperm.xlu0 %5097, %v1470
        %v5099 = vpop.permute.xlu0 %5098
        %5102 = vset.pattern.permute.xlu0 0
        %5103 = vperm.xlu0 %5102, %v1471
        %v5104 = vpop.permute.xlu0 %5103
        %5107 = vset.pattern.permute.xlu0 0
        %5108 = vperm.xlu0 %5107, %v1472
        %v5109 = vpop.permute.xlu0 %5108
        %5112 = vset.pattern.permute.xlu0 0
        %5113 = vperm.xlu0 %5112, %v1473
        %v5114 = vpop.permute.xlu0 %5113
        %5117 = vset.pattern.permute.xlu0 0
        %5118 = vperm.xlu0 %5117, %v1474
        %v5119 = vpop.permute.xlu0 %5118
        %5122 = vset.pattern.permute.xlu0 0
        %5123 = vperm.xlu0 %5122, %v1475
        %v5124 = vpop.permute.xlu0 %5123
        %5127 = vset.pattern.permute.xlu0 0
        %5128 = vperm.xlu0 %5127, %v1476
        %v5129 = vpop.permute.xlu0 %5128
        %5132 = vset.pattern.permute.xlu0 0
        %5133 = vperm.xlu0 %5132, %v1477
        %v5134 = vpop.permute.xlu0 %5133
        %5137 = vset.pattern.permute.xlu0 0
        %5138 = vperm.xlu0 %5137, %v1478
        %v5139 = vpop.permute.xlu0 %5138
        %v5141 = vmul.f32 %v5064, %v3500
        %v5142 = vmul.f32 %v5069, %v3604
        %v5143 = vmul.f32 %v5074, %v3708
        %v5144 = vmul.f32 %v5079, %v3812
        %v5145 = vmul.f32 %v5084, %v3916
        %v5146 = vmul.f32 %v5089, %v4020
        %v5147 = vmul.f32 %v5094, %v4124
        %v5148 = vmul.f32 %v5099, %v4228
        %v5149 = vmul.f32 %v5104, %v4332
        %v5150 = vmul.f32 %v5109, %v4436
        %v5151 = vmul.f32 %v5114, %v4540
        %v5152 = vmul.f32 %v5119, %v4644
        %v5153 = vmul.f32 %v5124, %v4748
        %v5154 = vmul.f32 %v5129, %v4852
        %v5155 = vmul.f32 %v5134, %v4956
        %v5156 = vmul.f32 %v5139, %v5060
        %v5157 = vadd.f32 %v3381, %v5141
        %v5158 = vadd.f32 %v3382, %v5142
        %v5159 = vadd.f32 %v3383, %v5143
        %v5160 = vadd.f32 %v3384, %v5144
        %v5161 = vadd.f32 %v3385, %v5145
        %v5162 = vadd.f32 %v3386, %v5146
        %v5163 = vadd.f32 %v3387, %v5147
        %v5164 = vadd.f32 %v3388, %v5148
        %v5165 = vadd.f32 %v3389, %v5149
        %v5166 = vadd.f32 %v3390, %v5150
        %v5167 = vadd.f32 %v3391, %v5151
        %v5168 = vadd.f32 %v3392, %v5152
        %v5169 = vadd.f32 %v3393, %v5153
        %v5170 = vadd.f32 %v3394, %v5154
        %v5171 = vadd.f32 %v3395, %v5155
        %v5172 = vadd.f32 %v3396, %v5156
        %v5173 = vand.u32 2147483647, %v1559
        %vm5174 = vcmp.le.f32.partialorder %v5173, 0.7853982
        %vm5175 = vcmp.lt.s32.totalorder %v1559, 0
        %v5176 = vand.u32 %v1559, 2139095040
        %v5177 = vshrl.u32 %v5176, 23
        %v5178 = vsub.s32 %v5177, 127
        %v5179 = vand.u32 2147483647, %v1559
        %v5180 = vand.u32 %v5179, 8388607
        %v5181 = vor.u32 %v5180, 8388608
        %v5182 = vsub.s32 0, %v5181
        %v5183 = vadd.s32 %v5178, 1
        %vm5184 = vcmp.gt.s32.totalorder %v5183, 0
        %v5185 = vsel %vm5184, %v5183, 0
        %v5186 = vshrl.u32 %v5185, 5
        %v5187 = vand.u32 %v5185, 31
        %v5188 = vsub.s32 32, %v5187
        %v5189 = vshrl.u32 683565275, %v5188
        %v5190 = vshll.u32 683565275, %v5187
        %v5191 = vshrl.u32 2475754826, %v5188
        %v5192 = vor.u32 %v5190, %v5191
        %v5193 = vshll.u32 2475754826, %v5187
        %v5194 = vshrl.u32 2131351028, %v5188
        %v5195 = vor.u32 %v5193, %v5194
        %v5196 = vshll.u32 2131351028, %v5187
        %v5197 = vshrl.u32 2102212464, %v5188
        %v5198 = vor.u32 %v5196, %v5197
        %v5199 = vshll.u32 2102212464, %v5187
        %v5200 = vshrl.u32 920167782, %v5188
        %v5201 = vor.u32 %v5199, %v5200
        %v5202 = vshll.u32 920167782, %v5187
        %v5203 = vshrl.u32 1326507024, %v5188
        %v5204 = vor.u32 %v5202, %v5203
        %vm5205 = vcmp.lt.s32.totalorder %v5186, 1
        %vm5206 = vcmp.lt.s32.totalorder %v5186, 2
        %vm5207 = vcmp.lt.s32.totalorder %v5186, 3
        %vm5208 = vcmp.lt.s32.totalorder %v5186, 4
        %v5209 = vsel %vm5205, %v5189, %v5192
        %v5210 = vsel %vm5208, %v5198, 2102212464
        %v5211 = vsel %vm5207, %v5195, %v5210
        %v5212 = vsel %vm5206, %v5209, %v5211
        %v5213 = vsel %vm5205, %v5192, %v5195
        %v5214 = vsel %vm5208, %v5201, 920167782
        %v5215 = vsel %vm5207, %v5198, %v5214
        %v5216 = vsel %vm5206, %v5213, %v5215
        %v5217 = vsel %vm5205, %v5195, %v5198
        %v5218 = vsel %vm5208, %v5204, 1326507024
        %v5219 = vsel %vm5207, %v5201, %v5218
        %v5220 = vsel %vm5206, %v5217, %v5219
        %v5221 = vshll.u32 %v5181, 8
        %v5222 = vmul.u32.u64.compose %v5221, %v5220
        %v5223 = vextract.low.u32 %v5222
        %v5224 = vextract.high.u32 %v5222
        %v5225 = vmul.u32.u64.compose %v5221, %v5216
        %v5226 = vextract.low.u32 %v5225
        %v5227 = vextract.high.u32 %v5225
        %v5228 = vmul.u32 %v5221, %v5212
        %v5229 = vadd.s32 %v5224, %v5226
        %vm5230 = vc.u32 %v5224, %v5226
        %v5231 = vadd.s32 %v5227, 1
        %v5232 = vsel %vm5230, %v5231, %v5227
        %v5233 = vadd.s32 %v5228, %v5232
        %v5234 = vadd.s32 %v5233, 536870912
        %v5235 = vshrl.u32 %v5234, 30
        %v5236 = vshll.u32 %v5235, 30
        %v5237 = vsub.s32 %v5233, %v5236
        %vm5238 = vcmp.lt.s32.totalorder %v5237, 0
        %v5239 = vsub.s32 0, %v5237
        %v5240 = vsel %vm5238, %v5239, %v5237
        %v5241 = vclz %v5240
        %v5242 = vsub.s32 %v5241, 2
        %vm5243 = vcmp.gt.s32.totalorder 0, %v5242
        %v5244 = vsel %vm5243, 0, %v5242
        %v5245 = vsub.s32 32, %v5244
        %v5246 = vshll.u32 %v5237, %v5244
        %v5247 = vshrl.u32 %v5229, %v5245
        %v5248 = vor.u32 %v5246, %v5247
        %v5249 = vsub.s32 4294967266, %v5244
        %v5250 = vadd.s32 %v5249, 127
        %v5251 = vshll.u32 %v5250, 23
        %v5252 = vor.u32 4788187, %v5251
        %v5253 = vand.u32 2147483647, %v5252
        %v5255 = vcvt.s32.f32 %v5248
        %v5256 = vmul.f32 %v5255, %v5253
        %v5257 = vxor.u32 %v5256, 2147483648
        %v5258 = vsel %vm5175, %v5257, %v5256
        %v5259 = vsub.s32 4, %v5235
        %v5260 = vsel %vm5175, %v5259, %v5235
        %v5261 = vsel %vm5174, %v1559, %v5258
        %v5262 = vsel %vm5174, 0, %v5260
        %v5263 = vcosq.f32.pop %v5261
        %v5264 = vsinq.f32.pop %v5261
        %vm5265 = vweird.f32 %v1559
        %v5266 = vand.u32 %v5262, 3
        %vm5267 = vcmp.lt.s32.totalorder %v5266, 2
        %vm5268 = vcmp.eq.s32.totalorder %v5266, 0
        %v5269 = vxor.u32 %v5264, 2147483648
        %v5270 = vsel %vm5268, %v5263, %v5269
        %vm5271 = vcmp.eq.s32.totalorder %v5266, 2
        %v5272 = vxor.u32 %v5263, 2147483648
        %v5273 = vsel %vm5271, %v5272, %v5264
        %v5274 = vsel %vm5267, %v5270, %v5273
        %v5275 = vsel %vm5265, nan, %v5274
        %v5276 = vand.u32 2147483647, %v1560
        %vm5277 = vcmp.le.f32.partialorder %v5276, 0.7853982
        %vm5278 = vcmp.lt.s32.totalorder %v1560, 0
        %v5279 = vand.u32 %v1560, 2139095040
        %v5280 = vshrl.u32 %v5279, 23
        %v5281 = vsub.s32 %v5280, 127
        %v5282 = vand.u32 2147483647, %v1560
        %v5283 = vand.u32 %v5282, 8388607
        %v5284 = vor.u32 %v5283, 8388608
        %v5285 = vsub.s32 0, %v5284
        %v5286 = vadd.s32 %v5281, 1
        %vm5287 = vcmp.gt.s32.totalorder %v5286, 0
        %v5288 = vsel %vm5287, %v5286, 0
        %v5289 = vshrl.u32 %v5288, 5
        %v5290 = vand.u32 %v5288, 31
        %v5291 = vsub.s32 32, %v5290
        %v5292 = vshrl.u32 683565275, %v5291
        %v5293 = vshll.u32 683565275, %v5290
        %v5294 = vshrl.u32 2475754826, %v5291
        %v5295 = vor.u32 %v5293, %v5294
        %v5296 = vshll.u32 2475754826, %v5290
        %v5297 = vshrl.u32 2131351028, %v5291
        %v5298 = vor.u32 %v5296, %v5297
        %v5299 = vshll.u32 2131351028, %v5290
        %v5300 = vshrl.u32 2102212464, %v5291
        %v5301 = vor.u32 %v5299, %v5300
        %v5302 = vshll.u32 2102212464, %v5290
        %v5303 = vshrl.u32 920167782, %v5291
        %v5304 = vor.u32 %v5302, %v5303
        %v5305 = vshll.u32 920167782, %v5290
        %v5306 = vshrl.u32 1326507024, %v5291
        %v5307 = vor.u32 %v5305, %v5306
        %vm5308 = vcmp.lt.s32.totalorder %v5289, 1
        %vm5309 = vcmp.lt.s32.totalorder %v5289, 2
        %vm5310 = vcmp.lt.s32.totalorder %v5289, 3
        %vm5311 = vcmp.lt.s32.totalorder %v5289, 4
        %v5312 = vsel %vm5308, %v5292, %v5295
        %v5313 = vsel %vm5311, %v5301, 2102212464
        %v5314 = vsel %vm5310, %v5298, %v5313
        %v5315 = vsel %vm5309, %v5312, %v5314
        %v5316 = vsel %vm5308, %v5295, %v5298
        %v5317 = vsel %vm5311, %v5304, 920167782
        %v5318 = vsel %vm5310, %v5301, %v5317
        %v5319 = vsel %vm5309, %v5316, %v5318
        %v5320 = vsel %vm5308, %v5298, %v5301
        %v5321 = vsel %vm5311, %v5307, 1326507024
        %v5322 = vsel %vm5310, %v5304, %v5321
        %v5323 = vsel %vm5309, %v5320, %v5322
        %v5324 = vshll.u32 %v5284, 8
        %v5325 = vmul.u32.u64.compose %v5324, %v5323
        %v5326 = vextract.low.u32 %v5325
        %v5327 = vextract.high.u32 %v5325
        %v5328 = vmul.u32.u64.compose %v5324, %v5319
        %v5329 = vextract.low.u32 %v5328
        %v5330 = vextract.high.u32 %v5328
        %v5331 = vmul.u32 %v5324, %v5315
        %v5332 = vadd.s32 %v5327, %v5329
        %vm5333 = vc.u32 %v5327, %v5329
        %v5334 = vadd.s32 %v5330, 1
        %v5335 = vsel %vm5333, %v5334, %v5330
        %v5336 = vadd.s32 %v5331, %v5335
        %v5337 = vadd.s32 %v5336, 536870912
        %v5338 = vshrl.u32 %v5337, 30
        %v5339 = vshll.u32 %v5338, 30
        %v5340 = vsub.s32 %v5336, %v5339
        %vm5341 = vcmp.lt.s32.totalorder %v5340, 0
        %v5342 = vsub.s32 0, %v5340
        %v5343 = vsel %vm5341, %v5342, %v5340
        %v5344 = vclz %v5343
        %v5345 = vsub.s32 %v5344, 2
        %vm5346 = vcmp.gt.s32.totalorder 0, %v5345
        %v5347 = vsel %vm5346, 0, %v5345
        %v5348 = vsub.s32 32, %v5347
        %v5349 = vshll.u32 %v5340, %v5347
        %v5350 = vshrl.u32 %v5332, %v5348
        %v5351 = vor.u32 %v5349, %v5350
        %v5352 = vsub.s32 4294967266, %v5347
        %v5353 = vadd.s32 %v5352, 127
        %v5354 = vshll.u32 %v5353, 23
        %v5355 = vor.u32 4788187, %v5354
        %v5356 = vand.u32 2147483647, %v5355
        %v5358 = vcvt.s32.f32 %v5351
        %v5359 = vmul.f32 %v5358, %v5356
        %v5360 = vxor.u32 %v5359, 2147483648
        %v5361 = vsel %vm5278, %v5360, %v5359
        %v5362 = vsub.s32 4, %v5338
        %v5363 = vsel %vm5278, %v5362, %v5338
        %v5364 = vsel %vm5277, %v1560, %v5361
        %v5365 = vsel %vm5277, 0, %v5363
        %v5366 = vcosq.f32.pop %v5364
        %v5367 = vsinq.f32.pop %v5364
        %vm5368 = vweird.f32 %v1560
        %v5369 = vand.u32 %v5365, 3
        %vm5370 = vcmp.lt.s32.totalorder %v5369, 2
        %vm5371 = vcmp.eq.s32.totalorder %v5369, 0
        %v5372 = vxor.u32 %v5367, 2147483648
        %v5373 = vsel %vm5371, %v5366, %v5372
        %vm5374 = vcmp.eq.s32.totalorder %v5369, 2
        %v5375 = vxor.u32 %v5366, 2147483648
        %v5376 = vsel %vm5374, %v5375, %v5367
        %v5377 = vsel %vm5370, %v5373, %v5376
        %v5378 = vsel %vm5368, nan, %v5377
        %v5379 = vand.u32 2147483647, %v1561
        %vm5380 = vcmp.le.f32.partialorder %v5379, 0.7853982
        %vm5381 = vcmp.lt.s32.totalorder %v1561, 0
        %v5382 = vand.u32 %v1561, 2139095040
        %v5383 = vshrl.u32 %v5382, 23
        %v5384 = vsub.s32 %v5383, 127
        %v5385 = vand.u32 2147483647, %v1561
        %v5386 = vand.u32 %v5385, 8388607
        %v5387 = vor.u32 %v5386, 8388608
        %v5388 = vsub.s32 0, %v5387
        %v5389 = vadd.s32 %v5384, 1
        %vm5390 = vcmp.gt.s32.totalorder %v5389, 0
        %v5391 = vsel %vm5390, %v5389, 0
        %v5392 = vshrl.u32 %v5391, 5
        %v5393 = vand.u32 %v5391, 31
        %v5394 = vsub.s32 32, %v5393
        %v5395 = vshrl.u32 683565275, %v5394
        %v5396 = vshll.u32 683565275, %v5393
        %v5397 = vshrl.u32 2475754826, %v5394
        %v5398 = vor.u32 %v5396, %v5397
        %v5399 = vshll.u32 2475754826, %v5393
        %v5400 = vshrl.u32 2131351028, %v5394
        %v5401 = vor.u32 %v5399, %v5400
        %v5402 = vshll.u32 2131351028, %v5393
        %v5403 = vshrl.u32 2102212464, %v5394
        %v5404 = vor.u32 %v5402, %v5403
        %v5405 = vshll.u32 2102212464, %v5393
        %v5406 = vshrl.u32 920167782, %v5394
        %v5407 = vor.u32 %v5405, %v5406
        %v5408 = vshll.u32 920167782, %v5393
        %v5409 = vshrl.u32 1326507024, %v5394
        %v5410 = vor.u32 %v5408, %v5409
        %vm5411 = vcmp.lt.s32.totalorder %v5392, 1
        %vm5412 = vcmp.lt.s32.totalorder %v5392, 2
        %vm5413 = vcmp.lt.s32.totalorder %v5392, 3
        %vm5414 = vcmp.lt.s32.totalorder %v5392, 4
        %v5415 = vsel %vm5411, %v5395, %v5398
        %v5416 = vsel %vm5414, %v5404, 2102212464
        %v5417 = vsel %vm5413, %v5401, %v5416
        %v5418 = vsel %vm5412, %v5415, %v5417
        %v5419 = vsel %vm5411, %v5398, %v5401
        %v5420 = vsel %vm5414, %v5407, 920167782
        %v5421 = vsel %vm5413, %v5404, %v5420
        %v5422 = vsel %vm5412, %v5419, %v5421
        %v5423 = vsel %vm5411, %v5401, %v5404
        %v5424 = vsel %vm5414, %v5410, 1326507024
        %v5425 = vsel %vm5413, %v5407, %v5424
        %v5426 = vsel %vm5412, %v5423, %v5425
        %v5427 = vshll.u32 %v5387, 8
        %v5428 = vmul.u32.u64.compose %v5427, %v5426
        %v5429 = vextract.low.u32 %v5428
        %v5430 = vextract.high.u32 %v5428
        %v5431 = vmul.u32.u64.compose %v5427, %v5422
        %v5432 = vextract.low.u32 %v5431
        %v5433 = vextract.high.u32 %v5431
        %v5434 = vmul.u32 %v5427, %v5418
        %v5435 = vadd.s32 %v5430, %v5432
        %vm5436 = vc.u32 %v5430, %v5432
        %v5437 = vadd.s32 %v5433, 1
        %v5438 = vsel %vm5436, %v5437, %v5433
        %v5439 = vadd.s32 %v5434, %v5438
        %v5440 = vadd.s32 %v5439, 536870912
        %v5441 = vshrl.u32 %v5440, 30
        %v5442 = vshll.u32 %v5441, 30
        %v5443 = vsub.s32 %v5439, %v5442
        %vm5444 = vcmp.lt.s32.totalorder %v5443, 0
        %v5445 = vsub.s32 0, %v5443
        %v5446 = vsel %vm5444, %v5445, %v5443
        %v5447 = vclz %v5446
        %v5448 = vsub.s32 %v5447, 2
        %vm5449 = vcmp.gt.s32.totalorder 0, %v5448
        %v5450 = vsel %vm5449, 0, %v5448
        %v5451 = vsub.s32 32, %v5450
        %v5452 = vshll.u32 %v5443, %v5450
        %v5453 = vshrl.u32 %v5435, %v5451
        %v5454 = vor.u32 %v5452, %v5453
        %v5455 = vsub.s32 4294967266, %v5450
        %v5456 = vadd.s32 %v5455, 127
        %v5457 = vshll.u32 %v5456, 23
        %v5458 = vor.u32 4788187, %v5457
        %v5459 = vand.u32 2147483647, %v5458
        %v5461 = vcvt.s32.f32 %v5454
        %v5462 = vmul.f32 %v5461, %v5459
        %v5463 = vxor.u32 %v5462, 2147483648
        %v5464 = vsel %vm5381, %v5463, %v5462
        %v5465 = vsub.s32 4, %v5441
        %v5466 = vsel %vm5381, %v5465, %v5441
        %v5467 = vsel %vm5380, %v1561, %v5464
        %v5468 = vsel %vm5380, 0, %v5466
        %v5469 = vcosq.f32.pop %v5467
        %v5470 = vsinq.f32.pop %v5467
        %vm5471 = vweird.f32 %v1561
        %v5472 = vand.u32 %v5468, 3
        %vm5473 = vcmp.lt.s32.totalorder %v5472, 2
        %vm5474 = vcmp.eq.s32.totalorder %v5472, 0
        %v5475 = vxor.u32 %v5470, 2147483648
        %v5476 = vsel %vm5474, %v5469, %v5475
        %vm5477 = vcmp.eq.s32.totalorder %v5472, 2
        %v5478 = vxor.u32 %v5469, 2147483648
        %v5479 = vsel %vm5477, %v5478, %v5470
        %v5480 = vsel %vm5473, %v5476, %v5479
        %v5481 = vsel %vm5471, nan, %v5480
        %v5482 = vand.u32 2147483647, %v1562
        %vm5483 = vcmp.le.f32.partialorder %v5482, 0.7853982
        %vm5484 = vcmp.lt.s32.totalorder %v1562, 0
        %v5485 = vand.u32 %v1562, 2139095040
        %v5486 = vshrl.u32 %v5485, 23
        %v5487 = vsub.s32 %v5486, 127
        %v5488 = vand.u32 2147483647, %v1562
        %v5489 = vand.u32 %v5488, 8388607
        %v5490 = vor.u32 %v5489, 8388608
        %v5491 = vsub.s32 0, %v5490
        %v5492 = vadd.s32 %v5487, 1
        %vm5493 = vcmp.gt.s32.totalorder %v5492, 0
        %v5494 = vsel %vm5493, %v5492, 0
        %v5495 = vshrl.u32 %v5494, 5
        %v5496 = vand.u32 %v5494, 31
        %v5497 = vsub.s32 32, %v5496
        %v5498 = vshrl.u32 683565275, %v5497
        %v5499 = vshll.u32 683565275, %v5496
        %v5500 = vshrl.u32 2475754826, %v5497
        %v5501 = vor.u32 %v5499, %v5500
        %v5502 = vshll.u32 2475754826, %v5496
        %v5503 = vshrl.u32 2131351028, %v5497
        %v5504 = vor.u32 %v5502, %v5503
        %v5505 = vshll.u32 2131351028, %v5496
        %v5506 = vshrl.u32 2102212464, %v5497
        %v5507 = vor.u32 %v5505, %v5506
        %v5508 = vshll.u32 2102212464, %v5496
        %v5509 = vshrl.u32 920167782, %v5497
        %v5510 = vor.u32 %v5508, %v5509
        %v5511 = vshll.u32 920167782, %v5496
        %v5512 = vshrl.u32 1326507024, %v5497
        %v5513 = vor.u32 %v5511, %v5512
        %vm5514 = vcmp.lt.s32.totalorder %v5495, 1
        %vm5515 = vcmp.lt.s32.totalorder %v5495, 2
        %vm5516 = vcmp.lt.s32.totalorder %v5495, 3
        %vm5517 = vcmp.lt.s32.totalorder %v5495, 4
        %v5518 = vsel %vm5514, %v5498, %v5501
        %v5519 = vsel %vm5517, %v5507, 2102212464
        %v5520 = vsel %vm5516, %v5504, %v5519
        %v5521 = vsel %vm5515, %v5518, %v5520
        %v5522 = vsel %vm5514, %v5501, %v5504
        %v5523 = vsel %vm5517, %v5510, 920167782
        %v5524 = vsel %vm5516, %v5507, %v5523
        %v5525 = vsel %vm5515, %v5522, %v5524
        %v5526 = vsel %vm5514, %v5504, %v5507
        %v5527 = vsel %vm5517, %v5513, 1326507024
        %v5528 = vsel %vm5516, %v5510, %v5527
        %v5529 = vsel %vm5515, %v5526, %v5528
        %v5530 = vshll.u32 %v5490, 8
        %v5531 = vmul.u32.u64.compose %v5530, %v5529
        %v5532 = vextract.low.u32 %v5531
        %v5533 = vextract.high.u32 %v5531
        %v5534 = vmul.u32.u64.compose %v5530, %v5525
        %v5535 = vextract.low.u32 %v5534
        %v5536 = vextract.high.u32 %v5534
        %v5537 = vmul.u32 %v5530, %v5521
        %v5538 = vadd.s32 %v5533, %v5535
        %vm5539 = vc.u32 %v5533, %v5535
        %v5540 = vadd.s32 %v5536, 1
        %v5541 = vsel %vm5539, %v5540, %v5536
        %v5542 = vadd.s32 %v5537, %v5541
        %v5543 = vadd.s32 %v5542, 536870912
        %v5544 = vshrl.u32 %v5543, 30
        %v5545 = vshll.u32 %v5544, 30
        %v5546 = vsub.s32 %v5542, %v5545
        %vm5547 = vcmp.lt.s32.totalorder %v5546, 0
        %v5548 = vsub.s32 0, %v5546
        %v5549 = vsel %vm5547, %v5548, %v5546
        %v5550 = vclz %v5549
        %v5551 = vsub.s32 %v5550, 2
        %vm5552 = vcmp.gt.s32.totalorder 0, %v5551
        %v5553 = vsel %vm5552, 0, %v5551
        %v5554 = vsub.s32 32, %v5553
        %v5555 = vshll.u32 %v5546, %v5553
        %v5556 = vshrl.u32 %v5538, %v5554
        %v5557 = vor.u32 %v5555, %v5556
        %v5558 = vsub.s32 4294967266, %v5553
        %v5559 = vadd.s32 %v5558, 127
        %v5560 = vshll.u32 %v5559, 23
        %v5561 = vor.u32 4788187, %v5560
        %v5562 = vand.u32 2147483647, %v5561
        %v5564 = vcvt.s32.f32 %v5557
        %v5565 = vmul.f32 %v5564, %v5562
        %v5566 = vxor.u32 %v5565, 2147483648
        %v5567 = vsel %vm5484, %v5566, %v5565
        %v5568 = vsub.s32 4, %v5544
        %v5569 = vsel %vm5484, %v5568, %v5544
        %v5570 = vsel %vm5483, %v1562, %v5567
        %v5571 = vsel %vm5483, 0, %v5569
        %v5572 = vcosq.f32.pop %v5570
        %v5573 = vsinq.f32.pop %v5570
        %vm5574 = vweird.f32 %v1562
        %v5575 = vand.u32 %v5571, 3
        %vm5576 = vcmp.lt.s32.totalorder %v5575, 2
        %vm5577 = vcmp.eq.s32.totalorder %v5575, 0
        %v5578 = vxor.u32 %v5573, 2147483648
        %v5579 = vsel %vm5577, %v5572, %v5578
        %vm5580 = vcmp.eq.s32.totalorder %v5575, 2
        %v5581 = vxor.u32 %v5572, 2147483648
        %v5582 = vsel %vm5580, %v5581, %v5573
        %v5583 = vsel %vm5576, %v5579, %v5582
        %v5584 = vsel %vm5574, nan, %v5583
        %v5585 = vand.u32 2147483647, %v1563
        %vm5586 = vcmp.le.f32.partialorder %v5585, 0.7853982
        %vm5587 = vcmp.lt.s32.totalorder %v1563, 0
        %v5588 = vand.u32 %v1563, 2139095040
        %v5589 = vshrl.u32 %v5588, 23
        %v5590 = vsub.s32 %v5589, 127
        %v5591 = vand.u32 2147483647, %v1563
        %v5592 = vand.u32 %v5591, 8388607
        %v5593 = vor.u32 %v5592, 8388608
        %v5594 = vsub.s32 0, %v5593
        %v5595 = vadd.s32 %v5590, 1
        %vm5596 = vcmp.gt.s32.totalorder %v5595, 0
        %v5597 = vsel %vm5596, %v5595, 0
        %v5598 = vshrl.u32 %v5597, 5
        %v5599 = vand.u32 %v5597, 31
        %v5600 = vsub.s32 32, %v5599
        %v5601 = vshrl.u32 683565275, %v5600
        %v5602 = vshll.u32 683565275, %v5599
        %v5603 = vshrl.u32 2475754826, %v5600
        %v5604 = vor.u32 %v5602, %v5603
        %v5605 = vshll.u32 2475754826, %v5599
        %v5606 = vshrl.u32 2131351028, %v5600
        %v5607 = vor.u32 %v5605, %v5606
        %v5608 = vshll.u32 2131351028, %v5599
        %v5609 = vshrl.u32 2102212464, %v5600
        %v5610 = vor.u32 %v5608, %v5609
        %v5611 = vshll.u32 2102212464, %v5599
        %v5612 = vshrl.u32 920167782, %v5600
        %v5613 = vor.u32 %v5611, %v5612
        %v5614 = vshll.u32 920167782, %v5599
        %v5615 = vshrl.u32 1326507024, %v5600
        %v5616 = vor.u32 %v5614, %v5615
        %vm5617 = vcmp.lt.s32.totalorder %v5598, 1
        %vm5618 = vcmp.lt.s32.totalorder %v5598, 2
        %vm5619 = vcmp.lt.s32.totalorder %v5598, 3
        %vm5620 = vcmp.lt.s32.totalorder %v5598, 4
        %v5621 = vsel %vm5617, %v5601, %v5604
        %v5622 = vsel %vm5620, %v5610, 2102212464
        %v5623 = vsel %vm5619, %v5607, %v5622
        %v5624 = vsel %vm5618, %v5621, %v5623
        %v5625 = vsel %vm5617, %v5604, %v5607
        %v5626 = vsel %vm5620, %v5613, 920167782
        %v5627 = vsel %vm5619, %v5610, %v5626
        %v5628 = vsel %vm5618, %v5625, %v5627
        %v5629 = vsel %vm5617, %v5607, %v5610
        %v5630 = vsel %vm5620, %v5616, 1326507024
        %v5631 = vsel %vm5619, %v5613, %v5630
        %v5632 = vsel %vm5618, %v5629, %v5631
        %v5633 = vshll.u32 %v5593, 8
        %v5634 = vmul.u32.u64.compose %v5633, %v5632
        %v5635 = vextract.low.u32 %v5634
        %v5636 = vextract.high.u32 %v5634
        %v5637 = vmul.u32.u64.compose %v5633, %v5628
        %v5638 = vextract.low.u32 %v5637
        %v5639 = vextract.high.u32 %v5637
        %v5640 = vmul.u32 %v5633, %v5624
        %v5641 = vadd.s32 %v5636, %v5638
        %vm5642 = vc.u32 %v5636, %v5638
        %v5643 = vadd.s32 %v5639, 1
        %v5644 = vsel %vm5642, %v5643, %v5639
        %v5645 = vadd.s32 %v5640, %v5644
        %v5646 = vadd.s32 %v5645, 536870912
        %v5647 = vshrl.u32 %v5646, 30
        %v5648 = vshll.u32 %v5647, 30
        %v5649 = vsub.s32 %v5645, %v5648
        %vm5650 = vcmp.lt.s32.totalorder %v5649, 0
        %v5651 = vsub.s32 0, %v5649
        %v5652 = vsel %vm5650, %v5651, %v5649
        %v5653 = vclz %v5652
        %v5654 = vsub.s32 %v5653, 2
        %vm5655 = vcmp.gt.s32.totalorder 0, %v5654
        %v5656 = vsel %vm5655, 0, %v5654
        %v5657 = vsub.s32 32, %v5656
        %v5658 = vshll.u32 %v5649, %v5656
        %v5659 = vshrl.u32 %v5641, %v5657
        %v5660 = vor.u32 %v5658, %v5659
        %v5661 = vsub.s32 4294967266, %v5656
        %v5662 = vadd.s32 %v5661, 127
        %v5663 = vshll.u32 %v5662, 23
        %v5664 = vor.u32 4788187, %v5663
        %v5665 = vand.u32 2147483647, %v5664
        %v5667 = vcvt.s32.f32 %v5660
        %v5668 = vmul.f32 %v5667, %v5665
        %v5669 = vxor.u32 %v5668, 2147483648
        %v5670 = vsel %vm5587, %v5669, %v5668
        %v5671 = vsub.s32 4, %v5647
        %v5672 = vsel %vm5587, %v5671, %v5647
        %v5673 = vsel %vm5586, %v1563, %v5670
        %v5674 = vsel %vm5586, 0, %v5672
        %v5675 = vcosq.f32.pop %v5673
        %v5676 = vsinq.f32.pop %v5673
        %vm5677 = vweird.f32 %v1563
        %v5678 = vand.u32 %v5674, 3
        %vm5679 = vcmp.lt.s32.totalorder %v5678, 2
        %vm5680 = vcmp.eq.s32.totalorder %v5678, 0
        %v5681 = vxor.u32 %v5676, 2147483648
        %v5682 = vsel %vm5680, %v5675, %v5681
        %vm5683 = vcmp.eq.s32.totalorder %v5678, 2
        %v5684 = vxor.u32 %v5675, 2147483648
        %v5685 = vsel %vm5683, %v5684, %v5676
        %v5686 = vsel %vm5679, %v5682, %v5685
        %v5687 = vsel %vm5677, nan, %v5686
        %v5688 = vand.u32 2147483647, %v1564
        %vm5689 = vcmp.le.f32.partialorder %v5688, 0.7853982
        %vm5690 = vcmp.lt.s32.totalorder %v1564, 0
        %v5691 = vand.u32 %v1564, 2139095040
        %v5692 = vshrl.u32 %v5691, 23
        %v5693 = vsub.s32 %v5692, 127
        %v5694 = vand.u32 2147483647, %v1564
        %v5695 = vand.u32 %v5694, 8388607
        %v5696 = vor.u32 %v5695, 8388608
        %v5697 = vsub.s32 0, %v5696
        %v5698 = vadd.s32 %v5693, 1
        %vm5699 = vcmp.gt.s32.totalorder %v5698, 0
        %v5700 = vsel %vm5699, %v5698, 0
        %v5701 = vshrl.u32 %v5700, 5
        %v5702 = vand.u32 %v5700, 31
        %v5703 = vsub.s32 32, %v5702
        %v5704 = vshrl.u32 683565275, %v5703
        %v5705 = vshll.u32 683565275, %v5702
        %v5706 = vshrl.u32 2475754826, %v5703
        %v5707 = vor.u32 %v5705, %v5706
        %v5708 = vshll.u32 2475754826, %v5702
        %v5709 = vshrl.u32 2131351028, %v5703
        %v5710 = vor.u32 %v5708, %v5709
        %v5711 = vshll.u32 2131351028, %v5702
        %v5712 = vshrl.u32 2102212464, %v5703
        %v5713 = vor.u32 %v5711, %v5712
        %v5714 = vshll.u32 2102212464, %v5702
        %v5715 = vshrl.u32 920167782, %v5703
        %v5716 = vor.u32 %v5714, %v5715
        %v5717 = vshll.u32 920167782, %v5702
        %v5718 = vshrl.u32 1326507024, %v5703
        %v5719 = vor.u32 %v5717, %v5718
        %vm5720 = vcmp.lt.s32.totalorder %v5701, 1
        %vm5721 = vcmp.lt.s32.totalorder %v5701, 2
        %vm5722 = vcmp.lt.s32.totalorder %v5701, 3
        %vm5723 = vcmp.lt.s32.totalorder %v5701, 4
        %v5724 = vsel %vm5720, %v5704, %v5707
        %v5725 = vsel %vm5723, %v5713, 2102212464
        %v5726 = vsel %vm5722, %v5710, %v5725
        %v5727 = vsel %vm5721, %v5724, %v5726
        %v5728 = vsel %vm5720, %v5707, %v5710
        %v5729 = vsel %vm5723, %v5716, 920167782
        %v5730 = vsel %vm5722, %v5713, %v5729
        %v5731 = vsel %vm5721, %v5728, %v5730
        %v5732 = vsel %vm5720, %v5710, %v5713
        %v5733 = vsel %vm5723, %v5719, 1326507024
        %v5734 = vsel %vm5722, %v5716, %v5733
        %v5735 = vsel %vm5721, %v5732, %v5734
        %v5736 = vshll.u32 %v5696, 8
        %v5737 = vmul.u32.u64.compose %v5736, %v5735
        %v5738 = vextract.low.u32 %v5737
        %v5739 = vextract.high.u32 %v5737
        %v5740 = vmul.u32.u64.compose %v5736, %v5731
        %v5741 = vextract.low.u32 %v5740
        %v5742 = vextract.high.u32 %v5740
        %v5743 = vmul.u32 %v5736, %v5727
        %v5744 = vadd.s32 %v5739, %v5741
        %vm5745 = vc.u32 %v5739, %v5741
        %v5746 = vadd.s32 %v5742, 1
        %v5747 = vsel %vm5745, %v5746, %v5742
        %v5748 = vadd.s32 %v5743, %v5747
        %v5749 = vadd.s32 %v5748, 536870912
        %v5750 = vshrl.u32 %v5749, 30
        %v5751 = vshll.u32 %v5750, 30
        %v5752 = vsub.s32 %v5748, %v5751
        %vm5753 = vcmp.lt.s32.totalorder %v5752, 0
        %v5754 = vsub.s32 0, %v5752
        %v5755 = vsel %vm5753, %v5754, %v5752
        %v5756 = vclz %v5755
        %v5757 = vsub.s32 %v5756, 2
        %vm5758 = vcmp.gt.s32.totalorder 0, %v5757
        %v5759 = vsel %vm5758, 0, %v5757
        %v5760 = vsub.s32 32, %v5759
        %v5761 = vshll.u32 %v5752, %v5759
        %v5762 = vshrl.u32 %v5744, %v5760
        %v5763 = vor.u32 %v5761, %v5762
        %v5764 = vsub.s32 4294967266, %v5759
        %v5765 = vadd.s32 %v5764, 127
        %v5766 = vshll.u32 %v5765, 23
        %v5767 = vor.u32 4788187, %v5766
        %v5768 = vand.u32 2147483647, %v5767
        %v5770 = vcvt.s32.f32 %v5763
        %v5771 = vmul.f32 %v5770, %v5768
        %v5772 = vxor.u32 %v5771, 2147483648
        %v5773 = vsel %vm5690, %v5772, %v5771
        %v5774 = vsub.s32 4, %v5750
        %v5775 = vsel %vm5690, %v5774, %v5750
        %v5776 = vsel %vm5689, %v1564, %v5773
        %v5777 = vsel %vm5689, 0, %v5775
        %v5778 = vcosq.f32.pop %v5776
        %v5779 = vsinq.f32.pop %v5776
        %vm5780 = vweird.f32 %v1564
        %v5781 = vand.u32 %v5777, 3
        %vm5782 = vcmp.lt.s32.totalorder %v5781, 2
        %vm5783 = vcmp.eq.s32.totalorder %v5781, 0
        %v5784 = vxor.u32 %v5779, 2147483648
        %v5785 = vsel %vm5783, %v5778, %v5784
        %vm5786 = vcmp.eq.s32.totalorder %v5781, 2
        %v5787 = vxor.u32 %v5778, 2147483648
        %v5788 = vsel %vm5786, %v5787, %v5779
        %v5789 = vsel %vm5782, %v5785, %v5788
        %v5790 = vsel %vm5780, nan, %v5789
        %v5791 = vand.u32 2147483647, %v1565
        %vm5792 = vcmp.le.f32.partialorder %v5791, 0.7853982
        %vm5793 = vcmp.lt.s32.totalorder %v1565, 0
        %v5794 = vand.u32 %v1565, 2139095040
        %v5795 = vshrl.u32 %v5794, 23
        %v5796 = vsub.s32 %v5795, 127
        %v5797 = vand.u32 2147483647, %v1565
        %v5798 = vand.u32 %v5797, 8388607
        %v5799 = vor.u32 %v5798, 8388608
        %v5800 = vsub.s32 0, %v5799
        %v5801 = vadd.s32 %v5796, 1
        %vm5802 = vcmp.gt.s32.totalorder %v5801, 0
        %v5803 = vsel %vm5802, %v5801, 0
        %v5804 = vshrl.u32 %v5803, 5
        %v5805 = vand.u32 %v5803, 31
        %v5806 = vsub.s32 32, %v5805
        %v5807 = vshrl.u32 683565275, %v5806
        %v5808 = vshll.u32 683565275, %v5805
        %v5809 = vshrl.u32 2475754826, %v5806
        %v5810 = vor.u32 %v5808, %v5809
        %v5811 = vshll.u32 2475754826, %v5805
        %v5812 = vshrl.u32 2131351028, %v5806
        %v5813 = vor.u32 %v5811, %v5812
        %v5814 = vshll.u32 2131351028, %v5805
        %v5815 = vshrl.u32 2102212464, %v5806
        %v5816 = vor.u32 %v5814, %v5815
        %v5817 = vshll.u32 2102212464, %v5805
        %v5818 = vshrl.u32 920167782, %v5806
        %v5819 = vor.u32 %v5817, %v5818
        %v5820 = vshll.u32 920167782, %v5805
        %v5821 = vshrl.u32 1326507024, %v5806
        %v5822 = vor.u32 %v5820, %v5821
        %vm5823 = vcmp.lt.s32.totalorder %v5804, 1
        %vm5824 = vcmp.lt.s32.totalorder %v5804, 2
        %vm5825 = vcmp.lt.s32.totalorder %v5804, 3
        %vm5826 = vcmp.lt.s32.totalorder %v5804, 4
        %v5827 = vsel %vm5823, %v5807, %v5810
        %v5828 = vsel %vm5826, %v5816, 2102212464
        %v5829 = vsel %vm5825, %v5813, %v5828
        %v5830 = vsel %vm5824, %v5827, %v5829
        %v5831 = vsel %vm5823, %v5810, %v5813
        %v5832 = vsel %vm5826, %v5819, 920167782
        %v5833 = vsel %vm5825, %v5816, %v5832
        %v5834 = vsel %vm5824, %v5831, %v5833
        %v5835 = vsel %vm5823, %v5813, %v5816
        %v5836 = vsel %vm5826, %v5822, 1326507024
        %v5837 = vsel %vm5825, %v5819, %v5836
        %v5838 = vsel %vm5824, %v5835, %v5837
        %v5839 = vshll.u32 %v5799, 8
        %v5840 = vmul.u32.u64.compose %v5839, %v5838
        %v5841 = vextract.low.u32 %v5840
        %v5842 = vextract.high.u32 %v5840
        %v5843 = vmul.u32.u64.compose %v5839, %v5834
        %v5844 = vextract.low.u32 %v5843
        %v5845 = vextract.high.u32 %v5843
        %v5846 = vmul.u32 %v5839, %v5830
        %v5847 = vadd.s32 %v5842, %v5844
        %vm5848 = vc.u32 %v5842, %v5844
        %v5849 = vadd.s32 %v5845, 1
        %v5850 = vsel %vm5848, %v5849, %v5845
        %v5851 = vadd.s32 %v5846, %v5850
        %v5852 = vadd.s32 %v5851, 536870912
        %v5853 = vshrl.u32 %v5852, 30
        %v5854 = vshll.u32 %v5853, 30
        %v5855 = vsub.s32 %v5851, %v5854
        %vm5856 = vcmp.lt.s32.totalorder %v5855, 0
        %v5857 = vsub.s32 0, %v5855
        %v5858 = vsel %vm5856, %v5857, %v5855
        %v5859 = vclz %v5858
        %v5860 = vsub.s32 %v5859, 2
        %vm5861 = vcmp.gt.s32.totalorder 0, %v5860
        %v5862 = vsel %vm5861, 0, %v5860
        %v5863 = vsub.s32 32, %v5862
        %v5864 = vshll.u32 %v5855, %v5862
        %v5865 = vshrl.u32 %v5847, %v5863
        %v5866 = vor.u32 %v5864, %v5865
        %v5867 = vsub.s32 4294967266, %v5862
        %v5868 = vadd.s32 %v5867, 127
        %v5869 = vshll.u32 %v5868, 23
        %v5870 = vor.u32 4788187, %v5869
        %v5871 = vand.u32 2147483647, %v5870
        %v5873 = vcvt.s32.f32 %v5866
        %v5874 = vmul.f32 %v5873, %v5871
        %v5875 = vxor.u32 %v5874, 2147483648
        %v5876 = vsel %vm5793, %v5875, %v5874
        %v5877 = vsub.s32 4, %v5853
        %v5878 = vsel %vm5793, %v5877, %v5853
        %v5879 = vsel %vm5792, %v1565, %v5876
        %v5880 = vsel %vm5792, 0, %v5878
        %v5881 = vcosq.f32.pop %v5879
        %v5882 = vsinq.f32.pop %v5879
        %vm5883 = vweird.f32 %v1565
        %v5884 = vand.u32 %v5880, 3
        %vm5885 = vcmp.lt.s32.totalorder %v5884, 2
        %vm5886 = vcmp.eq.s32.totalorder %v5884, 0
        %v5887 = vxor.u32 %v5882, 2147483648
        %v5888 = vsel %vm5886, %v5881, %v5887
        %vm5889 = vcmp.eq.s32.totalorder %v5884, 2
        %v5890 = vxor.u32 %v5881, 2147483648
        %v5891 = vsel %vm5889, %v5890, %v5882
        %v5892 = vsel %vm5885, %v5888, %v5891
        %v5893 = vsel %vm5883, nan, %v5892
        %v5894 = vand.u32 2147483647, %v1566
        %vm5895 = vcmp.le.f32.partialorder %v5894, 0.7853982
        %vm5896 = vcmp.lt.s32.totalorder %v1566, 0
        %v5897 = vand.u32 %v1566, 2139095040
        %v5898 = vshrl.u32 %v5897, 23
        %v5899 = vsub.s32 %v5898, 127
        %v5900 = vand.u32 2147483647, %v1566
        %v5901 = vand.u32 %v5900, 8388607
        %v5902 = vor.u32 %v5901, 8388608
        %v5903 = vsub.s32 0, %v5902
        %v5904 = vadd.s32 %v5899, 1
        %vm5905 = vcmp.gt.s32.totalorder %v5904, 0
        %v5906 = vsel %vm5905, %v5904, 0
        %v5907 = vshrl.u32 %v5906, 5
        %v5908 = vand.u32 %v5906, 31
        %v5909 = vsub.s32 32, %v5908
        %v5910 = vshrl.u32 683565275, %v5909
        %v5911 = vshll.u32 683565275, %v5908
        %v5912 = vshrl.u32 2475754826, %v5909
        %v5913 = vor.u32 %v5911, %v5912
        %v5914 = vshll.u32 2475754826, %v5908
        %v5915 = vshrl.u32 2131351028, %v5909
        %v5916 = vor.u32 %v5914, %v5915
        %v5917 = vshll.u32 2131351028, %v5908
        %v5918 = vshrl.u32 2102212464, %v5909
        %v5919 = vor.u32 %v5917, %v5918
        %v5920 = vshll.u32 2102212464, %v5908
        %v5921 = vshrl.u32 920167782, %v5909
        %v5922 = vor.u32 %v5920, %v5921
        %v5923 = vshll.u32 920167782, %v5908
        %v5924 = vshrl.u32 1326507024, %v5909
        %v5925 = vor.u32 %v5923, %v5924
        %vm5926 = vcmp.lt.s32.totalorder %v5907, 1
        %vm5927 = vcmp.lt.s32.totalorder %v5907, 2
        %vm5928 = vcmp.lt.s32.totalorder %v5907, 3
        %vm5929 = vcmp.lt.s32.totalorder %v5907, 4
        %v5930 = vsel %vm5926, %v5910, %v5913
        %v5931 = vsel %vm5929, %v5919, 2102212464
        %v5932 = vsel %vm5928, %v5916, %v5931
        %v5933 = vsel %vm5927, %v5930, %v5932
        %v5934 = vsel %vm5926, %v5913, %v5916
        %v5935 = vsel %vm5929, %v5922, 920167782
        %v5936 = vsel %vm5928, %v5919, %v5935
        %v5937 = vsel %vm5927, %v5934, %v5936
        %v5938 = vsel %vm5926, %v5916, %v5919
        %v5939 = vsel %vm5929, %v5925, 1326507024
        %v5940 = vsel %vm5928, %v5922, %v5939
        %v5941 = vsel %vm5927, %v5938, %v5940
        %v5942 = vshll.u32 %v5902, 8
        %v5943 = vmul.u32.u64.compose %v5942, %v5941
        %v5944 = vextract.low.u32 %v5943
        %v5945 = vextract.high.u32 %v5943
        %v5946 = vmul.u32.u64.compose %v5942, %v5937
        %v5947 = vextract.low.u32 %v5946
        %v5948 = vextract.high.u32 %v5946
        %v5949 = vmul.u32 %v5942, %v5933
        %v5950 = vadd.s32 %v5945, %v5947
        %vm5951 = vc.u32 %v5945, %v5947
        %v5952 = vadd.s32 %v5948, 1
        %v5953 = vsel %vm5951, %v5952, %v5948
        %v5954 = vadd.s32 %v5949, %v5953
        %v5955 = vadd.s32 %v5954, 536870912
        %v5956 = vshrl.u32 %v5955, 30
        %v5957 = vshll.u32 %v5956, 30
        %v5958 = vsub.s32 %v5954, %v5957
        %vm5959 = vcmp.lt.s32.totalorder %v5958, 0
        %v5960 = vsub.s32 0, %v5958
        %v5961 = vsel %vm5959, %v5960, %v5958
        %v5962 = vclz %v5961
        %v5963 = vsub.s32 %v5962, 2
        %vm5964 = vcmp.gt.s32.totalorder 0, %v5963
        %v5965 = vsel %vm5964, 0, %v5963
        %v5966 = vsub.s32 32, %v5965
        %v5967 = vshll.u32 %v5958, %v5965
        %v5968 = vshrl.u32 %v5950, %v5966
        %v5969 = vor.u32 %v5967, %v5968
        %v5970 = vsub.s32 4294967266, %v5965
        %v5971 = vadd.s32 %v5970, 127
        %v5972 = vshll.u32 %v5971, 23
        %v5973 = vor.u32 4788187, %v5972
        %v5974 = vand.u32 2147483647, %v5973
        %v5976 = vcvt.s32.f32 %v5969
        %v5977 = vmul.f32 %v5976, %v5974
        %v5978 = vxor.u32 %v5977, 2147483648
        %v5979 = vsel %vm5896, %v5978, %v5977
        %v5980 = vsub.s32 4, %v5956
        %v5981 = vsel %vm5896, %v5980, %v5956
        %v5982 = vsel %vm5895, %v1566, %v5979
        %v5983 = vsel %vm5895, 0, %v5981
        %v5984 = vcosq.f32.pop %v5982
        %v5985 = vsinq.f32.pop %v5982
        %vm5986 = vweird.f32 %v1566
        %v5987 = vand.u32 %v5983, 3
        %vm5988 = vcmp.lt.s32.totalorder %v5987, 2
        %vm5989 = vcmp.eq.s32.totalorder %v5987, 0
        %v5990 = vxor.u32 %v5985, 2147483648
        %v5991 = vsel %vm5989, %v5984, %v5990
        %vm5992 = vcmp.eq.s32.totalorder %v5987, 2
        %v5993 = vxor.u32 %v5984, 2147483648
        %v5994 = vsel %vm5992, %v5993, %v5985
        %v5995 = vsel %vm5988, %v5991, %v5994
        %v5996 = vsel %vm5986, nan, %v5995
        %v5997 = vand.u32 2147483647, %v1567
        %vm5998 = vcmp.le.f32.partialorder %v5997, 0.7853982
        %vm5999 = vcmp.lt.s32.totalorder %v1567, 0
        %v6000 = vand.u32 %v1567, 2139095040
        %v6001 = vshrl.u32 %v6000, 23
        %v6002 = vsub.s32 %v6001, 127
        %v6003 = vand.u32 2147483647, %v1567
        %v6004 = vand.u32 %v6003, 8388607
        %v6005 = vor.u32 %v6004, 8388608
        %v6006 = vsub.s32 0, %v6005
        %v6007 = vadd.s32 %v6002, 1
        %vm6008 = vcmp.gt.s32.totalorder %v6007, 0
        %v6009 = vsel %vm6008, %v6007, 0
        %v6010 = vshrl.u32 %v6009, 5
        %v6011 = vand.u32 %v6009, 31
        %v6012 = vsub.s32 32, %v6011
        %v6013 = vshrl.u32 683565275, %v6012
        %v6014 = vshll.u32 683565275, %v6011
        %v6015 = vshrl.u32 2475754826, %v6012
        %v6016 = vor.u32 %v6014, %v6015
        %v6017 = vshll.u32 2475754826, %v6011
        %v6018 = vshrl.u32 2131351028, %v6012
        %v6019 = vor.u32 %v6017, %v6018
        %v6020 = vshll.u32 2131351028, %v6011
        %v6021 = vshrl.u32 2102212464, %v6012
        %v6022 = vor.u32 %v6020, %v6021
        %v6023 = vshll.u32 2102212464, %v6011
        %v6024 = vshrl.u32 920167782, %v6012
        %v6025 = vor.u32 %v6023, %v6024
        %v6026 = vshll.u32 920167782, %v6011
        %v6027 = vshrl.u32 1326507024, %v6012
        %v6028 = vor.u32 %v6026, %v6027
        %vm6029 = vcmp.lt.s32.totalorder %v6010, 1
        %vm6030 = vcmp.lt.s32.totalorder %v6010, 2
        %vm6031 = vcmp.lt.s32.totalorder %v6010, 3
        %vm6032 = vcmp.lt.s32.totalorder %v6010, 4
        %v6033 = vsel %vm6029, %v6013, %v6016
        %v6034 = vsel %vm6032, %v6022, 2102212464
        %v6035 = vsel %vm6031, %v6019, %v6034
        %v6036 = vsel %vm6030, %v6033, %v6035
        %v6037 = vsel %vm6029, %v6016, %v6019
        %v6038 = vsel %vm6032, %v6025, 920167782
        %v6039 = vsel %vm6031, %v6022, %v6038
        %v6040 = vsel %vm6030, %v6037, %v6039
        %v6041 = vsel %vm6029, %v6019, %v6022
        %v6042 = vsel %vm6032, %v6028, 1326507024
        %v6043 = vsel %vm6031, %v6025, %v6042
        %v6044 = vsel %vm6030, %v6041, %v6043
        %v6045 = vshll.u32 %v6005, 8
        %v6046 = vmul.u32.u64.compose %v6045, %v6044
        %v6047 = vextract.low.u32 %v6046
        %v6048 = vextract.high.u32 %v6046
        %v6049 = vmul.u32.u64.compose %v6045, %v6040
        %v6050 = vextract.low.u32 %v6049
        %v6051 = vextract.high.u32 %v6049
        %v6052 = vmul.u32 %v6045, %v6036
        %v6053 = vadd.s32 %v6048, %v6050
        %vm6054 = vc.u32 %v6048, %v6050
        %v6055 = vadd.s32 %v6051, 1
        %v6056 = vsel %vm6054, %v6055, %v6051
        %v6057 = vadd.s32 %v6052, %v6056
        %v6058 = vadd.s32 %v6057, 536870912
        %v6059 = vshrl.u32 %v6058, 30
        %v6060 = vshll.u32 %v6059, 30
        %v6061 = vsub.s32 %v6057, %v6060
        %vm6062 = vcmp.lt.s32.totalorder %v6061, 0
        %v6063 = vsub.s32 0, %v6061
        %v6064 = vsel %vm6062, %v6063, %v6061
        %v6065 = vclz %v6064
        %v6066 = vsub.s32 %v6065, 2
        %vm6067 = vcmp.gt.s32.totalorder 0, %v6066
        %v6068 = vsel %vm6067, 0, %v6066
        %v6069 = vsub.s32 32, %v6068
        %v6070 = vshll.u32 %v6061, %v6068
        %v6071 = vshrl.u32 %v6053, %v6069
        %v6072 = vor.u32 %v6070, %v6071
        %v6073 = vsub.s32 4294967266, %v6068
        %v6074 = vadd.s32 %v6073, 127
        %v6075 = vshll.u32 %v6074, 23
        %v6076 = vor.u32 4788187, %v6075
        %v6077 = vand.u32 2147483647, %v6076
        %v6079 = vcvt.s32.f32 %v6072
        %v6080 = vmul.f32 %v6079, %v6077
        %v6081 = vxor.u32 %v6080, 2147483648
        %v6082 = vsel %vm5999, %v6081, %v6080
        %v6083 = vsub.s32 4, %v6059
        %v6084 = vsel %vm5999, %v6083, %v6059
        %v6085 = vsel %vm5998, %v1567, %v6082
        %v6086 = vsel %vm5998, 0, %v6084
        %v6087 = vcosq.f32.pop %v6085
        %v6088 = vsinq.f32.pop %v6085
        %vm6089 = vweird.f32 %v1567
        %v6090 = vand.u32 %v6086, 3
        %vm6091 = vcmp.lt.s32.totalorder %v6090, 2
        %vm6092 = vcmp.eq.s32.totalorder %v6090, 0
        %v6093 = vxor.u32 %v6088, 2147483648
        %v6094 = vsel %vm6092, %v6087, %v6093
        %vm6095 = vcmp.eq.s32.totalorder %v6090, 2
        %v6096 = vxor.u32 %v6087, 2147483648
        %v6097 = vsel %vm6095, %v6096, %v6088
        %v6098 = vsel %vm6091, %v6094, %v6097
        %v6099 = vsel %vm6089, nan, %v6098
        %v6100 = vand.u32 2147483647, %v1568
        %vm6101 = vcmp.le.f32.partialorder %v6100, 0.7853982
        %vm6102 = vcmp.lt.s32.totalorder %v1568, 0
        %v6103 = vand.u32 %v1568, 2139095040
        %v6104 = vshrl.u32 %v6103, 23
        %v6105 = vsub.s32 %v6104, 127
        %v6106 = vand.u32 2147483647, %v1568
        %v6107 = vand.u32 %v6106, 8388607
        %v6108 = vor.u32 %v6107, 8388608
        %v6109 = vsub.s32 0, %v6108
        %v6110 = vadd.s32 %v6105, 1
        %vm6111 = vcmp.gt.s32.totalorder %v6110, 0
        %v6112 = vsel %vm6111, %v6110, 0
        %v6113 = vshrl.u32 %v6112, 5
        %v6114 = vand.u32 %v6112, 31
        %v6115 = vsub.s32 32, %v6114
        %v6116 = vshrl.u32 683565275, %v6115
        %v6117 = vshll.u32 683565275, %v6114
        %v6118 = vshrl.u32 2475754826, %v6115
        %v6119 = vor.u32 %v6117, %v6118
        %v6120 = vshll.u32 2475754826, %v6114
        %v6121 = vshrl.u32 2131351028, %v6115
        %v6122 = vor.u32 %v6120, %v6121
        %v6123 = vshll.u32 2131351028, %v6114
        %v6124 = vshrl.u32 2102212464, %v6115
        %v6125 = vor.u32 %v6123, %v6124
        %v6126 = vshll.u32 2102212464, %v6114
        %v6127 = vshrl.u32 920167782, %v6115
        %v6128 = vor.u32 %v6126, %v6127
        %v6129 = vshll.u32 920167782, %v6114
        %v6130 = vshrl.u32 1326507024, %v6115
        %v6131 = vor.u32 %v6129, %v6130
        %vm6132 = vcmp.lt.s32.totalorder %v6113, 1
        %vm6133 = vcmp.lt.s32.totalorder %v6113, 2
        %vm6134 = vcmp.lt.s32.totalorder %v6113, 3
        %vm6135 = vcmp.lt.s32.totalorder %v6113, 4
        %v6136 = vsel %vm6132, %v6116, %v6119
        %v6137 = vsel %vm6135, %v6125, 2102212464
        %v6138 = vsel %vm6134, %v6122, %v6137
        %v6139 = vsel %vm6133, %v6136, %v6138
        %v6140 = vsel %vm6132, %v6119, %v6122
        %v6141 = vsel %vm6135, %v6128, 920167782
        %v6142 = vsel %vm6134, %v6125, %v6141
        %v6143 = vsel %vm6133, %v6140, %v6142
        %v6144 = vsel %vm6132, %v6122, %v6125
        %v6145 = vsel %vm6135, %v6131, 1326507024
        %v6146 = vsel %vm6134, %v6128, %v6145
        %v6147 = vsel %vm6133, %v6144, %v6146
        %v6148 = vshll.u32 %v6108, 8
        %v6149 = vmul.u32.u64.compose %v6148, %v6147
        %v6150 = vextract.low.u32 %v6149
        %v6151 = vextract.high.u32 %v6149
        %v6152 = vmul.u32.u64.compose %v6148, %v6143
        %v6153 = vextract.low.u32 %v6152
        %v6154 = vextract.high.u32 %v6152
        %v6155 = vmul.u32 %v6148, %v6139
        %v6156 = vadd.s32 %v6151, %v6153
        %vm6157 = vc.u32 %v6151, %v6153
        %v6158 = vadd.s32 %v6154, 1
        %v6159 = vsel %vm6157, %v6158, %v6154
        %v6160 = vadd.s32 %v6155, %v6159
        %v6161 = vadd.s32 %v6160, 536870912
        %v6162 = vshrl.u32 %v6161, 30
        %v6163 = vshll.u32 %v6162, 30
        %v6164 = vsub.s32 %v6160, %v6163
        %vm6165 = vcmp.lt.s32.totalorder %v6164, 0
        %v6166 = vsub.s32 0, %v6164
        %v6167 = vsel %vm6165, %v6166, %v6164
        %v6168 = vclz %v6167
        %v6169 = vsub.s32 %v6168, 2
        %vm6170 = vcmp.gt.s32.totalorder 0, %v6169
        %v6171 = vsel %vm6170, 0, %v6169
        %v6172 = vsub.s32 32, %v6171
        %v6173 = vshll.u32 %v6164, %v6171
        %v6174 = vshrl.u32 %v6156, %v6172
        %v6175 = vor.u32 %v6173, %v6174
        %v6176 = vsub.s32 4294967266, %v6171
        %v6177 = vadd.s32 %v6176, 127
        %v6178 = vshll.u32 %v6177, 23
        %v6179 = vor.u32 4788187, %v6178
        %v6180 = vand.u32 2147483647, %v6179
        %v6182 = vcvt.s32.f32 %v6175
        %v6183 = vmul.f32 %v6182, %v6180
        %v6184 = vxor.u32 %v6183, 2147483648
        %v6185 = vsel %vm6102, %v6184, %v6183
        %v6186 = vsub.s32 4, %v6162
        %v6187 = vsel %vm6102, %v6186, %v6162
        %v6188 = vsel %vm6101, %v1568, %v6185
        %v6189 = vsel %vm6101, 0, %v6187
        %v6190 = vcosq.f32.pop %v6188
        %v6191 = vsinq.f32.pop %v6188
        %vm6192 = vweird.f32 %v1568
        %v6193 = vand.u32 %v6189, 3
        %vm6194 = vcmp.lt.s32.totalorder %v6193, 2
        %vm6195 = vcmp.eq.s32.totalorder %v6193, 0
        %v6196 = vxor.u32 %v6191, 2147483648
        %v6197 = vsel %vm6195, %v6190, %v6196
        %vm6198 = vcmp.eq.s32.totalorder %v6193, 2
        %v6199 = vxor.u32 %v6190, 2147483648
        %v6200 = vsel %vm6198, %v6199, %v6191
        %v6201 = vsel %vm6194, %v6197, %v6200
        %v6202 = vsel %vm6192, nan, %v6201
        %v6203 = vand.u32 2147483647, %v1569
        %vm6204 = vcmp.le.f32.partialorder %v6203, 0.7853982
        %vm6205 = vcmp.lt.s32.totalorder %v1569, 0
        %v6206 = vand.u32 %v1569, 2139095040
        %v6207 = vshrl.u32 %v6206, 23
        %v6208 = vsub.s32 %v6207, 127
        %v6209 = vand.u32 2147483647, %v1569
        %v6210 = vand.u32 %v6209, 8388607
        %v6211 = vor.u32 %v6210, 8388608
        %v6212 = vsub.s32 0, %v6211
        %v6213 = vadd.s32 %v6208, 1
        %vm6214 = vcmp.gt.s32.totalorder %v6213, 0
        %v6215 = vsel %vm6214, %v6213, 0
        %v6216 = vshrl.u32 %v6215, 5
        %v6217 = vand.u32 %v6215, 31
        %v6218 = vsub.s32 32, %v6217
        %v6219 = vshrl.u32 683565275, %v6218
        %v6220 = vshll.u32 683565275, %v6217
        %v6221 = vshrl.u32 2475754826, %v6218
        %v6222 = vor.u32 %v6220, %v6221
        %v6223 = vshll.u32 2475754826, %v6217
        %v6224 = vshrl.u32 2131351028, %v6218
        %v6225 = vor.u32 %v6223, %v6224
        %v6226 = vshll.u32 2131351028, %v6217
        %v6227 = vshrl.u32 2102212464, %v6218
        %v6228 = vor.u32 %v6226, %v6227
        %v6229 = vshll.u32 2102212464, %v6217
        %v6230 = vshrl.u32 920167782, %v6218
        %v6231 = vor.u32 %v6229, %v6230
        %v6232 = vshll.u32 920167782, %v6217
        %v6233 = vshrl.u32 1326507024, %v6218
        %v6234 = vor.u32 %v6232, %v6233
        %vm6235 = vcmp.lt.s32.totalorder %v6216, 1
        %vm6236 = vcmp.lt.s32.totalorder %v6216, 2
        %vm6237 = vcmp.lt.s32.totalorder %v6216, 3
        %vm6238 = vcmp.lt.s32.totalorder %v6216, 4
        %v6239 = vsel %vm6235, %v6219, %v6222
        %v6240 = vsel %vm6238, %v6228, 2102212464
        %v6241 = vsel %vm6237, %v6225, %v6240
        %v6242 = vsel %vm6236, %v6239, %v6241
        %v6243 = vsel %vm6235, %v6222, %v6225
        %v6244 = vsel %vm6238, %v6231, 920167782
        %v6245 = vsel %vm6237, %v6228, %v6244
        %v6246 = vsel %vm6236, %v6243, %v6245
        %v6247 = vsel %vm6235, %v6225, %v6228
        %v6248 = vsel %vm6238, %v6234, 1326507024
        %v6249 = vsel %vm6237, %v6231, %v6248
        %v6250 = vsel %vm6236, %v6247, %v6249
        %v6251 = vshll.u32 %v6211, 8
        %v6252 = vmul.u32.u64.compose %v6251, %v6250
        %v6253 = vextract.low.u32 %v6252
        %v6254 = vextract.high.u32 %v6252
        %v6255 = vmul.u32.u64.compose %v6251, %v6246
        %v6256 = vextract.low.u32 %v6255
        %v6257 = vextract.high.u32 %v6255
        %v6258 = vmul.u32 %v6251, %v6242
        %v6259 = vadd.s32 %v6254, %v6256
        %vm6260 = vc.u32 %v6254, %v6256
        %v6261 = vadd.s32 %v6257, 1
        %v6262 = vsel %vm6260, %v6261, %v6257
        %v6263 = vadd.s32 %v6258, %v6262
        %v6264 = vadd.s32 %v6263, 536870912
        %v6265 = vshrl.u32 %v6264, 30
        %v6266 = vshll.u32 %v6265, 30
        %v6267 = vsub.s32 %v6263, %v6266
        %vm6268 = vcmp.lt.s32.totalorder %v6267, 0
        %v6269 = vsub.s32 0, %v6267
        %v6270 = vsel %vm6268, %v6269, %v6267
        %v6271 = vclz %v6270
        %v6272 = vsub.s32 %v6271, 2
        %vm6273 = vcmp.gt.s32.totalorder 0, %v6272
        %v6274 = vsel %vm6273, 0, %v6272
        %v6275 = vsub.s32 32, %v6274
        %v6276 = vshll.u32 %v6267, %v6274
        %v6277 = vshrl.u32 %v6259, %v6275
        %v6278 = vor.u32 %v6276, %v6277
        %v6279 = vsub.s32 4294967266, %v6274
        %v6280 = vadd.s32 %v6279, 127
        %v6281 = vshll.u32 %v6280, 23
        %v6282 = vor.u32 4788187, %v6281
        %v6283 = vand.u32 2147483647, %v6282
        %v6285 = vcvt.s32.f32 %v6278
        %v6286 = vmul.f32 %v6285, %v6283
        %v6287 = vxor.u32 %v6286, 2147483648
        %v6288 = vsel %vm6205, %v6287, %v6286
        %v6289 = vsub.s32 4, %v6265
        %v6290 = vsel %vm6205, %v6289, %v6265
        %v6291 = vsel %vm6204, %v1569, %v6288
        %v6292 = vsel %vm6204, 0, %v6290
        %v6293 = vcosq.f32.pop %v6291
        %v6294 = vsinq.f32.pop %v6291
        %vm6295 = vweird.f32 %v1569
        %v6296 = vand.u32 %v6292, 3
        %vm6297 = vcmp.lt.s32.totalorder %v6296, 2
        %vm6298 = vcmp.eq.s32.totalorder %v6296, 0
        %v6299 = vxor.u32 %v6294, 2147483648
        %v6300 = vsel %vm6298, %v6293, %v6299
        %vm6301 = vcmp.eq.s32.totalorder %v6296, 2
        %v6302 = vxor.u32 %v6293, 2147483648
        %v6303 = vsel %vm6301, %v6302, %v6294
        %v6304 = vsel %vm6297, %v6300, %v6303
        %v6305 = vsel %vm6295, nan, %v6304
        %v6306 = vand.u32 2147483647, %v1570
        %vm6307 = vcmp.le.f32.partialorder %v6306, 0.7853982
        %vm6308 = vcmp.lt.s32.totalorder %v1570, 0
        %v6309 = vand.u32 %v1570, 2139095040
        %v6310 = vshrl.u32 %v6309, 23
        %v6311 = vsub.s32 %v6310, 127
        %v6312 = vand.u32 2147483647, %v1570
        %v6313 = vand.u32 %v6312, 8388607
        %v6314 = vor.u32 %v6313, 8388608
        %v6315 = vsub.s32 0, %v6314
        %v6316 = vadd.s32 %v6311, 1
        %vm6317 = vcmp.gt.s32.totalorder %v6316, 0
        %v6318 = vsel %vm6317, %v6316, 0
        %v6319 = vshrl.u32 %v6318, 5
        %v6320 = vand.u32 %v6318, 31
        %v6321 = vsub.s32 32, %v6320
        %v6322 = vshrl.u32 683565275, %v6321
        %v6323 = vshll.u32 683565275, %v6320
        %v6324 = vshrl.u32 2475754826, %v6321
        %v6325 = vor.u32 %v6323, %v6324
        %v6326 = vshll.u32 2475754826, %v6320
        %v6327 = vshrl.u32 2131351028, %v6321
        %v6328 = vor.u32 %v6326, %v6327
        %v6329 = vshll.u32 2131351028, %v6320
        %v6330 = vshrl.u32 2102212464, %v6321
        %v6331 = vor.u32 %v6329, %v6330
        %v6332 = vshll.u32 2102212464, %v6320
        %v6333 = vshrl.u32 920167782, %v6321
        %v6334 = vor.u32 %v6332, %v6333
        %v6335 = vshll.u32 920167782, %v6320
        %v6336 = vshrl.u32 1326507024, %v6321
        %v6337 = vor.u32 %v6335, %v6336
        %vm6338 = vcmp.lt.s32.totalorder %v6319, 1
        %vm6339 = vcmp.lt.s32.totalorder %v6319, 2
        %vm6340 = vcmp.lt.s32.totalorder %v6319, 3
        %vm6341 = vcmp.lt.s32.totalorder %v6319, 4
        %v6342 = vsel %vm6338, %v6322, %v6325
        %v6343 = vsel %vm6341, %v6331, 2102212464
        %v6344 = vsel %vm6340, %v6328, %v6343
        %v6345 = vsel %vm6339, %v6342, %v6344
        %v6346 = vsel %vm6338, %v6325, %v6328
        %v6347 = vsel %vm6341, %v6334, 920167782
        %v6348 = vsel %vm6340, %v6331, %v6347
        %v6349 = vsel %vm6339, %v6346, %v6348
        %v6350 = vsel %vm6338, %v6328, %v6331
        %v6351 = vsel %vm6341, %v6337, 1326507024
        %v6352 = vsel %vm6340, %v6334, %v6351
        %v6353 = vsel %vm6339, %v6350, %v6352
        %v6354 = vshll.u32 %v6314, 8
        %v6355 = vmul.u32.u64.compose %v6354, %v6353
        %v6356 = vextract.low.u32 %v6355
        %v6357 = vextract.high.u32 %v6355
        %v6358 = vmul.u32.u64.compose %v6354, %v6349
        %v6359 = vextract.low.u32 %v6358
        %v6360 = vextract.high.u32 %v6358
        %v6361 = vmul.u32 %v6354, %v6345
        %v6362 = vadd.s32 %v6357, %v6359
        %vm6363 = vc.u32 %v6357, %v6359
        %v6364 = vadd.s32 %v6360, 1
        %v6365 = vsel %vm6363, %v6364, %v6360
        %v6366 = vadd.s32 %v6361, %v6365
        %v6367 = vadd.s32 %v6366, 536870912
        %v6368 = vshrl.u32 %v6367, 30
        %v6369 = vshll.u32 %v6368, 30
        %v6370 = vsub.s32 %v6366, %v6369
        %vm6371 = vcmp.lt.s32.totalorder %v6370, 0
        %v6372 = vsub.s32 0, %v6370
        %v6373 = vsel %vm6371, %v6372, %v6370
        %v6374 = vclz %v6373
        %v6375 = vsub.s32 %v6374, 2
        %vm6376 = vcmp.gt.s32.totalorder 0, %v6375
        %v6377 = vsel %vm6376, 0, %v6375
        %v6378 = vsub.s32 32, %v6377
        %v6379 = vshll.u32 %v6370, %v6377
        %v6380 = vshrl.u32 %v6362, %v6378
        %v6381 = vor.u32 %v6379, %v6380
        %v6382 = vsub.s32 4294967266, %v6377
        %v6383 = vadd.s32 %v6382, 127
        %v6384 = vshll.u32 %v6383, 23
        %v6385 = vor.u32 4788187, %v6384
        %v6386 = vand.u32 2147483647, %v6385
        %v6388 = vcvt.s32.f32 %v6381
        %v6389 = vmul.f32 %v6388, %v6386
        %v6390 = vxor.u32 %v6389, 2147483648
        %v6391 = vsel %vm6308, %v6390, %v6389
        %v6392 = vsub.s32 4, %v6368
        %v6393 = vsel %vm6308, %v6392, %v6368
        %v6394 = vsel %vm6307, %v1570, %v6391
        %v6395 = vsel %vm6307, 0, %v6393
        %v6396 = vcosq.f32.pop %v6394
        %v6397 = vsinq.f32.pop %v6394
        %vm6398 = vweird.f32 %v1570
        %v6399 = vand.u32 %v6395, 3
        %vm6400 = vcmp.lt.s32.totalorder %v6399, 2
        %vm6401 = vcmp.eq.s32.totalorder %v6399, 0
        %v6402 = vxor.u32 %v6397, 2147483648
        %v6403 = vsel %vm6401, %v6396, %v6402
        %vm6404 = vcmp.eq.s32.totalorder %v6399, 2
        %v6405 = vxor.u32 %v6396, 2147483648
        %v6406 = vsel %vm6404, %v6405, %v6397
        %v6407 = vsel %vm6400, %v6403, %v6406
        %v6408 = vsel %vm6398, nan, %v6407
        %v6409 = vand.u32 2147483647, %v1571
        %vm6410 = vcmp.le.f32.partialorder %v6409, 0.7853982
        %vm6411 = vcmp.lt.s32.totalorder %v1571, 0
        %v6412 = vand.u32 %v1571, 2139095040
        %v6413 = vshrl.u32 %v6412, 23
        %v6414 = vsub.s32 %v6413, 127
        %v6415 = vand.u32 2147483647, %v1571
        %v6416 = vand.u32 %v6415, 8388607
        %v6417 = vor.u32 %v6416, 8388608
        %v6418 = vsub.s32 0, %v6417
        %v6419 = vadd.s32 %v6414, 1
        %vm6420 = vcmp.gt.s32.totalorder %v6419, 0
        %v6421 = vsel %vm6420, %v6419, 0
        %v6422 = vshrl.u32 %v6421, 5
        %v6423 = vand.u32 %v6421, 31
        %v6424 = vsub.s32 32, %v6423
        %v6425 = vshrl.u32 683565275, %v6424
        %v6426 = vshll.u32 683565275, %v6423
        %v6427 = vshrl.u32 2475754826, %v6424
        %v6428 = vor.u32 %v6426, %v6427
        %v6429 = vshll.u32 2475754826, %v6423
        %v6430 = vshrl.u32 2131351028, %v6424
        %v6431 = vor.u32 %v6429, %v6430
        %v6432 = vshll.u32 2131351028, %v6423
        %v6433 = vshrl.u32 2102212464, %v6424
        %v6434 = vor.u32 %v6432, %v6433
        %v6435 = vshll.u32 2102212464, %v6423
        %v6436 = vshrl.u32 920167782, %v6424
        %v6437 = vor.u32 %v6435, %v6436
        %v6438 = vshll.u32 920167782, %v6423
        %v6439 = vshrl.u32 1326507024, %v6424
        %v6440 = vor.u32 %v6438, %v6439
        %vm6441 = vcmp.lt.s32.totalorder %v6422, 1
        %vm6442 = vcmp.lt.s32.totalorder %v6422, 2
        %vm6443 = vcmp.lt.s32.totalorder %v6422, 3
        %vm6444 = vcmp.lt.s32.totalorder %v6422, 4
        %v6445 = vsel %vm6441, %v6425, %v6428
        %v6446 = vsel %vm6444, %v6434, 2102212464
        %v6447 = vsel %vm6443, %v6431, %v6446
        %v6448 = vsel %vm6442, %v6445, %v6447
        %v6449 = vsel %vm6441, %v6428, %v6431
        %v6450 = vsel %vm6444, %v6437, 920167782
        %v6451 = vsel %vm6443, %v6434, %v6450
        %v6452 = vsel %vm6442, %v6449, %v6451
        %v6453 = vsel %vm6441, %v6431, %v6434
        %v6454 = vsel %vm6444, %v6440, 1326507024
        %v6455 = vsel %vm6443, %v6437, %v6454
        %v6456 = vsel %vm6442, %v6453, %v6455
        %v6457 = vshll.u32 %v6417, 8
        %v6458 = vmul.u32.u64.compose %v6457, %v6456
        %v6459 = vextract.low.u32 %v6458
        %v6460 = vextract.high.u32 %v6458
        %v6461 = vmul.u32.u64.compose %v6457, %v6452
        %v6462 = vextract.low.u32 %v6461
        %v6463 = vextract.high.u32 %v6461
        %v6464 = vmul.u32 %v6457, %v6448
        %v6465 = vadd.s32 %v6460, %v6462
        %vm6466 = vc.u32 %v6460, %v6462
        %v6467 = vadd.s32 %v6463, 1
        %v6468 = vsel %vm6466, %v6467, %v6463
        %v6469 = vadd.s32 %v6464, %v6468
        %v6470 = vadd.s32 %v6469, 536870912
        %v6471 = vshrl.u32 %v6470, 30
        %v6472 = vshll.u32 %v6471, 30
        %v6473 = vsub.s32 %v6469, %v6472
        %vm6474 = vcmp.lt.s32.totalorder %v6473, 0
        %v6475 = vsub.s32 0, %v6473
        %v6476 = vsel %vm6474, %v6475, %v6473
        %v6477 = vclz %v6476
        %v6478 = vsub.s32 %v6477, 2
        %vm6479 = vcmp.gt.s32.totalorder 0, %v6478
        %v6480 = vsel %vm6479, 0, %v6478
        %v6481 = vsub.s32 32, %v6480
        %v6482 = vshll.u32 %v6473, %v6480
        %v6483 = vshrl.u32 %v6465, %v6481
        %v6484 = vor.u32 %v6482, %v6483
        %v6485 = vsub.s32 4294967266, %v6480
        %v6486 = vadd.s32 %v6485, 127
        %v6487 = vshll.u32 %v6486, 23
        %v6488 = vor.u32 4788187, %v6487
        %v6489 = vand.u32 2147483647, %v6488
        %v6491 = vcvt.s32.f32 %v6484
        %v6492 = vmul.f32 %v6491, %v6489
        %v6493 = vxor.u32 %v6492, 2147483648
        %v6494 = vsel %vm6411, %v6493, %v6492
        %v6495 = vsub.s32 4, %v6471
        %v6496 = vsel %vm6411, %v6495, %v6471
        %v6497 = vsel %vm6410, %v1571, %v6494
        %v6498 = vsel %vm6410, 0, %v6496
        %v6499 = vcosq.f32.pop %v6497
        %v6500 = vsinq.f32.pop %v6497
        %vm6501 = vweird.f32 %v1571
        %v6502 = vand.u32 %v6498, 3
        %vm6503 = vcmp.lt.s32.totalorder %v6502, 2
        %vm6504 = vcmp.eq.s32.totalorder %v6502, 0
        %v6505 = vxor.u32 %v6500, 2147483648
        %v6506 = vsel %vm6504, %v6499, %v6505
        %vm6507 = vcmp.eq.s32.totalorder %v6502, 2
        %v6508 = vxor.u32 %v6499, 2147483648
        %v6509 = vsel %vm6507, %v6508, %v6500
        %v6510 = vsel %vm6503, %v6506, %v6509
        %v6511 = vsel %vm6501, nan, %v6510
        %v6512 = vand.u32 2147483647, %v1572
        %vm6513 = vcmp.le.f32.partialorder %v6512, 0.7853982
        %vm6514 = vcmp.lt.s32.totalorder %v1572, 0
        %v6515 = vand.u32 %v1572, 2139095040
        %v6516 = vshrl.u32 %v6515, 23
        %v6517 = vsub.s32 %v6516, 127
        %v6518 = vand.u32 2147483647, %v1572
        %v6519 = vand.u32 %v6518, 8388607
        %v6520 = vor.u32 %v6519, 8388608
        %v6521 = vsub.s32 0, %v6520
        %v6522 = vadd.s32 %v6517, 1
        %vm6523 = vcmp.gt.s32.totalorder %v6522, 0
        %v6524 = vsel %vm6523, %v6522, 0
        %v6525 = vshrl.u32 %v6524, 5
        %v6526 = vand.u32 %v6524, 31
        %v6527 = vsub.s32 32, %v6526
        %v6528 = vshrl.u32 683565275, %v6527
        %v6529 = vshll.u32 683565275, %v6526
        %v6530 = vshrl.u32 2475754826, %v6527
        %v6531 = vor.u32 %v6529, %v6530
        %v6532 = vshll.u32 2475754826, %v6526
        %v6533 = vshrl.u32 2131351028, %v6527
        %v6534 = vor.u32 %v6532, %v6533
        %v6535 = vshll.u32 2131351028, %v6526
        %v6536 = vshrl.u32 2102212464, %v6527
        %v6537 = vor.u32 %v6535, %v6536
        %v6538 = vshll.u32 2102212464, %v6526
        %v6539 = vshrl.u32 920167782, %v6527
        %v6540 = vor.u32 %v6538, %v6539
        %v6541 = vshll.u32 920167782, %v6526
        %v6542 = vshrl.u32 1326507024, %v6527
        %v6543 = vor.u32 %v6541, %v6542
        %vm6544 = vcmp.lt.s32.totalorder %v6525, 1
        %vm6545 = vcmp.lt.s32.totalorder %v6525, 2
        %vm6546 = vcmp.lt.s32.totalorder %v6525, 3
        %vm6547 = vcmp.lt.s32.totalorder %v6525, 4
        %v6548 = vsel %vm6544, %v6528, %v6531
        %v6549 = vsel %vm6547, %v6537, 2102212464
        %v6550 = vsel %vm6546, %v6534, %v6549
        %v6551 = vsel %vm6545, %v6548, %v6550
        %v6552 = vsel %vm6544, %v6531, %v6534
        %v6553 = vsel %vm6547, %v6540, 920167782
        %v6554 = vsel %vm6546, %v6537, %v6553
        %v6555 = vsel %vm6545, %v6552, %v6554
        %v6556 = vsel %vm6544, %v6534, %v6537
        %v6557 = vsel %vm6547, %v6543, 1326507024
        %v6558 = vsel %vm6546, %v6540, %v6557
        %v6559 = vsel %vm6545, %v6556, %v6558
        %v6560 = vshll.u32 %v6520, 8
        %v6561 = vmul.u32.u64.compose %v6560, %v6559
        %v6562 = vextract.low.u32 %v6561
        %v6563 = vextract.high.u32 %v6561
        %v6564 = vmul.u32.u64.compose %v6560, %v6555
        %v6565 = vextract.low.u32 %v6564
        %v6566 = vextract.high.u32 %v6564
        %v6567 = vmul.u32 %v6560, %v6551
        %v6568 = vadd.s32 %v6563, %v6565
        %vm6569 = vc.u32 %v6563, %v6565
        %v6570 = vadd.s32 %v6566, 1
        %v6571 = vsel %vm6569, %v6570, %v6566
        %v6572 = vadd.s32 %v6567, %v6571
        %v6573 = vadd.s32 %v6572, 536870912
        %v6574 = vshrl.u32 %v6573, 30
        %v6575 = vshll.u32 %v6574, 30
        %v6576 = vsub.s32 %v6572, %v6575
        %vm6577 = vcmp.lt.s32.totalorder %v6576, 0
        %v6578 = vsub.s32 0, %v6576
        %v6579 = vsel %vm6577, %v6578, %v6576
        %v6580 = vclz %v6579
        %v6581 = vsub.s32 %v6580, 2
        %vm6582 = vcmp.gt.s32.totalorder 0, %v6581
        %v6583 = vsel %vm6582, 0, %v6581
        %v6584 = vsub.s32 32, %v6583
        %v6585 = vshll.u32 %v6576, %v6583
        %v6586 = vshrl.u32 %v6568, %v6584
        %v6587 = vor.u32 %v6585, %v6586
        %v6588 = vsub.s32 4294967266, %v6583
        %v6589 = vadd.s32 %v6588, 127
        %v6590 = vshll.u32 %v6589, 23
        %v6591 = vor.u32 4788187, %v6590
        %v6592 = vand.u32 2147483647, %v6591
        %v6594 = vcvt.s32.f32 %v6587
        %v6595 = vmul.f32 %v6594, %v6592
        %v6596 = vxor.u32 %v6595, 2147483648
        %v6597 = vsel %vm6514, %v6596, %v6595
        %v6598 = vsub.s32 4, %v6574
        %v6599 = vsel %vm6514, %v6598, %v6574
        %v6600 = vsel %vm6513, %v1572, %v6597
        %v6601 = vsel %vm6513, 0, %v6599
        %v6602 = vcosq.f32.pop %v6600
        %v6603 = vsinq.f32.pop %v6600
        %vm6604 = vweird.f32 %v1572
        %v6605 = vand.u32 %v6601, 3
        %vm6606 = vcmp.lt.s32.totalorder %v6605, 2
        %vm6607 = vcmp.eq.s32.totalorder %v6605, 0
        %v6608 = vxor.u32 %v6603, 2147483648
        %v6609 = vsel %vm6607, %v6602, %v6608
        %vm6610 = vcmp.eq.s32.totalorder %v6605, 2
        %v6611 = vxor.u32 %v6602, 2147483648
        %v6612 = vsel %vm6610, %v6611, %v6603
        %v6613 = vsel %vm6606, %v6609, %v6612
        %v6614 = vsel %vm6604, nan, %v6613
        %v6615 = vand.u32 2147483647, %v1573
        %vm6616 = vcmp.le.f32.partialorder %v6615, 0.7853982
        %vm6617 = vcmp.lt.s32.totalorder %v1573, 0
        %v6618 = vand.u32 %v1573, 2139095040
        %v6619 = vshrl.u32 %v6618, 23
        %v6620 = vsub.s32 %v6619, 127
        %v6621 = vand.u32 2147483647, %v1573
        %v6622 = vand.u32 %v6621, 8388607
        %v6623 = vor.u32 %v6622, 8388608
        %v6624 = vsub.s32 0, %v6623
        %v6625 = vadd.s32 %v6620, 1
        %vm6626 = vcmp.gt.s32.totalorder %v6625, 0
        %v6627 = vsel %vm6626, %v6625, 0
        %v6628 = vshrl.u32 %v6627, 5
        %v6629 = vand.u32 %v6627, 31
        %v6630 = vsub.s32 32, %v6629
        %v6631 = vshrl.u32 683565275, %v6630
        %v6632 = vshll.u32 683565275, %v6629
        %v6633 = vshrl.u32 2475754826, %v6630
        %v6634 = vor.u32 %v6632, %v6633
        %v6635 = vshll.u32 2475754826, %v6629
        %v6636 = vshrl.u32 2131351028, %v6630
        %v6637 = vor.u32 %v6635, %v6636
        %v6638 = vshll.u32 2131351028, %v6629
        %v6639 = vshrl.u32 2102212464, %v6630
        %v6640 = vor.u32 %v6638, %v6639
        %v6641 = vshll.u32 2102212464, %v6629
        %v6642 = vshrl.u32 920167782, %v6630
        %v6643 = vor.u32 %v6641, %v6642
        %v6644 = vshll.u32 920167782, %v6629
        %v6645 = vshrl.u32 1326507024, %v6630
        %v6646 = vor.u32 %v6644, %v6645
        %vm6647 = vcmp.lt.s32.totalorder %v6628, 1
        %vm6648 = vcmp.lt.s32.totalorder %v6628, 2
        %vm6649 = vcmp.lt.s32.totalorder %v6628, 3
        %vm6650 = vcmp.lt.s32.totalorder %v6628, 4
        %v6651 = vsel %vm6647, %v6631, %v6634
        %v6652 = vsel %vm6650, %v6640, 2102212464
        %v6653 = vsel %vm6649, %v6637, %v6652
        %v6654 = vsel %vm6648, %v6651, %v6653
        %v6655 = vsel %vm6647, %v6634, %v6637
        %v6656 = vsel %vm6650, %v6643, 920167782
        %v6657 = vsel %vm6649, %v6640, %v6656
        %v6658 = vsel %vm6648, %v6655, %v6657
        %v6659 = vsel %vm6647, %v6637, %v6640
        %v6660 = vsel %vm6650, %v6646, 1326507024
        %v6661 = vsel %vm6649, %v6643, %v6660
        %v6662 = vsel %vm6648, %v6659, %v6661
        %v6663 = vshll.u32 %v6623, 8
        %v6664 = vmul.u32.u64.compose %v6663, %v6662
        %v6665 = vextract.low.u32 %v6664
        %v6666 = vextract.high.u32 %v6664
        %v6667 = vmul.u32.u64.compose %v6663, %v6658
        %v6668 = vextract.low.u32 %v6667
        %v6669 = vextract.high.u32 %v6667
        %v6670 = vmul.u32 %v6663, %v6654
        %v6671 = vadd.s32 %v6666, %v6668
        %vm6672 = vc.u32 %v6666, %v6668
        %v6673 = vadd.s32 %v6669, 1
        %v6674 = vsel %vm6672, %v6673, %v6669
        %v6675 = vadd.s32 %v6670, %v6674
        %v6676 = vadd.s32 %v6675, 536870912
        %v6677 = vshrl.u32 %v6676, 30
        %v6678 = vshll.u32 %v6677, 30
        %v6679 = vsub.s32 %v6675, %v6678
        %vm6680 = vcmp.lt.s32.totalorder %v6679, 0
        %v6681 = vsub.s32 0, %v6679
        %v6682 = vsel %vm6680, %v6681, %v6679
        %v6683 = vclz %v6682
        %v6684 = vsub.s32 %v6683, 2
        %vm6685 = vcmp.gt.s32.totalorder 0, %v6684
        %v6686 = vsel %vm6685, 0, %v6684
        %v6687 = vsub.s32 32, %v6686
        %v6688 = vshll.u32 %v6679, %v6686
        %v6689 = vshrl.u32 %v6671, %v6687
        %v6690 = vor.u32 %v6688, %v6689
        %v6691 = vsub.s32 4294967266, %v6686
        %v6692 = vadd.s32 %v6691, 127
        %v6693 = vshll.u32 %v6692, 23
        %v6694 = vor.u32 4788187, %v6693
        %v6695 = vand.u32 2147483647, %v6694
        %v6697 = vcvt.s32.f32 %v6690
        %v6698 = vmul.f32 %v6697, %v6695
        %v6699 = vxor.u32 %v6698, 2147483648
        %v6700 = vsel %vm6617, %v6699, %v6698
        %v6701 = vsub.s32 4, %v6677
        %v6702 = vsel %vm6617, %v6701, %v6677
        %v6703 = vsel %vm6616, %v1573, %v6700
        %v6704 = vsel %vm6616, 0, %v6702
        %v6705 = vcosq.f32.pop %v6703
        %v6706 = vsinq.f32.pop %v6703
        %vm6707 = vweird.f32 %v1573
        %v6708 = vand.u32 %v6704, 3
        %vm6709 = vcmp.lt.s32.totalorder %v6708, 2
        %vm6710 = vcmp.eq.s32.totalorder %v6708, 0
        %v6711 = vxor.u32 %v6706, 2147483648
        %v6712 = vsel %vm6710, %v6705, %v6711
        %vm6713 = vcmp.eq.s32.totalorder %v6708, 2
        %v6714 = vxor.u32 %v6705, 2147483648
        %v6715 = vsel %vm6713, %v6714, %v6706
        %v6716 = vsel %vm6709, %v6712, %v6715
        %v6717 = vsel %vm6707, nan, %v6716
        %v6718 = vand.u32 2147483647, %v1574
        %vm6719 = vcmp.le.f32.partialorder %v6718, 0.7853982
        %vm6720 = vcmp.lt.s32.totalorder %v1574, 0
        %v6721 = vand.u32 %v1574, 2139095040
        %v6722 = vshrl.u32 %v6721, 23
        %v6723 = vsub.s32 %v6722, 127
        %v6724 = vand.u32 2147483647, %v1574
        %v6725 = vand.u32 %v6724, 8388607
        %v6726 = vor.u32 %v6725, 8388608
        %v6727 = vsub.s32 0, %v6726
        %v6728 = vadd.s32 %v6723, 1
        %vm6729 = vcmp.gt.s32.totalorder %v6728, 0
        %v6730 = vsel %vm6729, %v6728, 0
        %v6731 = vshrl.u32 %v6730, 5
        %v6732 = vand.u32 %v6730, 31
        %v6733 = vsub.s32 32, %v6732
        %v6734 = vshrl.u32 683565275, %v6733
        %v6735 = vshll.u32 683565275, %v6732
        %v6736 = vshrl.u32 2475754826, %v6733
        %v6737 = vor.u32 %v6735, %v6736
        %v6738 = vshll.u32 2475754826, %v6732
        %v6739 = vshrl.u32 2131351028, %v6733
        %v6740 = vor.u32 %v6738, %v6739
        %v6741 = vshll.u32 2131351028, %v6732
        %v6742 = vshrl.u32 2102212464, %v6733
        %v6743 = vor.u32 %v6741, %v6742
        %v6744 = vshll.u32 2102212464, %v6732
        %v6745 = vshrl.u32 920167782, %v6733
        %v6746 = vor.u32 %v6744, %v6745
        %v6747 = vshll.u32 920167782, %v6732
        %v6748 = vshrl.u32 1326507024, %v6733
        %v6749 = vor.u32 %v6747, %v6748
        %vm6750 = vcmp.lt.s32.totalorder %v6731, 1
        %vm6751 = vcmp.lt.s32.totalorder %v6731, 2
        %vm6752 = vcmp.lt.s32.totalorder %v6731, 3
        %vm6753 = vcmp.lt.s32.totalorder %v6731, 4
        %v6754 = vsel %vm6750, %v6734, %v6737
        %v6755 = vsel %vm6753, %v6743, 2102212464
        %v6756 = vsel %vm6752, %v6740, %v6755
        %v6757 = vsel %vm6751, %v6754, %v6756
        %v6758 = vsel %vm6750, %v6737, %v6740
        %v6759 = vsel %vm6753, %v6746, 920167782
        %v6760 = vsel %vm6752, %v6743, %v6759
        %v6761 = vsel %vm6751, %v6758, %v6760
        %v6762 = vsel %vm6750, %v6740, %v6743
        %v6763 = vsel %vm6753, %v6749, 1326507024
        %v6764 = vsel %vm6752, %v6746, %v6763
        %v6765 = vsel %vm6751, %v6762, %v6764
        %v6766 = vshll.u32 %v6726, 8
        %v6767 = vmul.u32.u64.compose %v6766, %v6765
        %v6768 = vextract.low.u32 %v6767
        %v6769 = vextract.high.u32 %v6767
        %v6770 = vmul.u32.u64.compose %v6766, %v6761
        %v6771 = vextract.low.u32 %v6770
        %v6772 = vextract.high.u32 %v6770
        %v6773 = vmul.u32 %v6766, %v6757
        %v6774 = vadd.s32 %v6769, %v6771
        %vm6775 = vc.u32 %v6769, %v6771
        %v6776 = vadd.s32 %v6772, 1
        %v6777 = vsel %vm6775, %v6776, %v6772
        %v6778 = vadd.s32 %v6773, %v6777
        %v6779 = vadd.s32 %v6778, 536870912
        %v6780 = vshrl.u32 %v6779, 30
        %v6781 = vshll.u32 %v6780, 30
        %v6782 = vsub.s32 %v6778, %v6781
        %vm6783 = vcmp.lt.s32.totalorder %v6782, 0
        %v6784 = vsub.s32 0, %v6782
        %v6785 = vsel %vm6783, %v6784, %v6782
        %v6786 = vclz %v6785
        %v6787 = vsub.s32 %v6786, 2
        %vm6788 = vcmp.gt.s32.totalorder 0, %v6787
        %v6789 = vsel %vm6788, 0, %v6787
        %v6790 = vsub.s32 32, %v6789
        %v6791 = vshll.u32 %v6782, %v6789
        %v6792 = vshrl.u32 %v6774, %v6790
        %v6793 = vor.u32 %v6791, %v6792
        %v6794 = vsub.s32 4294967266, %v6789
        %v6795 = vadd.s32 %v6794, 127
        %v6796 = vshll.u32 %v6795, 23
        %v6797 = vor.u32 4788187, %v6796
        %v6798 = vand.u32 2147483647, %v6797
        %v6800 = vcvt.s32.f32 %v6793
        %v6801 = vmul.f32 %v6800, %v6798
        %v6802 = vxor.u32 %v6801, 2147483648
        %v6803 = vsel %vm6720, %v6802, %v6801
        %v6804 = vsub.s32 4, %v6780
        %v6805 = vsel %vm6720, %v6804, %v6780
        %v6806 = vsel %vm6719, %v1574, %v6803
        %v6807 = vsel %vm6719, 0, %v6805
        %v6808 = vcosq.f32.pop %v6806
        %v6809 = vsinq.f32.pop %v6806
        %vm6810 = vweird.f32 %v1574
        %v6811 = vand.u32 %v6807, 3
        %vm6812 = vcmp.lt.s32.totalorder %v6811, 2
        %vm6813 = vcmp.eq.s32.totalorder %v6811, 0
        %v6814 = vxor.u32 %v6809, 2147483648
        %v6815 = vsel %vm6813, %v6808, %v6814
        %vm6816 = vcmp.eq.s32.totalorder %v6811, 2
        %v6817 = vxor.u32 %v6808, 2147483648
        %v6818 = vsel %vm6816, %v6817, %v6809
        %v6819 = vsel %vm6812, %v6815, %v6818
        %v6820 = vsel %vm6810, nan, %v6819
        %v6821 = vmul.f32 %v3304, %v5275
        %v6822 = vmul.f32 %v3309, %v5378
        %v6823 = vmul.f32 %v3314, %v5481
        %v6824 = vmul.f32 %v3319, %v5584
        %v6825 = vmul.f32 %v3324, %v5687
        %v6826 = vmul.f32 %v3329, %v5790
        %v6827 = vmul.f32 %v3334, %v5893
        %v6828 = vmul.f32 %v3339, %v5996
        %v6829 = vmul.f32 %v3344, %v6099
        %v6830 = vmul.f32 %v3349, %v6202
        %v6831 = vmul.f32 %v3354, %v6305
        %v6832 = vmul.f32 %v3359, %v6408
        %v6833 = vmul.f32 %v3364, %v6511
        %v6834 = vmul.f32 %v3369, %v6614
        %v6835 = vmul.f32 %v3374, %v6717
        %v6836 = vmul.f32 %v3379, %v6820
        %v6837 = vand.u32 2147483647, %v1605
        %vm6838 = vcmp.le.f32.partialorder %v6837, 0.7853982
        %vm6839 = vcmp.lt.s32.totalorder %v1605, 0
        %v6840 = vand.u32 %v1605, 2139095040
        %v6841 = vshrl.u32 %v6840, 23
        %v6842 = vsub.s32 %v6841, 127
        %v6843 = vand.u32 2147483647, %v1605
        %v6844 = vand.u32 %v6843, 8388607
        %v6845 = vor.u32 %v6844, 8388608
        %v6846 = vsub.s32 0, %v6845
        %v6847 = vadd.s32 %v6842, 1
        %vm6848 = vcmp.gt.s32.totalorder %v6847, 0
        %v6849 = vsel %vm6848, %v6847, 0
        %v6850 = vshrl.u32 %v6849, 5
        %v6851 = vand.u32 %v6849, 31
        %v6852 = vsub.s32 32, %v6851
        %v6853 = vshrl.u32 683565275, %v6852
        %v6854 = vshll.u32 683565275, %v6851
        %v6855 = vshrl.u32 2475754826, %v6852
        %v6856 = vor.u32 %v6854, %v6855
        %v6857 = vshll.u32 2475754826, %v6851
        %v6858 = vshrl.u32 2131351028, %v6852
        %v6859 = vor.u32 %v6857, %v6858
        %v6860 = vshll.u32 2131351028, %v6851
        %v6861 = vshrl.u32 2102212464, %v6852
        %v6862 = vor.u32 %v6860, %v6861
        %v6863 = vshll.u32 2102212464, %v6851
        %v6864 = vshrl.u32 920167782, %v6852
        %v6865 = vor.u32 %v6863, %v6864
        %v6866 = vshll.u32 920167782, %v6851
        %v6867 = vshrl.u32 1326507024, %v6852
        %v6868 = vor.u32 %v6866, %v6867
        %vm6869 = vcmp.lt.s32.totalorder %v6850, 1
        %vm6870 = vcmp.lt.s32.totalorder %v6850, 2
        %vm6871 = vcmp.lt.s32.totalorder %v6850, 3
        %vm6872 = vcmp.lt.s32.totalorder %v6850, 4
        %v6873 = vsel %vm6869, %v6853, %v6856
        %v6874 = vsel %vm6872, %v6862, 2102212464
        %v6875 = vsel %vm6871, %v6859, %v6874
        %v6876 = vsel %vm6870, %v6873, %v6875
        %v6877 = vsel %vm6869, %v6856, %v6859
        %v6878 = vsel %vm6872, %v6865, 920167782
        %v6879 = vsel %vm6871, %v6862, %v6878
        %v6880 = vsel %vm6870, %v6877, %v6879
        %v6881 = vsel %vm6869, %v6859, %v6862
        %v6882 = vsel %vm6872, %v6868, 1326507024
        %v6883 = vsel %vm6871, %v6865, %v6882
        %v6884 = vsel %vm6870, %v6881, %v6883
        %v6885 = vshll.u32 %v6845, 8
        %v6886 = vmul.u32.u64.compose %v6885, %v6884
        %v6887 = vextract.low.u32 %v6886
        %v6888 = vextract.high.u32 %v6886
        %v6889 = vmul.u32.u64.compose %v6885, %v6880
        %v6890 = vextract.low.u32 %v6889
        %v6891 = vextract.high.u32 %v6889
        %v6892 = vmul.u32 %v6885, %v6876
        %v6893 = vadd.s32 %v6888, %v6890
        %vm6894 = vc.u32 %v6888, %v6890
        %v6895 = vadd.s32 %v6891, 1
        %v6896 = vsel %vm6894, %v6895, %v6891
        %v6897 = vadd.s32 %v6892, %v6896
        %v6898 = vadd.s32 %v6897, 536870912
        %v6899 = vshrl.u32 %v6898, 30
        %v6900 = vshll.u32 %v6899, 30
        %v6901 = vsub.s32 %v6897, %v6900
        %vm6902 = vcmp.lt.s32.totalorder %v6901, 0
        %v6903 = vsub.s32 0, %v6901
        %v6904 = vsel %vm6902, %v6903, %v6901
        %v6905 = vclz %v6904
        %v6906 = vsub.s32 %v6905, 2
        %vm6907 = vcmp.gt.s32.totalorder 0, %v6906
        %v6908 = vsel %vm6907, 0, %v6906
        %v6909 = vsub.s32 32, %v6908
        %v6910 = vshll.u32 %v6901, %v6908
        %v6911 = vshrl.u32 %v6893, %v6909
        %v6912 = vor.u32 %v6910, %v6911
        %v6913 = vsub.s32 4294967266, %v6908
        %v6914 = vadd.s32 %v6913, 127
        %v6915 = vshll.u32 %v6914, 23
        %v6916 = vor.u32 4788187, %v6915
        %v6917 = vand.u32 2147483647, %v6916
        %v6919 = vcvt.s32.f32 %v6912
        %v6920 = vmul.f32 %v6919, %v6917
        %v6921 = vxor.u32 %v6920, 2147483648
        %v6922 = vsel %vm6839, %v6921, %v6920
        %v6923 = vsub.s32 4, %v6899
        %v6924 = vsel %vm6839, %v6923, %v6899
        %v6925 = vsel %vm6838, %v1605, %v6922
        %v6926 = vsel %vm6838, 0, %v6924
        %v6927 = vcosq.f32.pop %v6925
        %v6928 = vsinq.f32.pop %v6925
        %vm6929 = vweird.f32 %v1605
        %v6930 = vand.u32 %v6926, 3
        %vm6931 = vcmp.lt.s32.totalorder %v6930, 2
        %vm6932 = vcmp.eq.s32.totalorder %v6930, 0
        %v6933 = vxor.u32 %v6928, 2147483648
        %v6934 = vsel %vm6932, %v6927, %v6933
        %vm6935 = vcmp.eq.s32.totalorder %v6930, 2
        %v6936 = vxor.u32 %v6927, 2147483648
        %v6937 = vsel %vm6935, %v6936, %v6928
        %v6938 = vsel %vm6931, %v6934, %v6937
        %v6939 = vsel %vm6929, nan, %v6938
        %v6940 = vand.u32 2147483647, %v1606
        %vm6941 = vcmp.le.f32.partialorder %v6940, 0.7853982
        %vm6942 = vcmp.lt.s32.totalorder %v1606, 0
        %v6943 = vand.u32 %v1606, 2139095040
        %v6944 = vshrl.u32 %v6943, 23
        %v6945 = vsub.s32 %v6944, 127
        %v6946 = vand.u32 2147483647, %v1606
        %v6947 = vand.u32 %v6946, 8388607
        %v6948 = vor.u32 %v6947, 8388608
        %v6949 = vsub.s32 0, %v6948
        %v6950 = vadd.s32 %v6945, 1
        %vm6951 = vcmp.gt.s32.totalorder %v6950, 0
        %v6952 = vsel %vm6951, %v6950, 0
        %v6953 = vshrl.u32 %v6952, 5
        %v6954 = vand.u32 %v6952, 31
        %v6955 = vsub.s32 32, %v6954
        %v6956 = vshrl.u32 683565275, %v6955
        %v6957 = vshll.u32 683565275, %v6954
        %v6958 = vshrl.u32 2475754826, %v6955
        %v6959 = vor.u32 %v6957, %v6958
        %v6960 = vshll.u32 2475754826, %v6954
        %v6961 = vshrl.u32 2131351028, %v6955
        %v6962 = vor.u32 %v6960, %v6961
        %v6963 = vshll.u32 2131351028, %v6954
        %v6964 = vshrl.u32 2102212464, %v6955
        %v6965 = vor.u32 %v6963, %v6964
        %v6966 = vshll.u32 2102212464, %v6954
        %v6967 = vshrl.u32 920167782, %v6955
        %v6968 = vor.u32 %v6966, %v6967
        %v6969 = vshll.u32 920167782, %v6954
        %v6970 = vshrl.u32 1326507024, %v6955
        %v6971 = vor.u32 %v6969, %v6970
        %vm6972 = vcmp.lt.s32.totalorder %v6953, 1
        %vm6973 = vcmp.lt.s32.totalorder %v6953, 2
        %vm6974 = vcmp.lt.s32.totalorder %v6953, 3
        %vm6975 = vcmp.lt.s32.totalorder %v6953, 4
        %v6976 = vsel %vm6972, %v6956, %v6959
        %v6977 = vsel %vm6975, %v6965, 2102212464
        %v6978 = vsel %vm6974, %v6962, %v6977
        %v6979 = vsel %vm6973, %v6976, %v6978
        %v6980 = vsel %vm6972, %v6959, %v6962
        %v6981 = vsel %vm6975, %v6968, 920167782
        %v6982 = vsel %vm6974, %v6965, %v6981
        %v6983 = vsel %vm6973, %v6980, %v6982
        %v6984 = vsel %vm6972, %v6962, %v6965
        %v6985 = vsel %vm6975, %v6971, 1326507024
        %v6986 = vsel %vm6974, %v6968, %v6985
        %v6987 = vsel %vm6973, %v6984, %v6986
        %v6988 = vshll.u32 %v6948, 8
        %v6989 = vmul.u32.u64.compose %v6988, %v6987
        %v6990 = vextract.low.u32 %v6989
        %v6991 = vextract.high.u32 %v6989
        %v6992 = vmul.u32.u64.compose %v6988, %v6983
        %v6993 = vextract.low.u32 %v6992
        %v6994 = vextract.high.u32 %v6992
        %v6995 = vmul.u32 %v6988, %v6979
        %v6996 = vadd.s32 %v6991, %v6993
        %vm6997 = vc.u32 %v6991, %v6993
        %v6998 = vadd.s32 %v6994, 1
        %v6999 = vsel %vm6997, %v6998, %v6994
        %v7000 = vadd.s32 %v6995, %v6999
        %v7001 = vadd.s32 %v7000, 536870912
        %v7002 = vshrl.u32 %v7001, 30
        %v7003 = vshll.u32 %v7002, 30
        %v7004 = vsub.s32 %v7000, %v7003
        %vm7005 = vcmp.lt.s32.totalorder %v7004, 0
        %v7006 = vsub.s32 0, %v7004
        %v7007 = vsel %vm7005, %v7006, %v7004
        %v7008 = vclz %v7007
        %v7009 = vsub.s32 %v7008, 2
        %vm7010 = vcmp.gt.s32.totalorder 0, %v7009
        %v7011 = vsel %vm7010, 0, %v7009
        %v7012 = vsub.s32 32, %v7011
        %v7013 = vshll.u32 %v7004, %v7011
        %v7014 = vshrl.u32 %v6996, %v7012
        %v7015 = vor.u32 %v7013, %v7014
        %v7016 = vsub.s32 4294967266, %v7011
        %v7017 = vadd.s32 %v7016, 127
        %v7018 = vshll.u32 %v7017, 23
        %v7019 = vor.u32 4788187, %v7018
        %v7020 = vand.u32 2147483647, %v7019
        %v7022 = vcvt.s32.f32 %v7015
        %v7023 = vmul.f32 %v7022, %v7020
        %v7024 = vxor.u32 %v7023, 2147483648
        %v7025 = vsel %vm6942, %v7024, %v7023
        %v7026 = vsub.s32 4, %v7002
        %v7027 = vsel %vm6942, %v7026, %v7002
        %v7028 = vsel %vm6941, %v1606, %v7025
        %v7029 = vsel %vm6941, 0, %v7027
        %v7030 = vcosq.f32.pop %v7028
        %v7031 = vsinq.f32.pop %v7028
        %vm7032 = vweird.f32 %v1606
        %v7033 = vand.u32 %v7029, 3
        %vm7034 = vcmp.lt.s32.totalorder %v7033, 2
        %vm7035 = vcmp.eq.s32.totalorder %v7033, 0
        %v7036 = vxor.u32 %v7031, 2147483648
        %v7037 = vsel %vm7035, %v7030, %v7036
        %vm7038 = vcmp.eq.s32.totalorder %v7033, 2
        %v7039 = vxor.u32 %v7030, 2147483648
        %v7040 = vsel %vm7038, %v7039, %v7031
        %v7041 = vsel %vm7034, %v7037, %v7040
        %v7042 = vsel %vm7032, nan, %v7041
        %v7043 = vand.u32 2147483647, %v1607
        %vm7044 = vcmp.le.f32.partialorder %v7043, 0.7853982
        %vm7045 = vcmp.lt.s32.totalorder %v1607, 0
        %v7046 = vand.u32 %v1607, 2139095040
        %v7047 = vshrl.u32 %v7046, 23
        %v7048 = vsub.s32 %v7047, 127
        %v7049 = vand.u32 2147483647, %v1607
        %v7050 = vand.u32 %v7049, 8388607
        %v7051 = vor.u32 %v7050, 8388608
        %v7052 = vsub.s32 0, %v7051
        %v7053 = vadd.s32 %v7048, 1
        %vm7054 = vcmp.gt.s32.totalorder %v7053, 0
        %v7055 = vsel %vm7054, %v7053, 0
        %v7056 = vshrl.u32 %v7055, 5
        %v7057 = vand.u32 %v7055, 31
        %v7058 = vsub.s32 32, %v7057
        %v7059 = vshrl.u32 683565275, %v7058
        %v7060 = vshll.u32 683565275, %v7057
        %v7061 = vshrl.u32 2475754826, %v7058
        %v7062 = vor.u32 %v7060, %v7061
        %v7063 = vshll.u32 2475754826, %v7057
        %v7064 = vshrl.u32 2131351028, %v7058
        %v7065 = vor.u32 %v7063, %v7064
        %v7066 = vshll.u32 2131351028, %v7057
        %v7067 = vshrl.u32 2102212464, %v7058
        %v7068 = vor.u32 %v7066, %v7067
        %v7069 = vshll.u32 2102212464, %v7057
        %v7070 = vshrl.u32 920167782, %v7058
        %v7071 = vor.u32 %v7069, %v7070
        %v7072 = vshll.u32 920167782, %v7057
        %v7073 = vshrl.u32 1326507024, %v7058
        %v7074 = vor.u32 %v7072, %v7073
        %vm7075 = vcmp.lt.s32.totalorder %v7056, 1
        %vm7076 = vcmp.lt.s32.totalorder %v7056, 2
        %vm7077 = vcmp.lt.s32.totalorder %v7056, 3
        %vm7078 = vcmp.lt.s32.totalorder %v7056, 4
        %v7079 = vsel %vm7075, %v7059, %v7062
        %v7080 = vsel %vm7078, %v7068, 2102212464
        %v7081 = vsel %vm7077, %v7065, %v7080
        %v7082 = vsel %vm7076, %v7079, %v7081
        %v7083 = vsel %vm7075, %v7062, %v7065
        %v7084 = vsel %vm7078, %v7071, 920167782
        %v7085 = vsel %vm7077, %v7068, %v7084
        %v7086 = vsel %vm7076, %v7083, %v7085
        %v7087 = vsel %vm7075, %v7065, %v7068
        %v7088 = vsel %vm7078, %v7074, 1326507024
        %v7089 = vsel %vm7077, %v7071, %v7088
        %v7090 = vsel %vm7076, %v7087, %v7089
        %v7091 = vshll.u32 %v7051, 8
        %v7092 = vmul.u32.u64.compose %v7091, %v7090
        %v7093 = vextract.low.u32 %v7092
        %v7094 = vextract.high.u32 %v7092
        %v7095 = vmul.u32.u64.compose %v7091, %v7086
        %v7096 = vextract.low.u32 %v7095
        %v7097 = vextract.high.u32 %v7095
        %v7098 = vmul.u32 %v7091, %v7082
        %v7099 = vadd.s32 %v7094, %v7096
        %vm7100 = vc.u32 %v7094, %v7096
        %v7101 = vadd.s32 %v7097, 1
        %v7102 = vsel %vm7100, %v7101, %v7097
        %v7103 = vadd.s32 %v7098, %v7102
        %v7104 = vadd.s32 %v7103, 536870912
        %v7105 = vshrl.u32 %v7104, 30
        %v7106 = vshll.u32 %v7105, 30
        %v7107 = vsub.s32 %v7103, %v7106
        %vm7108 = vcmp.lt.s32.totalorder %v7107, 0
        %v7109 = vsub.s32 0, %v7107
        %v7110 = vsel %vm7108, %v7109, %v7107
        %v7111 = vclz %v7110
        %v7112 = vsub.s32 %v7111, 2
        %vm7113 = vcmp.gt.s32.totalorder 0, %v7112
        %v7114 = vsel %vm7113, 0, %v7112
        %v7115 = vsub.s32 32, %v7114
        %v7116 = vshll.u32 %v7107, %v7114
        %v7117 = vshrl.u32 %v7099, %v7115
        %v7118 = vor.u32 %v7116, %v7117
        %v7119 = vsub.s32 4294967266, %v7114
        %v7120 = vadd.s32 %v7119, 127
        %v7121 = vshll.u32 %v7120, 23
        %v7122 = vor.u32 4788187, %v7121
        %v7123 = vand.u32 2147483647, %v7122
        %v7125 = vcvt.s32.f32 %v7118
        %v7126 = vmul.f32 %v7125, %v7123
        %v7127 = vxor.u32 %v7126, 2147483648
        %v7128 = vsel %vm7045, %v7127, %v7126
        %v7129 = vsub.s32 4, %v7105
        %v7130 = vsel %vm7045, %v7129, %v7105
        %v7131 = vsel %vm7044, %v1607, %v7128
        %v7132 = vsel %vm7044, 0, %v7130
        %v7133 = vcosq.f32.pop %v7131
        %v7134 = vsinq.f32.pop %v7131
        %vm7135 = vweird.f32 %v1607
        %v7136 = vand.u32 %v7132, 3
        %vm7137 = vcmp.lt.s32.totalorder %v7136, 2
        %vm7138 = vcmp.eq.s32.totalorder %v7136, 0
        %v7139 = vxor.u32 %v7134, 2147483648
        %v7140 = vsel %vm7138, %v7133, %v7139
        %vm7141 = vcmp.eq.s32.totalorder %v7136, 2
        %v7142 = vxor.u32 %v7133, 2147483648
        %v7143 = vsel %vm7141, %v7142, %v7134
        %v7144 = vsel %vm7137, %v7140, %v7143
        %v7145 = vsel %vm7135, nan, %v7144
        %v7146 = vand.u32 2147483647, %v1608
        %vm7147 = vcmp.le.f32.partialorder %v7146, 0.7853982
        %vm7148 = vcmp.lt.s32.totalorder %v1608, 0
        %v7149 = vand.u32 %v1608, 2139095040
        %v7150 = vshrl.u32 %v7149, 23
        %v7151 = vsub.s32 %v7150, 127
        %v7152 = vand.u32 2147483647, %v1608
        %v7153 = vand.u32 %v7152, 8388607
        %v7154 = vor.u32 %v7153, 8388608
        %v7155 = vsub.s32 0, %v7154
        %v7156 = vadd.s32 %v7151, 1
        %vm7157 = vcmp.gt.s32.totalorder %v7156, 0
        %v7158 = vsel %vm7157, %v7156, 0
        %v7159 = vshrl.u32 %v7158, 5
        %v7160 = vand.u32 %v7158, 31
        %v7161 = vsub.s32 32, %v7160
        %v7162 = vshrl.u32 683565275, %v7161
        %v7163 = vshll.u32 683565275, %v7160
        %v7164 = vshrl.u32 2475754826, %v7161
        %v7165 = vor.u32 %v7163, %v7164
        %v7166 = vshll.u32 2475754826, %v7160
        %v7167 = vshrl.u32 2131351028, %v7161
        %v7168 = vor.u32 %v7166, %v7167
        %v7169 = vshll.u32 2131351028, %v7160
        %v7170 = vshrl.u32 2102212464, %v7161
        %v7171 = vor.u32 %v7169, %v7170
        %v7172 = vshll.u32 2102212464, %v7160
        %v7173 = vshrl.u32 920167782, %v7161
        %v7174 = vor.u32 %v7172, %v7173
        %v7175 = vshll.u32 920167782, %v7160
        %v7176 = vshrl.u32 1326507024, %v7161
        %v7177 = vor.u32 %v7175, %v7176
        %vm7178 = vcmp.lt.s32.totalorder %v7159, 1
        %vm7179 = vcmp.lt.s32.totalorder %v7159, 2
        %vm7180 = vcmp.lt.s32.totalorder %v7159, 3
        %vm7181 = vcmp.lt.s32.totalorder %v7159, 4
        %v7182 = vsel %vm7178, %v7162, %v7165
        %v7183 = vsel %vm7181, %v7171, 2102212464
        %v7184 = vsel %vm7180, %v7168, %v7183
        %v7185 = vsel %vm7179, %v7182, %v7184
        %v7186 = vsel %vm7178, %v7165, %v7168
        %v7187 = vsel %vm7181, %v7174, 920167782
        %v7188 = vsel %vm7180, %v7171, %v7187
        %v7189 = vsel %vm7179, %v7186, %v7188
        %v7190 = vsel %vm7178, %v7168, %v7171
        %v7191 = vsel %vm7181, %v7177, 1326507024
        %v7192 = vsel %vm7180, %v7174, %v7191
        %v7193 = vsel %vm7179, %v7190, %v7192
        %v7194 = vshll.u32 %v7154, 8
        %v7195 = vmul.u32.u64.compose %v7194, %v7193
        %v7196 = vextract.low.u32 %v7195
        %v7197 = vextract.high.u32 %v7195
        %v7198 = vmul.u32.u64.compose %v7194, %v7189
        %v7199 = vextract.low.u32 %v7198
        %v7200 = vextract.high.u32 %v7198
        %v7201 = vmul.u32 %v7194, %v7185
        %v7202 = vadd.s32 %v7197, %v7199
        %vm7203 = vc.u32 %v7197, %v7199
        %v7204 = vadd.s32 %v7200, 1
        %v7205 = vsel %vm7203, %v7204, %v7200
        %v7206 = vadd.s32 %v7201, %v7205
        %v7207 = vadd.s32 %v7206, 536870912
        %v7208 = vshrl.u32 %v7207, 30
        %v7209 = vshll.u32 %v7208, 30
        %v7210 = vsub.s32 %v7206, %v7209
        %vm7211 = vcmp.lt.s32.totalorder %v7210, 0
        %v7212 = vsub.s32 0, %v7210
        %v7213 = vsel %vm7211, %v7212, %v7210
        %v7214 = vclz %v7213
        %v7215 = vsub.s32 %v7214, 2
        %vm7216 = vcmp.gt.s32.totalorder 0, %v7215
        %v7217 = vsel %vm7216, 0, %v7215
        %v7218 = vsub.s32 32, %v7217
        %v7219 = vshll.u32 %v7210, %v7217
        %v7220 = vshrl.u32 %v7202, %v7218
        %v7221 = vor.u32 %v7219, %v7220
        %v7222 = vsub.s32 4294967266, %v7217
        %v7223 = vadd.s32 %v7222, 127
        %v7224 = vshll.u32 %v7223, 23
        %v7225 = vor.u32 4788187, %v7224
        %v7226 = vand.u32 2147483647, %v7225
        %v7228 = vcvt.s32.f32 %v7221
        %v7229 = vmul.f32 %v7228, %v7226
        %v7230 = vxor.u32 %v7229, 2147483648
        %v7231 = vsel %vm7148, %v7230, %v7229
        %v7232 = vsub.s32 4, %v7208
        %v7233 = vsel %vm7148, %v7232, %v7208
        %v7234 = vsel %vm7147, %v1608, %v7231
        %v7235 = vsel %vm7147, 0, %v7233
        %v7236 = vcosq.f32.pop %v7234
        %v7237 = vsinq.f32.pop %v7234
        %vm7238 = vweird.f32 %v1608
        %v7239 = vand.u32 %v7235, 3
        %vm7240 = vcmp.lt.s32.totalorder %v7239, 2
        %vm7241 = vcmp.eq.s32.totalorder %v7239, 0
        %v7242 = vxor.u32 %v7237, 2147483648
        %v7243 = vsel %vm7241, %v7236, %v7242
        %vm7244 = vcmp.eq.s32.totalorder %v7239, 2
        %v7245 = vxor.u32 %v7236, 2147483648
        %v7246 = vsel %vm7244, %v7245, %v7237
        %v7247 = vsel %vm7240, %v7243, %v7246
        %v7248 = vsel %vm7238, nan, %v7247
        %v7249 = vand.u32 2147483647, %v1609
        %vm7250 = vcmp.le.f32.partialorder %v7249, 0.7853982
        %vm7251 = vcmp.lt.s32.totalorder %v1609, 0
        %v7252 = vand.u32 %v1609, 2139095040
        %v7253 = vshrl.u32 %v7252, 23
        %v7254 = vsub.s32 %v7253, 127
        %v7255 = vand.u32 2147483647, %v1609
        %v7256 = vand.u32 %v7255, 8388607
        %v7257 = vor.u32 %v7256, 8388608
        %v7258 = vsub.s32 0, %v7257
        %v7259 = vadd.s32 %v7254, 1
        %vm7260 = vcmp.gt.s32.totalorder %v7259, 0
        %v7261 = vsel %vm7260, %v7259, 0
        %v7262 = vshrl.u32 %v7261, 5
        %v7263 = vand.u32 %v7261, 31
        %v7264 = vsub.s32 32, %v7263
        %v7265 = vshrl.u32 683565275, %v7264
        %v7266 = vshll.u32 683565275, %v7263
        %v7267 = vshrl.u32 2475754826, %v7264
        %v7268 = vor.u32 %v7266, %v7267
        %v7269 = vshll.u32 2475754826, %v7263
        %v7270 = vshrl.u32 2131351028, %v7264
        %v7271 = vor.u32 %v7269, %v7270
        %v7272 = vshll.u32 2131351028, %v7263
        %v7273 = vshrl.u32 2102212464, %v7264
        %v7274 = vor.u32 %v7272, %v7273
        %v7275 = vshll.u32 2102212464, %v7263
        %v7276 = vshrl.u32 920167782, %v7264
        %v7277 = vor.u32 %v7275, %v7276
        %v7278 = vshll.u32 920167782, %v7263
        %v7279 = vshrl.u32 1326507024, %v7264
        %v7280 = vor.u32 %v7278, %v7279
        %vm7281 = vcmp.lt.s32.totalorder %v7262, 1
        %vm7282 = vcmp.lt.s32.totalorder %v7262, 2
        %vm7283 = vcmp.lt.s32.totalorder %v7262, 3
        %vm7284 = vcmp.lt.s32.totalorder %v7262, 4
        %v7285 = vsel %vm7281, %v7265, %v7268
        %v7286 = vsel %vm7284, %v7274, 2102212464
        %v7287 = vsel %vm7283, %v7271, %v7286
        %v7288 = vsel %vm7282, %v7285, %v7287
        %v7289 = vsel %vm7281, %v7268, %v7271
        %v7290 = vsel %vm7284, %v7277, 920167782
        %v7291 = vsel %vm7283, %v7274, %v7290
        %v7292 = vsel %vm7282, %v7289, %v7291
        %v7293 = vsel %vm7281, %v7271, %v7274
        %v7294 = vsel %vm7284, %v7280, 1326507024
        %v7295 = vsel %vm7283, %v7277, %v7294
        %v7296 = vsel %vm7282, %v7293, %v7295
        %v7297 = vshll.u32 %v7257, 8
        %v7298 = vmul.u32.u64.compose %v7297, %v7296
        %v7299 = vextract.low.u32 %v7298
        %v7300 = vextract.high.u32 %v7298
        %v7301 = vmul.u32.u64.compose %v7297, %v7292
        %v7302 = vextract.low.u32 %v7301
        %v7303 = vextract.high.u32 %v7301
        %v7304 = vmul.u32 %v7297, %v7288
        %v7305 = vadd.s32 %v7300, %v7302
        %vm7306 = vc.u32 %v7300, %v7302
        %v7307 = vadd.s32 %v7303, 1
        %v7308 = vsel %vm7306, %v7307, %v7303
        %v7309 = vadd.s32 %v7304, %v7308
        %v7310 = vadd.s32 %v7309, 536870912
        %v7311 = vshrl.u32 %v7310, 30
        %v7312 = vshll.u32 %v7311, 30
        %v7313 = vsub.s32 %v7309, %v7312
        %vm7314 = vcmp.lt.s32.totalorder %v7313, 0
        %v7315 = vsub.s32 0, %v7313
        %v7316 = vsel %vm7314, %v7315, %v7313
        %v7317 = vclz %v7316
        %v7318 = vsub.s32 %v7317, 2
        %vm7319 = vcmp.gt.s32.totalorder 0, %v7318
        %v7320 = vsel %vm7319, 0, %v7318
        %v7321 = vsub.s32 32, %v7320
        %v7322 = vshll.u32 %v7313, %v7320
        %v7323 = vshrl.u32 %v7305, %v7321
        %v7324 = vor.u32 %v7322, %v7323
        %v7325 = vsub.s32 4294967266, %v7320
        %v7326 = vadd.s32 %v7325, 127
        %v7327 = vshll.u32 %v7326, 23
        %v7328 = vor.u32 4788187, %v7327
        %v7329 = vand.u32 2147483647, %v7328
        %v7331 = vcvt.s32.f32 %v7324
        %v7332 = vmul.f32 %v7331, %v7329
        %v7333 = vxor.u32 %v7332, 2147483648
        %v7334 = vsel %vm7251, %v7333, %v7332
        %v7335 = vsub.s32 4, %v7311
        %v7336 = vsel %vm7251, %v7335, %v7311
        %v7337 = vsel %vm7250, %v1609, %v7334
        %v7338 = vsel %vm7250, 0, %v7336
        %v7339 = vcosq.f32.pop %v7337
        %v7340 = vsinq.f32.pop %v7337
        %vm7341 = vweird.f32 %v1609
        %v7342 = vand.u32 %v7338, 3
        %vm7343 = vcmp.lt.s32.totalorder %v7342, 2
        %vm7344 = vcmp.eq.s32.totalorder %v7342, 0
        %v7345 = vxor.u32 %v7340, 2147483648
        %v7346 = vsel %vm7344, %v7339, %v7345
        %vm7347 = vcmp.eq.s32.totalorder %v7342, 2
        %v7348 = vxor.u32 %v7339, 2147483648
        %v7349 = vsel %vm7347, %v7348, %v7340
        %v7350 = vsel %vm7343, %v7346, %v7349
        %v7351 = vsel %vm7341, nan, %v7350
        %v7352 = vand.u32 2147483647, %v1610
        %vm7353 = vcmp.le.f32.partialorder %v7352, 0.7853982
        %vm7354 = vcmp.lt.s32.totalorder %v1610, 0
        %v7355 = vand.u32 %v1610, 2139095040
        %v7356 = vshrl.u32 %v7355, 23
        %v7357 = vsub.s32 %v7356, 127
        %v7358 = vand.u32 2147483647, %v1610
        %v7359 = vand.u32 %v7358, 8388607
        %v7360 = vor.u32 %v7359, 8388608
        %v7361 = vsub.s32 0, %v7360
        %v7362 = vadd.s32 %v7357, 1
        %vm7363 = vcmp.gt.s32.totalorder %v7362, 0
        %v7364 = vsel %vm7363, %v7362, 0
        %v7365 = vshrl.u32 %v7364, 5
        %v7366 = vand.u32 %v7364, 31
        %v7367 = vsub.s32 32, %v7366
        %v7368 = vshrl.u32 683565275, %v7367
        %v7369 = vshll.u32 683565275, %v7366
        %v7370 = vshrl.u32 2475754826, %v7367
        %v7371 = vor.u32 %v7369, %v7370
        %v7372 = vshll.u32 2475754826, %v7366
        %v7373 = vshrl.u32 2131351028, %v7367
        %v7374 = vor.u32 %v7372, %v7373
        %v7375 = vshll.u32 2131351028, %v7366
        %v7376 = vshrl.u32 2102212464, %v7367
        %v7377 = vor.u32 %v7375, %v7376
        %v7378 = vshll.u32 2102212464, %v7366
        %v7379 = vshrl.u32 920167782, %v7367
        %v7380 = vor.u32 %v7378, %v7379
        %v7381 = vshll.u32 920167782, %v7366
        %v7382 = vshrl.u32 1326507024, %v7367
        %v7383 = vor.u32 %v7381, %v7382
        %vm7384 = vcmp.lt.s32.totalorder %v7365, 1
        %vm7385 = vcmp.lt.s32.totalorder %v7365, 2
        %vm7386 = vcmp.lt.s32.totalorder %v7365, 3
        %vm7387 = vcmp.lt.s32.totalorder %v7365, 4
        %v7388 = vsel %vm7384, %v7368, %v7371
        %v7389 = vsel %vm7387, %v7377, 2102212464
        %v7390 = vsel %vm7386, %v7374, %v7389
        %v7391 = vsel %vm7385, %v7388, %v7390
        %v7392 = vsel %vm7384, %v7371, %v7374
        %v7393 = vsel %vm7387, %v7380, 920167782
        %v7394 = vsel %vm7386, %v7377, %v7393
        %v7395 = vsel %vm7385, %v7392, %v7394
        %v7396 = vsel %vm7384, %v7374, %v7377
        %v7397 = vsel %vm7387, %v7383, 1326507024
        %v7398 = vsel %vm7386, %v7380, %v7397
        %v7399 = vsel %vm7385, %v7396, %v7398
        %v7400 = vshll.u32 %v7360, 8
        %v7401 = vmul.u32.u64.compose %v7400, %v7399
        %v7402 = vextract.low.u32 %v7401
        %v7403 = vextract.high.u32 %v7401
        %v7404 = vmul.u32.u64.compose %v7400, %v7395
        %v7405 = vextract.low.u32 %v7404
        %v7406 = vextract.high.u32 %v7404
        %v7407 = vmul.u32 %v7400, %v7391
        %v7408 = vadd.s32 %v7403, %v7405
        %vm7409 = vc.u32 %v7403, %v7405
        %v7410 = vadd.s32 %v7406, 1
        %v7411 = vsel %vm7409, %v7410, %v7406
        %v7412 = vadd.s32 %v7407, %v7411
        %v7413 = vadd.s32 %v7412, 536870912
        %v7414 = vshrl.u32 %v7413, 30
        %v7415 = vshll.u32 %v7414, 30
        %v7416 = vsub.s32 %v7412, %v7415
        %vm7417 = vcmp.lt.s32.totalorder %v7416, 0
        %v7418 = vsub.s32 0, %v7416
        %v7419 = vsel %vm7417, %v7418, %v7416
        %v7420 = vclz %v7419
        %v7421 = vsub.s32 %v7420, 2
        %vm7422 = vcmp.gt.s32.totalorder 0, %v7421
        %v7423 = vsel %vm7422, 0, %v7421
        %v7424 = vsub.s32 32, %v7423
        %v7425 = vshll.u32 %v7416, %v7423
        %v7426 = vshrl.u32 %v7408, %v7424
        %v7427 = vor.u32 %v7425, %v7426
        %v7428 = vsub.s32 4294967266, %v7423
        %v7429 = vadd.s32 %v7428, 127
        %v7430 = vshll.u32 %v7429, 23
        %v7431 = vor.u32 4788187, %v7430
        %v7432 = vand.u32 2147483647, %v7431
        %v7434 = vcvt.s32.f32 %v7427
        %v7435 = vmul.f32 %v7434, %v7432
        %v7436 = vxor.u32 %v7435, 2147483648
        %v7437 = vsel %vm7354, %v7436, %v7435
        %v7438 = vsub.s32 4, %v7414
        %v7439 = vsel %vm7354, %v7438, %v7414
        %v7440 = vsel %vm7353, %v1610, %v7437
        %v7441 = vsel %vm7353, 0, %v7439
        %v7442 = vcosq.f32.pop %v7440
        %v7443 = vsinq.f32.pop %v7440
        %vm7444 = vweird.f32 %v1610
        %v7445 = vand.u32 %v7441, 3
        %vm7446 = vcmp.lt.s32.totalorder %v7445, 2
        %vm7447 = vcmp.eq.s32.totalorder %v7445, 0
        %v7448 = vxor.u32 %v7443, 2147483648
        %v7449 = vsel %vm7447, %v7442, %v7448
        %vm7450 = vcmp.eq.s32.totalorder %v7445, 2
        %v7451 = vxor.u32 %v7442, 2147483648
        %v7452 = vsel %vm7450, %v7451, %v7443
        %v7453 = vsel %vm7446, %v7449, %v7452
        %v7454 = vsel %vm7444, nan, %v7453
        %v7455 = vand.u32 2147483647, %v1611
        %vm7456 = vcmp.le.f32.partialorder %v7455, 0.7853982
        %vm7457 = vcmp.lt.s32.totalorder %v1611, 0
        %v7458 = vand.u32 %v1611, 2139095040
        %v7459 = vshrl.u32 %v7458, 23
        %v7460 = vsub.s32 %v7459, 127
        %v7461 = vand.u32 2147483647, %v1611
        %v7462 = vand.u32 %v7461, 8388607
        %v7463 = vor.u32 %v7462, 8388608
        %v7464 = vsub.s32 0, %v7463
        %v7465 = vadd.s32 %v7460, 1
        %vm7466 = vcmp.gt.s32.totalorder %v7465, 0
        %v7467 = vsel %vm7466, %v7465, 0
        %v7468 = vshrl.u32 %v7467, 5
        %v7469 = vand.u32 %v7467, 31
        %v7470 = vsub.s32 32, %v7469
        %v7471 = vshrl.u32 683565275, %v7470
        %v7472 = vshll.u32 683565275, %v7469
        %v7473 = vshrl.u32 2475754826, %v7470
        %v7474 = vor.u32 %v7472, %v7473
        %v7475 = vshll.u32 2475754826, %v7469
        %v7476 = vshrl.u32 2131351028, %v7470
        %v7477 = vor.u32 %v7475, %v7476
        %v7478 = vshll.u32 2131351028, %v7469
        %v7479 = vshrl.u32 2102212464, %v7470
        %v7480 = vor.u32 %v7478, %v7479
        %v7481 = vshll.u32 2102212464, %v7469
        %v7482 = vshrl.u32 920167782, %v7470
        %v7483 = vor.u32 %v7481, %v7482
        %v7484 = vshll.u32 920167782, %v7469
        %v7485 = vshrl.u32 1326507024, %v7470
        %v7486 = vor.u32 %v7484, %v7485
        %vm7487 = vcmp.lt.s32.totalorder %v7468, 1
        %vm7488 = vcmp.lt.s32.totalorder %v7468, 2
        %vm7489 = vcmp.lt.s32.totalorder %v7468, 3
        %vm7490 = vcmp.lt.s32.totalorder %v7468, 4
        %v7491 = vsel %vm7487, %v7471, %v7474
        %v7492 = vsel %vm7490, %v7480, 2102212464
        %v7493 = vsel %vm7489, %v7477, %v7492
        %v7494 = vsel %vm7488, %v7491, %v7493
        %v7495 = vsel %vm7487, %v7474, %v7477
        %v7496 = vsel %vm7490, %v7483, 920167782
        %v7497 = vsel %vm7489, %v7480, %v7496
        %v7498 = vsel %vm7488, %v7495, %v7497
        %v7499 = vsel %vm7487, %v7477, %v7480
        %v7500 = vsel %vm7490, %v7486, 1326507024
        %v7501 = vsel %vm7489, %v7483, %v7500
        %v7502 = vsel %vm7488, %v7499, %v7501
        %v7503 = vshll.u32 %v7463, 8
        %v7504 = vmul.u32.u64.compose %v7503, %v7502
        %v7505 = vextract.low.u32 %v7504
        %v7506 = vextract.high.u32 %v7504
        %v7507 = vmul.u32.u64.compose %v7503, %v7498
        %v7508 = vextract.low.u32 %v7507
        %v7509 = vextract.high.u32 %v7507
        %v7510 = vmul.u32 %v7503, %v7494
        %v7511 = vadd.s32 %v7506, %v7508
        %vm7512 = vc.u32 %v7506, %v7508
        %v7513 = vadd.s32 %v7509, 1
        %v7514 = vsel %vm7512, %v7513, %v7509
        %v7515 = vadd.s32 %v7510, %v7514
        %v7516 = vadd.s32 %v7515, 536870912
        %v7517 = vshrl.u32 %v7516, 30
        %v7518 = vshll.u32 %v7517, 30
        %v7519 = vsub.s32 %v7515, %v7518
        %vm7520 = vcmp.lt.s32.totalorder %v7519, 0
        %v7521 = vsub.s32 0, %v7519
        %v7522 = vsel %vm7520, %v7521, %v7519
        %v7523 = vclz %v7522
        %v7524 = vsub.s32 %v7523, 2
        %vm7525 = vcmp.gt.s32.totalorder 0, %v7524
        %v7526 = vsel %vm7525, 0, %v7524
        %v7527 = vsub.s32 32, %v7526
        %v7528 = vshll.u32 %v7519, %v7526
        %v7529 = vshrl.u32 %v7511, %v7527
        %v7530 = vor.u32 %v7528, %v7529
        %v7531 = vsub.s32 4294967266, %v7526
        %v7532 = vadd.s32 %v7531, 127
        %v7533 = vshll.u32 %v7532, 23
        %v7534 = vor.u32 4788187, %v7533
        %v7535 = vand.u32 2147483647, %v7534
        %v7537 = vcvt.s32.f32 %v7530
        %v7538 = vmul.f32 %v7537, %v7535
        %v7539 = vxor.u32 %v7538, 2147483648
        %v7540 = vsel %vm7457, %v7539, %v7538
        %v7541 = vsub.s32 4, %v7517
        %v7542 = vsel %vm7457, %v7541, %v7517
        %v7543 = vsel %vm7456, %v1611, %v7540
        %v7544 = vsel %vm7456, 0, %v7542
        %v7545 = vcosq.f32.pop %v7543
        %v7546 = vsinq.f32.pop %v7543
        %vm7547 = vweird.f32 %v1611
        %v7548 = vand.u32 %v7544, 3
        %vm7549 = vcmp.lt.s32.totalorder %v7548, 2
        %vm7550 = vcmp.eq.s32.totalorder %v7548, 0
        %v7551 = vxor.u32 %v7546, 2147483648
        %v7552 = vsel %vm7550, %v7545, %v7551
        %vm7553 = vcmp.eq.s32.totalorder %v7548, 2
        %v7554 = vxor.u32 %v7545, 2147483648
        %v7555 = vsel %vm7553, %v7554, %v7546
        %v7556 = vsel %vm7549, %v7552, %v7555
        %v7557 = vsel %vm7547, nan, %v7556
        %v7558 = vand.u32 2147483647, %v1612
        %vm7559 = vcmp.le.f32.partialorder %v7558, 0.7853982
        %vm7560 = vcmp.lt.s32.totalorder %v1612, 0
        %v7561 = vand.u32 %v1612, 2139095040
        %v7562 = vshrl.u32 %v7561, 23
        %v7563 = vsub.s32 %v7562, 127
        %v7564 = vand.u32 2147483647, %v1612
        %v7565 = vand.u32 %v7564, 8388607
        %v7566 = vor.u32 %v7565, 8388608
        %v7567 = vsub.s32 0, %v7566
        %v7568 = vadd.s32 %v7563, 1
        %vm7569 = vcmp.gt.s32.totalorder %v7568, 0
        %v7570 = vsel %vm7569, %v7568, 0
        %v7571 = vshrl.u32 %v7570, 5
        %v7572 = vand.u32 %v7570, 31
        %v7573 = vsub.s32 32, %v7572
        %v7574 = vshrl.u32 683565275, %v7573
        %v7575 = vshll.u32 683565275, %v7572
        %v7576 = vshrl.u32 2475754826, %v7573
        %v7577 = vor.u32 %v7575, %v7576
        %v7578 = vshll.u32 2475754826, %v7572
        %v7579 = vshrl.u32 2131351028, %v7573
        %v7580 = vor.u32 %v7578, %v7579
        %v7581 = vshll.u32 2131351028, %v7572
        %v7582 = vshrl.u32 2102212464, %v7573
        %v7583 = vor.u32 %v7581, %v7582
        %v7584 = vshll.u32 2102212464, %v7572
        %v7585 = vshrl.u32 920167782, %v7573
        %v7586 = vor.u32 %v7584, %v7585
        %v7587 = vshll.u32 920167782, %v7572
        %v7588 = vshrl.u32 1326507024, %v7573
        %v7589 = vor.u32 %v7587, %v7588
        %vm7590 = vcmp.lt.s32.totalorder %v7571, 1
        %vm7591 = vcmp.lt.s32.totalorder %v7571, 2
        %vm7592 = vcmp.lt.s32.totalorder %v7571, 3
        %vm7593 = vcmp.lt.s32.totalorder %v7571, 4
        %v7594 = vsel %vm7590, %v7574, %v7577
        %v7595 = vsel %vm7593, %v7583, 2102212464
        %v7596 = vsel %vm7592, %v7580, %v7595
        %v7597 = vsel %vm7591, %v7594, %v7596
        %v7598 = vsel %vm7590, %v7577, %v7580
        %v7599 = vsel %vm7593, %v7586, 920167782
        %v7600 = vsel %vm7592, %v7583, %v7599
        %v7601 = vsel %vm7591, %v7598, %v7600
        %v7602 = vsel %vm7590, %v7580, %v7583
        %v7603 = vsel %vm7593, %v7589, 1326507024
        %v7604 = vsel %vm7592, %v7586, %v7603
        %v7605 = vsel %vm7591, %v7602, %v7604
        %v7606 = vshll.u32 %v7566, 8
        %v7607 = vmul.u32.u64.compose %v7606, %v7605
        %v7608 = vextract.low.u32 %v7607
        %v7609 = vextract.high.u32 %v7607
        %v7610 = vmul.u32.u64.compose %v7606, %v7601
        %v7611 = vextract.low.u32 %v7610
        %v7612 = vextract.high.u32 %v7610
        %v7613 = vmul.u32 %v7606, %v7597
        %v7614 = vadd.s32 %v7609, %v7611
        %vm7615 = vc.u32 %v7609, %v7611
        %v7616 = vadd.s32 %v7612, 1
        %v7617 = vsel %vm7615, %v7616, %v7612
        %v7618 = vadd.s32 %v7613, %v7617
        %v7619 = vadd.s32 %v7618, 536870912
        %v7620 = vshrl.u32 %v7619, 30
        %v7621 = vshll.u32 %v7620, 30
        %v7622 = vsub.s32 %v7618, %v7621
        %vm7623 = vcmp.lt.s32.totalorder %v7622, 0
        %v7624 = vsub.s32 0, %v7622
        %v7625 = vsel %vm7623, %v7624, %v7622
        %v7626 = vclz %v7625
        %v7627 = vsub.s32 %v7626, 2
        %vm7628 = vcmp.gt.s32.totalorder 0, %v7627
        %v7629 = vsel %vm7628, 0, %v7627
        %v7630 = vsub.s32 32, %v7629
        %v7631 = vshll.u32 %v7622, %v7629
        %v7632 = vshrl.u32 %v7614, %v7630
        %v7633 = vor.u32 %v7631, %v7632
        %v7634 = vsub.s32 4294967266, %v7629
        %v7635 = vadd.s32 %v7634, 127
        %v7636 = vshll.u32 %v7635, 23
        %v7637 = vor.u32 4788187, %v7636
        %v7638 = vand.u32 2147483647, %v7637
        %v7640 = vcvt.s32.f32 %v7633
        %v7641 = vmul.f32 %v7640, %v7638
        %v7642 = vxor.u32 %v7641, 2147483648
        %v7643 = vsel %vm7560, %v7642, %v7641
        %v7644 = vsub.s32 4, %v7620
        %v7645 = vsel %vm7560, %v7644, %v7620
        %v7646 = vsel %vm7559, %v1612, %v7643
        %v7647 = vsel %vm7559, 0, %v7645
        %v7648 = vcosq.f32.pop %v7646
        %v7649 = vsinq.f32.pop %v7646
        %vm7650 = vweird.f32 %v1612
        %v7651 = vand.u32 %v7647, 3
        %vm7652 = vcmp.lt.s32.totalorder %v7651, 2
        %vm7653 = vcmp.eq.s32.totalorder %v7651, 0
        %v7654 = vxor.u32 %v7649, 2147483648
        %v7655 = vsel %vm7653, %v7648, %v7654
        %vm7656 = vcmp.eq.s32.totalorder %v7651, 2
        %v7657 = vxor.u32 %v7648, 2147483648
        %v7658 = vsel %vm7656, %v7657, %v7649
        %v7659 = vsel %vm7652, %v7655, %v7658
        %v7660 = vsel %vm7650, nan, %v7659
        %v7661 = vand.u32 2147483647, %v1613
        %vm7662 = vcmp.le.f32.partialorder %v7661, 0.7853982
        %vm7663 = vcmp.lt.s32.totalorder %v1613, 0
        %v7664 = vand.u32 %v1613, 2139095040
        %v7665 = vshrl.u32 %v7664, 23
        %v7666 = vsub.s32 %v7665, 127
        %v7667 = vand.u32 2147483647, %v1613
        %v7668 = vand.u32 %v7667, 8388607
        %v7669 = vor.u32 %v7668, 8388608
        %v7670 = vsub.s32 0, %v7669
        %v7671 = vadd.s32 %v7666, 1
        %vm7672 = vcmp.gt.s32.totalorder %v7671, 0
        %v7673 = vsel %vm7672, %v7671, 0
        %v7674 = vshrl.u32 %v7673, 5
        %v7675 = vand.u32 %v7673, 31
        %v7676 = vsub.s32 32, %v7675
        %v7677 = vshrl.u32 683565275, %v7676
        %v7678 = vshll.u32 683565275, %v7675
        %v7679 = vshrl.u32 2475754826, %v7676
        %v7680 = vor.u32 %v7678, %v7679
        %v7681 = vshll.u32 2475754826, %v7675
        %v7682 = vshrl.u32 2131351028, %v7676
        %v7683 = vor.u32 %v7681, %v7682
        %v7684 = vshll.u32 2131351028, %v7675
        %v7685 = vshrl.u32 2102212464, %v7676
        %v7686 = vor.u32 %v7684, %v7685
        %v7687 = vshll.u32 2102212464, %v7675
        %v7688 = vshrl.u32 920167782, %v7676
        %v7689 = vor.u32 %v7687, %v7688
        %v7690 = vshll.u32 920167782, %v7675
        %v7691 = vshrl.u32 1326507024, %v7676
        %v7692 = vor.u32 %v7690, %v7691
        %vm7693 = vcmp.lt.s32.totalorder %v7674, 1
        %vm7694 = vcmp.lt.s32.totalorder %v7674, 2
        %vm7695 = vcmp.lt.s32.totalorder %v7674, 3
        %vm7696 = vcmp.lt.s32.totalorder %v7674, 4
        %v7697 = vsel %vm7693, %v7677, %v7680
        %v7698 = vsel %vm7696, %v7686, 2102212464
        %v7699 = vsel %vm7695, %v7683, %v7698
        %v7700 = vsel %vm7694, %v7697, %v7699
        %v7701 = vsel %vm7693, %v7680, %v7683
        %v7702 = vsel %vm7696, %v7689, 920167782
        %v7703 = vsel %vm7695, %v7686, %v7702
        %v7704 = vsel %vm7694, %v7701, %v7703
        %v7705 = vsel %vm7693, %v7683, %v7686
        %v7706 = vsel %vm7696, %v7692, 1326507024
        %v7707 = vsel %vm7695, %v7689, %v7706
        %v7708 = vsel %vm7694, %v7705, %v7707
        %v7709 = vshll.u32 %v7669, 8
        %v7710 = vmul.u32.u64.compose %v7709, %v7708
        %v7711 = vextract.low.u32 %v7710
        %v7712 = vextract.high.u32 %v7710
        %v7713 = vmul.u32.u64.compose %v7709, %v7704
        %v7714 = vextract.low.u32 %v7713
        %v7715 = vextract.high.u32 %v7713
        %v7716 = vmul.u32 %v7709, %v7700
        %v7717 = vadd.s32 %v7712, %v7714
        %vm7718 = vc.u32 %v7712, %v7714
        %v7719 = vadd.s32 %v7715, 1
        %v7720 = vsel %vm7718, %v7719, %v7715
        %v7721 = vadd.s32 %v7716, %v7720
        %v7722 = vadd.s32 %v7721, 536870912
        %v7723 = vshrl.u32 %v7722, 30
        %v7724 = vshll.u32 %v7723, 30
        %v7725 = vsub.s32 %v7721, %v7724
        %vm7726 = vcmp.lt.s32.totalorder %v7725, 0
        %v7727 = vsub.s32 0, %v7725
        %v7728 = vsel %vm7726, %v7727, %v7725
        %v7729 = vclz %v7728
        %v7730 = vsub.s32 %v7729, 2
        %vm7731 = vcmp.gt.s32.totalorder 0, %v7730
        %v7732 = vsel %vm7731, 0, %v7730
        %v7733 = vsub.s32 32, %v7732
        %v7734 = vshll.u32 %v7725, %v7732
        %v7735 = vshrl.u32 %v7717, %v7733
        %v7736 = vor.u32 %v7734, %v7735
        %v7737 = vsub.s32 4294967266, %v7732
        %v7738 = vadd.s32 %v7737, 127
        %v7739 = vshll.u32 %v7738, 23
        %v7740 = vor.u32 4788187, %v7739
        %v7741 = vand.u32 2147483647, %v7740
        %v7743 = vcvt.s32.f32 %v7736
        %v7744 = vmul.f32 %v7743, %v7741
        %v7745 = vxor.u32 %v7744, 2147483648
        %v7746 = vsel %vm7663, %v7745, %v7744
        %v7747 = vsub.s32 4, %v7723
        %v7748 = vsel %vm7663, %v7747, %v7723
        %v7749 = vsel %vm7662, %v1613, %v7746
        %v7750 = vsel %vm7662, 0, %v7748
        %v7751 = vcosq.f32.pop %v7749
        %v7752 = vsinq.f32.pop %v7749
        %vm7753 = vweird.f32 %v1613
        %v7754 = vand.u32 %v7750, 3
        %vm7755 = vcmp.lt.s32.totalorder %v7754, 2
        %vm7756 = vcmp.eq.s32.totalorder %v7754, 0
        %v7757 = vxor.u32 %v7752, 2147483648
        %v7758 = vsel %vm7756, %v7751, %v7757
        %vm7759 = vcmp.eq.s32.totalorder %v7754, 2
        %v7760 = vxor.u32 %v7751, 2147483648
        %v7761 = vsel %vm7759, %v7760, %v7752
        %v7762 = vsel %vm7755, %v7758, %v7761
        %v7763 = vsel %vm7753, nan, %v7762
        %v7764 = vand.u32 2147483647, %v1614
        %vm7765 = vcmp.le.f32.partialorder %v7764, 0.7853982
        %vm7766 = vcmp.lt.s32.totalorder %v1614, 0
        %v7767 = vand.u32 %v1614, 2139095040
        %v7768 = vshrl.u32 %v7767, 23
        %v7769 = vsub.s32 %v7768, 127
        %v7770 = vand.u32 2147483647, %v1614
        %v7771 = vand.u32 %v7770, 8388607
        %v7772 = vor.u32 %v7771, 8388608
        %v7773 = vsub.s32 0, %v7772
        %v7774 = vadd.s32 %v7769, 1
        %vm7775 = vcmp.gt.s32.totalorder %v7774, 0
        %v7776 = vsel %vm7775, %v7774, 0
        %v7777 = vshrl.u32 %v7776, 5
        %v7778 = vand.u32 %v7776, 31
        %v7779 = vsub.s32 32, %v7778
        %v7780 = vshrl.u32 683565275, %v7779
        %v7781 = vshll.u32 683565275, %v7778
        %v7782 = vshrl.u32 2475754826, %v7779
        %v7783 = vor.u32 %v7781, %v7782
        %v7784 = vshll.u32 2475754826, %v7778
        %v7785 = vshrl.u32 2131351028, %v7779
        %v7786 = vor.u32 %v7784, %v7785
        %v7787 = vshll.u32 2131351028, %v7778
        %v7788 = vshrl.u32 2102212464, %v7779
        %v7789 = vor.u32 %v7787, %v7788
        %v7790 = vshll.u32 2102212464, %v7778
        %v7791 = vshrl.u32 920167782, %v7779
        %v7792 = vor.u32 %v7790, %v7791
        %v7793 = vshll.u32 920167782, %v7778
        %v7794 = vshrl.u32 1326507024, %v7779
        %v7795 = vor.u32 %v7793, %v7794
        %vm7796 = vcmp.lt.s32.totalorder %v7777, 1
        %vm7797 = vcmp.lt.s32.totalorder %v7777, 2
        %vm7798 = vcmp.lt.s32.totalorder %v7777, 3
        %vm7799 = vcmp.lt.s32.totalorder %v7777, 4
        %v7800 = vsel %vm7796, %v7780, %v7783
        %v7801 = vsel %vm7799, %v7789, 2102212464
        %v7802 = vsel %vm7798, %v7786, %v7801
        %v7803 = vsel %vm7797, %v7800, %v7802
        %v7804 = vsel %vm7796, %v7783, %v7786
        %v7805 = vsel %vm7799, %v7792, 920167782
        %v7806 = vsel %vm7798, %v7789, %v7805
        %v7807 = vsel %vm7797, %v7804, %v7806
        %v7808 = vsel %vm7796, %v7786, %v7789
        %v7809 = vsel %vm7799, %v7795, 1326507024
        %v7810 = vsel %vm7798, %v7792, %v7809
        %v7811 = vsel %vm7797, %v7808, %v7810
        %v7812 = vshll.u32 %v7772, 8
        %v7813 = vmul.u32.u64.compose %v7812, %v7811
        %v7814 = vextract.low.u32 %v7813
        %v7815 = vextract.high.u32 %v7813
        %v7816 = vmul.u32.u64.compose %v7812, %v7807
        %v7817 = vextract.low.u32 %v7816
        %v7818 = vextract.high.u32 %v7816
        %v7819 = vmul.u32 %v7812, %v7803
        %v7820 = vadd.s32 %v7815, %v7817
        %vm7821 = vc.u32 %v7815, %v7817
        %v7822 = vadd.s32 %v7818, 1
        %v7823 = vsel %vm7821, %v7822, %v7818
        %v7824 = vadd.s32 %v7819, %v7823
        %v7825 = vadd.s32 %v7824, 536870912
        %v7826 = vshrl.u32 %v7825, 30
        %v7827 = vshll.u32 %v7826, 30
        %v7828 = vsub.s32 %v7824, %v7827
        %vm7829 = vcmp.lt.s32.totalorder %v7828, 0
        %v7830 = vsub.s32 0, %v7828
        %v7831 = vsel %vm7829, %v7830, %v7828
        %v7832 = vclz %v7831
        %v7833 = vsub.s32 %v7832, 2
        %vm7834 = vcmp.gt.s32.totalorder 0, %v7833
        %v7835 = vsel %vm7834, 0, %v7833
        %v7836 = vsub.s32 32, %v7835
        %v7837 = vshll.u32 %v7828, %v7835
        %v7838 = vshrl.u32 %v7820, %v7836
        %v7839 = vor.u32 %v7837, %v7838
        %v7840 = vsub.s32 4294967266, %v7835
        %v7841 = vadd.s32 %v7840, 127
        %v7842 = vshll.u32 %v7841, 23
        %v7843 = vor.u32 4788187, %v7842
        %v7844 = vand.u32 2147483647, %v7843
        %v7846 = vcvt.s32.f32 %v7839
        %v7847 = vmul.f32 %v7846, %v7844
        %v7848 = vxor.u32 %v7847, 2147483648
        %v7849 = vsel %vm7766, %v7848, %v7847
        %v7850 = vsub.s32 4, %v7826
        %v7851 = vsel %vm7766, %v7850, %v7826
        %v7852 = vsel %vm7765, %v1614, %v7849
        %v7853 = vsel %vm7765, 0, %v7851
        %v7854 = vcosq.f32.pop %v7852
        %v7855 = vsinq.f32.pop %v7852
        %vm7856 = vweird.f32 %v1614
        %v7857 = vand.u32 %v7853, 3
        %vm7858 = vcmp.lt.s32.totalorder %v7857, 2
        %vm7859 = vcmp.eq.s32.totalorder %v7857, 0
        %v7860 = vxor.u32 %v7855, 2147483648
        %v7861 = vsel %vm7859, %v7854, %v7860
        %vm7862 = vcmp.eq.s32.totalorder %v7857, 2
        %v7863 = vxor.u32 %v7854, 2147483648
        %v7864 = vsel %vm7862, %v7863, %v7855
        %v7865 = vsel %vm7858, %v7861, %v7864
        %v7866 = vsel %vm7856, nan, %v7865
        %v7867 = vand.u32 2147483647, %v1615
        %vm7868 = vcmp.le.f32.partialorder %v7867, 0.7853982
        %vm7869 = vcmp.lt.s32.totalorder %v1615, 0
        %v7870 = vand.u32 %v1615, 2139095040
        %v7871 = vshrl.u32 %v7870, 23
        %v7872 = vsub.s32 %v7871, 127
        %v7873 = vand.u32 2147483647, %v1615
        %v7874 = vand.u32 %v7873, 8388607
        %v7875 = vor.u32 %v7874, 8388608
        %v7876 = vsub.s32 0, %v7875
        %v7877 = vadd.s32 %v7872, 1
        %vm7878 = vcmp.gt.s32.totalorder %v7877, 0
        %v7879 = vsel %vm7878, %v7877, 0
        %v7880 = vshrl.u32 %v7879, 5
        %v7881 = vand.u32 %v7879, 31
        %v7882 = vsub.s32 32, %v7881
        %v7883 = vshrl.u32 683565275, %v7882
        %v7884 = vshll.u32 683565275, %v7881
        %v7885 = vshrl.u32 2475754826, %v7882
        %v7886 = vor.u32 %v7884, %v7885
        %v7887 = vshll.u32 2475754826, %v7881
        %v7888 = vshrl.u32 2131351028, %v7882
        %v7889 = vor.u32 %v7887, %v7888
        %v7890 = vshll.u32 2131351028, %v7881
        %v7891 = vshrl.u32 2102212464, %v7882
        %v7892 = vor.u32 %v7890, %v7891
        %v7893 = vshll.u32 2102212464, %v7881
        %v7894 = vshrl.u32 920167782, %v7882
        %v7895 = vor.u32 %v7893, %v7894
        %v7896 = vshll.u32 920167782, %v7881
        %v7897 = vshrl.u32 1326507024, %v7882
        %v7898 = vor.u32 %v7896, %v7897
        %vm7899 = vcmp.lt.s32.totalorder %v7880, 1
        %vm7900 = vcmp.lt.s32.totalorder %v7880, 2
        %vm7901 = vcmp.lt.s32.totalorder %v7880, 3
        %vm7902 = vcmp.lt.s32.totalorder %v7880, 4
        %v7903 = vsel %vm7899, %v7883, %v7886
        %v7904 = vsel %vm7902, %v7892, 2102212464
        %v7905 = vsel %vm7901, %v7889, %v7904
        %v7906 = vsel %vm7900, %v7903, %v7905
        %v7907 = vsel %vm7899, %v7886, %v7889
        %v7908 = vsel %vm7902, %v7895, 920167782
        %v7909 = vsel %vm7901, %v7892, %v7908
        %v7910 = vsel %vm7900, %v7907, %v7909
        %v7911 = vsel %vm7899, %v7889, %v7892
        %v7912 = vsel %vm7902, %v7898, 1326507024
        %v7913 = vsel %vm7901, %v7895, %v7912
        %v7914 = vsel %vm7900, %v7911, %v7913
        %v7915 = vshll.u32 %v7875, 8
        %v7916 = vmul.u32.u64.compose %v7915, %v7914
        %v7917 = vextract.low.u32 %v7916
        %v7918 = vextract.high.u32 %v7916
        %v7919 = vmul.u32.u64.compose %v7915, %v7910
        %v7920 = vextract.low.u32 %v7919
        %v7921 = vextract.high.u32 %v7919
        %v7922 = vmul.u32 %v7915, %v7906
        %v7923 = vadd.s32 %v7918, %v7920
        %vm7924 = vc.u32 %v7918, %v7920
        %v7925 = vadd.s32 %v7921, 1
        %v7926 = vsel %vm7924, %v7925, %v7921
        %v7927 = vadd.s32 %v7922, %v7926
        %v7928 = vadd.s32 %v7927, 536870912
        %v7929 = vshrl.u32 %v7928, 30
        %v7930 = vshll.u32 %v7929, 30
        %v7931 = vsub.s32 %v7927, %v7930
        %vm7932 = vcmp.lt.s32.totalorder %v7931, 0
        %v7933 = vsub.s32 0, %v7931
        %v7934 = vsel %vm7932, %v7933, %v7931
        %v7935 = vclz %v7934
        %v7936 = vsub.s32 %v7935, 2
        %vm7937 = vcmp.gt.s32.totalorder 0, %v7936
        %v7938 = vsel %vm7937, 0, %v7936
        %v7939 = vsub.s32 32, %v7938
        %v7940 = vshll.u32 %v7931, %v7938
        %v7941 = vshrl.u32 %v7923, %v7939
        %v7942 = vor.u32 %v7940, %v7941
        %v7943 = vsub.s32 4294967266, %v7938
        %v7944 = vadd.s32 %v7943, 127
        %v7945 = vshll.u32 %v7944, 23
        %v7946 = vor.u32 4788187, %v7945
        %v7947 = vand.u32 2147483647, %v7946
        %v7949 = vcvt.s32.f32 %v7942
        %v7950 = vmul.f32 %v7949, %v7947
        %v7951 = vxor.u32 %v7950, 2147483648
        %v7952 = vsel %vm7869, %v7951, %v7950
        %v7953 = vsub.s32 4, %v7929
        %v7954 = vsel %vm7869, %v7953, %v7929
        %v7955 = vsel %vm7868, %v1615, %v7952
        %v7956 = vsel %vm7868, 0, %v7954
        %v7957 = vcosq.f32.pop %v7955
        %v7958 = vsinq.f32.pop %v7955
        %vm7959 = vweird.f32 %v1615
        %v7960 = vand.u32 %v7956, 3
        %vm7961 = vcmp.lt.s32.totalorder %v7960, 2
        %vm7962 = vcmp.eq.s32.totalorder %v7960, 0
        %v7963 = vxor.u32 %v7958, 2147483648
        %v7964 = vsel %vm7962, %v7957, %v7963
        %vm7965 = vcmp.eq.s32.totalorder %v7960, 2
        %v7966 = vxor.u32 %v7957, 2147483648
        %v7967 = vsel %vm7965, %v7966, %v7958
        %v7968 = vsel %vm7961, %v7964, %v7967
        %v7969 = vsel %vm7959, nan, %v7968
        %v7970 = vand.u32 2147483647, %v1616
        %vm7971 = vcmp.le.f32.partialorder %v7970, 0.7853982
        %vm7972 = vcmp.lt.s32.totalorder %v1616, 0
        %v7973 = vand.u32 %v1616, 2139095040
        %v7974 = vshrl.u32 %v7973, 23
        %v7975 = vsub.s32 %v7974, 127
        %v7976 = vand.u32 2147483647, %v1616
        %v7977 = vand.u32 %v7976, 8388607
        %v7978 = vor.u32 %v7977, 8388608
        %v7979 = vsub.s32 0, %v7978
        %v7980 = vadd.s32 %v7975, 1
        %vm7981 = vcmp.gt.s32.totalorder %v7980, 0
        %v7982 = vsel %vm7981, %v7980, 0
        %v7983 = vshrl.u32 %v7982, 5
        %v7984 = vand.u32 %v7982, 31
        %v7985 = vsub.s32 32, %v7984
        %v7986 = vshrl.u32 683565275, %v7985
        %v7987 = vshll.u32 683565275, %v7984
        %v7988 = vshrl.u32 2475754826, %v7985
        %v7989 = vor.u32 %v7987, %v7988
        %v7990 = vshll.u32 2475754826, %v7984
        %v7991 = vshrl.u32 2131351028, %v7985
        %v7992 = vor.u32 %v7990, %v7991
        %v7993 = vshll.u32 2131351028, %v7984
        %v7994 = vshrl.u32 2102212464, %v7985
        %v7995 = vor.u32 %v7993, %v7994
        %v7996 = vshll.u32 2102212464, %v7984
        %v7997 = vshrl.u32 920167782, %v7985
        %v7998 = vor.u32 %v7996, %v7997
        %v7999 = vshll.u32 920167782, %v7984
        %v8000 = vshrl.u32 1326507024, %v7985
        %v8001 = vor.u32 %v7999, %v8000
        %vm8002 = vcmp.lt.s32.totalorder %v7983, 1
        %vm8003 = vcmp.lt.s32.totalorder %v7983, 2
        %vm8004 = vcmp.lt.s32.totalorder %v7983, 3
        %vm8005 = vcmp.lt.s32.totalorder %v7983, 4
        %v8006 = vsel %vm8002, %v7986, %v7989
        %v8007 = vsel %vm8005, %v7995, 2102212464
        %v8008 = vsel %vm8004, %v7992, %v8007
        %v8009 = vsel %vm8003, %v8006, %v8008
        %v8010 = vsel %vm8002, %v7989, %v7992
        %v8011 = vsel %vm8005, %v7998, 920167782
        %v8012 = vsel %vm8004, %v7995, %v8011
        %v8013 = vsel %vm8003, %v8010, %v8012
        %v8014 = vsel %vm8002, %v7992, %v7995
        %v8015 = vsel %vm8005, %v8001, 1326507024
        %v8016 = vsel %vm8004, %v7998, %v8015
        %v8017 = vsel %vm8003, %v8014, %v8016
        %v8018 = vshll.u32 %v7978, 8
        %v8019 = vmul.u32.u64.compose %v8018, %v8017
        %v8020 = vextract.low.u32 %v8019
        %v8021 = vextract.high.u32 %v8019
        %v8022 = vmul.u32.u64.compose %v8018, %v8013
        %v8023 = vextract.low.u32 %v8022
        %v8024 = vextract.high.u32 %v8022
        %v8025 = vmul.u32 %v8018, %v8009
        %v8026 = vadd.s32 %v8021, %v8023
        %vm8027 = vc.u32 %v8021, %v8023
        %v8028 = vadd.s32 %v8024, 1
        %v8029 = vsel %vm8027, %v8028, %v8024
        %v8030 = vadd.s32 %v8025, %v8029
        %v8031 = vadd.s32 %v8030, 536870912
        %v8032 = vshrl.u32 %v8031, 30
        %v8033 = vshll.u32 %v8032, 30
        %v8034 = vsub.s32 %v8030, %v8033
        %vm8035 = vcmp.lt.s32.totalorder %v8034, 0
        %v8036 = vsub.s32 0, %v8034
        %v8037 = vsel %vm8035, %v8036, %v8034
        %v8038 = vclz %v8037
        %v8039 = vsub.s32 %v8038, 2
        %vm8040 = vcmp.gt.s32.totalorder 0, %v8039
        %v8041 = vsel %vm8040, 0, %v8039
        %v8042 = vsub.s32 32, %v8041
        %v8043 = vshll.u32 %v8034, %v8041
        %v8044 = vshrl.u32 %v8026, %v8042
        %v8045 = vor.u32 %v8043, %v8044
        %v8046 = vsub.s32 4294967266, %v8041
        %v8047 = vadd.s32 %v8046, 127
        %v8048 = vshll.u32 %v8047, 23
        %v8049 = vor.u32 4788187, %v8048
        %v8050 = vand.u32 2147483647, %v8049
        %v8052 = vcvt.s32.f32 %v8045
        %v8053 = vmul.f32 %v8052, %v8050
        %v8054 = vxor.u32 %v8053, 2147483648
        %v8055 = vsel %vm7972, %v8054, %v8053
        %v8056 = vsub.s32 4, %v8032
        %v8057 = vsel %vm7972, %v8056, %v8032
        %v8058 = vsel %vm7971, %v1616, %v8055
        %v8059 = vsel %vm7971, 0, %v8057
        %v8060 = vcosq.f32.pop %v8058
        %v8061 = vsinq.f32.pop %v8058
        %vm8062 = vweird.f32 %v1616
        %v8063 = vand.u32 %v8059, 3
        %vm8064 = vcmp.lt.s32.totalorder %v8063, 2
        %vm8065 = vcmp.eq.s32.totalorder %v8063, 0
        %v8066 = vxor.u32 %v8061, 2147483648
        %v8067 = vsel %vm8065, %v8060, %v8066
        %vm8068 = vcmp.eq.s32.totalorder %v8063, 2
        %v8069 = vxor.u32 %v8060, 2147483648
        %v8070 = vsel %vm8068, %v8069, %v8061
        %v8071 = vsel %vm8064, %v8067, %v8070
        %v8072 = vsel %vm8062, nan, %v8071
        %v8073 = vand.u32 2147483647, %v1617
        %vm8074 = vcmp.le.f32.partialorder %v8073, 0.7853982
        %vm8075 = vcmp.lt.s32.totalorder %v1617, 0
        %v8076 = vand.u32 %v1617, 2139095040
        %v8077 = vshrl.u32 %v8076, 23
        %v8078 = vsub.s32 %v8077, 127
        %v8079 = vand.u32 2147483647, %v1617
        %v8080 = vand.u32 %v8079, 8388607
        %v8081 = vor.u32 %v8080, 8388608
        %v8082 = vsub.s32 0, %v8081
        %v8083 = vadd.s32 %v8078, 1
        %vm8084 = vcmp.gt.s32.totalorder %v8083, 0
        %v8085 = vsel %vm8084, %v8083, 0
        %v8086 = vshrl.u32 %v8085, 5
        %v8087 = vand.u32 %v8085, 31
        %v8088 = vsub.s32 32, %v8087
        %v8089 = vshrl.u32 683565275, %v8088
        %v8090 = vshll.u32 683565275, %v8087
        %v8091 = vshrl.u32 2475754826, %v8088
        %v8092 = vor.u32 %v8090, %v8091
        %v8093 = vshll.u32 2475754826, %v8087
        %v8094 = vshrl.u32 2131351028, %v8088
        %v8095 = vor.u32 %v8093, %v8094
        %v8096 = vshll.u32 2131351028, %v8087
        %v8097 = vshrl.u32 2102212464, %v8088
        %v8098 = vor.u32 %v8096, %v8097
        %v8099 = vshll.u32 2102212464, %v8087
        %v8100 = vshrl.u32 920167782, %v8088
        %v8101 = vor.u32 %v8099, %v8100
        %v8102 = vshll.u32 920167782, %v8087
        %v8103 = vshrl.u32 1326507024, %v8088
        %v8104 = vor.u32 %v8102, %v8103
        %vm8105 = vcmp.lt.s32.totalorder %v8086, 1
        %vm8106 = vcmp.lt.s32.totalorder %v8086, 2
        %vm8107 = vcmp.lt.s32.totalorder %v8086, 3
        %vm8108 = vcmp.lt.s32.totalorder %v8086, 4
        %v8109 = vsel %vm8105, %v8089, %v8092
        %v8110 = vsel %vm8108, %v8098, 2102212464
        %v8111 = vsel %vm8107, %v8095, %v8110
        %v8112 = vsel %vm8106, %v8109, %v8111
        %v8113 = vsel %vm8105, %v8092, %v8095
        %v8114 = vsel %vm8108, %v8101, 920167782
        %v8115 = vsel %vm8107, %v8098, %v8114
        %v8116 = vsel %vm8106, %v8113, %v8115
        %v8117 = vsel %vm8105, %v8095, %v8098
        %v8118 = vsel %vm8108, %v8104, 1326507024
        %v8119 = vsel %vm8107, %v8101, %v8118
        %v8120 = vsel %vm8106, %v8117, %v8119
        %v8121 = vshll.u32 %v8081, 8
        %v8122 = vmul.u32.u64.compose %v8121, %v8120
        %v8123 = vextract.low.u32 %v8122
        %v8124 = vextract.high.u32 %v8122
        %v8125 = vmul.u32.u64.compose %v8121, %v8116
        %v8126 = vextract.low.u32 %v8125
        %v8127 = vextract.high.u32 %v8125
        %v8128 = vmul.u32 %v8121, %v8112
        %v8129 = vadd.s32 %v8124, %v8126
        %vm8130 = vc.u32 %v8124, %v8126
        %v8131 = vadd.s32 %v8127, 1
        %v8132 = vsel %vm8130, %v8131, %v8127
        %v8133 = vadd.s32 %v8128, %v8132
        %v8134 = vadd.s32 %v8133, 536870912
        %v8135 = vshrl.u32 %v8134, 30
        %v8136 = vshll.u32 %v8135, 30
        %v8137 = vsub.s32 %v8133, %v8136
        %vm8138 = vcmp.lt.s32.totalorder %v8137, 0
        %v8139 = vsub.s32 0, %v8137
        %v8140 = vsel %vm8138, %v8139, %v8137
        %v8141 = vclz %v8140
        %v8142 = vsub.s32 %v8141, 2
        %vm8143 = vcmp.gt.s32.totalorder 0, %v8142
        %v8144 = vsel %vm8143, 0, %v8142
        %v8145 = vsub.s32 32, %v8144
        %v8146 = vshll.u32 %v8137, %v8144
        %v8147 = vshrl.u32 %v8129, %v8145
        %v8148 = vor.u32 %v8146, %v8147
        %v8149 = vsub.s32 4294967266, %v8144
        %v8150 = vadd.s32 %v8149, 127
        %v8151 = vshll.u32 %v8150, 23
        %v8152 = vor.u32 4788187, %v8151
        %v8153 = vand.u32 2147483647, %v8152
        %v8155 = vcvt.s32.f32 %v8148
        %v8156 = vmul.f32 %v8155, %v8153
        %v8157 = vxor.u32 %v8156, 2147483648
        %v8158 = vsel %vm8075, %v8157, %v8156
        %v8159 = vsub.s32 4, %v8135
        %v8160 = vsel %vm8075, %v8159, %v8135
        %v8161 = vsel %vm8074, %v1617, %v8158
        %v8162 = vsel %vm8074, 0, %v8160
        %v8163 = vcosq.f32.pop %v8161
        %v8164 = vsinq.f32.pop %v8161
        %vm8165 = vweird.f32 %v1617
        %v8166 = vand.u32 %v8162, 3
        %vm8167 = vcmp.lt.s32.totalorder %v8166, 2
        %vm8168 = vcmp.eq.s32.totalorder %v8166, 0
        %v8169 = vxor.u32 %v8164, 2147483648
        %v8170 = vsel %vm8168, %v8163, %v8169
        %vm8171 = vcmp.eq.s32.totalorder %v8166, 2
        %v8172 = vxor.u32 %v8163, 2147483648
        %v8173 = vsel %vm8171, %v8172, %v8164
        %v8174 = vsel %vm8167, %v8170, %v8173
        %v8175 = vsel %vm8165, nan, %v8174
        %v8176 = vand.u32 2147483647, %v1618
        %vm8177 = vcmp.le.f32.partialorder %v8176, 0.7853982
        %vm8178 = vcmp.lt.s32.totalorder %v1618, 0
        %v8179 = vand.u32 %v1618, 2139095040
        %v8180 = vshrl.u32 %v8179, 23
        %v8181 = vsub.s32 %v8180, 127
        %v8182 = vand.u32 2147483647, %v1618
        %v8183 = vand.u32 %v8182, 8388607
        %v8184 = vor.u32 %v8183, 8388608
        %v8185 = vsub.s32 0, %v8184
        %v8186 = vadd.s32 %v8181, 1
        %vm8187 = vcmp.gt.s32.totalorder %v8186, 0
        %v8188 = vsel %vm8187, %v8186, 0
        %v8189 = vshrl.u32 %v8188, 5
        %v8190 = vand.u32 %v8188, 31
        %v8191 = vsub.s32 32, %v8190
        %v8192 = vshrl.u32 683565275, %v8191
        %v8193 = vshll.u32 683565275, %v8190
        %v8194 = vshrl.u32 2475754826, %v8191
        %v8195 = vor.u32 %v8193, %v8194
        %v8196 = vshll.u32 2475754826, %v8190
        %v8197 = vshrl.u32 2131351028, %v8191
        %v8198 = vor.u32 %v8196, %v8197
        %v8199 = vshll.u32 2131351028, %v8190
        %v8200 = vshrl.u32 2102212464, %v8191
        %v8201 = vor.u32 %v8199, %v8200
        %v8202 = vshll.u32 2102212464, %v8190
        %v8203 = vshrl.u32 920167782, %v8191
        %v8204 = vor.u32 %v8202, %v8203
        %v8205 = vshll.u32 920167782, %v8190
        %v8206 = vshrl.u32 1326507024, %v8191
        %v8207 = vor.u32 %v8205, %v8206
        %vm8208 = vcmp.lt.s32.totalorder %v8189, 1
        %vm8209 = vcmp.lt.s32.totalorder %v8189, 2
        %vm8210 = vcmp.lt.s32.totalorder %v8189, 3
        %vm8211 = vcmp.lt.s32.totalorder %v8189, 4
        %v8212 = vsel %vm8208, %v8192, %v8195
        %v8213 = vsel %vm8211, %v8201, 2102212464
        %v8214 = vsel %vm8210, %v8198, %v8213
        %v8215 = vsel %vm8209, %v8212, %v8214
        %v8216 = vsel %vm8208, %v8195, %v8198
        %v8217 = vsel %vm8211, %v8204, 920167782
        %v8218 = vsel %vm8210, %v8201, %v8217
        %v8219 = vsel %vm8209, %v8216, %v8218
        %v8220 = vsel %vm8208, %v8198, %v8201
        %v8221 = vsel %vm8211, %v8207, 1326507024
        %v8222 = vsel %vm8210, %v8204, %v8221
        %v8223 = vsel %vm8209, %v8220, %v8222
        %v8224 = vshll.u32 %v8184, 8
        %v8225 = vmul.u32.u64.compose %v8224, %v8223
        %v8226 = vextract.low.u32 %v8225
        %v8227 = vextract.high.u32 %v8225
        %v8228 = vmul.u32.u64.compose %v8224, %v8219
        %v8229 = vextract.low.u32 %v8228
        %v8230 = vextract.high.u32 %v8228
        %v8231 = vmul.u32 %v8224, %v8215
        %v8232 = vadd.s32 %v8227, %v8229
        %vm8233 = vc.u32 %v8227, %v8229
        %v8234 = vadd.s32 %v8230, 1
        %v8235 = vsel %vm8233, %v8234, %v8230
        %v8236 = vadd.s32 %v8231, %v8235
        %v8237 = vadd.s32 %v8236, 536870912
        %v8238 = vshrl.u32 %v8237, 30
        %v8239 = vshll.u32 %v8238, 30
        %v8240 = vsub.s32 %v8236, %v8239
        %vm8241 = vcmp.lt.s32.totalorder %v8240, 0
        %v8242 = vsub.s32 0, %v8240
        %v8243 = vsel %vm8241, %v8242, %v8240
        %v8244 = vclz %v8243
        %v8245 = vsub.s32 %v8244, 2
        %vm8246 = vcmp.gt.s32.totalorder 0, %v8245
        %v8247 = vsel %vm8246, 0, %v8245
        %v8248 = vsub.s32 32, %v8247
        %v8249 = vshll.u32 %v8240, %v8247
        %v8250 = vshrl.u32 %v8232, %v8248
        %v8251 = vor.u32 %v8249, %v8250
        %v8252 = vsub.s32 4294967266, %v8247
        %v8253 = vadd.s32 %v8252, 127
        %v8254 = vshll.u32 %v8253, 23
        %v8255 = vor.u32 4788187, %v8254
        %v8256 = vand.u32 2147483647, %v8255
        %v8258 = vcvt.s32.f32 %v8251
        %v8259 = vmul.f32 %v8258, %v8256
        %v8260 = vxor.u32 %v8259, 2147483648
        %v8261 = vsel %vm8178, %v8260, %v8259
        %v8262 = vsub.s32 4, %v8238
        %v8263 = vsel %vm8178, %v8262, %v8238
        %v8264 = vsel %vm8177, %v1618, %v8261
        %v8265 = vsel %vm8177, 0, %v8263
        %v8266 = vcosq.f32.pop %v8264
        %v8267 = vsinq.f32.pop %v8264
        %vm8268 = vweird.f32 %v1618
        %v8269 = vand.u32 %v8265, 3
        %vm8270 = vcmp.lt.s32.totalorder %v8269, 2
        %vm8271 = vcmp.eq.s32.totalorder %v8269, 0
        %v8272 = vxor.u32 %v8267, 2147483648
        %v8273 = vsel %vm8271, %v8266, %v8272
        %vm8274 = vcmp.eq.s32.totalorder %v8269, 2
        %v8275 = vxor.u32 %v8266, 2147483648
        %v8276 = vsel %vm8274, %v8275, %v8267
        %v8277 = vsel %vm8270, %v8273, %v8276
        %v8278 = vsel %vm8268, nan, %v8277
        %v8279 = vand.u32 2147483647, %v1619
        %vm8280 = vcmp.le.f32.partialorder %v8279, 0.7853982
        %vm8281 = vcmp.lt.s32.totalorder %v1619, 0
        %v8282 = vand.u32 %v1619, 2139095040
        %v8283 = vshrl.u32 %v8282, 23
        %v8284 = vsub.s32 %v8283, 127
        %v8285 = vand.u32 2147483647, %v1619
        %v8286 = vand.u32 %v8285, 8388607
        %v8287 = vor.u32 %v8286, 8388608
        %v8288 = vsub.s32 0, %v8287
        %v8289 = vadd.s32 %v8284, 1
        %vm8290 = vcmp.gt.s32.totalorder %v8289, 0
        %v8291 = vsel %vm8290, %v8289, 0
        %v8292 = vshrl.u32 %v8291, 5
        %v8293 = vand.u32 %v8291, 31
        %v8294 = vsub.s32 32, %v8293
        %v8295 = vshrl.u32 683565275, %v8294
        %v8296 = vshll.u32 683565275, %v8293
        %v8297 = vshrl.u32 2475754826, %v8294
        %v8298 = vor.u32 %v8296, %v8297
        %v8299 = vshll.u32 2475754826, %v8293
        %v8300 = vshrl.u32 2131351028, %v8294
        %v8301 = vor.u32 %v8299, %v8300
        %v8302 = vshll.u32 2131351028, %v8293
        %v8303 = vshrl.u32 2102212464, %v8294
        %v8304 = vor.u32 %v8302, %v8303
        %v8305 = vshll.u32 2102212464, %v8293
        %v8306 = vshrl.u32 920167782, %v8294
        %v8307 = vor.u32 %v8305, %v8306
        %v8308 = vshll.u32 920167782, %v8293
        %v8309 = vshrl.u32 1326507024, %v8294
        %v8310 = vor.u32 %v8308, %v8309
        %vm8311 = vcmp.lt.s32.totalorder %v8292, 1
        %vm8312 = vcmp.lt.s32.totalorder %v8292, 2
        %vm8313 = vcmp.lt.s32.totalorder %v8292, 3
        %vm8314 = vcmp.lt.s32.totalorder %v8292, 4
        %v8315 = vsel %vm8311, %v8295, %v8298
        %v8316 = vsel %vm8314, %v8304, 2102212464
        %v8317 = vsel %vm8313, %v8301, %v8316
        %v8318 = vsel %vm8312, %v8315, %v8317
        %v8319 = vsel %vm8311, %v8298, %v8301
        %v8320 = vsel %vm8314, %v8307, 920167782
        %v8321 = vsel %vm8313, %v8304, %v8320
        %v8322 = vsel %vm8312, %v8319, %v8321
        %v8323 = vsel %vm8311, %v8301, %v8304
        %v8324 = vsel %vm8314, %v8310, 1326507024
        %v8325 = vsel %vm8313, %v8307, %v8324
        %v8326 = vsel %vm8312, %v8323, %v8325
        %v8327 = vshll.u32 %v8287, 8
        %v8328 = vmul.u32.u64.compose %v8327, %v8326
        %v8329 = vextract.low.u32 %v8328
        %v8330 = vextract.high.u32 %v8328
        %v8331 = vmul.u32.u64.compose %v8327, %v8322
        %v8332 = vextract.low.u32 %v8331
        %v8333 = vextract.high.u32 %v8331
        %v8334 = vmul.u32 %v8327, %v8318
        %v8335 = vadd.s32 %v8330, %v8332
        %vm8336 = vc.u32 %v8330, %v8332
        %v8337 = vadd.s32 %v8333, 1
        %v8338 = vsel %vm8336, %v8337, %v8333
        %v8339 = vadd.s32 %v8334, %v8338
        %v8340 = vadd.s32 %v8339, 536870912
        %v8341 = vshrl.u32 %v8340, 30
        %v8342 = vshll.u32 %v8341, 30
        %v8343 = vsub.s32 %v8339, %v8342
        %vm8344 = vcmp.lt.s32.totalorder %v8343, 0
        %v8345 = vsub.s32 0, %v8343
        %v8346 = vsel %vm8344, %v8345, %v8343
        %v8347 = vclz %v8346
        %v8348 = vsub.s32 %v8347, 2
        %vm8349 = vcmp.gt.s32.totalorder 0, %v8348
        %v8350 = vsel %vm8349, 0, %v8348
        %v8351 = vsub.s32 32, %v8350
        %v8352 = vshll.u32 %v8343, %v8350
        %v8353 = vshrl.u32 %v8335, %v8351
        %v8354 = vor.u32 %v8352, %v8353
        %v8355 = vsub.s32 4294967266, %v8350
        %v8356 = vadd.s32 %v8355, 127
        %v8357 = vshll.u32 %v8356, 23
        %v8358 = vor.u32 4788187, %v8357
        %v8359 = vand.u32 2147483647, %v8358
        %v8361 = vcvt.s32.f32 %v8354
        %v8362 = vmul.f32 %v8361, %v8359
        %v8363 = vxor.u32 %v8362, 2147483648
        %v8364 = vsel %vm8281, %v8363, %v8362
        %v8365 = vsub.s32 4, %v8341
        %v8366 = vsel %vm8281, %v8365, %v8341
        %v8367 = vsel %vm8280, %v1619, %v8364
        %v8368 = vsel %vm8280, 0, %v8366
        %v8369 = vcosq.f32.pop %v8367
        %v8370 = vsinq.f32.pop %v8367
        %vm8371 = vweird.f32 %v1619
        %v8372 = vand.u32 %v8368, 3
        %vm8373 = vcmp.lt.s32.totalorder %v8372, 2
        %vm8374 = vcmp.eq.s32.totalorder %v8372, 0
        %v8375 = vxor.u32 %v8370, 2147483648
        %v8376 = vsel %vm8374, %v8369, %v8375
        %vm8377 = vcmp.eq.s32.totalorder %v8372, 2
        %v8378 = vxor.u32 %v8369, 2147483648
        %v8379 = vsel %vm8377, %v8378, %v8370
        %v8380 = vsel %vm8373, %v8376, %v8379
        %v8381 = vsel %vm8371, nan, %v8380
        %v8382 = vand.u32 2147483647, %v1620
        %vm8383 = vcmp.le.f32.partialorder %v8382, 0.7853982
        %vm8384 = vcmp.lt.s32.totalorder %v1620, 0
        %v8385 = vand.u32 %v1620, 2139095040
        %v8386 = vshrl.u32 %v8385, 23
        %v8387 = vsub.s32 %v8386, 127
        %v8388 = vand.u32 2147483647, %v1620
        %v8389 = vand.u32 %v8388, 8388607
        %v8390 = vor.u32 %v8389, 8388608
        %v8391 = vsub.s32 0, %v8390
        %v8392 = vadd.s32 %v8387, 1
        %vm8393 = vcmp.gt.s32.totalorder %v8392, 0
        %v8394 = vsel %vm8393, %v8392, 0
        %v8395 = vshrl.u32 %v8394, 5
        %v8396 = vand.u32 %v8394, 31
        %v8397 = vsub.s32 32, %v8396
        %v8398 = vshrl.u32 683565275, %v8397
        %v8399 = vshll.u32 683565275, %v8396
        %v8400 = vshrl.u32 2475754826, %v8397
        %v8401 = vor.u32 %v8399, %v8400
        %v8402 = vshll.u32 2475754826, %v8396
        %v8403 = vshrl.u32 2131351028, %v8397
        %v8404 = vor.u32 %v8402, %v8403
        %v8405 = vshll.u32 2131351028, %v8396
        %v8406 = vshrl.u32 2102212464, %v8397
        %v8407 = vor.u32 %v8405, %v8406
        %v8408 = vshll.u32 2102212464, %v8396
        %v8409 = vshrl.u32 920167782, %v8397
        %v8410 = vor.u32 %v8408, %v8409
        %v8411 = vshll.u32 920167782, %v8396
        %v8412 = vshrl.u32 1326507024, %v8397
        %v8413 = vor.u32 %v8411, %v8412
        %vm8414 = vcmp.lt.s32.totalorder %v8395, 1
        %vm8415 = vcmp.lt.s32.totalorder %v8395, 2
        %vm8416 = vcmp.lt.s32.totalorder %v8395, 3
        %vm8417 = vcmp.lt.s32.totalorder %v8395, 4
        %v8418 = vsel %vm8414, %v8398, %v8401
        %v8419 = vsel %vm8417, %v8407, 2102212464
        %v8420 = vsel %vm8416, %v8404, %v8419
        %v8421 = vsel %vm8415, %v8418, %v8420
        %v8422 = vsel %vm8414, %v8401, %v8404
        %v8423 = vsel %vm8417, %v8410, 920167782
        %v8424 = vsel %vm8416, %v8407, %v8423
        %v8425 = vsel %vm8415, %v8422, %v8424
        %v8426 = vsel %vm8414, %v8404, %v8407
        %v8427 = vsel %vm8417, %v8413, 1326507024
        %v8428 = vsel %vm8416, %v8410, %v8427
        %v8429 = vsel %vm8415, %v8426, %v8428
        %v8430 = vshll.u32 %v8390, 8
        %v8431 = vmul.u32.u64.compose %v8430, %v8429
        %v8432 = vextract.low.u32 %v8431
        %v8433 = vextract.high.u32 %v8431
        %v8434 = vmul.u32.u64.compose %v8430, %v8425
        %v8435 = vextract.low.u32 %v8434
        %v8436 = vextract.high.u32 %v8434
        %v8437 = vmul.u32 %v8430, %v8421
        %v8438 = vadd.s32 %v8433, %v8435
        %vm8439 = vc.u32 %v8433, %v8435
        %v8440 = vadd.s32 %v8436, 1
        %v8441 = vsel %vm8439, %v8440, %v8436
        %v8442 = vadd.s32 %v8437, %v8441
        %v8443 = vadd.s32 %v8442, 536870912
        %v8444 = vshrl.u32 %v8443, 30
        %v8445 = vshll.u32 %v8444, 30
        %v8446 = vsub.s32 %v8442, %v8445
        %vm8447 = vcmp.lt.s32.totalorder %v8446, 0
        %v8448 = vsub.s32 0, %v8446
        %v8449 = vsel %vm8447, %v8448, %v8446
        %v8450 = vclz %v8449
        %v8451 = vsub.s32 %v8450, 2
        %vm8452 = vcmp.gt.s32.totalorder 0, %v8451
        %v8453 = vsel %vm8452, 0, %v8451
        %v8454 = vsub.s32 32, %v8453
        %v8455 = vshll.u32 %v8446, %v8453
        %v8456 = vshrl.u32 %v8438, %v8454
        %v8457 = vor.u32 %v8455, %v8456
        %v8458 = vsub.s32 4294967266, %v8453
        %v8459 = vadd.s32 %v8458, 127
        %v8460 = vshll.u32 %v8459, 23
        %v8461 = vor.u32 4788187, %v8460
        %v8462 = vand.u32 2147483647, %v8461
        %v8464 = vcvt.s32.f32 %v8457
        %v8465 = vmul.f32 %v8464, %v8462
        %v8466 = vxor.u32 %v8465, 2147483648
        %v8467 = vsel %vm8384, %v8466, %v8465
        %v8468 = vsub.s32 4, %v8444
        %v8469 = vsel %vm8384, %v8468, %v8444
        %v8470 = vsel %vm8383, %v1620, %v8467
        %v8471 = vsel %vm8383, 0, %v8469
        %v8472 = vcosq.f32.pop %v8470
        %v8473 = vsinq.f32.pop %v8470
        %vm8474 = vweird.f32 %v1620
        %v8475 = vand.u32 %v8471, 3
        %vm8476 = vcmp.lt.s32.totalorder %v8475, 2
        %vm8477 = vcmp.eq.s32.totalorder %v8475, 0
        %v8478 = vxor.u32 %v8473, 2147483648
        %v8479 = vsel %vm8477, %v8472, %v8478
        %vm8480 = vcmp.eq.s32.totalorder %v8475, 2
        %v8481 = vxor.u32 %v8472, 2147483648
        %v8482 = vsel %vm8480, %v8481, %v8473
        %v8483 = vsel %vm8476, %v8479, %v8482
        %v8484 = vsel %vm8474, nan, %v8483
        %v8485 = vmul.f32 %v5064, %v6939
        %v8486 = vmul.f32 %v5069, %v7042
        %v8487 = vmul.f32 %v5074, %v7145
        %v8488 = vmul.f32 %v5079, %v7248
        %v8489 = vmul.f32 %v5084, %v7351
        %v8490 = vmul.f32 %v5089, %v7454
        %v8491 = vmul.f32 %v5094, %v7557
        %v8492 = vmul.f32 %v5099, %v7660
        %v8493 = vmul.f32 %v5104, %v7763
        %v8494 = vmul.f32 %v5109, %v7866
        %v8495 = vmul.f32 %v5114, %v7969
        %v8496 = vmul.f32 %v5119, %v8072
        %v8497 = vmul.f32 %v5124, %v8175
        %v8498 = vmul.f32 %v5129, %v8278
        %v8499 = vmul.f32 %v5134, %v8381
        %v8500 = vmul.f32 %v5139, %v8484
        %v8501 = vadd.f32 %v6821, %v8485
        %v8502 = vadd.f32 %v6822, %v8486
        %v8503 = vadd.f32 %v6823, %v8487
        %v8504 = vadd.f32 %v6824, %v8488
        %v8505 = vadd.f32 %v6825, %v8489
        %v8506 = vadd.f32 %v6826, %v8490
        %v8507 = vadd.f32 %v6827, %v8491
        %v8508 = vadd.f32 %v6828, %v8492
        %v8509 = vadd.f32 %v6829, %v8493
        %v8510 = vadd.f32 %v6830, %v8494
        %v8511 = vadd.f32 %v6831, %v8495
        %v8512 = vadd.f32 %v6832, %v8496
        %v8513 = vadd.f32 %v6833, %v8497
        %v8514 = vadd.f32 %v6834, %v8498
        %v8515 = vadd.f32 %v6835, %v8499
        %v8516 = vadd.f32 %v6836, %v8500
        %v8517 = vpack.c.bf16 %v640, %v639
        %v8518 = vpack.c.bf16 %v642, %v641
        %v8519 = vpack.c.bf16 %v644, %v643
        %v8520 = vpack.c.bf16 %v646, %v645
        %v8521 = vpack.c.bf16 %v648, %v647
        %v8522 = vpack.c.bf16 %v650, %v649
        %v8523 = vpack.c.bf16 %v652, %v651
        %v8524 = vpack.c.bf16 %v654, %v653
        %v8525 = vld [vmem:[%s10] sm:$0x3]
        %v8526 = vpack.c.bf16 %v5158, %v5157
        %v8527 = vpack.c.bf16 %v5160, %v5159
        %v8528 = vpack.c.bf16 %v5162, %v5161
        %v8529 = vpack.c.bf16 %v5164, %v5163
        %v8530 = vpack.c.bf16 %v5166, %v5165
        %v8531 = vpack.c.bf16 %v5168, %v5167
        %v8532 = vpack.c.bf16 %v5170, %v5169
        %v8533 = vpack.c.bf16 %v5172, %v5171
        %v8534 = vld [vmem:[%s10] sm:$0xe]
        %v8536 = vunpack.c.l.b16 %v8534
        %v8537 = vpack.c.b16 %v8536, %v8536
        %v8539 = vshrl.u32 %v8537, 16
        %v8541 = vrot.slane %v8539, 1
        %v8542 = vshll.u32 %v8537, 16
        %v8544 = vrot.slane %v8542, 2
        %v8545 = vor.u32 %v8541, %v8544
        %vm8546 = vcmask 31744
        %v8548 = vsel %vm8546, %v8526, 0
        %v8551 = vsel %vm8546, %v8527, 0
        %v8554 = vsel %vm8546, %v8528, 0
        %v8557 = vsel %vm8546, %v8529, 0
        %v8560 = vsel %vm8546, %v8530, 0
        %v8563 = vsel %vm8546, %v8531, 0
        %v8566 = vsel %vm8546, %v8532, 0
        %v8569 = vsel %vm8546, %v8533, 0
        %vm8571 = vcmask 1041408
        %v8573 = vsel %vm8571, %v8545, 0
        %8575 = vmatprep.subr.bf16.mxu0 0
        %8576 = vmatpush1.bf16.msra.mxu0 0
        %8577 = vmatprep.subr.bf16.mxu0 0
        %8578 = vmatpush1.bf16.msra.mxu0 0
        %8579 = vmatprep.subr.bf16.mxu0 0
        %8580 = vmatpush1.bf16.msra.mxu0 0
        %8581 = vmatprep.subr.bf16.mxu0 0
        %8582 = vmatpush1.bf16.msra.mxu0 0
        %8583 = vmatprep.subr.bf16.mxu0 0
        %8584 = vmatpush1.bf16.msra.mxu0 0
        %8585 = vmatprep.subr.bf16.mxu0 0
        %8586 = vmatpush1.bf16.msra.mxu0 0
        %8587 = vmatprep.subr.bf16.mxu0 0
        %8588 = vmatpush1.bf16.msra.mxu0 0
        %8589 = vmatprep.subr.bf16.mxu0 0
        %8590 = vmatpush1.bf16.msra.mxu0 %v8573
        %8591 = vmatprep.subr.bf16.mxu0 0
        %8592 = vmatpush2.bf16.msra.mxu0 0
        %8593 = vmatprep.subr.bf16.mxu0 0
        %8594 = vmatpush2.bf16.msra.mxu0 0
        %8595 = vmatprep.subr.bf16.mxu0 0
        %8596 = vmatpush2.bf16.msra.mxu0 0
        %8597 = vmatprep.subr.bf16.mxu0 0
        %8598 = vmatpush2.bf16.msra.mxu0 0
        %8599 = vmatprep.subr.bf16.mxu0 0
        %8600 = vmatpush2.bf16.msra.mxu0 0
        %8601 = vmatprep.subr.bf16.mxu0 0
        %8602 = vmatpush2.bf16.msra.mxu0 0
        %8603 = vmatprep.subr.bf16.mxu0 0
        %8604 = vmatpush2.bf16.msra.mxu0 0
        %8605 = vmatprep.subr.bf16.mxu0 0
        %8606 = vmatpush2.bf16.msra.mxu0 0
        %8607 = vmatprep.mubr.bf16.mxu0 0
        %8608 = vmatmul.mubr.bf16.gmra.mxu0 %v8548
        %v8609 = vpop.f32.mrf.mxu0
        %v8610 = vadd.f32 0.0, %v8609
        %v8611 = vpop.f32.mrf.mxu0
        %v8612 = vpop.f32.mrf.mxu0
        %v8613 = vadd.f32 0.0, %v8612
        %v8614 = vpop.f32.mrf.mxu0
        %8615 = vmatprep.mubr.bf16.mxu0 0
        %8616 = vmatmul.mubr.bf16.gmra.mxu0 %v8551
        %v8617 = vpop.f32.mrf.mxu0
        %v8618 = vadd.f32 0.0, %v8617
        %v8619 = vpop.f32.mrf.mxu0
        %v8620 = vpop.f32.mrf.mxu0
        %v8621 = vadd.f32 0.0, %v8620
        %v8622 = vpop.f32.mrf.mxu0
        %8623 = vmatprep.mubr.bf16.mxu0 0
        %8624 = vmatmul.mubr.bf16.gmra.mxu0 %v8554
        %v8625 = vpop.f32.mrf.mxu0
        %v8626 = vadd.f32 0.0, %v8625
        %v8627 = vpop.f32.mrf.mxu0
        %v8628 = vpop.f32.mrf.mxu0
        %v8629 = vadd.f32 0.0, %v8628
        %v8630 = vpop.f32.mrf.mxu0
        %8631 = vmatprep.mubr.bf16.mxu0 0
        %8632 = vmatmul.mubr.bf16.gmra.mxu0 %v8557
        %v8633 = vpop.f32.mrf.mxu0
        %v8634 = vadd.f32 0.0, %v8633
        %v8635 = vpop.f32.mrf.mxu0
        %v8636 = vpop.f32.mrf.mxu0
        %v8637 = vadd.f32 0.0, %v8636
        %v8638 = vpop.f32.mrf.mxu0
        %8639 = vmatprep.mubr.bf16.mxu0 0
        %8640 = vmatmul.mubr.bf16.gmra.mxu0 %v8560
        %v8641 = vpop.f32.mrf.mxu0
        %v8642 = vadd.f32 0.0, %v8641
        %v8643 = vpop.f32.mrf.mxu0
        %v8644 = vpop.f32.mrf.mxu0
        %v8645 = vadd.f32 0.0, %v8644
        %v8646 = vpop.f32.mrf.mxu0
        %8647 = vmatprep.mubr.bf16.mxu0 0
        %8648 = vmatmul.mubr.bf16.gmra.mxu0 %v8563
        %v8649 = vpop.f32.mrf.mxu0
        %v8650 = vadd.f32 0.0, %v8649
        %v8651 = vpop.f32.mrf.mxu0
        %v8652 = vpop.f32.mrf.mxu0
        %v8653 = vadd.f32 0.0, %v8652
        %v8654 = vpop.f32.mrf.mxu0
        %8655 = vmatprep.mubr.bf16.mxu0 0
        %8656 = vmatmul.mubr.bf16.gmra.mxu0 %v8566
        %v8657 = vpop.f32.mrf.mxu0
        %v8658 = vadd.f32 0.0, %v8657
        %v8659 = vpop.f32.mrf.mxu0
        %v8660 = vpop.f32.mrf.mxu0
        %v8661 = vadd.f32 0.0, %v8660
        %v8662 = vpop.f32.mrf.mxu0
        %8663 = vmatprep.mubr.bf16.mxu0 0
        %8664 = vmatmul.mubr.bf16.gmra.mxu0 %v8569
        %v8665 = vpop.f32.mrf.mxu0
        %v8666 = vadd.f32 0.0, %v8665
        %v8667 = vpop.f32.mrf.mxu0
        %v8668 = vpop.f32.mrf.mxu0
        %v8669 = vadd.f32 0.0, %v8668
        %v8670 = vpop.f32.mrf.mxu0
        %8671 = vdwg.mxu0
        %vm8672 = vcmask 23552
        %v8674 = vsel %vm8672, %v8517, 0
        %v8677 = vsel %vm8672, %v8518, 0
        %v8680 = vsel %vm8672, %v8519, 0
        %v8683 = vsel %vm8672, %v8520, 0
        %v8686 = vsel %vm8672, %v8521, 0
        %v8689 = vsel %vm8672, %v8522, 0
        %v8692 = vsel %vm8672, %v8523, 0
        %v8695 = vsel %vm8672, %v8524, 0
        %vm8697 = vcmask 1040384
        %v8698 = vsel %vm8697, 4294967295, 65535
        %v8699 = vsel %vm8571, %v8698, 0
        %v8701 = vand.u32 %v8525, %v8699
        %8703 = vmatprep.subr.bf16.mxu0 0
        %8704 = vmatpush1.bf16.msra.mxu0 0
        %8705 = vmatprep.subr.bf16.mxu0 0
        %8706 = vmatpush1.bf16.msra.mxu0 0
        %8707 = vmatprep.subr.bf16.mxu0 0
        %8708 = vmatpush1.bf16.msra.mxu0 0
        %8709 = vmatprep.subr.bf16.mxu0 0
        %8710 = vmatpush1.bf16.msra.mxu0 0
        %8711 = vmatprep.subr.bf16.mxu0 0
        %8712 = vmatpush1.bf16.msra.mxu0 0
        %8713 = vmatprep.subr.bf16.mxu0 0
        %8714 = vmatpush1.bf16.msra.mxu0 0
        %8715 = vmatprep.subr.bf16.mxu0 0
        %8716 = vmatpush1.bf16.msra.mxu0 0
        %8717 = vmatprep.subr.bf16.mxu0 0
        %8718 = vmatpush1.bf16.msra.mxu0 %v8701
        %8719 = vmatprep.subr.bf16.mxu0 0
        %8720 = vmatpush2.bf16.msra.mxu0 0
        %8721 = vmatprep.subr.bf16.mxu0 0
        %8722 = vmatpush2.bf16.msra.mxu0 0
        %8723 = vmatprep.subr.bf16.mxu0 0
        %8724 = vmatpush2.bf16.msra.mxu0 0
        %8725 = vmatprep.subr.bf16.mxu0 0
        %8726 = vmatpush2.bf16.msra.mxu0 0
        %8727 = vmatprep.subr.bf16.mxu0 0
        %8728 = vmatpush2.bf16.msra.mxu0 0
        %8729 = vmatprep.subr.bf16.mxu0 0
        %8730 = vmatpush2.bf16.msra.mxu0 0
        %8731 = vmatprep.subr.bf16.mxu0 0
        %8732 = vmatpush2.bf16.msra.mxu0 0
        %8733 = vmatprep.subr.bf16.mxu0 0
        %8734 = vmatpush2.bf16.msra.mxu0 0
        %8735 = vmatprep.mubr.bf16.mxu0 0
        %8736 = vmatmul.mubr.bf16.gmra.mxu0 %v8674
        %v8737 = vpop.f32.mrf.mxu0
        %v8738 = vadd.f32 %v8610, %v8737
        %v8739 = vpop.f32.mrf.mxu0
        %v8740 = vpop.f32.mrf.mxu0
        %v8741 = vadd.f32 %v8613, %v8740
        %v8742 = vpop.f32.mrf.mxu0
        %8743 = vmatprep.mubr.bf16.mxu0 0
        %8744 = vmatmul.mubr.bf16.gmra.mxu0 %v8677
        %v8745 = vpop.f32.mrf.mxu0
        %v8746 = vadd.f32 %v8618, %v8745
        %v8747 = vpop.f32.mrf.mxu0
        %v8748 = vpop.f32.mrf.mxu0
        %v8749 = vadd.f32 %v8621, %v8748
        %v8750 = vpop.f32.mrf.mxu0
        %8751 = vmatprep.mubr.bf16.mxu0 0
        %8752 = vmatmul.mubr.bf16.gmra.mxu0 %v8680
        %v8753 = vpop.f32.mrf.mxu0
        %v8754 = vadd.f32 %v8626, %v8753
        %v8755 = vpop.f32.mrf.mxu0
        %v8756 = vpop.f32.mrf.mxu0
        %v8757 = vadd.f32 %v8629, %v8756
        %v8758 = vpop.f32.mrf.mxu0
        %8759 = vmatprep.mubr.bf16.mxu0 0
        %8760 = vmatmul.mubr.bf16.gmra.mxu0 %v8683
        %v8761 = vpop.f32.mrf.mxu0
        %v8762 = vadd.f32 %v8634, %v8761
        %v8763 = vpop.f32.mrf.mxu0
        %v8764 = vpop.f32.mrf.mxu0
        %v8765 = vadd.f32 %v8637, %v8764
        %v8766 = vpop.f32.mrf.mxu0
        %8767 = vmatprep.mubr.bf16.mxu0 0
        %8768 = vmatmul.mubr.bf16.gmra.mxu0 %v8686
        %v8769 = vpop.f32.mrf.mxu0
        %v8770 = vadd.f32 %v8642, %v8769
        %v8771 = vpop.f32.mrf.mxu0
        %v8772 = vpop.f32.mrf.mxu0
        %v8773 = vadd.f32 %v8645, %v8772
        %v8774 = vpop.f32.mrf.mxu0
        %8775 = vmatprep.mubr.bf16.mxu0 0
        %8776 = vmatmul.mubr.bf16.gmra.mxu0 %v8689
        %v8777 = vpop.f32.mrf.mxu0
        %v8778 = vadd.f32 %v8650, %v8777
        %v8779 = vpop.f32.mrf.mxu0
        %v8780 = vpop.f32.mrf.mxu0
        %v8781 = vadd.f32 %v8653, %v8780
        %v8782 = vpop.f32.mrf.mxu0
        %8783 = vmatprep.mubr.bf16.mxu0 0
        %8784 = vmatmul.mubr.bf16.gmra.mxu0 %v8692
        %v8785 = vpop.f32.mrf.mxu0
        %v8786 = vadd.f32 %v8658, %v8785
        %v8787 = vpop.f32.mrf.mxu0
        %v8788 = vpop.f32.mrf.mxu0
        %v8789 = vadd.f32 %v8661, %v8788
        %v8790 = vpop.f32.mrf.mxu0
        %8791 = vmatprep.mubr.bf16.mxu0 0
        %8792 = vmatmul.mubr.bf16.gmra.mxu0 %v8695
        %v8793 = vpop.f32.mrf.mxu0
        %v8794 = vadd.f32 %v8666, %v8793
        %v8795 = vpop.f32.mrf.mxu0
        %v8796 = vpop.f32.mrf.mxu0
        %v8797 = vadd.f32 %v8669, %v8796
        %v8798 = vpop.f32.mrf.mxu0
        %8799 = vdwg.mxu0
        %v8800 = vpack.c.bf16 %v8502, %v8501
        %v8801 = vpack.c.bf16 %v8504, %v8503
        %v8802 = vpack.c.bf16 %v8506, %v8505
        %v8803 = vpack.c.bf16 %v8508, %v8507
        %v8804 = vpack.c.bf16 %v8510, %v8509
        %v8805 = vpack.c.bf16 %v8512, %v8511
        %v8806 = vpack.c.bf16 %v8514, %v8513
        %v8807 = vpack.c.bf16 %v8516, %v8515
        %v8808 = vld [vmem:[%s10] sm:$0x8]
        %v8809 = vld [vmem:[%s10 + $0x4] sm:$0x3]
        %v8812 = vunpack.c.l.b16 %v8808
        %v8813 = vunpack.c.l.b16 %v8809
        %v8814 = vpack.c.b16 %v8813, %v8812
        %v8816 = vshrl.u32 %v8814, 16
        %v8818 = vrot.slane %v8816, 3
        %v8819 = vshll.u32 %v8814, 16
        %v8821 = vrot.slane %v8819, 4
        %v8822 = vor.u32 %v8818, %v8821
        %v8824 = vsel %vm8546, %v8800, 0
        %v8827 = vsel %vm8546, %v8801, 0
        %v8830 = vsel %vm8546, %v8802, 0
        %v8833 = vsel %vm8546, %v8803, 0
        %v8836 = vsel %vm8546, %v8804, 0
        %v8839 = vsel %vm8546, %v8805, 0
        %v8842 = vsel %vm8546, %v8806, 0
        %v8845 = vsel %vm8546, %v8807, 0
        %v8848 = vsel %vm8571, %v8822, 0
        %8850 = vmatprep.subr.bf16.mxu0 0
        %8851 = vmatpush1.bf16.msra.mxu0 0
        %8852 = vmatprep.subr.bf16.mxu0 0
        %8853 = vmatpush1.bf16.msra.mxu0 0
        %8854 = vmatprep.subr.bf16.mxu0 0
        %8855 = vmatpush1.bf16.msra.mxu0 0
        %8856 = vmatprep.subr.bf16.mxu0 0
        %8857 = vmatpush1.bf16.msra.mxu0 0
        %8858 = vmatprep.subr.bf16.mxu0 0
        %8859 = vmatpush1.bf16.msra.mxu0 0
        %8860 = vmatprep.subr.bf16.mxu0 0
        %8861 = vmatpush1.bf16.msra.mxu0 0
        %8862 = vmatprep.subr.bf16.mxu0 0
        %8863 = vmatpush1.bf16.msra.mxu0 0
        %8864 = vmatprep.subr.bf16.mxu0 0
        %8865 = vmatpush1.bf16.msra.mxu0 %v8848
        %8866 = vmatprep.subr.bf16.mxu0 0
        %8867 = vmatpush2.bf16.msra.mxu0 0
        %8868 = vmatprep.subr.bf16.mxu0 0
        %8869 = vmatpush2.bf16.msra.mxu0 0
        %8870 = vmatprep.subr.bf16.mxu0 0
        %8871 = vmatpush2.bf16.msra.mxu0 0
        %8872 = vmatprep.subr.bf16.mxu0 0
        %8873 = vmatpush2.bf16.msra.mxu0 0
        %8874 = vmatprep.subr.bf16.mxu0 0
        %8875 = vmatpush2.bf16.msra.mxu0 0
        %8876 = vmatprep.subr.bf16.mxu0 0
        %8877 = vmatpush2.bf16.msra.mxu0 0
        %8878 = vmatprep.subr.bf16.mxu0 0
        %8879 = vmatpush2.bf16.msra.mxu0 0
        %8880 = vmatprep.subr.bf16.mxu0 0
        %8881 = vmatpush2.bf16.msra.mxu0 0
        %8882 = vmatprep.mubr.bf16.mxu0 0
        %8883 = vmatmul.mubr.bf16.gmra.mxu0 %v8824
        %v8884 = vpop.f32.mrf.mxu0
        %v8885 = vadd.f32 0.0, %v8884
        %v8886 = vpop.f32.mrf.mxu0
        %v8887 = vpop.f32.mrf.mxu0
        %v8888 = vadd.f32 0.0, %v8887
        %v8889 = vpop.f32.mrf.mxu0
        %8890 = vmatprep.mubr.bf16.mxu0 0
        %8891 = vmatmul.mubr.bf16.gmra.mxu0 %v8827
        %v8892 = vpop.f32.mrf.mxu0
        %v8893 = vadd.f32 0.0, %v8892
        %v8894 = vpop.f32.mrf.mxu0
        %v8895 = vpop.f32.mrf.mxu0
        %v8896 = vadd.f32 0.0, %v8895
        %v8897 = vpop.f32.mrf.mxu0
        %8898 = vmatprep.mubr.bf16.mxu0 0
        %8899 = vmatmul.mubr.bf16.gmra.mxu0 %v8830
        %v8900 = vpop.f32.mrf.mxu0
        %v8901 = vadd.f32 0.0, %v8900
        %v8902 = vpop.f32.mrf.mxu0
        %v8903 = vpop.f32.mrf.mxu0
        %v8904 = vadd.f32 0.0, %v8903
        %v8905 = vpop.f32.mrf.mxu0
        %8906 = vmatprep.mubr.bf16.mxu0 0
        %8907 = vmatmul.mubr.bf16.gmra.mxu0 %v8833
        %v8908 = vpop.f32.mrf.mxu0
        %v8909 = vadd.f32 0.0, %v8908
        %v8910 = vpop.f32.mrf.mxu0
        %v8911 = vpop.f32.mrf.mxu0
        %v8912 = vadd.f32 0.0, %v8911
        %v8913 = vpop.f32.mrf.mxu0
        %8914 = vmatprep.mubr.bf16.mxu0 0
        %8915 = vmatmul.mubr.bf16.gmra.mxu0 %v8836
        %v8916 = vpop.f32.mrf.mxu0
        %v8917 = vadd.f32 0.0, %v8916
        %v8918 = vpop.f32.mrf.mxu0
        %v8919 = vpop.f32.mrf.mxu0
        %v8920 = vadd.f32 0.0, %v8919
        %v8921 = vpop.f32.mrf.mxu0
        %8922 = vmatprep.mubr.bf16.mxu0 0
        %8923 = vmatmul.mubr.bf16.gmra.mxu0 %v8839
        %v8924 = vpop.f32.mrf.mxu0
        %v8925 = vadd.f32 0.0, %v8924
        %v8926 = vpop.f32.mrf.mxu0
        %v8927 = vpop.f32.mrf.mxu0
        %v8928 = vadd.f32 0.0, %v8927
        %v8929 = vpop.f32.mrf.mxu0
        %8930 = vmatprep.mubr.bf16.mxu0 0
        %8931 = vmatmul.mubr.bf16.gmra.mxu0 %v8842
        %v8932 = vpop.f32.mrf.mxu0
        %v8933 = vadd.f32 0.0, %v8932
        %v8934 = vpop.f32.mrf.mxu0
        %v8935 = vpop.f32.mrf.mxu0
        %v8936 = vadd.f32 0.0, %v8935
        %v8937 = vpop.f32.mrf.mxu0
        %8938 = vmatprep.mubr.bf16.mxu0 0
        %8939 = vmatmul.mubr.bf16.gmra.mxu0 %v8845
        %v8940 = vpop.f32.mrf.mxu0
        %v8941 = vadd.f32 0.0, %v8940
        %v8942 = vpop.f32.mrf.mxu0
        %v8943 = vpop.f32.mrf.mxu0
        %v8944 = vadd.f32 0.0, %v8943
        %v8945 = vpop.f32.mrf.mxu0
        %8946 = vdwg.mxu0
        %v8947 = vadd.f32 %v8738, %v8885
        %v8948 = vadd.f32 %v8741, %v8888
        %v8949 = vadd.f32 %v8746, %v8893
        %v8950 = vadd.f32 %v8749, %v8896
        %v8951 = vadd.f32 %v8754, %v8901
        %v8952 = vadd.f32 %v8757, %v8904
        %v8953 = vadd.f32 %v8762, %v8909
        %v8954 = vadd.f32 %v8765, %v8912
        %v8955 = vadd.f32 %v8770, %v8917
        %v8956 = vadd.f32 %v8773, %v8920
        %v8957 = vadd.f32 %v8778, %v8925
        %v8958 = vadd.f32 %v8781, %v8928
        %v8959 = vadd.f32 %v8786, %v8933
        %v8960 = vadd.f32 %v8789, %v8936
        %v8961 = vadd.f32 %v8794, %v8941
        %v8962 = vadd.f32 %v8797, %v8944
        %v8963 = vld [vmem:[%s4] sm:$0xff]
        %v8964 = vld [vmem:[%s4 + $0x8] sm:$0xff]
        %v8965 = vadd.f32 %v8947, %v8963
        %v8966 = vadd.f32 %v8948, %v8964
        %v8967 = vadd.f32 %v8949, %v8963
        %v8968 = vadd.f32 %v8950, %v8964
        %v8969 = vadd.f32 %v8951, %v8963
        %v8970 = vadd.f32 %v8952, %v8964
        %v8971 = vadd.f32 %v8953, %v8963
        %v8972 = vadd.f32 %v8954, %v8964
        %v8973 = vadd.f32 %v8955, %v8963
        %v8974 = vadd.f32 %v8956, %v8964
        %v8975 = vadd.f32 %v8957, %v8963
        %v8976 = vadd.f32 %v8958, %v8964
        %v8977 = vadd.f32 %v8959, %v8963
        %v8978 = vadd.f32 %v8960, %v8964
        %v8979 = vadd.f32 %v8961, %v8963
        %v8980 = vadd.f32 %v8962, %v8964
        %v8981 = vld [vmem:[%s637] sm:$0xff]
        %v8983 = vcombine.high %v8981, %v8981
        %v8985 = vunpack.c.l.s4 1966171168
        %v8986 = vunpack.c.0.s8 %v8985
        %v8987 = vlaneseq
        %v8988 = vshrl.u32 %v8987, 7
        %v8989 = vsub.s32 %v8986, %v8988
        %v8990 = vrot.slane %v8981, %v8989
        %v8992 = vunpack.c.l.s4 1966171168
        %v8993 = vunpack.c.0.s8 %v8992
        %v8994 = vlaneseq
        %v8995 = vshrl.u32 %v8994, 7
        %v8996 = vsub.s32 %v8993, %v8995
        %v8997 = vrot.slane %v8983, %v8996
        %v8998 = vcombine.high %v8990, %v8990
        %v8999 = vcombine.high %v8997, %v8997
        %v9001 = vunpack.c.l.s4 1966171168
        %v9002 = vunpack.c.0.s8 %v9001
        %v9003 = vlaneseq
        %v9004 = vshrl.u32 %v9003, 7
        %v9005 = vsub.s32 %v9002, %v9004
        %v9006 = vrot.slane %v8990, %v9005
        %v9008 = vunpack.c.l.s4 1966171168
        %v9009 = vunpack.c.0.s8 %v9008
        %v9010 = vlaneseq
        %v9011 = vshrl.u32 %v9010, 7
        %v9012 = vsub.s32 %v9009, %v9011
        %v9013 = vrot.slane %v8997, %v9012
        %v9015 = vunpack.c.l.s4 1966171168
        %v9016 = vunpack.c.0.s8 %v9015
        %v9017 = vlaneseq
        %v9018 = vshrl.u32 %v9017, 7
        %v9019 = vsub.s32 %v9016, %v9018
        %v9020 = vrot.slane %v8998, %v9019
        %v9022 = vunpack.c.l.s4 1966171168
        %v9023 = vunpack.c.0.s8 %v9022
        %v9024 = vlaneseq
        %v9025 = vshrl.u32 %v9024, 7
        %v9026 = vsub.s32 %v9023, %v9025
        %v9027 = vrot.slane %v8999, %v9026
        %v9028 = vcombine.high %v9006, %v9006
        %v9029 = vcombine.high %v9013, %v9013
        %v9030 = vcombine.high %v9020, %v9020
        %v9031 = vcombine.high %v9027, %v9027
        %v9032 = vlaneseq
        %v9033 = vshrl.u32 %v9032, 7
        %v9034 = vsub.s32 0, %v9033
        %v9035 = vrot.slane %v9006, %v9034
        %v9036 = vlaneseq
        %v9037 = vshrl.u32 %v9036, 7
        %v9038 = vsub.s32 0, %v9037
        %v9039 = vrot.slane %v9020, %v9038
        %v9040 = vlaneseq
        %v9041 = vshrl.u32 %v9040, 7
        %v9042 = vsub.s32 0, %v9041
        %v9043 = vrot.slane %v9028, %v9042
        %v9044 = vlaneseq
        %v9045 = vshrl.u32 %v9044, 7
        %v9046 = vsub.s32 0, %v9045
        %v9047 = vrot.slane %v9030, %v9046
        %v9048 = vlaneseq
        %v9049 = vshrl.u32 %v9048, 7
        %v9050 = vsub.s32 0, %v9049
        %v9051 = vrot.slane %v9013, %v9050
        %v9052 = vlaneseq
        %v9053 = vshrl.u32 %v9052, 7
        %v9054 = vsub.s32 0, %v9053
        %v9055 = vrot.slane %v9027, %v9054
        %v9056 = vlaneseq
        %v9057 = vshrl.u32 %v9056, 7
        %v9058 = vsub.s32 0, %v9057
        %v9059 = vrot.slane %v9029, %v9058
        %v9060 = vlaneseq
        %v9061 = vshrl.u32 %v9060, 7
        %v9062 = vsub.s32 0, %v9061
        %v9063 = vrot.slane %v9031, %v9062
        %v9072 = vadd.f32 %v8965, %v9035
        %v9073 = vadd.f32 %v8966, %v9035
        %v9074 = vadd.f32 %v8967, %v9039
        %v9075 = vadd.f32 %v8968, %v9039
        %v9076 = vadd.f32 %v8969, %v9043
        %v9077 = vadd.f32 %v8970, %v9043
        %v9078 = vadd.f32 %v8971, %v9047
        %v9079 = vadd.f32 %v8972, %v9047
        %v9080 = vadd.f32 %v8973, %v9051
        %v9081 = vadd.f32 %v8974, %v9051
        %v9082 = vadd.f32 %v8975, %v9055
        %v9083 = vadd.f32 %v8976, %v9055
        %v9084 = vadd.f32 %v8977, %v9059
        %v9085 = vadd.f32 %v8978, %v9059
        %v9086 = vadd.f32 %v8979, %v9063
        %v9087 = vadd.f32 %v8980, %v9063
        %v9088 = vtanh.pop %v9072
        %v9089 = vtanh.pop %v9073
        %v9090 = vtanh.pop %v9074
        %v9091 = vtanh.pop %v9075
        %v9092 = vtanh.pop %v9076
        %v9093 = vtanh.pop %v9077
        %v9094 = vtanh.pop %v9078
        %v9095 = vtanh.pop %v9079
        %v9096 = vtanh.pop %v9080
        %v9097 = vtanh.pop %v9081
        %v9098 = vtanh.pop %v9082
        %v9099 = vtanh.pop %v9083
        %v9100 = vtanh.pop %v9084
        %v9101 = vtanh.pop %v9085
        %v9102 = vtanh.pop %v9086
        %v9103 = vtanh.pop %v9087
        %v9104 = vld [vmem:[%s11] sm:$0x1]
        %v9106 = vlaneseq
        %v9107 = vshrl.u32 %v9106, 7
        %v9108 = vsub.s32 0, %v9107
        %v9109 = vrot.slane %v9104, %v9108
        %v9111 = vmul.f32 %v9109, %v9088
        %v9112 = vmul.f32 %v9109, %v9089
        %v9113 = vmul.f32 %v9109, %v9090
        %v9114 = vmul.f32 %v9109, %v9091
        %v9115 = vmul.f32 %v9109, %v9092
        %v9116 = vmul.f32 %v9109, %v9093
        %v9117 = vmul.f32 %v9109, %v9094
        %v9118 = vmul.f32 %v9109, %v9095
        %v9119 = vmul.f32 %v9109, %v9096
        %v9120 = vmul.f32 %v9109, %v9097
        %v9121 = vmul.f32 %v9109, %v9098
        %v9122 = vmul.f32 %v9109, %v9099
        %v9123 = vmul.f32 %v9109, %v9100
        %v9124 = vmul.f32 %v9109, %v9101
        %v9125 = vmul.f32 %v9109, %v9102
        %v9126 = vmul.f32 %v9109, %v9103
        %vm9127 = vcmask 261120
        %v9128 = vsel %vm9127, %v9111, 0.0
        %9129 = vadd.xlane.f32.xlu0 %v9128
        %v9130 = vpop.xlane.xlu0 %9129
        %v9131 = vsel %vm9127, %v9112, 0.0
        %9132 = vadd.xlane.f32.xlu0 %v9131
        %v9133 = vpop.xlane.xlu0 %9132
        %v9134 = vsel %vm9127, %v9113, 0.0
        %9135 = vadd.xlane.f32.xlu0 %v9134
        %v9136 = vpop.xlane.xlu0 %9135
        %v9137 = vsel %vm9127, %v9114, 0.0
        %9138 = vadd.xlane.f32.xlu0 %v9137
        %v9139 = vpop.xlane.xlu0 %9138
        %v9140 = vsel %vm9127, %v9115, 0.0
        %9141 = vadd.xlane.f32.xlu0 %v9140
        %v9142 = vpop.xlane.xlu0 %9141
        %v9143 = vsel %vm9127, %v9116, 0.0
        %9144 = vadd.xlane.f32.xlu0 %v9143
        %v9145 = vpop.xlane.xlu0 %9144
        %v9146 = vsel %vm9127, %v9117, 0.0
        %9147 = vadd.xlane.f32.xlu0 %v9146
        %v9148 = vpop.xlane.xlu0 %9147
        %v9149 = vsel %vm9127, %v9118, 0.0
        %9150 = vadd.xlane.f32.xlu0 %v9149
        %v9151 = vpop.xlane.xlu0 %9150
        %v9152 = vsel %vm9127, %v9119, 0.0
        %9153 = vadd.xlane.f32.xlu0 %v9152
        %v9154 = vpop.xlane.xlu0 %9153
        %v9155 = vsel %vm9127, %v9120, 0.0
        %9156 = vadd.xlane.f32.xlu0 %v9155
        %v9157 = vpop.xlane.xlu0 %9156
        %v9158 = vsel %vm9127, %v9121, 0.0
        %9159 = vadd.xlane.f32.xlu0 %v9158
        %v9160 = vpop.xlane.xlu0 %9159
        %v9161 = vsel %vm9127, %v9122, 0.0
        %9162 = vadd.xlane.f32.xlu0 %v9161
        %v9163 = vpop.xlane.xlu0 %9162
        %v9164 = vsel %vm9127, %v9123, 0.0
        %9165 = vadd.xlane.f32.xlu0 %v9164
        %v9166 = vpop.xlane.xlu0 %9165
        %v9167 = vsel %vm9127, %v9124, 0.0
        %9168 = vadd.xlane.f32.xlu0 %v9167
        %v9169 = vpop.xlane.xlu0 %9168
        %v9170 = vsel %vm9127, %v9125, 0.0
        %9171 = vadd.xlane.f32.xlu0 %v9170
        %v9172 = vpop.xlane.xlu0 %9171
        %v9173 = vsel %vm9127, %v9126, 0.0
        %9174 = vadd.xlane.f32.xlu0 %v9173
        %v9175 = vpop.xlane.xlu0 %9174
        %v9176 = vld [vmem:[%s633] sm:$0xff]
        %vm9177 = vcmp.gt.f32.partialorder %v9176, 0.5
        %v9194 = vlaneseq
        %v9195 = vand.u32 %v9194, 127
        %v9196 = vlaneseq
        %v9197 = vshrl.u32 %v9196, 7
        %v9198 = vsub.s32 %v9195, %v9197
        %v9199 = vrot.slane %v9130, %v9198
        %v9200 = vadd.s32 %v9195, 4294967288
        %v9201 = vlaneseq
        %v9202 = vshrl.u32 %v9201, 7
        %v9203 = vsub.s32 %v9200, %v9202
        %v9204 = vrot.slane %v9133, %v9203
        %vm9205 = vcmask 130112
        %v9206 = vsel %vm9205, %v9204, %v9199
        %v9207 = vlaneseq
        %v9208 = vshrl.u32 %v9207, 7
        %v9209 = vsub.s32 %v9195, %v9208
        %v9210 = vrot.slane %v9136, %v9209
        %v9211 = vlaneseq
        %v9212 = vshrl.u32 %v9211, 7
        %v9213 = vsub.s32 %v9200, %v9212
        %v9214 = vrot.slane %v9139, %v9213
        %v9215 = vsel %vm9205, %v9214, %v9210
        %v9216 = vlaneseq
        %v9217 = vshrl.u32 %v9216, 7
        %v9218 = vsub.s32 %v9195, %v9217
        %v9219 = vrot.slane %v9142, %v9218
        %v9220 = vlaneseq
        %v9221 = vshrl.u32 %v9220, 7
        %v9222 = vsub.s32 %v9200, %v9221
        %v9223 = vrot.slane %v9145, %v9222
        %v9224 = vsel %vm9205, %v9223, %v9219
        %v9225 = vlaneseq
        %v9226 = vshrl.u32 %v9225, 7
        %v9227 = vsub.s32 %v9195, %v9226
        %v9228 = vrot.slane %v9148, %v9227
        %v9229 = vlaneseq
        %v9230 = vshrl.u32 %v9229, 7
        %v9231 = vsub.s32 %v9200, %v9230
        %v9232 = vrot.slane %v9151, %v9231
        %v9233 = vsel %vm9205, %v9232, %v9228
        %v9234 = vlaneseq
        %v9235 = vshrl.u32 %v9234, 7
        %v9236 = vsub.s32 %v9195, %v9235
        %v9237 = vrot.slane %v9154, %v9236
        %v9238 = vlaneseq
        %v9239 = vshrl.u32 %v9238, 7
        %v9240 = vsub.s32 %v9200, %v9239
        %v9241 = vrot.slane %v9157, %v9240
        %v9242 = vsel %vm9205, %v9241, %v9237
        %v9243 = vlaneseq
        %v9244 = vshrl.u32 %v9243, 7
        %v9245 = vsub.s32 %v9195, %v9244
        %v9246 = vrot.slane %v9160, %v9245
        %v9247 = vlaneseq
        %v9248 = vshrl.u32 %v9247, 7
        %v9249 = vsub.s32 %v9200, %v9248
        %v9250 = vrot.slane %v9163, %v9249
        %v9251 = vsel %vm9205, %v9250, %v9246
        %v9252 = vlaneseq
        %v9253 = vshrl.u32 %v9252, 7
        %v9254 = vsub.s32 %v9195, %v9253
        %v9255 = vrot.slane %v9166, %v9254
        %v9256 = vlaneseq
        %v9257 = vshrl.u32 %v9256, 7
        %v9258 = vsub.s32 %v9200, %v9257
        %v9259 = vrot.slane %v9169, %v9258
        %v9260 = vsel %vm9205, %v9259, %v9255
        %v9261 = vlaneseq
        %v9262 = vshrl.u32 %v9261, 7
        %v9263 = vsub.s32 %v9195, %v9262
        %v9264 = vrot.slane %v9172, %v9263
        %v9265 = vlaneseq
        %v9266 = vshrl.u32 %v9265, 7
        %v9267 = vsub.s32 %v9200, %v9266
        %v9268 = vrot.slane %v9175, %v9267
        %v9269 = vsel %vm9205, %v9268, %v9264
        %vm9270 = vcmask 1041409
        %v9271 = vsel %vm9270, %v9215, %v9206
        %vm9272 = vcmask 1042434
        %v9273 = vsel %vm9272, %v9224, %v9271
        %vm9274 = vcmask 1043459
        %v9275 = vsel %vm9274, %v9233, %v9273
        %vm9276 = vcmask 1044484
        %v9277 = vsel %vm9276, %v9242, %v9275
        %vm9278 = vcmask 1045509
        %v9279 = vsel %vm9278, %v9251, %v9277
        %vm9280 = vcmask 1046534
        %v9281 = vsel %vm9280, %v9260, %v9279
        %vm9282 = vcmask 1047559
        %v9283 = vsel %vm9282, %v9269, %v9281
        %v9285 = vsel %vm9177, %v9283, -1e+09
        %vm9286 = vcmask 130048
        %v9287 = vsel %vm9286, %v9285, -inf
        %9288 = vmax.xlane.f32.xlu0 %v9287
        %v9289 = vpop.xlane.xlu0 %9288
        %v9290 = vsub.f32 %v9285, %v9289
        %v9291 = vmul.f32 %v9290, 1.442695
        %v9292 = vpow.pop %v9291
        %v9293 = vsel %vm9286, %v9292, 0.0
        %9294 = vadd.xlane.f32.xlu0 %v9293
        %v9295 = vpop.xlane.xlu0 %9294
        %v9296 = vrcp.pop %v9295
        %v9297 = vmul.f32 %v9292, %v9296
        %v9298 = vpack.c.bf16 %v9297, %v9297
        %v9299 = vld [vmem:[%s3] sm:$0xf]
        %v9300 = vld [vmem:[%s3 + $0x4] sm:$0xf]
        %v9301 = vlaneseq
        %v9302 = vshrl.u32 %v9301, 7
        %v9303 = vsub.s32 0, %v9302
        %v9304 = vrot.slane %v9297, %v9303
        %9306 = vbcast.lane.b32.xlu0 %v9304, 256
        %v9307 = vpop.permute.xlu0 %9306
        %s9309 = sor.u32 256, 8
        %9310 = vbcast.lane.b32.xlu0 %v9304, %s9309
        %v9311 = vpop.permute.xlu0 %9310
        %v9312 = vlaneseq
        %v9313 = vshrl.u32 %v9312, 7
        %v9314 = vsub.s32 1, %v9313
        %v9315 = vrot.slane %v9297, %v9314
        %9317 = vbcast.lane.b32.xlu0 %v9315, 256
        %v9318 = vpop.permute.xlu0 %9317
        %s9320 = sor.u32 256, 8
        %9321 = vbcast.lane.b32.xlu0 %v9315, %s9320
        %v9322 = vpop.permute.xlu0 %9321
        %v9323 = vlaneseq
        %v9324 = vshrl.u32 %v9323, 7
        %v9325 = vsub.s32 2, %v9324
        %v9326 = vrot.slane %v9297, %v9325
        %9328 = vbcast.lane.b32.xlu0 %v9326, 256
        %v9329 = vpop.permute.xlu0 %9328
        %s9331 = sor.u32 256, 8
        %9332 = vbcast.lane.b32.xlu0 %v9326, %s9331
        %v9333 = vpop.permute.xlu0 %9332
        %v9334 = vlaneseq
        %v9335 = vshrl.u32 %v9334, 7
        %v9336 = vsub.s32 3, %v9335
        %v9337 = vrot.slane %v9297, %v9336
        %9339 = vbcast.lane.b32.xlu0 %v9337, 256
        %v9340 = vpop.permute.xlu0 %9339
        %s9342 = sor.u32 256, 8
        %9343 = vbcast.lane.b32.xlu0 %v9337, %s9342
        %v9344 = vpop.permute.xlu0 %9343
        %v9345 = vlaneseq
        %v9346 = vshrl.u32 %v9345, 7
        %v9347 = vsub.s32 4, %v9346
        %v9348 = vrot.slane %v9297, %v9347
        %9350 = vbcast.lane.b32.xlu0 %v9348, 256
        %v9351 = vpop.permute.xlu0 %9350
        %s9353 = sor.u32 256, 8
        %9354 = vbcast.lane.b32.xlu0 %v9348, %s9353
        %v9355 = vpop.permute.xlu0 %9354
        %v9356 = vlaneseq
        %v9357 = vshrl.u32 %v9356, 7
        %v9358 = vsub.s32 5, %v9357
        %v9359 = vrot.slane %v9297, %v9358
        %9361 = vbcast.lane.b32.xlu0 %v9359, 256
        %v9362 = vpop.permute.xlu0 %9361
        %s9364 = sor.u32 256, 8
        %9365 = vbcast.lane.b32.xlu0 %v9359, %s9364
        %v9366 = vpop.permute.xlu0 %9365
        %v9367 = vlaneseq
        %v9368 = vshrl.u32 %v9367, 7
        %v9369 = vsub.s32 6, %v9368
        %v9370 = vrot.slane %v9297, %v9369
        %9372 = vbcast.lane.b32.xlu0 %v9370, 256
        %v9373 = vpop.permute.xlu0 %9372
        %s9375 = sor.u32 256, 8
        %9376 = vbcast.lane.b32.xlu0 %v9370, %s9375
        %v9377 = vpop.permute.xlu0 %9376
        %v9378 = vlaneseq
        %v9379 = vshrl.u32 %v9378, 7
        %v9380 = vsub.s32 7, %v9379
        %v9381 = vrot.slane %v9297, %v9380
        %9383 = vbcast.lane.b32.xlu0 %v9381, 256
        %v9384 = vpop.permute.xlu0 %9383
        %s9386 = sor.u32 256, 8
        %9387 = vbcast.lane.b32.xlu0 %v9381, %s9386
        %v9388 = vpop.permute.xlu0 %9387
        %v9389 = vmul.f32 %v9307, %v639
        %v9390 = vmul.f32 %v9311, %v640
        %v9391 = vmul.f32 %v9318, %v641
        %v9392 = vmul.f32 %v9322, %v642
        %v9393 = vmul.f32 %v9329, %v643
        %v9394 = vmul.f32 %v9333, %v644
        %v9395 = vmul.f32 %v9340, %v645
        %v9396 = vmul.f32 %v9344, %v646
        %v9397 = vmul.f32 %v9351, %v647
        %v9398 = vmul.f32 %v9355, %v648
        %v9399 = vmul.f32 %v9362, %v649
        %v9400 = vmul.f32 %v9366, %v650
        %v9401 = vmul.f32 %v9373, %v651
        %v9402 = vmul.f32 %v9377, %v652
        %v9403 = vmul.f32 %v9384, %v653
        %v9404 = vmul.f32 %v9388, %v654
        %v9405 = vsel %vm8672, %v9389, 0.0
        %v9406 = vsel %vm8672, %v9390, 0.0
        %v9407 = vadd.f32 %v9405, %v9406
        %v9408 = vrot.slane %v9407, 4
        %v9409 = vadd.f32 %v9407, %v9408
        %v9410 = vrot.slane %v9409, 2
        %v9411 = vadd.f32 %v9409, %v9410
        %v9412 = vrot.slane %v9411, 1
        %v9413 = vadd.f32 %v9411, %v9412
        %v9414 = vsel %vm8672, %v9391, 0.0
        %v9415 = vsel %vm8672, %v9392, 0.0
        %v9416 = vadd.f32 %v9414, %v9415
        %v9417 = vrot.slane %v9416, 4
        %v9418 = vadd.f32 %v9416, %v9417
        %v9419 = vrot.slane %v9418, 2
        %v9420 = vadd.f32 %v9418, %v9419
        %v9421 = vrot.slane %v9420, 1
        %v9422 = vadd.f32 %v9420, %v9421
        %v9423 = vsel %vm8672, %v9393, 0.0
        %v9424 = vsel %vm8672, %v9394, 0.0
        %v9425 = vadd.f32 %v9423, %v9424
        %v9426 = vrot.slane %v9425, 4
        %v9427 = vadd.f32 %v9425, %v9426
        %v9428 = vrot.slane %v9427, 2
        %v9429 = vadd.f32 %v9427, %v9428
        %v9430 = vrot.slane %v9429, 1
        %v9431 = vadd.f32 %v9429, %v9430
        %v9432 = vsel %vm8672, %v9395, 0.0
        %v9433 = vsel %vm8672, %v9396, 0.0
        %v9434 = vadd.f32 %v9432, %v9433
        %v9435 = vrot.slane %v9434, 4
        %v9436 = vadd.f32 %v9434, %v9435
        %v9437 = vrot.slane %v9436, 2
        %v9438 = vadd.f32 %v9436, %v9437
        %v9439 = vrot.slane %v9438, 1
        %v9440 = vadd.f32 %v9438, %v9439
        %v9441 = vsel %vm8672, %v9397, 0.0
        %v9442 = vsel %vm8672, %v9398, 0.0
        %v9443 = vadd.f32 %v9441, %v9442
        %v9444 = vrot.slane %v9443, 4
        %v9445 = vadd.f32 %v9443, %v9444
        %v9446 = vrot.slane %v9445, 2
        %v9447 = vadd.f32 %v9445, %v9446
        %v9448 = vrot.slane %v9447, 1
        %v9449 = vadd.f32 %v9447, %v9448
        %v9450 = vsel %vm8672, %v9399, 0.0
        %v9451 = vsel %vm8672, %v9400, 0.0
        %v9452 = vadd.f32 %v9450, %v9451
        %v9453 = vrot.slane %v9452, 4
        %v9454 = vadd.f32 %v9452, %v9453
        %v9455 = vrot.slane %v9454, 2
        %v9456 = vadd.f32 %v9454, %v9455
        %v9457 = vrot.slane %v9456, 1
        %v9458 = vadd.f32 %v9456, %v9457
        %v9459 = vsel %vm8672, %v9401, 0.0
        %v9460 = vsel %vm8672, %v9402, 0.0
        %v9461 = vadd.f32 %v9459, %v9460
        %v9462 = vrot.slane %v9461, 4
        %v9463 = vadd.f32 %v9461, %v9462
        %v9464 = vrot.slane %v9463, 2
        %v9465 = vadd.f32 %v9463, %v9464
        %v9466 = vrot.slane %v9465, 1
        %v9467 = vadd.f32 %v9465, %v9466
        %v9468 = vsel %vm8672, %v9403, 0.0
        %v9469 = vsel %vm8672, %v9404, 0.0
        %v9470 = vadd.f32 %v9468, %v9469
        %v9471 = vrot.slane %v9470, 4
        %v9472 = vadd.f32 %v9470, %v9471
        %v9473 = vrot.slane %v9472, 2
        %v9474 = vadd.f32 %v9472, %v9473
        %v9475 = vrot.slane %v9474, 1
        %v9476 = vadd.f32 %v9474, %v9475
        %v9477 = vmul.f32 %v9307, %v5157
        %v9478 = vmul.f32 %v9311, %v5158
        %v9479 = vmul.f32 %v9318, %v5159
        %v9480 = vmul.f32 %v9322, %v5160
        %v9481 = vmul.f32 %v9329, %v5161
        %v9482 = vmul.f32 %v9333, %v5162
        %v9483 = vmul.f32 %v9340, %v5163
        %v9484 = vmul.f32 %v9344, %v5164
        %v9485 = vmul.f32 %v9351, %v5165
        %v9486 = vmul.f32 %v9355, %v5166
        %v9487 = vmul.f32 %v9362, %v5167
        %v9488 = vmul.f32 %v9366, %v5168
        %v9489 = vmul.f32 %v9373, %v5169
        %v9490 = vmul.f32 %v9377, %v5170
        %v9491 = vmul.f32 %v9384, %v5171
        %v9492 = vmul.f32 %v9388, %v5172
        %v9493 = vsel %vm8546, %v9477, 0.0
        %v9494 = vsel %vm8546, %v9478, 0.0
        %v9495 = vadd.f32 %v9493, %v9494
        %v9496 = vrot.slane %v9495, 4
        %v9497 = vadd.f32 %v9495, %v9496
        %v9498 = vrot.slane %v9497, 2
        %v9499 = vadd.f32 %v9497, %v9498
        %v9500 = vrot.slane %v9499, 1
        %v9501 = vadd.f32 %v9499, %v9500
        %v9502 = vsel %vm8546, %v9479, 0.0
        %v9503 = vsel %vm8546, %v9480, 0.0
        %v9504 = vadd.f32 %v9502, %v9503
        %v9505 = vrot.slane %v9504, 4
        %v9506 = vadd.f32 %v9504, %v9505
        %v9507 = vrot.slane %v9506, 2
        %v9508 = vadd.f32 %v9506, %v9507
        %v9509 = vrot.slane %v9508, 1
        %v9510 = vadd.f32 %v9508, %v9509
        %v9511 = vsel %vm8546, %v9481, 0.0
        %v9512 = vsel %vm8546, %v9482, 0.0
        %v9513 = vadd.f32 %v9511, %v9512
        %v9514 = vrot.slane %v9513, 4
        %v9515 = vadd.f32 %v9513, %v9514
        %v9516 = vrot.slane %v9515, 2
        %v9517 = vadd.f32 %v9515, %v9516
        %v9518 = vrot.slane %v9517, 1
        %v9519 = vadd.f32 %v9517, %v9518
        %v9520 = vsel %vm8546, %v9483, 0.0
        %v9521 = vsel %vm8546, %v9484, 0.0
        %v9522 = vadd.f32 %v9520, %v9521
        %v9523 = vrot.slane %v9522, 4
        %v9524 = vadd.f32 %v9522, %v9523
        %v9525 = vrot.slane %v9524, 2
        %v9526 = vadd.f32 %v9524, %v9525
        %v9527 = vrot.slane %v9526, 1
        %v9528 = vadd.f32 %v9526, %v9527
        %v9529 = vsel %vm8546, %v9485, 0.0
        %v9530 = vsel %vm8546, %v9486, 0.0
        %v9531 = vadd.f32 %v9529, %v9530
        %v9532 = vrot.slane %v9531, 4
        %v9533 = vadd.f32 %v9531, %v9532
        %v9534 = vrot.slane %v9533, 2
        %v9535 = vadd.f32 %v9533, %v9534
        %v9536 = vrot.slane %v9535, 1
        %v9537 = vadd.f32 %v9535, %v9536
        %v9538 = vsel %vm8546, %v9487, 0.0
        %v9539 = vsel %vm8546, %v9488, 0.0
        %v9540 = vadd.f32 %v9538, %v9539
        %v9541 = vrot.slane %v9540, 4
        %v9542 = vadd.f32 %v9540, %v9541
        %v9543 = vrot.slane %v9542, 2
        %v9544 = vadd.f32 %v9542, %v9543
        %v9545 = vrot.slane %v9544, 1
        %v9546 = vadd.f32 %v9544, %v9545
        %v9547 = vsel %vm8546, %v9489, 0.0
        %v9548 = vsel %vm8546, %v9490, 0.0
        %v9549 = vadd.f32 %v9547, %v9548
        %v9550 = vrot.slane %v9549, 4
        %v9551 = vadd.f32 %v9549, %v9550
        %v9552 = vrot.slane %v9551, 2
        %v9553 = vadd.f32 %v9551, %v9552
        %v9554 = vrot.slane %v9553, 1
        %v9555 = vadd.f32 %v9553, %v9554
        %v9556 = vsel %vm8546, %v9491, 0.0
        %v9557 = vsel %vm8546, %v9492, 0.0
        %v9558 = vadd.f32 %v9556, %v9557
        %v9559 = vrot.slane %v9558, 4
        %v9560 = vadd.f32 %v9558, %v9559
        %v9561 = vrot.slane %v9560, 2
        %v9562 = vadd.f32 %v9560, %v9561
        %v9563 = vrot.slane %v9562, 1
        %v9564 = vadd.f32 %v9562, %v9563
        %v9565 = vmul.f32 %v9307, %v8501
        %v9566 = vmul.f32 %v9311, %v8502
        %v9567 = vmul.f32 %v9318, %v8503
        %v9568 = vmul.f32 %v9322, %v8504
        %v9569 = vmul.f32 %v9329, %v8505
        %v9570 = vmul.f32 %v9333, %v8506
        %v9571 = vmul.f32 %v9340, %v8507
        %v9572 = vmul.f32 %v9344, %v8508
        %v9573 = vmul.f32 %v9351, %v8509
        %v9574 = vmul.f32 %v9355, %v8510
        %v9575 = vmul.f32 %v9362, %v8511
        %v9576 = vmul.f32 %v9366, %v8512
        %v9577 = vmul.f32 %v9373, %v8513
        %v9578 = vmul.f32 %v9377, %v8514
        %v9579 = vmul.f32 %v9384, %v8515
        %v9580 = vmul.f32 %v9388, %v8516
        %v9581 = vsel %vm8546, %v9565, 0.0
        %v9582 = vsel %vm8546, %v9566, 0.0
        %v9583 = vadd.f32 %v9581, %v9582
        %v9584 = vrot.slane %v9583, 4
        %v9585 = vadd.f32 %v9583, %v9584
        %v9586 = vrot.slane %v9585, 2
        %v9587 = vadd.f32 %v9585, %v9586
        %v9588 = vrot.slane %v9587, 1
        %v9589 = vadd.f32 %v9587, %v9588
        %v9590 = vsel %vm8546, %v9567, 0.0
        %v9591 = vsel %vm8546, %v9568, 0.0
        %v9592 = vadd.f32 %v9590, %v9591
        %v9593 = vrot.slane %v9592, 4
        %v9594 = vadd.f32 %v9592, %v9593
        %v9595 = vrot.slane %v9594, 2
        %v9596 = vadd.f32 %v9594, %v9595
        %v9597 = vrot.slane %v9596, 1
        %v9598 = vadd.f32 %v9596, %v9597
        %v9599 = vsel %vm8546, %v9569, 0.0
        %v9600 = vsel %vm8546, %v9570, 0.0
        %v9601 = vadd.f32 %v9599, %v9600
        %v9602 = vrot.slane %v9601, 4
        %v9603 = vadd.f32 %v9601, %v9602
        %v9604 = vrot.slane %v9603, 2
        %v9605 = vadd.f32 %v9603, %v9604
        %v9606 = vrot.slane %v9605, 1
        %v9607 = vadd.f32 %v9605, %v9606
        %v9608 = vsel %vm8546, %v9571, 0.0
        %v9609 = vsel %vm8546, %v9572, 0.0
        %v9610 = vadd.f32 %v9608, %v9609
        %v9611 = vrot.slane %v9610, 4
        %v9612 = vadd.f32 %v9610, %v9611
        %v9613 = vrot.slane %v9612, 2
        %v9614 = vadd.f32 %v9612, %v9613
        %v9615 = vrot.slane %v9614, 1
        %v9616 = vadd.f32 %v9614, %v9615
        %v9617 = vsel %vm8546, %v9573, 0.0
        %v9618 = vsel %vm8546, %v9574, 0.0
        %v9619 = vadd.f32 %v9617, %v9618
        %v9620 = vrot.slane %v9619, 4
        %v9621 = vadd.f32 %v9619, %v9620
        %v9622 = vrot.slane %v9621, 2
        %v9623 = vadd.f32 %v9621, %v9622
        %v9624 = vrot.slane %v9623, 1
        %v9625 = vadd.f32 %v9623, %v9624
        %v9626 = vsel %vm8546, %v9575, 0.0
        %v9627 = vsel %vm8546, %v9576, 0.0
        %v9628 = vadd.f32 %v9626, %v9627
        %v9629 = vrot.slane %v9628, 4
        %v9630 = vadd.f32 %v9628, %v9629
        %v9631 = vrot.slane %v9630, 2
        %v9632 = vadd.f32 %v9630, %v9631
        %v9633 = vrot.slane %v9632, 1
        %v9634 = vadd.f32 %v9632, %v9633
        %v9635 = vsel %vm8546, %v9577, 0.0
        %v9636 = vsel %vm8546, %v9578, 0.0
        %v9637 = vadd.f32 %v9635, %v9636
        %v9638 = vrot.slane %v9637, 4
        %v9639 = vadd.f32 %v9637, %v9638
        %v9640 = vrot.slane %v9639, 2
        %v9641 = vadd.f32 %v9639, %v9640
        %v9642 = vrot.slane %v9641, 1
        %v9643 = vadd.f32 %v9641, %v9642
        %v9644 = vsel %vm8546, %v9579, 0.0
        %v9645 = vsel %vm8546, %v9580, 0.0
        %v9646 = vadd.f32 %v9644, %v9645
        %v9647 = vrot.slane %v9646, 4
        %v9648 = vadd.f32 %v9646, %v9647
        %v9649 = vrot.slane %v9648, 2
        %v9650 = vadd.f32 %v9648, %v9649
        %v9651 = vrot.slane %v9650, 1
        %v9652 = vadd.f32 %v9650, %v9651
        %v9653 = vld [vmem:[%s12] sm:$0x7]
        %v9654 = vld [vmem:[%s12 + $0x3] sm:$0xf]
        %v9663 = vsel %vm9270, %v9510, %v9501
        %v9664 = vsel %vm9272, %v9519, %v9663
        %v9665 = vsel %vm9274, %v9528, %v9664
        %v9666 = vsel %vm9276, %v9537, %v9665
        %v9667 = vsel %vm9278, %v9546, %v9666
        %v9668 = vsel %vm9280, %v9555, %v9667
        %v9669 = vsel %vm9282, %v9564, %v9668
        %v9670 = vsel %vm8546, %v9669, 0
        %vm9672 = vcmask 1043456
        %v9674 = vsel %vm9672, %v9654, 0
        %9676 = vmatprep.subr.mxu0 0.0
        %9677 = vmatpush1.msra.mxu0 0.0
        %9678 = vmatprep.subr.mxu0 0.0
        %9679 = vmatpush1.msra.mxu0 0.0
        %9680 = vmatprep.subr.mxu0 0.0
        %9681 = vmatpush1.msra.mxu0 0.0
        %9682 = vmatprep.subr.mxu0 0.0
        %9683 = vmatpush1.msra.mxu0 0.0
        %9684 = vmatprep.subr.mxu0 0.0
        %9685 = vmatpush1.msra.mxu0 0.0
        %9686 = vmatprep.subr.mxu0 0.0
        %9687 = vmatpush1.msra.mxu0 0.0
        %9688 = vmatprep.subr.mxu0 0.0
        %9689 = vmatpush1.msra.mxu0 0.0
        %9690 = vmatprep.subr.mxu0 0.0
        %9691 = vmatpush1.msra.mxu0 0.0
        %9692 = vmatprep.subr.mxu0 0.0
        %9693 = vmatpush1.msra.mxu0 0.0
        %9694 = vmatprep.subr.mxu0 0.0
        %9695 = vmatpush1.msra.mxu0 0.0
        %9696 = vmatprep.subr.mxu0 0.0
        %9697 = vmatpush1.msra.mxu0 0.0
        %9698 = vmatprep.subr.mxu0 0.0
        %9699 = vmatpush1.msra.mxu0 0.0
        %9700 = vmatprep.subr.mxu0 0.0
        %9701 = vmatpush1.msra.mxu0 0.0
        %9702 = vmatprep.subr.mxu0 0.0
        %9703 = vmatpush1.msra.mxu0 0.0
        %9704 = vmatprep.subr.mxu0 0.0
        %9705 = vmatpush1.msra.mxu0 0.0
        %9706 = vmatprep.subr.mxu0 0.0
        %9707 = vmatpush1.msra.mxu0 %v9674
        %9708 = vmatprep.subr.mxu0 0.0
        %9709 = vmatpush2.msra.mxu0 0.0
        %9710 = vmatprep.subr.mxu0 0.0
        %9711 = vmatpush2.msra.mxu0 0.0
        %9712 = vmatprep.subr.mxu0 0.0
        %9713 = vmatpush2.msra.mxu0 0.0
        %9714 = vmatprep.subr.mxu0 0.0
        %9715 = vmatpush2.msra.mxu0 0.0
        %9716 = vmatprep.subr.mxu0 0.0
        %9717 = vmatpush2.msra.mxu0 0.0
        %9718 = vmatprep.subr.mxu0 0.0
        %9719 = vmatpush2.msra.mxu0 0.0
        %9720 = vmatprep.subr.mxu0 0.0
        %9721 = vmatpush2.msra.mxu0 0.0
        %9722 = vmatprep.subr.mxu0 0.0
        %9723 = vmatpush2.msra.mxu0 0.0
        %9724 = vmatprep.subr.mxu0 0.0
        %9725 = vmatpush2.msra.mxu0 0.0
        %9726 = vmatprep.subr.mxu0 0.0
        %9727 = vmatpush2.msra.mxu0 0.0
        %9728 = vmatprep.subr.mxu0 0.0
        %9729 = vmatpush2.msra.mxu0 0.0
        %9730 = vmatprep.subr.mxu0 0.0
        %9731 = vmatpush2.msra.mxu0 0.0
        %9732 = vmatprep.subr.mxu0 0.0
        %9733 = vmatpush2.msra.mxu0 0.0
        %9734 = vmatprep.subr.mxu0 0.0
        %9735 = vmatpush2.msra.mxu0 0.0
        %9736 = vmatprep.subr.mxu0 0.0
        %9737 = vmatpush2.msra.mxu0 0.0
        %9738 = vmatprep.subr.mxu0 0.0
        %9739 = vmatpush2.msra.mxu0 0.0
        %9740 = vmatprep.mubr.f32.mxu0 0.0
        %9741 = vmatmul.mubr.f32.gmra.mxu0 %v9670
        %v9742 = vpop.f32.mrf.mxu0
        %v9743 = vadd.f32 0.0, %v9742
        %v9744 = vpop.f32.mrf.mxu0
        %9745 = vdwg.mxu0
        %v9754 = vsel %vm9270, %v9422, %v9413
        %v9755 = vsel %vm9272, %v9431, %v9754
        %v9756 = vsel %vm9274, %v9440, %v9755
        %v9757 = vsel %vm9276, %v9449, %v9756
        %v9758 = vsel %vm9278, %v9458, %v9757
        %v9759 = vsel %vm9280, %v9467, %v9758
        %v9760 = vsel %vm9282, %v9476, %v9759
        %v9761 = vsel %vm8672, %v9760, 0
        %vm9763 = vcmask 1042432
        %v9765 = vsel %vm9763, %v9653, 0
        %9767 = vmatprep.subr.mxu0 0.0
        %9768 = vmatpush1.msra.mxu0 0.0
        %9769 = vmatprep.subr.mxu0 0.0
        %9770 = vmatpush1.msra.mxu0 0.0
        %9771 = vmatprep.subr.mxu0 0.0
        %9772 = vmatpush1.msra.mxu0 0.0
        %9773 = vmatprep.subr.mxu0 0.0
        %9774 = vmatpush1.msra.mxu0 0.0
        %9775 = vmatprep.subr.mxu0 0.0
        %9776 = vmatpush1.msra.mxu0 0.0
        %9777 = vmatprep.subr.mxu0 0.0
        %9778 = vmatpush1.msra.mxu0 0.0
        %9779 = vmatprep.subr.mxu0 0.0
        %9780 = vmatpush1.msra.mxu0 0.0
        %9781 = vmatprep.subr.mxu0 0.0
        %9782 = vmatpush1.msra.mxu0 0.0
        %9783 = vmatprep.subr.mxu0 0.0
        %9784 = vmatpush1.msra.mxu0 0.0
        %9785 = vmatprep.subr.mxu0 0.0
        %9786 = vmatpush1.msra.mxu0 0.0
        %9787 = vmatprep.subr.mxu0 0.0
        %9788 = vmatpush1.msra.mxu0 0.0
        %9789 = vmatprep.subr.mxu0 0.0
        %9790 = vmatpush1.msra.mxu0 0.0
        %9791 = vmatprep.subr.mxu0 0.0
        %9792 = vmatpush1.msra.mxu0 0.0
        %9793 = vmatprep.subr.mxu0 0.0
        %9794 = vmatpush1.msra.mxu0 0.0
        %9795 = vmatprep.subr.mxu0 0.0
        %9796 = vmatpush1.msra.mxu0 0.0
        %9797 = vmatprep.subr.mxu0 0.0
        %9798 = vmatpush1.msra.mxu0 %v9765
        %9799 = vmatprep.subr.mxu0 0.0
        %9800 = vmatpush2.msra.mxu0 0.0
        %9801 = vmatprep.subr.mxu0 0.0
        %9802 = vmatpush2.msra.mxu0 0.0
        %9803 = vmatprep.subr.mxu0 0.0
        %9804 = vmatpush2.msra.mxu0 0.0
        %9805 = vmatprep.subr.mxu0 0.0
        %9806 = vmatpush2.msra.mxu0 0.0
        %9807 = vmatprep.subr.mxu0 0.0
        %9808 = vmatpush2.msra.mxu0 0.0
        %9809 = vmatprep.subr.mxu0 0.0
        %9810 = vmatpush2.msra.mxu0 0.0
        %9811 = vmatprep.subr.mxu0 0.0
        %9812 = vmatpush2.msra.mxu0 0.0
        %9813 = vmatprep.subr.mxu0 0.0
        %9814 = vmatpush2.msra.mxu0 0.0
        %9815 = vmatprep.subr.mxu0 0.0
        %9816 = vmatpush2.msra.mxu0 0.0
        %9817 = vmatprep.subr.mxu0 0.0
        %9818 = vmatpush2.msra.mxu0 0.0
        %9819 = vmatprep.subr.mxu0 0.0
        %9820 = vmatpush2.msra.mxu0 0.0
        %9821 = vmatprep.subr.mxu0 0.0
        %9822 = vmatpush2.msra.mxu0 0.0
        %9823 = vmatprep.subr.mxu0 0.0
        %9824 = vmatpush2.msra.mxu0 0.0
        %9825 = vmatprep.subr.mxu0 0.0
        %9826 = vmatpush2.msra.mxu0 0.0
        %9827 = vmatprep.subr.mxu0 0.0
        %9828 = vmatpush2.msra.mxu0 0.0
        %9829 = vmatprep.subr.mxu0 0.0
        %9830 = vmatpush2.msra.mxu0 0.0
        %9831 = vmatprep.mubr.f32.mxu0 0.0
        %9832 = vmatmul.mubr.f32.gmra.mxu0 %v9761
        %v9833 = vpop.f32.mrf.mxu0
        %v9834 = vadd.f32 %v9743, %v9833
        %v9835 = vpop.f32.mrf.mxu0
        %9836 = vdwg.mxu0
        %v9837 = vld [vmem:[%s12 + $0x7] sm:$0xf]
        %v9846 = vsel %vm9270, %v9598, %v9589
        %v9847 = vsel %vm9272, %v9607, %v9846
        %v9848 = vsel %vm9274, %v9616, %v9847
        %v9849 = vsel %vm9276, %v9625, %v9848
        %v9850 = vsel %vm9278, %v9634, %v9849
        %v9851 = vsel %vm9280, %v9643, %v9850
        %v9852 = vsel %vm9282, %v9652, %v9851
        %v9853 = vsel %vm8546, %v9852, 0
        %v9856 = vsel %vm9672, %v9837, 0
        %9858 = vmatprep.subr.mxu0 0.0
        %9859 = vmatpush1.msra.mxu0 0.0
        %9860 = vmatprep.subr.mxu0 0.0
        %9861 = vmatpush1.msra.mxu0 0.0
        %9862 = vmatprep.subr.mxu0 0.0
        %9863 = vmatpush1.msra.mxu0 0.0
        %9864 = vmatprep.subr.mxu0 0.0
        %9865 = vmatpush1.msra.mxu0 0.0
        %9866 = vmatprep.subr.mxu0 0.0
        %9867 = vmatpush1.msra.mxu0 0.0
        %9868 = vmatprep.subr.mxu0 0.0
        %9869 = vmatpush1.msra.mxu0 0.0
        %9870 = vmatprep.subr.mxu0 0.0
        %9871 = vmatpush1.msra.mxu0 0.0
        %9872 = vmatprep.subr.mxu0 0.0
        %9873 = vmatpush1.msra.mxu0 0.0
        %9874 = vmatprep.subr.mxu0 0.0
        %9875 = vmatpush1.msra.mxu0 0.0
        %9876 = vmatprep.subr.mxu0 0.0
        %9877 = vmatpush1.msra.mxu0 0.0
        %9878 = vmatprep.subr.mxu0 0.0
        %9879 = vmatpush1.msra.mxu0 0.0
        %9880 = vmatprep.subr.mxu0 0.0
        %9881 = vmatpush1.msra.mxu0 0.0
        %9882 = vmatprep.subr.mxu0 0.0
        %9883 = vmatpush1.msra.mxu0 0.0
        %9884 = vmatprep.subr.mxu0 0.0
        %9885 = vmatpush1.msra.mxu0 0.0
        %9886 = vmatprep.subr.mxu0 0.0
        %9887 = vmatpush1.msra.mxu0 0.0
        %9888 = vmatprep.subr.mxu0 0.0
        %9889 = vmatpush1.msra.mxu0 %v9856
        %9890 = vmatprep.subr.mxu0 0.0
        %9891 = vmatpush2.msra.mxu0 0.0
        %9892 = vmatprep.subr.mxu0 0.0
        %9893 = vmatpush2.msra.mxu0 0.0
        %9894 = vmatprep.subr.mxu0 0.0
        %9895 = vmatpush2.msra.mxu0 0.0
        %9896 = vmatprep.subr.mxu0 0.0
        %9897 = vmatpush2.msra.mxu0 0.0
        %9898 = vmatprep.subr.mxu0 0.0
        %9899 = vmatpush2.msra.mxu0 0.0
        %9900 = vmatprep.subr.mxu0 0.0
        %9901 = vmatpush2.msra.mxu0 0.0
        %9902 = vmatprep.subr.mxu0 0.0
        %9903 = vmatpush2.msra.mxu0 0.0
        %9904 = vmatprep.subr.mxu0 0.0
        %9905 = vmatpush2.msra.mxu0 0.0
        %9906 = vmatprep.subr.mxu0 0.0
        %9907 = vmatpush2.msra.mxu0 0.0
        %9908 = vmatprep.subr.mxu0 0.0
        %9909 = vmatpush2.msra.mxu0 0.0
        %9910 = vmatprep.subr.mxu0 0.0
        %9911 = vmatpush2.msra.mxu0 0.0
        %9912 = vmatprep.subr.mxu0 0.0
        %9913 = vmatpush2.msra.mxu0 0.0
        %9914 = vmatprep.subr.mxu0 0.0
        %9915 = vmatpush2.msra.mxu0 0.0
        %9916 = vmatprep.subr.mxu0 0.0
        %9917 = vmatpush2.msra.mxu0 0.0
        %9918 = vmatprep.subr.mxu0 0.0
        %9919 = vmatpush2.msra.mxu0 0.0
        %9920 = vmatprep.subr.mxu0 0.0
        %9921 = vmatpush2.msra.mxu0 0.0
        %9922 = vmatprep.mubr.f32.mxu0 0.0
        %9923 = vmatmul.mubr.f32.gmra.mxu0 %v9853
        %v9924 = vpop.f32.mrf.mxu0
        %v9925 = vadd.f32 0.0, %v9924
        %v9926 = vpop.f32.mrf.mxu0
        %9927 = vdwg.mxu0
        %v9928 = vadd.f32 %v9834, %v9925
        %v9931 = vunpack.c.l.b16 %v9299
        %v9932 = vunpack.c.l.b16 %v9300
        %v9933 = vpack.c.b16 %v9932, %v9931
        %v9936 = vsel %vm9286, %v9298, 0
        %9938 = vmatprep.subr.bf16.mxu0 0
        %9939 = vmatpush1.bf16.msra.mxu0 0
        %9940 = vmatprep.subr.bf16.mxu0 0
        %9941 = vmatpush1.bf16.msra.mxu0 0
        %9942 = vmatprep.subr.bf16.mxu0 0
        %9943 = vmatpush1.bf16.msra.mxu0 0
        %9944 = vmatprep.subr.bf16.mxu0 0
        %9945 = vmatpush1.bf16.msra.mxu0 0
        %9946 = vmatprep.subr.bf16.mxu0 0
        %9947 = vmatpush1.bf16.msra.mxu0 0
        %9948 = vmatprep.subr.bf16.mxu0 0
        %9949 = vmatpush1.bf16.msra.mxu0 0
        %9950 = vmatprep.subr.bf16.mxu0 0
        %9951 = vmatpush1.bf16.msra.mxu0 0
        %9952 = vmatprep.subr.bf16.mxu0 0
        %9953 = vmatpush1.bf16.msra.mxu0 %v9933
        %9954 = vmatprep.subr.bf16.mxu0 0
        %9955 = vmatpush2.bf16.msra.mxu0 0
        %9956 = vmatprep.subr.bf16.mxu0 0
        %9957 = vmatpush2.bf16.msra.mxu0 0
        %9958 = vmatprep.subr.bf16.mxu0 0
        %9959 = vmatpush2.bf16.msra.mxu0 0
        %9960 = vmatprep.subr.bf16.mxu0 0
        %9961 = vmatpush2.bf16.msra.mxu0 0
        %9962 = vmatprep.subr.bf16.mxu0 0
        %9963 = vmatpush2.bf16.msra.mxu0 0
        %9964 = vmatprep.subr.bf16.mxu0 0
        %9965 = vmatpush2.bf16.msra.mxu0 0
        %9966 = vmatprep.subr.bf16.mxu0 0
        %9967 = vmatpush2.bf16.msra.mxu0 0
        %9968 = vmatprep.subr.bf16.mxu0 0
        %9969 = vmatpush2.bf16.msra.mxu0 0
        %9970 = vmatprep.mubr.bf16.mxu0 0
        %9971 = vmatmul.mubr.bf16.gmra.mxu0 %v9936
        %v9972 = vpop.f32.mrf.mxu0
        %v9973 = vadd.f32 %v9928, %v9972
        %v9974 = vpop.f32.mrf.mxu0
        %v9975 = vpop.f32.mrf.mxu0
        %v9976 = vpop.f32.mrf.mxu0
        %9977 = vdwg.mxu0
        %v9978 = vld [vmem:[%s13] sm:$0x1]
        %v9980 = vlaneseq
        %v9981 = vshrl.u32 %v9980, 7
        %v9982 = vsub.s32 0, %v9981
        %v9983 = vrot.slane %v9978, %v9982
        %v9985 = vadd.f32 %v9973, %v9983
        %v9986 = vmax.f32 %v9985, 0.0
        %v9987 = vld [vmem:[%s14] sm:$0xff]
        %v9988 = vld [vmem:[%s14 + $0x8] sm:$0xff]
        %v9989 = vld [vmem:[%s14 + $0x10] sm:$0xff]
        %v9990 = vld [vmem:[%s14 + $0x18] sm:$0xff]
        %v9991 = vld [vmem:[%s15] sm:$0x1]
        %v9993 = vlaneseq
        %v9994 = vshrl.u32 %v9993, 7
        %v9995 = vsub.s32 0, %v9994
        %v9996 = vrot.slane %v9991, %v9995
        %v9999 = vsel %vm9127, %v9986, 0
        %10001 = vmatprep.subr.mxu0 0.0
        %10002 = vmatpush1.msra.mxu0 0.0
        %10003 = vmatprep.subr.mxu0 0.0
        %10004 = vmatpush1.msra.mxu0 0.0
        %10005 = vmatprep.subr.mxu0 0.0
        %10006 = vmatpush1.msra.mxu0 0.0
        %10007 = vmatprep.subr.mxu0 0.0
        %10008 = vmatpush1.msra.mxu0 0.0
        %10009 = vmatprep.subr.mxu0 0.0
        %10010 = vmatpush1.msra.mxu0 0.0
        %10011 = vmatprep.subr.mxu0 0.0
        %10012 = vmatpush1.msra.mxu0 0.0
        %10013 = vmatprep.subr.mxu0 0.0
        %10014 = vmatpush1.msra.mxu0 0.0
        %10015 = vmatprep.subr.mxu0 0.0
        %10016 = vmatpush1.msra.mxu0 0.0
        %10017 = vmatprep.subr.mxu0 0.0
        %10018 = vmatpush1.msra.mxu0 0.0
        %10019 = vmatprep.subr.mxu0 0.0
        %10020 = vmatpush1.msra.mxu0 0.0
        %10021 = vmatprep.subr.mxu0 0.0
        %10022 = vmatpush1.msra.mxu0 0.0
        %10023 = vmatprep.subr.mxu0 0.0
        %10024 = vmatpush1.msra.mxu0 0.0
        %10025 = vmatprep.subr.mxu0 0.0
        %10026 = vmatpush1.msra.mxu0 %v9990
        %10027 = vmatprep.subr.mxu0 0.0
        %10028 = vmatpush1.msra.mxu0 %v9989
        %10029 = vmatprep.subr.mxu0 0.0
        %10030 = vmatpush1.msra.mxu0 %v9988
        %10031 = vmatprep.subr.mxu0 0.0
        %10032 = vmatpush1.msra.mxu0 %v9987
        %10033 = vmatprep.subr.mxu0 0.0
        %10034 = vmatpush2.msra.mxu0 0.0
        %10035 = vmatprep.subr.mxu0 0.0
        %10036 = vmatpush2.msra.mxu0 0.0
        %10037 = vmatprep.subr.mxu0 0.0
        %10038 = vmatpush2.msra.mxu0 0.0
        %10039 = vmatprep.subr.mxu0 0.0
        %10040 = vmatpush2.msra.mxu0 0.0
        %10041 = vmatprep.subr.mxu0 0.0
        %10042 = vmatpush2.msra.mxu0 0.0
        %10043 = vmatprep.subr.mxu0 0.0
        %10044 = vmatpush2.msra.mxu0 0.0
        %10045 = vmatprep.subr.mxu0 0.0
        %10046 = vmatpush2.msra.mxu0 0.0
        %10047 = vmatprep.subr.mxu0 0.0
        %10048 = vmatpush2.msra.mxu0 0.0
        %10049 = vmatprep.subr.mxu0 0.0
        %10050 = vmatpush2.msra.mxu0 0.0
        %10051 = vmatprep.subr.mxu0 0.0
        %10052 = vmatpush2.msra.mxu0 0.0
        %10053 = vmatprep.subr.mxu0 0.0
        %10054 = vmatpush2.msra.mxu0 0.0
        %10055 = vmatprep.subr.mxu0 0.0
        %10056 = vmatpush2.msra.mxu0 0.0
        %10057 = vmatprep.subr.mxu0 0.0
        %10058 = vmatpush2.msra.mxu0 0.0
        %10059 = vmatprep.subr.mxu0 0.0
        %10060 = vmatpush2.msra.mxu0 0.0
        %10061 = vmatprep.subr.mxu0 0.0
        %10062 = vmatpush2.msra.mxu0 0.0
        %10063 = vmatprep.subr.mxu0 0.0
        %10064 = vmatpush2.msra.mxu0 0.0
        %10065 = vmatprep.mubr.f32.mxu0 0.0
        %10066 = vmatmul.mubr.f32.gmra.mxu0 %v9999
        %v10067 = vpop.f32.mrf.mxu0
        %v10068 = vadd.f32 %v9996, %v10067
        %v10069 = vpop.f32.mrf.mxu0
        %10070 = vdwg.mxu0
        %v10071 = vmax.f32 %v10068, 0.0
        %v10072 = vld [vmem:[%s16] sm:$0xff]
        %v10073 = vld [vmem:[%s16 + $0x8] sm:$0xff]
        %v10074 = vld [vmem:[%s16 + $0x10] sm:$0xff]
        %v10075 = vld [vmem:[%s16 + $0x18] sm:$0xff]
        %v10076 = vld [vmem:[%s17] sm:$0x1]
        %v10078 = vlaneseq
        %v10079 = vshrl.u32 %v10078, 7
        %v10080 = vsub.s32 0, %v10079
        %v10081 = vrot.slane %v10076, %v10080
        %v10084 = vsel %vm9127, %v10071, 0
        %10086 = vmatprep.subr.mxu0 0.0
        %10087 = vmatpush1.msra.mxu0 0.0
        %10088 = vmatprep.subr.mxu0 0.0
        %10089 = vmatpush1.msra.mxu0 0.0
        %10090 = vmatprep.subr.mxu0 0.0
        %10091 = vmatpush1.msra.mxu0 0.0
        %10092 = vmatprep.subr.mxu0 0.0
        %10093 = vmatpush1.msra.mxu0 0.0
        %10094 = vmatprep.subr.mxu0 0.0
        %10095 = vmatpush1.msra.mxu0 0.0
        %10096 = vmatprep.subr.mxu0 0.0
        %10097 = vmatpush1.msra.mxu0 0.0
        %10098 = vmatprep.subr.mxu0 0.0
        %10099 = vmatpush1.msra.mxu0 0.0
        %10100 = vmatprep.subr.mxu0 0.0
        %10101 = vmatpush1.msra.mxu0 0.0
        %10102 = vmatprep.subr.mxu0 0.0
        %10103 = vmatpush1.msra.mxu0 0.0
        %10104 = vmatprep.subr.mxu0 0.0
        %10105 = vmatpush1.msra.mxu0 0.0
        %10106 = vmatprep.subr.mxu0 0.0
        %10107 = vmatpush1.msra.mxu0 0.0
        %10108 = vmatprep.subr.mxu0 0.0
        %10109 = vmatpush1.msra.mxu0 0.0
        %10110 = vmatprep.subr.mxu0 0.0
        %10111 = vmatpush1.msra.mxu0 %v10075
        %10112 = vmatprep.subr.mxu0 0.0
        %10113 = vmatpush1.msra.mxu0 %v10074
        %10114 = vmatprep.subr.mxu0 0.0
        %10115 = vmatpush1.msra.mxu0 %v10073
        %10116 = vmatprep.subr.mxu0 0.0
        %10117 = vmatpush1.msra.mxu0 %v10072
        %10118 = vmatprep.subr.mxu0 0.0
        %10119 = vmatpush2.msra.mxu0 0.0
        %10120 = vmatprep.subr.mxu0 0.0
        %10121 = vmatpush2.msra.mxu0 0.0
        %10122 = vmatprep.subr.mxu0 0.0
        %10123 = vmatpush2.msra.mxu0 0.0
        %10124 = vmatprep.subr.mxu0 0.0
        %10125 = vmatpush2.msra.mxu0 0.0
        %10126 = vmatprep.subr.mxu0 0.0
        %10127 = vmatpush2.msra.mxu0 0.0
        %10128 = vmatprep.subr.mxu0 0.0
        %10129 = vmatpush2.msra.mxu0 0.0
        %10130 = vmatprep.subr.mxu0 0.0
        %10131 = vmatpush2.msra.mxu0 0.0
        %10132 = vmatprep.subr.mxu0 0.0
        %10133 = vmatpush2.msra.mxu0 0.0
        %10134 = vmatprep.subr.mxu0 0.0
        %10135 = vmatpush2.msra.mxu0 0.0
        %10136 = vmatprep.subr.mxu0 0.0
        %10137 = vmatpush2.msra.mxu0 0.0
        %10138 = vmatprep.subr.mxu0 0.0
        %10139 = vmatpush2.msra.mxu0 0.0
        %10140 = vmatprep.subr.mxu0 0.0
        %10141 = vmatpush2.msra.mxu0 0.0
        %10142 = vmatprep.subr.mxu0 0.0
        %10143 = vmatpush2.msra.mxu0 0.0
        %10144 = vmatprep.subr.mxu0 0.0
        %10145 = vmatpush2.msra.mxu0 0.0
        %10146 = vmatprep.subr.mxu0 0.0
        %10147 = vmatpush2.msra.mxu0 0.0
        %10148 = vmatprep.subr.mxu0 0.0
        %10149 = vmatpush2.msra.mxu0 0.0
        %10150 = vmatprep.mubr.f32.mxu0 0.0
        %10151 = vmatmul.mubr.f32.gmra.mxu0 %v10084
        %v10152 = vpop.f32.mrf.mxu0
        %v10153 = vadd.f32 %v10081, %v10152
        %v10154 = vpop.f32.mrf.mxu0
        %10155 = vdwg.mxu0
        %v10156 = vmax.f32 %v10153, 0.0
        %10157 = vst.msk [vmem:[%s615] sm:$0xff] %vm9127, %v10156
        %s10158 = sand.u32 %s438, 1
        %s10159 = scalar_lea.sflag [#allocation3], %s10158
        %s10160 = sand.u32 %s438, 1
        %s10161 = smul.addr %s10160, 8
        %s10162 = scalar_lea.vmem [#allocation2], %s10161
        // Predicated region
        $region93: #{tpu_custom_call.1} parent=91 // pred_check
          %p10163 = pneg %p448
        $region94: #{tpu_custom_call.1} parent=91 // pred_check_branch
          %10165 = sbr.rel (%p10163) target = $region96
        $region95: #{tpu_custom_call.1} parent=91 // pred_region
          %s10167 = ssub.s32 128, 128
          %10168 = vsyncadd %s10159, %s10167
          %s10169 = smul.addr %s32, 128
          %s10170 = scalar_lea.hbm %s18, %s10169
          %s10172 = sshll.u32 %s10162, 4
          %s10173 = int_to_ptr.vmem [resolvable:$true] %s10172
          %10175 = dma.vmem_to_hbm [thread:$0]  %s10173, 128, %s10170, %s10159
        $region96: #{tpu_custom_call.1} parent=91 // pred_fallthru
          _
      $region92: #{tpu_custom_call.1} parent=5 // pred_fallthru
        _
      %p10176 = scmp.le.s32.totalorder 2, %s27
      // Predicated region
      $region97: #{tpu_custom_call.1} parent=5 // pred_check
        %p10177 = pneg %p10176
      $region98: #{tpu_custom_call.1} parent=5 // pred_check_branch
        %10179 = sbr.rel (%p10177) target = $region100
      $region99: #{tpu_custom_call.1} parent=5 // pred_region
        %s10180 = ssub.s32 %s27, 2
        // Predicated region
        $region101: #{tpu_custom_call.1} parent=99 // pred_check
          %p10181 = pneg %p454
        $region102: #{tpu_custom_call.1} parent=99 // pred_check_branch
          %10183 = sbr.rel (%p10181) target = $region104
        $region103: #{tpu_custom_call.1} parent=99 // pred_region
          %s10184 = sand.u32 %s439, 1
          %s10185 = scalar_lea.sflag [#allocation3], %s10184
          %s10186 = sand.u32 %s439, 1
          %s10187 = smul.addr %s10186, 8
          %s10188 = scalar_lea.vmem [#allocation2], %s10187
          %10189 = dma.done %s10185, 128
        $region104: #{tpu_custom_call.1} parent=99 // pred_fallthru
          _
      $region100: #{tpu_custom_call.1} parent=5 // pred_fallthru
        _
    $region6: #{tpu_custom_call.1} parent=1 // loop_footer
      %s31 = sadd.s32 1, %s27
    $region7: #{tpu_custom_call.1} parent=1 // loop_footer_branch
      %26 = sbr.rel target = $region3
    $region8: #{tpu_custom_call.1} parent=1 // loop_exit
      _
    %10190 = vsyncpa [#allocation3], 1
    %s10191 = scalar_lea.sflag [#allocation3], 1
    %10192 = vsyncpa %s10191, 1

</llo_original>
